<compile_context>
chip_gen: v6e
topology: v6e:2x2x1
jax: 0.10.0
libtpu: 0.0.40
codegen_flags: <defaults>
</compile_context>

<pallas_src>
import functools

import jax
import jax.numpy as jnp
from jax.experimental import pallas as pl
from jax.experimental.pallas import tpu as pltpu


_BUCKETS = (128, 256, 512, 1024)   # padded output widths of the weight slabs
_OUT_SUBLANES = 8                  # output block sublane count (tiling rule)


def _bucket_width(out_features):
    for b in _BUCKETS:
        if out_features <= b:
            return b
    # TODO(synk): if num_h is scaled up (e.g. 4096-wide hidden layers), tile the
    # big layers over K/N with a BlockSpec grid instead of VMEM-resident slabs.
    raise ValueError(f"layer width {out_features} > {_BUCKETS[-1]}: needs K/N tiling")


def _mlp_fused_kernel(x_ref, w128_ref, w256_ref, w512_ref, w1024_ref, b_ref,
                      out_ref, *, meta):
    """Fused 13-layer MLP for one stacked input:
         y = mean_batch(L12(relu(L11(... relu(L0(x)) ...))))

    meta[i] = (bucket_width, row_offset, bias_offset, fan_in, fan_out).
    Layer i's weight is rows [row_offset, row_offset+fan_in) of the bf16 slab of
    width bucket_width (columns >= fan_out are zero); its bias is the f32 lane
    window [bias_offset, bias_offset+bucket_width) of the flat bias row.
    1/batch is pre-folded into the last layer's params, so the epilogue is a
    plain sublane sum.
    """
    slabs = {128: w128_ref, 256: w256_ref, 512: w512_ref, 1024: w1024_ref}
    n_layers = len(meta)

    h = x_ref[0].astype(jnp.bfloat16)                      # (batch, num_i) bf16
    out = None
    for i, (bw, roff, boff, fan_in, fan_out) in enumerate(meta):
        w = slabs[bw][roff:roff + fan_in, :]               # (fan_in, bw)  bf16
        b = b_ref[0:1, boff:boff + bw]                     # (1, bw)       f32
        acc = jnp.dot(h, w, preferred_element_type=jnp.float32) + b
        if i < n_layers - 1:
            h = jnp.maximum(acc, 0.0).astype(jnp.bfloat16)  # ReLU, bf16 activations
            if bw != fan_out:
                # TODO(synk): if the Mosaic dump shows lane-mask relayouts here,
                # keep h at bw and zero-pad the next layer's W rows instead.
                h = h[:, :fan_out]
        else:
            out = acc                                       # last layer: no ReLU
    # x.mean(dim=0): 1/batch already folded into the last layer's W and b.
    s = jnp.sum(out, axis=0, keepdims=True)                 # (1, 128) f32
    out_ref[0] = jnp.broadcast_to(s, out_ref.shape[1:])     # lane-dense store


def pack_params(params, batch):
    """Pack per-layer (W_t, b) into 4 bf16 weight slabs (bucketed by padded
    output width), one lane-dense f32 bias row, and static per-layer metadata.

    params[i] = (W_t (fan_in, fan_out) f32, b (1, fan_out) f32) in forward order.
    The final layer is pre-scaled by 1/batch so the kernel's batch-sum equals
    the module's mean(dim=0) (exact for power-of-two batch).
    """
    n_layers = len(params)
    slab_rows = {bw: [] for bw in _BUCKETS}
    row_off = {bw: 0 for bw in _BUCKETS}
    bias_chunks = []
    bias_off = 0
    meta = []

    for i, (w, b) in enumerate(params):
        fan_in, fan_out = w.shape
        w = w.astype(jnp.float32)
        b = jnp.reshape(b, (1, fan_out)).astype(jnp.float32)
        if i == n_layers - 1:          # fold the mean's 1/batch into last layer
            w = w / batch
            b = b / batch
        bw = _bucket_width(fan_out)
        w_pad = jnp.zeros((fan_in, bw), jnp.float32).at[:, :fan_out].set(w)
        slab_rows[bw].append(w_pad.astype(jnp.bfloat16))
        b_pad = jnp.zeros((1, bw), jnp.float32).at[:, :fan_out].set(b)
        bias_chunks.append(b_pad)
        meta.append((bw, row_off[bw], bias_off, fan_in, fan_out))
        row_off[bw] += fan_in
        bias_off += bw

    slabs = []
    for bw in _BUCKETS:
        if slab_rows[bw]:
            slabs.append(jnp.concatenate(slab_rows[bw], axis=0))
        else:
            slabs.append(jnp.zeros((8, bw), jnp.bfloat16))   # unused dummy slab
    bias = jnp.concatenate(bias_chunks, axis=1)              # (1, total_bw) f32
    return tuple(slabs), bias, tuple(meta)


def mlp_self_forward_stacked(xs, params):
    """xs: (N, batch, num_i) f32 — N independent MLP_self.forward evaluations.
    params: list of (W_t (in,out), b (1,out)) f32 in forward order.
    Returns (N, num_o) f32; row n == MLP_self.forward(xs[n])."""
    n_stack, batch, num_i = xs.shape
    num_o = params[-1][0].shape[1]

    slabs, bias, meta = pack_params(params, batch)
    out_pad = meta[-1][0]                      # last layer's padded lane width

    weight_inputs = (*slabs, bias)
    weight_bytes = sum(int(a.size) * a.dtype.itemsize for a in weight_inputs)
    x_bytes = int(xs.size) * 4
    out_bytes = n_stack * _OUT_SUBLANES * out_pad * 4
    flops = 2 * n_stack * batch * sum(fi * fo for (_, _, _, fi, fo) in meta)

    # Resident slabs are double-buffered by the pipeline (constant index => DMA'd
    # once); add headroom for the tiny x/out tiles + activations.  Cap at 32 MiB
    # (valid on v5e/v6e 128 MiB and v7x 64 MiB physical VMEM).
    vmem_limit = min(32 << 20, max(16 << 20, 2 * weight_bytes + (8 << 20)))

    def resident_spec(a):
        # Full-array block with a constant index_map: fetched once at step 0 and
        # kept VMEM-resident across all grid steps (weights / bias).
        return pl.BlockSpec(a.shape, lambda n, _nd=a.ndim: (0,) * _nd)

    out = pl.pallas_call(
        functools.partial(_mlp_fused_kernel, meta=meta),
        grid=(n_stack,),
        out_shape=jax.ShapeDtypeStruct((n_stack, _OUT_SUBLANES, out_pad),
                                       jnp.float32),
        in_specs=[pl.BlockSpec((1, batch, num_i), lambda n: (n, 0, 0))]
                 + [resident_spec(a) for a in weight_inputs],
        out_specs=pl.BlockSpec((1, _OUT_SUBLANES, out_pad), lambda n: (n, 0, 0)),
        compiler_params=pltpu.CompilerParams(
            dimension_semantics=("parallel",),     # v7x: shard stack over 2 TCs
            vmem_limit_bytes=vmem_limit),
        cost_estimate=pl.CostEstimate(flops=flops, transcendentals=0,
                                      bytes_accessed=weight_bytes + x_bytes
                                      + out_bytes),
    )(xs.astype(jnp.float32), *weight_inputs)
    return out[:, 0, :num_o]


def mlp_self_forward(x, params):
    """Single-input convenience wrapper matching MLP_self.forward:
    x: (batch, num_i) f32 -> (num_o,) f32."""
    return mlp_self_forward_stacked(x[None], params)[0]


def init_params(key, num_i, num_h, num_o):
    """Deterministic init mimicking torch.nn.Linear's U(-1/sqrt(fan_in), +).
    Weights returned pre-transposed to (in, out); biases as (1, out)."""
    dims = [
        (num_i, num_h),            # linear
        (num_h, num_h * 2),        # linear1
        (num_h * 2, num_h * 4),    # linear2
        (num_h * 4, num_h * 8),    # linear3
        (num_h * 8, num_h * 16),   # linear4
        (num_h * 16, num_h * 32),  # linear10
        (num_h * 32, num_h * 32),  # linear12
        (num_h * 32, num_h * 16),  # linear11
        (num_h * 16, num_h * 8),   # linear5
        (num_h * 8, num_h * 4),    # linear6
        (num_h * 4, num_h * 2),    # linear7
        (num_h * 2, num_h),        # linear8
        (num_h, num_o),            # linear9
    ]
    params = []
    for fan_in, fan_out in dims:
        key, kw, kb = jax.random.split(key, 3)
        bound = 1.0 / (fan_in ** 0.5)
        w = jax.random.uniform(kw, (fan_in, fan_out), jnp.float32, -bound, bound)
        b = jax.random.uniform(kb, (1, fan_out), jnp.float32, -bound, bound)
        params.append((w, b))
    return params


def reference_forward_f32(x, params):
    """Pure f32 reference (PyTorch semantics)."""
    h = x
    n = len(params)
    for i, (w, b) in enumerate(params):
        h = h @ w + b
        if i < n - 1:
            h = jnp.maximum(h, 0.0)
    return jnp.mean(h, axis=0)


def reference_forward_bf16(x, params):
    """Reference matching the kernel's numerics (bf16 operands, f32 accumulate,
    f32 bias add / ReLU, bf16 activations between layers)."""
    h = x.astype(jnp.bfloat16)
    n = len(params)
    for i, (w, b) in enumerate(params):
        acc = jnp.dot(h, w.astype(jnp.bfloat16),
                      preferred_element_type=jnp.float32) + b
        if i < n - 1:
            h = jnp.maximum(acc, 0.0).astype(jnp.bfloat16)
        else:
            acc_out = acc
    return jnp.mean(acc_out, axis=0)


if __name__ == "__main__":
    batch, num_i, num_h, num_o = 8, 32, 32, 8
    n_stack = 4                                   # amortize weight DMA over 4 inputs

    key = jax.random.PRNGKey(0)
    key, kx = jax.random.split(key)
    xs = jax.random.normal(kx, (n_stack, batch, num_i), jnp.float32)
    params = init_params(key, num_i, num_h, num_o)

    outs = jax.block_until_ready(mlp_self_forward_stacked(xs, params))
    assert outs.shape == (n_stack, num_o), outs.shape

    # Single-input path (the module's exact forward signature).
    out0 = jax.block_until_ready(mlp_self_forward(xs[0], params))
    assert out0.shape == (num_o,), out0.shape
    assert jnp.allclose(out0, outs[0], rtol=1e-5, atol=1e-6), (out0, outs[0])

    for i in range(n_stack):
        ref_bf16 = reference_forward_bf16(xs[i], params)  # kernel numerics
        ref_f32 = reference_forward_f32(xs[i], params)    # PyTorch-style full f32
        assert jnp.allclose(outs[i], ref_bf16, rtol=1e-2, atol=1e-4), \
            (i, outs[i], ref_bf16)
        assert jnp.allclose(outs[i], ref_f32, rtol=1e-1, atol=1e-3), \
            (i, outs[i], ref_f32)

    print("KERNEL_OK")
</pallas_src>

<mosaic_0001>
module attributes {stable_mosaic.version = 11 : i64} {
  func.func @_mlp_fused_kernel(%arg0: i32, %arg1: memref<1x8x32xf32, #tpu.memory_space<vmem>>, %arg2: memref<608x128xbf16, #tpu.memory_space<vmem>>, %arg3: memref<640x256xbf16, #tpu.memory_space<vmem>>, %arg4: memref<1280x512xbf16, #tpu.memory_space<vmem>>, %arg5: memref<1536x1024xbf16, #tpu.memory_space<vmem>>, %arg6: memref<1x4480xf32, #tpu.memory_space<vmem>>, %arg7: memref<1x8x128xf32, #tpu.memory_space<vmem>>) attributes {dimension_semantics = [#tpu.dimension_semantics<parallel>], iteration_bounds = array<i64: 4>, scalar_prefetch = 0 : i64, scratch_operands = 0 : i64, tpu.core_type = #tpu.core_type<tc>, window_params = [{transform_indices = @transform_0, window_bounds = array<i64: 1, 8, 32>}, {pipeline_mode = #tpu.pipeline_mode<synchronous>, transform_indices = @transform_1, window_bounds = array<i64: 608, 128>}, {pipeline_mode = #tpu.pipeline_mode<synchronous>, transform_indices = @transform_2, window_bounds = array<i64: 640, 256>}, {pipeline_mode = #tpu.pipeline_mode<synchronous>, transform_indices = @transform_3, window_bounds = array<i64: 1280, 512>}, {pipeline_mode = #tpu.pipeline_mode<synchronous>, transform_indices = @transform_4, window_bounds = array<i64: 1536, 1024>}, {pipeline_mode = #tpu.pipeline_mode<synchronous>, transform_indices = @transform_5, window_bounds = array<i64: 1, 4480>}, {transform_indices = @transform_6, window_bounds = array<i64: 1, 8, 128>}]} {
    %c0 = arith.constant 0 : index
    %c0_0 = arith.constant 0 : index
    %c0_1 = arith.constant 0 : index
    %0 = vector.load %arg1[%c0, %c0_0, %c0_1] : memref<1x8x32xf32, #tpu.memory_space<vmem>>, vector<1x8x32xf32>
    %1 = vector.shape_cast %0 : vector<1x8x32xf32> to vector<8x32xf32>
    %2 = arith.truncf %1 : vector<8x32xf32> to vector<8x32xbf16>
    %c0_2 = arith.constant 0 : index
    %c0_3 = arith.constant 0 : index
    %3 = vector.load %arg2[%c0_2, %c0_3] : memref<608x128xbf16, #tpu.memory_space<vmem>>, vector<32x128xbf16>
    %c0_4 = arith.constant 0 : index
    %c0_5 = arith.constant 0 : index
    %4 = vector.load %arg6[%c0_4, %c0_5] : memref<1x4480xf32, #tpu.memory_space<vmem>>, vector<1x128xf32>
    %cst = arith.constant dense<0.000000e+00> : vector<8x128xf32>
    %5 = tpu.matmul %2, %3, %cst {dimension_numbers = #tpu.dot_dimension_numbers<[1], [0], [0], [1], [0, 0, 1, 1], [], []>} : vector<8x32xbf16>, vector<32x128xbf16>, vector<8x128xf32> -> vector<8x128xf32>
    %6 = vector.broadcast %4 : vector<1x128xf32> to vector<8x128xf32>
    %7 = arith.addf %5, %6 : vector<8x128xf32>
    %cst_6 = arith.constant 0.000000e+00 : f32
    %8 = vector.broadcast %cst_6 : f32 to vector<8x128xf32>
    %9 = arith.maximumf %7, %8 : vector<8x128xf32>
    %10 = arith.truncf %9 : vector<8x128xf32> to vector<8x128xbf16>
    %11 = vector.extract_strided_slice %10 {offsets = [0, 0], sizes = [8, 32], strides = [1, 1]} : vector<8x128xbf16> to vector<8x32xbf16>
    %c32 = arith.constant 32 : index
    %c0_7 = arith.constant 0 : index
    %12 = vector.load %arg2[%c32, %c0_7] : memref<608x128xbf16, #tpu.memory_space<vmem>>, vector<32x128xbf16>
    %c0_8 = arith.constant 0 : index
    %c128 = arith.constant 128 : index
    %13 = vector.load %arg6[%c0_8, %c128] : memref<1x4480xf32, #tpu.memory_space<vmem>>, vector<1x128xf32>
    %cst_9 = arith.constant dense<0.000000e+00> : vector<8x128xf32>
    %14 = tpu.matmul %11, %12, %cst_9 {dimension_numbers = #tpu.dot_dimension_numbers<[1], [0], [0], [1], [0, 0, 1, 1], [], []>} : vector<8x32xbf16>, vector<32x128xbf16>, vector<8x128xf32> -> vector<8x128xf32>
    %15 = vector.broadcast %13 : vector<1x128xf32> to vector<8x128xf32>
    %16 = arith.addf %14, %15 : vector<8x128xf32>
    %cst_10 = arith.constant 0.000000e+00 : f32
    %17 = vector.broadcast %cst_10 : f32 to vector<8x128xf32>
    %18 = arith.maximumf %16, %17 : vector<8x128xf32>
    %19 = arith.truncf %18 : vector<8x128xf32> to vector<8x128xbf16>
    %20 = vector.extract_strided_slice %19 {offsets = [0, 0], sizes = [8, 64], strides = [1, 1]} : vector<8x128xbf16> to vector<8x64xbf16>
    %c64 = arith.constant 64 : index
    %c0_11 = arith.constant 0 : index
    %21 = vector.load %arg2[%c64, %c0_11] : memref<608x128xbf16, #tpu.memory_space<vmem>>, vector<64x128xbf16>
    %c0_12 = arith.constant 0 : index
    %c256 = arith.constant 256 : index
    %22 = vector.load %arg6[%c0_12, %c256] : memref<1x4480xf32, #tpu.memory_space<vmem>>, vector<1x128xf32>
    %cst_13 = arith.constant dense<0.000000e+00> : vector<8x128xf32>
    %23 = tpu.matmul %20, %21, %cst_13 {dimension_numbers = #tpu.dot_dimension_numbers<[1], [0], [0], [1], [0, 0, 1, 1], [], []>} : vector<8x64xbf16>, vector<64x128xbf16>, vector<8x128xf32> -> vector<8x128xf32>
    %24 = vector.broadcast %22 : vector<1x128xf32> to vector<8x128xf32>
    %25 = arith.addf %23, %24 : vector<8x128xf32>
    %cst_14 = arith.constant 0.000000e+00 : f32
    %26 = vector.broadcast %cst_14 : f32 to vector<8x128xf32>
    %27 = arith.maximumf %25, %26 : vector<8x128xf32>
    %28 = arith.truncf %27 : vector<8x128xf32> to vector<8x128xbf16>
    %c0_15 = arith.constant 0 : index
    %c0_16 = arith.constant 0 : index
    %29 = vector.load %arg3[%c0_15, %c0_16] : memref<640x256xbf16, #tpu.memory_space<vmem>>, vector<128x256xbf16>
    %c0_17 = arith.constant 0 : index
    %c384 = arith.constant 384 : index
    %30 = vector.load %arg6[%c0_17, %c384] : memref<1x4480xf32, #tpu.memory_space<vmem>>, vector<1x256xf32>
    %cst_18 = arith.constant dense<0.000000e+00> : vector<8x256xf32>
    %31 = tpu.matmul %28, %29, %cst_18 {dimension_numbers = #tpu.dot_dimension_numbers<[1], [0], [0], [1], [0, 0, 1, 1], [], []>} : vector<8x128xbf16>, vector<128x256xbf16>, vector<8x256xf32> -> vector<8x256xf32>
    %32 = vector.broadcast %30 : vector<1x256xf32> to vector<8x256xf32>
    %33 = arith.addf %31, %32 : vector<8x256xf32>
    %cst_19 = arith.constant 0.000000e+00 : f32
    %34 = vector.broadcast %cst_19 : f32 to vector<8x256xf32>
    %35 = arith.maximumf %33, %34 : vector<8x256xf32>
    %36 = arith.truncf %35 : vector<8x256xf32> to vector<8x256xbf16>
    %c0_20 = arith.constant 0 : index
    %c0_21 = arith.constant 0 : index
    %37 = vector.load %arg4[%c0_20, %c0_21] : memref<1280x512xbf16, #tpu.memory_space<vmem>>, vector<256x512xbf16>
    %c0_22 = arith.constant 0 : index
    %c640 = arith.constant 640 : index
    %38 = vector.load %arg6[%c0_22, %c640] : memref<1x4480xf32, #tpu.memory_space<vmem>>, vector<1x512xf32>
    %cst_23 = arith.constant dense<0.000000e+00> : vector<8x512xf32>
    %39 = tpu.matmul %36, %37, %cst_23 {dimension_numbers = #tpu.dot_dimension_numbers<[1], [0], [0], [1], [0, 0, 1, 1], [], []>} : vector<8x256xbf16>, vector<256x512xbf16>, vector<8x512xf32> -> vector<8x512xf32>
    %40 = vector.broadcast %38 : vector<1x512xf32> to vector<8x512xf32>
    %41 = arith.addf %39, %40 : vector<8x512xf32>
    %cst_24 = arith.constant 0.000000e+00 : f32
    %42 = vector.broadcast %cst_24 : f32 to vector<8x512xf32>
    %43 = arith.maximumf %41, %42 : vector<8x512xf32>
    %44 = arith.truncf %43 : vector<8x512xf32> to vector<8x512xbf16>
    %c0_25 = arith.constant 0 : index
    %c0_26 = arith.constant 0 : index
    %45 = vector.load %arg5[%c0_25, %c0_26] : memref<1536x1024xbf16, #tpu.memory_space<vmem>>, vector<512x1024xbf16>
    %c0_27 = arith.constant 0 : index
    %c1152 = arith.constant 1152 : index
    %46 = vector.load %arg6[%c0_27, %c1152] : memref<1x4480xf32, #tpu.memory_space<vmem>>, vector<1x1024xf32>
    %cst_28 = arith.constant dense<0.000000e+00> : vector<8x1024xf32>
    %47 = tpu.matmul %44, %45, %cst_28 {dimension_numbers = #tpu.dot_dimension_numbers<[1], [0], [0], [1], [0, 0, 1, 1], [], []>} : vector<8x512xbf16>, vector<512x1024xbf16>, vector<8x1024xf32> -> vector<8x1024xf32>
    %48 = vector.broadcast %46 : vector<1x1024xf32> to vector<8x1024xf32>
    %49 = arith.addf %47, %48 : vector<8x1024xf32>
    %cst_29 = arith.constant 0.000000e+00 : f32
    %50 = vector.broadcast %cst_29 : f32 to vector<8x1024xf32>
    %51 = arith.maximumf %49, %50 : vector<8x1024xf32>
    %52 = arith.truncf %51 : vector<8x1024xf32> to vector<8x1024xbf16>
    %c512 = arith.constant 512 : index
    %c0_30 = arith.constant 0 : index
    %53 = vector.load %arg5[%c512, %c0_30] : memref<1536x1024xbf16, #tpu.memory_space<vmem>>, vector<1024x1024xbf16>
    %c0_31 = arith.constant 0 : index
    %c2176 = arith.constant 2176 : index
    %54 = vector.load %arg6[%c0_31, %c2176] : memref<1x4480xf32, #tpu.memory_space<vmem>>, vector<1x1024xf32>
    %cst_32 = arith.constant dense<0.000000e+00> : vector<8x1024xf32>
    %55 = tpu.matmul %52, %53, %cst_32 {dimension_numbers = #tpu.dot_dimension_numbers<[1], [0], [0], [1], [0, 0, 1, 1], [], []>} : vector<8x1024xbf16>, vector<1024x1024xbf16>, vector<8x1024xf32> -> vector<8x1024xf32>
    %56 = vector.broadcast %54 : vector<1x1024xf32> to vector<8x1024xf32>
    %57 = arith.addf %55, %56 : vector<8x1024xf32>
    %cst_33 = arith.constant 0.000000e+00 : f32
    %58 = vector.broadcast %cst_33 : f32 to vector<8x1024xf32>
    %59 = arith.maximumf %57, %58 : vector<8x1024xf32>
    %60 = arith.truncf %59 : vector<8x1024xf32> to vector<8x1024xbf16>
    %c256_34 = arith.constant 256 : index
    %c0_35 = arith.constant 0 : index
    %61 = vector.load %arg4[%c256_34, %c0_35] : memref<1280x512xbf16, #tpu.memory_space<vmem>>, vector<1024x512xbf16>
    %c0_36 = arith.constant 0 : index
    %c3200 = arith.constant 3200 : index
    %62 = vector.load %arg6[%c0_36, %c3200] : memref<1x4480xf32, #tpu.memory_space<vmem>>, vector<1x512xf32>
    %cst_37 = arith.constant dense<0.000000e+00> : vector<8x512xf32>
    %63 = tpu.matmul %60, %61, %cst_37 {dimension_numbers = #tpu.dot_dimension_numbers<[1], [0], [0], [1], [0, 0, 1, 1], [], []>} : vector<8x1024xbf16>, vector<1024x512xbf16>, vector<8x512xf32> -> vector<8x512xf32>
    %64 = vector.broadcast %62 : vector<1x512xf32> to vector<8x512xf32>
    %65 = arith.addf %63, %64 : vector<8x512xf32>
    %cst_38 = arith.constant 0.000000e+00 : f32
    %66 = vector.broadcast %cst_38 : f32 to vector<8x512xf32>
    %67 = arith.maximumf %65, %66 : vector<8x512xf32>
    %68 = arith.truncf %67 : vector<8x512xf32> to vector<8x512xbf16>
    %c128_39 = arith.constant 128 : index
    %c0_40 = arith.constant 0 : index
    %69 = vector.load %arg3[%c128_39, %c0_40] : memref<640x256xbf16, #tpu.memory_space<vmem>>, vector<512x256xbf16>
    %c0_41 = arith.constant 0 : index
    %c3712 = arith.constant 3712 : index
    %70 = vector.load %arg6[%c0_41, %c3712] : memref<1x4480xf32, #tpu.memory_space<vmem>>, vector<1x256xf32>
    %cst_42 = arith.constant dense<0.000000e+00> : vector<8x256xf32>
    %71 = tpu.matmul %68, %69, %cst_42 {dimension_numbers = #tpu.dot_dimension_numbers<[1], [0], [0], [1], [0, 0, 1, 1], [], []>} : vector<8x512xbf16>, vector<512x256xbf16>, vector<8x256xf32> -> vector<8x256xf32>
    %72 = vector.broadcast %70 : vector<1x256xf32> to vector<8x256xf32>
    %73 = arith.addf %71, %72 : vector<8x256xf32>
    %cst_43 = arith.constant 0.000000e+00 : f32
    %74 = vector.broadcast %cst_43 : f32 to vector<8x256xf32>
    %75 = arith.maximumf %73, %74 : vector<8x256xf32>
    %76 = arith.truncf %75 : vector<8x256xf32> to vector<8x256xbf16>
    %c128_44 = arith.constant 128 : index
    %c0_45 = arith.constant 0 : index
    %77 = vector.load %arg2[%c128_44, %c0_45] : memref<608x128xbf16, #tpu.memory_space<vmem>>, vector<256x128xbf16>
    %c0_46 = arith.constant 0 : index
    %c3968 = arith.constant 3968 : index
    %78 = vector.load %arg6[%c0_46, %c3968] : memref<1x4480xf32, #tpu.memory_space<vmem>>, vector<1x128xf32>
    %cst_47 = arith.constant dense<0.000000e+00> : vector<8x128xf32>
    %79 = tpu.matmul %76, %77, %cst_47 {dimension_numbers = #tpu.dot_dimension_numbers<[1], [0], [0], [1], [0, 0, 1, 1], [], []>} : vector<8x256xbf16>, vector<256x128xbf16>, vector<8x128xf32> -> vector<8x128xf32>
    %80 = vector.broadcast %78 : vector<1x128xf32> to vector<8x128xf32>
    %81 = arith.addf %79, %80 : vector<8x128xf32>
    %cst_48 = arith.constant 0.000000e+00 : f32
    %82 = vector.broadcast %cst_48 : f32 to vector<8x128xf32>
    %83 = arith.maximumf %81, %82 : vector<8x128xf32>
    %84 = arith.truncf %83 : vector<8x128xf32> to vector<8x128xbf16>
    %c384_49 = arith.constant 384 : index
    %c0_50 = arith.constant 0 : index
    %85 = vector.load %arg2[%c384_49, %c0_50] : memref<608x128xbf16, #tpu.memory_space<vmem>>, vector<128x128xbf16>
    %c0_51 = arith.constant 0 : index
    %c4096 = arith.constant 4096 : index
    %86 = vector.load %arg6[%c0_51, %c4096] : memref<1x4480xf32, #tpu.memory_space<vmem>>, vector<1x128xf32>
    %cst_52 = arith.constant dense<0.000000e+00> : vector<8x128xf32>
    %87 = tpu.matmul %84, %85, %cst_52 {dimension_numbers = #tpu.dot_dimension_numbers<[1], [0], [0], [1], [0, 0, 1, 1], [], []>} : vector<8x128xbf16>, vector<128x128xbf16>, vector<8x128xf32> -> vector<8x128xf32>
    %88 = vector.broadcast %86 : vector<1x128xf32> to vector<8x128xf32>
    %89 = arith.addf %87, %88 : vector<8x128xf32>
    %cst_53 = arith.constant 0.000000e+00 : f32
    %90 = vector.broadcast %cst_53 : f32 to vector<8x128xf32>
    %91 = arith.maximumf %89, %90 : vector<8x128xf32>
    %92 = arith.truncf %91 : vector<8x128xf32> to vector<8x128xbf16>
    %93 = vector.extract_strided_slice %92 {offsets = [0, 0], sizes = [8, 64], strides = [1, 1]} : vector<8x128xbf16> to vector<8x64xbf16>
    %c512_54 = arith.constant 512 : index
    %c0_55 = arith.constant 0 : index
    %94 = vector.load %arg2[%c512_54, %c0_55] : memref<608x128xbf16, #tpu.memory_space<vmem>>, vector<64x128xbf16>
    %c0_56 = arith.constant 0 : index
    %c4224 = arith.constant 4224 : index
    %95 = vector.load %arg6[%c0_56, %c4224] : memref<1x4480xf32, #tpu.memory_space<vmem>>, vector<1x128xf32>
    %cst_57 = arith.constant dense<0.000000e+00> : vector<8x128xf32>
    %96 = tpu.matmul %93, %94, %cst_57 {dimension_numbers = #tpu.dot_dimension_numbers<[1], [0], [0], [1], [0, 0, 1, 1], [], []>} : vector<8x64xbf16>, vector<64x128xbf16>, vector<8x128xf32> -> vector<8x128xf32>
    %97 = vector.broadcast %95 : vector<1x128xf32> to vector<8x128xf32>
    %98 = arith.addf %96, %97 : vector<8x128xf32>
    %cst_58 = arith.constant 0.000000e+00 : f32
    %99 = vector.broadcast %cst_58 : f32 to vector<8x128xf32>
    %100 = arith.maximumf %98, %99 : vector<8x128xf32>
    %101 = arith.truncf %100 : vector<8x128xf32> to vector<8x128xbf16>
    %102 = vector.extract_strided_slice %101 {offsets = [0, 0], sizes = [8, 32], strides = [1, 1]} : vector<8x128xbf16> to vector<8x32xbf16>
    %c576 = arith.constant 576 : index
    %c0_59 = arith.constant 0 : index
    %103 = vector.load %arg2[%c576, %c0_59] : memref<608x128xbf16, #tpu.memory_space<vmem>>, vector<32x128xbf16>
    %c0_60 = arith.constant 0 : index
    %c4352 = arith.constant 4352 : index
    %104 = vector.load %arg6[%c0_60, %c4352] : memref<1x4480xf32, #tpu.memory_space<vmem>>, vector<1x128xf32>
    %cst_61 = arith.constant dense<0.000000e+00> : vector<8x128xf32>
    %105 = tpu.matmul %102, %103, %cst_61 {dimension_numbers = #tpu.dot_dimension_numbers<[1], [0], [0], [1], [0, 0, 1, 1], [], []>} : vector<8x32xbf16>, vector<32x128xbf16>, vector<8x128xf32> -> vector<8x128xf32>
    %106 = vector.broadcast %104 : vector<1x128xf32> to vector<8x128xf32>
    %107 = arith.addf %105, %106 : vector<8x128xf32>
    %cst_62 = arith.constant dense<0.000000e+00> : vector<128xf32>
    %108 = vector.multi_reduction <add>, %107, %cst_62 [0] : vector<8x128xf32> to vector<128xf32>
    %109 = vector.shape_cast %108 : vector<128xf32> to vector<1x128xf32>
    %110 = vector.shape_cast %109 : vector<1x128xf32> to vector<1x128xf32>
    %111 = vector.broadcast %110 : vector<1x128xf32> to vector<8x128xf32>
    %c0_63 = arith.constant 0 : index
    %c0_64 = arith.constant 0 : index
    %c0_65 = arith.constant 0 : index
    %112 = vector.load %arg7[%c0_63, %c0_64, %c0_65] : memref<1x8x128xf32, #tpu.memory_space<vmem>>, vector<1x8x128xf32>
    %113 = vector.shape_cast %112 : vector<1x8x128xf32> to vector<8x128xf32>
    %114 = vector.shape_cast %111 : vector<8x128xf32> to vector<1x8x128xf32>
    tpu.vector_store %arg7[%c0_63, %c0_64, %c0_65], %114 {strides = array<i32>} : memref<1x8x128xf32, #tpu.memory_space<vmem>>, vector<1x8x128xf32>,
    return
  }
  func.func @transform_0(%arg0: i32) -> (i32, i32, i32) {
    %c0_i32 = arith.constant 0 : i32
    %c0_i32_0 = arith.constant 0 : i32
    %c0_i32_1 = arith.constant 0 : i32
    return %arg0, %c0_i32, %c0_i32_0 : i32, i32, i32
  }
  func.func @transform_1(%arg0: i32) -> (i32, i32) {
    %c0_i32 = arith.constant 0 : i32
    %c0_i32_0 = arith.constant 0 : i32
    %c0_i32_1 = arith.constant 0 : i32
    return %c0_i32, %c0_i32_0 : i32, i32
  }
  func.func @transform_2(%arg0: i32) -> (i32, i32) {
    %c0_i32 = arith.constant 0 : i32
    %c0_i32_0 = arith.constant 0 : i32
    %c0_i32_1 = arith.constant 0 : i32
    return %c0_i32, %c0_i32_0 : i32, i32
  }
  func.func @transform_3(%arg0: i32) -> (i32, i32) {
    %c0_i32 = arith.constant 0 : i32
    %c0_i32_0 = arith.constant 0 : i32
    %c0_i32_1 = arith.constant 0 : i32
    return %c0_i32, %c0_i32_0 : i32, i32
  }
  func.func @transform_4(%arg0: i32) -> (i32, i32) {
    %c0_i32 = arith.constant 0 : i32
    %c0_i32_0 = arith.constant 0 : i32
    %c0_i32_1 = arith.constant 0 : i32
    return %c0_i32, %c0_i32_0 : i32, i32
  }
  func.func @transform_5(%arg0: i32) -> (i32, i32) {
    %c0_i32 = arith.constant 0 : i32
    %c0_i32_0 = arith.constant 0 : i32
    %c0_i32_1 = arith.constant 0 : i32
    return %c0_i32, %c0_i32_0 : i32, i32
  }
  func.func @transform_6(%arg0: i32) -> (i32, i32, i32) {
    %c0_i32 = arith.constant 0 : i32
    %c0_i32_0 = arith.constant 0 : i32
    %c0_i32_1 = arith.constant 0 : i32
    return %arg0, %c0_i32, %c0_i32_0 : i32, i32, i32
  }
}

</mosaic_0001>

<llo_original>
// kernel: tpu_custom_call.1
$region0: #{tpu_custom_call.1}
  #allocation0 [shape = 'u32[]', space=smem, size = 0x4, offset = 0x4, fixed_abs, tag = 'smem constant byte address 0x4 - core index']
  #allocation1 [shape = 'u32[144,128]{1,0:T(1,128)}', space=vmem, size = 0x12000, scoped, tag = 'internal scratch']
  %s0 = inlined_call_operand.hbm [shape: f32[4,8,32], index: 0, kind: input, shape index: {}]
  %s1 = inlined_call_operand.hbm [shape: bf16[608,128], index: 1, kind: input, shape index: {}]
  %s2 = inlined_call_operand.hbm [shape: bf16[640,256], index: 2, kind: input, shape index: {}]
  %s3 = inlined_call_operand.hbm [shape: bf16[1280,512], index: 3, kind: input, shape index: {}]
  %s4 = inlined_call_operand.hbm [shape: bf16[1536,1024], index: 4, kind: input, shape index: {}]
  %s5 = inlined_call_operand.hbm [shape: f32[1,4480], index: 5, kind: input, shape index: {}]
  %s6 = inlined_call_operand.hbm [shape: f32[4,8,128], index: 6, kind: output, shape index: {}]
  %s7 = sld [smem:[#allocation0]]
  $region81: #{tpu_custom_call.1} parent=0
    _
  %s9 = ssub.s32 1, %s7
  %s10 = scalar_select 0, %s9, %s7
  $region1: #{tpu_custom_call.1} parent=0
    #allocation2 [shape = 'u8[8192]{0}', space=vmem, size = 0x2000, scoped, tag = 'input window, operand 0']
    #allocation3 [shape = 's32[2]{0}', space=sflag, size = 0x8, scoped, tag = 'scoped memory for tpu_custom_call.1']
    #allocation4 [shape = 's32[2]{0}', space=sflag, size = 0x8, scoped, tag = 'scoped memory for tpu_custom_call.1']
    #allocation5 [shape = 'u8[155648]{0}', space=vmem, size = 0x26000, scoped, tag = 'input window, operand 1, single buffered']
    #allocation6 [shape = 's32[1]{0}', space=sflag, size = 0x4, scoped, tag = 'scoped memory for tpu_custom_call.1']
    #allocation7 [shape = 'u8[327680]{0}', space=vmem, size = 0x50000, scoped, tag = 'input window, operand 2, single buffered']
    #allocation8 [shape = 'u8[1310720]{0}', space=vmem, size = 0x140000, scoped, tag = 'input window, operand 3, single buffered']
    #allocation9 [shape = 's32[1]{0}', space=sflag, size = 0x4, scoped, tag = 'scoped memory for tpu_custom_call.1']
    #allocation10 [shape = 'u8[3145728]{0}', space=vmem, size = 0x300000, scoped, tag = 'input window, operand 4, single buffered']
    #allocation11 [shape = 'u8[17920]{0}', space=vmem, size = 0x4800, scoped, tag = 'input window, operand 5, single buffered']
    #allocation12 [shape = 's32[1]{0}', space=sflag, size = 0x4, scoped, tag = 'scoped memory for tpu_custom_call.1']
    #allocation13 [shape = 'u8[8192]{0}', space=vmem, size = 0x2000, scoped, tag = 'output window, operand 0']
    %11 = vsyncpa [#allocation3], 0
    %s12 = scalar_lea.sflag [#allocation3], 1
    %13 = vsyncpa %s12, 0
    %14 = vsyncpa [#allocation6], 0
    %15 = vsyncpa [#allocation9], 0
    %16 = vsyncpa [#allocation12], 0
    %17 = vsyncpa [#allocation4], 0
    %s18 = scalar_lea.sflag [#allocation4], 1
    %19 = vsyncpa %s18, 0
    loop: start=0, step=1, limit=6
    $region2: #{tpu_custom_call.1} parent=1 // loop_pre_header
      _
    $region3: #{tpu_custom_call.1} parent=1 // loop_header
      %s21 = sphi 0, %s25
      %p22 = scmp.ge.s32.totalorder %s21, 6
      %s31 = sphi 0, %s33
      %s34 = sphi 0, %s31
      %s35 = sphi 0, %s34
      %s51 = sphi 0, %s35
      %s55 = sphi 0, %s55
      %s57 = sphi 0, %s55
      %s58 = sphi 0, %s57
      %s72 = sphi 0, %s58
      %s76 = sphi 0, %s76
      %s78 = sphi 0, %s76
      %s79 = sphi 0, %s78
      %s93 = sphi 0, %s79
      %s97 = sphi 0, %s97
      %s99 = sphi 0, %s97
      %s100 = sphi 0, %s99
      %s114 = sphi 0, %s100
      %s118 = sphi 0, %s118
      %s120 = sphi 0, %s118
      %s121 = sphi 0, %s120
      %s135 = sphi 0, %s121
      %s139 = sphi 0, %s139
      %s141 = sphi 0, %s139
      %s142 = sphi 0, %s141
      %s156 = sphi 0, %s142
      %s162 = sphi 0, %s164
      %s165 = sphi 0, %s162
      %s166 = sphi 0, %s165
      %s182 = sphi 0, %s166
    $region4: #{tpu_custom_call.1} parent=1 // loop_header_branch
      %24 = sbr.rel (%p22) target = $region8
    $region5: #{tpu_custom_call.1} parent=1 // loop_body
      %s26 = ssub.s32 %s21, 1
      %s27 = ssub.s32 %s21, 2
      %s28 = sadd.s32 %s21, 1
      %s29 = ssub.s32 %s21, %s28
      %p30 = scmp.eq.s32.totalorder %s29, 0
      %s32 = sadd.s32 %s31, 1
      %s33 = scalar_select %p30, %s31, %s32
      %p36 = pneg %p30
      %p37 = scmp.eq.s32.totalorder %s21, 3
      %p38 = por %p36, %p37
      %p39 = scmp.ne.s32.totalorder %s31, %s34
      %p40 = scmp.eq.s32.totalorder %s21, 0
      %p41 = por %p39, %p40
      %p42 = scmp.ne.s32.totalorder %s31, %s34
      %p43 = scmp.eq.s32.totalorder %s26, 3
      %p44 = por %p42, %p43
      %p45 = scmp.ne.s32.totalorder %s34, %s35
      %p46 = scmp.eq.s32.totalorder %s26, 0
      %p47 = por %p45, %p46
      %p48 = scmp.ne.s32.totalorder %s34, %s35
      %p49 = scmp.eq.s32.totalorder %s27, 3
      %p50 = por %p48, %p49
      %p52 = scmp.ne.s32.totalorder %s35, %s51
      %p53 = scmp.eq.s32.totalorder %s27, 0
      %p54 = por %p52, %p53
      %s56 = sadd.s32 %s55, 1
      %p59 = scmp.eq.s32.totalorder %s21, 3
      %p60 = scmp.ne.s32.totalorder %s55, %s57
      %p61 = scmp.eq.s32.totalorder %s21, 0
      %p62 = por %p60, %p61
      %p63 = scmp.ne.s32.totalorder %s55, %s57
      %p64 = scmp.eq.s32.totalorder %s26, 3
      %p65 = por %p63, %p64
      %p66 = scmp.ne.s32.totalorder %s57, %s58
      %p67 = scmp.eq.s32.totalorder %s26, 0
      %p68 = por %p66, %p67
      %p69 = scmp.ne.s32.totalorder %s57, %s58
      %p70 = scmp.eq.s32.totalorder %s27, 3
      %p71 = por %p69, %p70
      %p73 = scmp.ne.s32.totalorder %s58, %s72
      %p74 = scmp.eq.s32.totalorder %s27, 0
      %p75 = por %p73, %p74
      %s77 = sadd.s32 %s76, 1
      %p80 = scmp.eq.s32.totalorder %s21, 3
      %p81 = scmp.ne.s32.totalorder %s76, %s78
      %p82 = scmp.eq.s32.totalorder %s21, 0
      %p83 = por %p81, %p82
      %p84 = scmp.ne.s32.totalorder %s76, %s78
      %p85 = scmp.eq.s32.totalorder %s26, 3
      %p86 = por %p84, %p85
      %p87 = scmp.ne.s32.totalorder %s78, %s79
      %p88 = scmp.eq.s32.totalorder %s26, 0
      %p89 = por %p87, %p88
      %p90 = scmp.ne.s32.totalorder %s78, %s79
      %p91 = scmp.eq.s32.totalorder %s27, 3
      %p92 = por %p90, %p91
      %p94 = scmp.ne.s32.totalorder %s79, %s93
      %p95 = scmp.eq.s32.totalorder %s27, 0
      %p96 = por %p94, %p95
      %s98 = sadd.s32 %s97, 1
      %p101 = scmp.eq.s32.totalorder %s21, 3
      %p102 = scmp.ne.s32.totalorder %s97, %s99
      %p103 = scmp.eq.s32.totalorder %s21, 0
      %p104 = por %p102, %p103
      %p105 = scmp.ne.s32.totalorder %s97, %s99
      %p106 = scmp.eq.s32.totalorder %s26, 3
      %p107 = por %p105, %p106
      %p108 = scmp.ne.s32.totalorder %s99, %s100
      %p109 = scmp.eq.s32.totalorder %s26, 0
      %p110 = por %p108, %p109
      %p111 = scmp.ne.s32.totalorder %s99, %s100
      %p112 = scmp.eq.s32.totalorder %s27, 3
      %p113 = por %p111, %p112
      %p115 = scmp.ne.s32.totalorder %s100, %s114
      %p116 = scmp.eq.s32.totalorder %s27, 0
      %p117 = por %p115, %p116
      %s119 = sadd.s32 %s118, 1
      %p122 = scmp.eq.s32.totalorder %s21, 3
      %p123 = scmp.ne.s32.totalorder %s118, %s120
      %p124 = scmp.eq.s32.totalorder %s21, 0
      %p125 = por %p123, %p124
      %p126 = scmp.ne.s32.totalorder %s118, %s120
      %p127 = scmp.eq.s32.totalorder %s26, 3
      %p128 = por %p126, %p127
      %p129 = scmp.ne.s32.totalorder %s120, %s121
      %p130 = scmp.eq.s32.totalorder %s26, 0
      %p131 = por %p129, %p130
      %p132 = scmp.ne.s32.totalorder %s120, %s121
      %p133 = scmp.eq.s32.totalorder %s27, 3
      %p134 = por %p132, %p133
      %p136 = scmp.ne.s32.totalorder %s121, %s135
      %p137 = scmp.eq.s32.totalorder %s27, 0
      %p138 = por %p136, %p137
      %s140 = sadd.s32 %s139, 1
      %p143 = scmp.eq.s32.totalorder %s21, 3
      %p144 = scmp.ne.s32.totalorder %s139, %s141
      %p145 = scmp.eq.s32.totalorder %s21, 0
      %p146 = por %p144, %p145
      %p147 = scmp.ne.s32.totalorder %s139, %s141
      %p148 = scmp.eq.s32.totalorder %s26, 3
      %p149 = por %p147, %p148
      %p150 = scmp.ne.s32.totalorder %s141, %s142
      %p151 = scmp.eq.s32.totalorder %s26, 0
      %p152 = por %p150, %p151
      %p153 = scmp.ne.s32.totalorder %s141, %s142
      %p154 = scmp.eq.s32.totalorder %s27, 3
      %p155 = por %p153, %p154
      %p157 = scmp.ne.s32.totalorder %s142, %s156
      %p158 = scmp.eq.s32.totalorder %s27, 0
      %p159 = por %p157, %p158
      %s160 = ssub.s32 %s21, %s28
      %p161 = scmp.eq.s32.totalorder %s160, 0
      %s163 = sadd.s32 %s162, 1
      %s164 = scalar_select %p161, %s162, %s163
      %p167 = pneg %p161
      %p168 = scmp.eq.s32.totalorder %s21, 3
      %p169 = por %p167, %p168
      %p170 = scmp.ne.s32.totalorder %s162, %s165
      %p171 = scmp.eq.s32.totalorder %s21, 0
      %p172 = por %p170, %p171
      %p173 = scmp.ne.s32.totalorder %s162, %s165
      %p174 = scmp.eq.s32.totalorder %s26, 3
      %p175 = por %p173, %p174
      %p176 = scmp.ne.s32.totalorder %s165, %s166
      %p177 = scmp.eq.s32.totalorder %s26, 0
      %p178 = por %p176, %p177
      %p179 = scmp.ne.s32.totalorder %s165, %s166
      %p180 = scmp.eq.s32.totalorder %s27, 3
      %p181 = por %p179, %p180
      %p183 = scmp.ne.s32.totalorder %s166, %s182
      %p184 = scmp.eq.s32.totalorder %s27, 0
      %p185 = por %p183, %p184
      %p186 = scmp.le.s32.totalorder 1, %s21
      %p187 = scmp.lt.s32.totalorder %s21, 5
      %p188 = pnand %p186, %p187
      %p189 = pneg %p188
      // Predicated region
      $region9: #{tpu_custom_call.1} parent=5 // pred_check
        _
      $region10: #{tpu_custom_call.1} parent=5 // pred_check_branch
        %191 = sbr.rel (%p188) target = $region12
      $region11: #{tpu_custom_call.1} parent=5 // pred_region
        %s192 = ssub.s32 %s21, 1
        // Predicated region
        $region13: #{tpu_custom_call.1} parent=11 // pred_check
          %p193 = pneg %p68
        $region14: #{tpu_custom_call.1} parent=11 // pred_check_branch
          %195 = sbr.rel (%p193) target = $region16
        $region15: #{tpu_custom_call.1} parent=11 // pred_region
          %s197 = ssub.s32 4864, 4864
          %198 = vsyncadd [#allocation6], %s197
          %s199 = sshll.u32 [#allocation5], 4
          %s200 = int_to_ptr.vmem [resolvable:$true] %s199
          %205 = dma.hbm_to_vmem [thread:$0]  %s1, 4864, %s200, [#allocation6], 64, 64, 4
        $region16: #{tpu_custom_call.1} parent=11 // pred_fallthru
          _
        // Predicated region
        $region17: #{tpu_custom_call.1} parent=11 // pred_check
          %p206 = pneg %p89
        $region18: #{tpu_custom_call.1} parent=11 // pred_check_branch
          %208 = sbr.rel (%p206) target = $region20
        $region19: #{tpu_custom_call.1} parent=11 // pred_region
          %s210 = ssub.s32 10240, 10240
          %211 = vsyncadd [#allocation6], %s210
          %s212 = sshll.u32 [#allocation7], 4
          %s213 = int_to_ptr.vmem [resolvable:$true] %s212
          %218 = dma.hbm_to_vmem [thread:$0]  %s2, 10240, %s213, [#allocation6], 128, 128, 8
        $region20: #{tpu_custom_call.1} parent=11 // pred_fallthru
          _
        // Predicated region
        $region21: #{tpu_custom_call.1} parent=11 // pred_check
          %p219 = pneg %p110
        $region22: #{tpu_custom_call.1} parent=11 // pred_check_branch
          %221 = sbr.rel (%p219) target = $region24
        $region23: #{tpu_custom_call.1} parent=11 // pred_region
          %s223 = ssub.s32 40960, 40960
          %224 = vsyncadd [#allocation9], %s223
          %s225 = sshll.u32 [#allocation8], 4
          %s226 = int_to_ptr.vmem [resolvable:$true] %s225
          %231 = dma.hbm_to_vmem [thread:$0]  %s3, 40960, %s226, [#allocation9], 256, 256, 16
        $region24: #{tpu_custom_call.1} parent=11 // pred_fallthru
          _
        // Predicated region
        $region25: #{tpu_custom_call.1} parent=11 // pred_check
          %p232 = pneg %p131
        $region26: #{tpu_custom_call.1} parent=11 // pred_check_branch
          %234 = sbr.rel (%p232) target = $region28
        $region27: #{tpu_custom_call.1} parent=11 // pred_region
          %s236 = ssub.s32 98304, 98304
          %237 = vsyncadd [#allocation9], %s236
          %s238 = sshll.u32 [#allocation10], 4
          %s239 = int_to_ptr.vmem [resolvable:$true] %s238
          %244 = dma.hbm_to_vmem [thread:$0]  %s4, 98304, %s239, [#allocation9], 512, 512, 32
        $region28: #{tpu_custom_call.1} parent=11 // pred_fallthru
          _
        // Predicated region
        $region29: #{tpu_custom_call.1} parent=11 // pred_check
          %p245 = pneg %p152
        $region30: #{tpu_custom_call.1} parent=11 // pred_check_branch
          %247 = sbr.rel (%p245) target = $region32
        $region31: #{tpu_custom_call.1} parent=11 // pred_region
          %s249 = ssub.s32 560, 560
          %250 = vsyncadd [#allocation12], %s249
          %s252 = sshll.u32 [#allocation11], 4
          %s253 = int_to_ptr.vmem [resolvable:$true] %s252
          %255 = dma.hbm_to_vmem [thread:$0]  %s5, 560, %s253, [#allocation12]
        $region32: #{tpu_custom_call.1} parent=11 // pred_fallthru
          _
      $region12: #{tpu_custom_call.1} parent=5 // pred_fallthru
        _
      %p256 = scmp.lt.s32.totalorder %s21, 4
      // Predicated region
      $region33: #{tpu_custom_call.1} parent=5 // pred_check
        %p257 = pneg %p256
      $region34: #{tpu_custom_call.1} parent=5 // pred_check_branch
        %259 = sbr.rel (%p257) target = $region36
      $region35: #{tpu_custom_call.1} parent=5 // pred_region
        // Predicated region
        $region37: #{tpu_custom_call.1} parent=35 // pred_check
          %p260 = pneg %p41
        $region38: #{tpu_custom_call.1} parent=35 // pred_check_branch
          %262 = sbr.rel (%p260) target = $region40
        $region39: #{tpu_custom_call.1} parent=35 // pred_region
          %s263 = sand.u32 %s31, 1
          %s264 = scalar_lea.sflag [#allocation3], %s263
          %s265 = sand.u32 %s31, 1
          %s266 = smul.addr %s265, 8
          %s267 = scalar_lea.vmem [#allocation2], %s266
          %s269 = ssub.s32 128, 128
          %270 = vsyncadd %s264, %s269
          %s271 = smul.addr %s21, 128
          %s272 = scalar_lea.hbm %s0, %s271
          %s274 = sshll.u32 %s267, 4
          %s275 = int_to_ptr.vmem [resolvable:$true] %s274
          %277 = dma.hbm_to_vmem [thread:$0]  %s272, 128, %s275, %s264
        $region40: #{tpu_custom_call.1} parent=35 // pred_fallthru
          _
      $region36: #{tpu_custom_call.1} parent=5 // pred_fallthru
        _
      %p278 = scmp.le.s32.totalorder 1, %s21
      %p279 = scmp.lt.s32.totalorder %s21, 5
      %p280 = pnand %p278, %p279
      %p281 = pneg %p280
      // Predicated region
      $region41: #{tpu_custom_call.1} parent=5 // pred_check
        _
      $region42: #{tpu_custom_call.1} parent=5 // pred_check_branch
        %283 = sbr.rel (%p280) target = $region44
      $region43: #{tpu_custom_call.1} parent=5 // pred_region
        %s284 = ssub.s32 %s21, 1
        %s285 = sand.u32 %s34, 1
        %s286 = scalar_lea.sflag [#allocation3], %s285
        %s287 = sand.u32 %s34, 1
        %s288 = smul.addr %s287, 8
        %s289 = scalar_lea.vmem [#allocation2], %s288
        // Predicated region
        $region45: #{tpu_custom_call.1} parent=43 // pred_check
          %p290 = pneg %p47
        $region46: #{tpu_custom_call.1} parent=43 // pred_check_branch
          %292 = sbr.rel (%p290) target = $region48
        $region47: #{tpu_custom_call.1} parent=43 // pred_region
          %293 = dma.done %s286, 128
        $region48: #{tpu_custom_call.1} parent=43 // pred_fallthru
          _
        // Predicated region
        $region49: #{tpu_custom_call.1} parent=43 // pred_check
          %p294 = pneg %p68
        $region50: #{tpu_custom_call.1} parent=43 // pred_check_branch
          %296 = sbr.rel (%p294) target = $region52
        $region51: #{tpu_custom_call.1} parent=43 // pred_region
          %297 = dma.done [#allocation6], 4864
        $region52: #{tpu_custom_call.1} parent=43 // pred_fallthru
          _
        // Predicated region
        $region53: #{tpu_custom_call.1} parent=43 // pred_check
          %p298 = pneg %p89
        $region54: #{tpu_custom_call.1} parent=43 // pred_check_branch
          %300 = sbr.rel (%p298) target = $region56
        $region55: #{tpu_custom_call.1} parent=43 // pred_region
          %301 = dma.done [#allocation6], 10240
        $region56: #{tpu_custom_call.1} parent=43 // pred_fallthru
          _
        // Predicated region
        $region57: #{tpu_custom_call.1} parent=43 // pred_check
          %p302 = pneg %p110
        $region58: #{tpu_custom_call.1} parent=43 // pred_check_branch
          %304 = sbr.rel (%p302) target = $region60
        $region59: #{tpu_custom_call.1} parent=43 // pred_region
          %305 = dma.done [#allocation9], 40960
        $region60: #{tpu_custom_call.1} parent=43 // pred_fallthru
          _
        // Predicated region
        $region61: #{tpu_custom_call.1} parent=43 // pred_check
          %p306 = pneg %p131
        $region62: #{tpu_custom_call.1} parent=43 // pred_check_branch
          %308 = sbr.rel (%p306) target = $region64
        $region63: #{tpu_custom_call.1} parent=43 // pred_region
          %309 = dma.done [#allocation9], 98304
        $region64: #{tpu_custom_call.1} parent=43 // pred_fallthru
          _
        // Predicated region
        $region65: #{tpu_custom_call.1} parent=43 // pred_check
          %p310 = pneg %p152
        $region66: #{tpu_custom_call.1} parent=43 // pred_check_branch
          %312 = sbr.rel (%p310) target = $region68
        $region67: #{tpu_custom_call.1} parent=43 // pred_region
          %313 = dma.done [#allocation12], 560
        $region68: #{tpu_custom_call.1} parent=43 // pred_fallthru
          _
        %s314 = sand.u32 %s34, 1
        %s315 = scalar_lea.sflag [#allocation3], %s314
        %s316 = sand.u32 %s34, 1
        %s317 = smul.addr %s316, 8
        %s318 = scalar_lea.vmem [#allocation2], %s317
        %p319 = pneg %p47
        %p320 = pneg %p44
        %p321 = pneg %p68
        %p322 = pneg %p65
        %p323 = pneg %p89
        %p324 = pneg %p86
        %p325 = pneg %p110
        %p326 = pneg %p107
        %p327 = pneg %p131
        %p328 = pneg %p128
        %p329 = pneg %p152
        %p330 = pneg %p149
        %p331 = pneg %p178
        %p332 = pneg %p175
        %s333 = sand.u32 %s165, 1
        %s334 = scalar_lea.sflag [#allocation4], %s333
        %s335 = sand.u32 %s165, 1
        %s336 = smul.addr %s335, 8
        %s337 = scalar_lea.vmem [#allocation13], %s336
        %v339 = vld [vmem:[%s289] sm:$0xff]
        %v340 = vpack.c.bf16 %v339, %v339
        %v341 = vld [vmem:[#allocation5] sm:$0xf]
        %v342 = vld [vmem:[#allocation5 + $0x4] sm:$0xf]
        %v343 = vld [vmem:[#allocation5 + $0x8] sm:$0xf]
        %v344 = vld [vmem:[#allocation5 + $0xc] sm:$0xf]
        %v345 = vld [vmem:[#allocation11] sm:$0x1]
        %v347 = vlaneseq
        %v348 = vshrl.u32 %v347, 7
        %v349 = vsub.s32 0, %v348
        %v350 = vrot.slane %v345, %v349
        %v356 = vunpack.c.l.b16 %v341
        %v357 = vunpack.c.l.b16 %v342
        %v358 = vunpack.c.l.b16 %v343
        %v359 = vunpack.c.l.b16 %v344
        %v360 = vpack.c.b16 %v357, %v356
        %v361 = vpack.c.b16 %v359, %v358
        %vm364 = vcmask 261120
        %v366 = vsel %vm364, %v340, 0
        %368 = vmatprep.subr.bf16.mxu0 0
        %369 = vmatpush1.bf16.msra.mxu0 0
        %370 = vmatprep.subr.bf16.mxu0 0
        %371 = vmatpush1.bf16.msra.mxu0 0
        %372 = vmatprep.subr.bf16.mxu0 0
        %373 = vmatpush1.bf16.msra.mxu0 0
        %374 = vmatprep.subr.bf16.mxu0 0
        %375 = vmatpush1.bf16.msra.mxu0 0
        %376 = vmatprep.subr.bf16.mxu0 0
        %377 = vmatpush1.bf16.msra.mxu0 0
        %378 = vmatprep.subr.bf16.mxu0 0
        %379 = vmatpush1.bf16.msra.mxu0 0
        %380 = vmatprep.subr.bf16.mxu0 0
        %381 = vmatpush1.bf16.msra.mxu0 %v361
        %382 = vmatprep.subr.bf16.mxu0 0
        %383 = vmatpush1.bf16.msra.mxu0 %v360
        %384 = vmatprep.subr.bf16.mxu0 0
        %385 = vmatpush2.bf16.msra.mxu0 0
        %386 = vmatprep.subr.bf16.mxu0 0
        %387 = vmatpush2.bf16.msra.mxu0 0
        %388 = vmatprep.subr.bf16.mxu0 0
        %389 = vmatpush2.bf16.msra.mxu0 0
        %390 = vmatprep.subr.bf16.mxu0 0
        %391 = vmatpush2.bf16.msra.mxu0 0
        %392 = vmatprep.subr.bf16.mxu0 0
        %393 = vmatpush2.bf16.msra.mxu0 0
        %394 = vmatprep.subr.bf16.mxu0 0
        %395 = vmatpush2.bf16.msra.mxu0 0
        %396 = vmatprep.subr.bf16.mxu0 0
        %397 = vmatpush2.bf16.msra.mxu0 0
        %398 = vmatprep.subr.bf16.mxu0 0
        %399 = vmatpush2.bf16.msra.mxu0 0
        %400 = vmatprep.mubr.bf16.mxu0 0
        %401 = vmatmul.mubr.bf16.gmra.mxu0 %v366
        %v402 = vpop.f32.mrf.mxu0
        %v403 = vadd.f32 %v350, %v402
        %v404 = vpop.f32.mrf.mxu0
        %v405 = vpop.f32.mrf.mxu0
        %v406 = vpop.f32.mrf.mxu0
        %407 = vdwg.mxu0
        %v408 = vmax.f32 %v403, 0.0
        %v409 = vpack.c.bf16 %v408, %v408
        %v410 = vld [vmem:[#allocation5 + $0x10] sm:$0xf]
        %v411 = vld [vmem:[#allocation5 + $0x14] sm:$0xf]
        %v412 = vld [vmem:[#allocation5 + $0x18] sm:$0xf]
        %v413 = vld [vmem:[#allocation5 + $0x1c] sm:$0xf]
        %v414 = vld [vmem:[#allocation11 + $0x1] sm:$0x1]
        %v416 = vlaneseq
        %v417 = vshrl.u32 %v416, 7
        %v418 = vsub.s32 0, %v417
        %v419 = vrot.slane %v414, %v418
        %v425 = vunpack.c.l.b16 %v410
        %v426 = vunpack.c.l.b16 %v411
        %v427 = vunpack.c.l.b16 %v412
        %v428 = vunpack.c.l.b16 %v413
        %v429 = vpack.c.b16 %v426, %v425
        %v430 = vpack.c.b16 %v428, %v427
        %v434 = vsel %vm364, %v409, 0
        %436 = vmatprep.subr.bf16.mxu0 0
        %437 = vmatpush1.bf16.msra.mxu0 0
        %438 = vmatprep.subr.bf16.mxu0 0
        %439 = vmatpush1.bf16.msra.mxu0 0
        %440 = vmatprep.subr.bf16.mxu0 0
        %441 = vmatpush1.bf16.msra.mxu0 0
        %442 = vmatprep.subr.bf16.mxu0 0
        %443 = vmatpush1.bf16.msra.mxu0 0
        %444 = vmatprep.subr.bf16.mxu0 0
        %445 = vmatpush1.bf16.msra.mxu0 0
        %446 = vmatprep.subr.bf16.mxu0 0
        %447 = vmatpush1.bf16.msra.mxu0 0
        %448 = vmatprep.subr.bf16.mxu0 0
        %449 = vmatpush1.bf16.msra.mxu0 %v430
        %450 = vmatprep.subr.bf16.mxu0 0
        %451 = vmatpush1.bf16.msra.mxu0 %v429
        %452 = vmatprep.subr.bf16.mxu0 0
        %453 = vmatpush2.bf16.msra.mxu0 0
        %454 = vmatprep.subr.bf16.mxu0 0
        %455 = vmatpush2.bf16.msra.mxu0 0
        %456 = vmatprep.subr.bf16.mxu0 0
        %457 = vmatpush2.bf16.msra.mxu0 0
        %458 = vmatprep.subr.bf16.mxu0 0
        %459 = vmatpush2.bf16.msra.mxu0 0
        %460 = vmatprep.subr.bf16.mxu0 0
        %461 = vmatpush2.bf16.msra.mxu0 0
        %462 = vmatprep.subr.bf16.mxu0 0
        %463 = vmatpush2.bf16.msra.mxu0 0
        %464 = vmatprep.subr.bf16.mxu0 0
        %465 = vmatpush2.bf16.msra.mxu0 0
        %466 = vmatprep.subr.bf16.mxu0 0
        %467 = vmatpush2.bf16.msra.mxu0 0
        %468 = vmatprep.mubr.bf16.mxu0 0
        %469 = vmatmul.mubr.bf16.gmra.mxu0 %v434
        %v470 = vpop.f32.mrf.mxu0
        %v471 = vadd.f32 %v419, %v470
        %v472 = vpop.f32.mrf.mxu0
        %v473 = vpop.f32.mrf.mxu0
        %v474 = vpop.f32.mrf.mxu0
        %475 = vdwg.mxu0
        %v476 = vmax.f32 %v471, 0.0
        %v477 = vpack.c.bf16 %v476, %v476
        %v478 = vld [vmem:[#allocation5 + $0x20] sm:$0xf]
        %v479 = vld [vmem:[#allocation5 + $0x24] sm:$0xf]
        %v480 = vld [vmem:[#allocation5 + $0x28] sm:$0xf]
        %v481 = vld [vmem:[#allocation5 + $0x2c] sm:$0xf]
        %v482 = vld [vmem:[#allocation5 + $0x30] sm:$0xf]
        %v483 = vld [vmem:[#allocation5 + $0x34] sm:$0xf]
        %v484 = vld [vmem:[#allocation5 + $0x38] sm:$0xf]
        %v485 = vld [vmem:[#allocation5 + $0x3c] sm:$0xf]
        %v486 = vld [vmem:[#allocation11 + $0x2] sm:$0x1]
        %v488 = vlaneseq
        %v489 = vshrl.u32 %v488, 7
        %v490 = vsub.s32 0, %v489
        %v491 = vrot.slane %v486, %v490
        %v501 = vunpack.c.l.b16 %v478
        %v502 = vunpack.c.l.b16 %v479
        %v503 = vunpack.c.l.b16 %v480
        %v504 = vunpack.c.l.b16 %v481
        %v505 = vunpack.c.l.b16 %v482
        %v506 = vunpack.c.l.b16 %v483
        %v507 = vunpack.c.l.b16 %v484
        %v508 = vunpack.c.l.b16 %v485
        %v509 = vpack.c.b16 %v502, %v501
        %v510 = vpack.c.b16 %v504, %v503
        %v511 = vpack.c.b16 %v506, %v505
        %v512 = vpack.c.b16 %v508, %v507
        %vm517 = vcmask 523264
        %v519 = vsel %vm517, %v477, 0
        %521 = vmatprep.subr.bf16.mxu0 0
        %522 = vmatpush1.bf16.msra.mxu0 0
        %523 = vmatprep.subr.bf16.mxu0 0
        %524 = vmatpush1.bf16.msra.mxu0 0
        %525 = vmatprep.subr.bf16.mxu0 0
        %526 = vmatpush1.bf16.msra.mxu0 0
        %527 = vmatprep.subr.bf16.mxu0 0
        %528 = vmatpush1.bf16.msra.mxu0 0
        %529 = vmatprep.subr.bf16.mxu0 0
        %530 = vmatpush1.bf16.msra.mxu0 %v512
        %531 = vmatprep.subr.bf16.mxu0 0
        %532 = vmatpush1.bf16.msra.mxu0 %v511
        %533 = vmatprep.subr.bf16.mxu0 0
        %534 = vmatpush1.bf16.msra.mxu0 %v510
        %535 = vmatprep.subr.bf16.mxu0 0
        %536 = vmatpush1.bf16.msra.mxu0 %v509
        %537 = vmatprep.subr.bf16.mxu0 0
        %538 = vmatpush2.bf16.msra.mxu0 0
        %539 = vmatprep.subr.bf16.mxu0 0
        %540 = vmatpush2.bf16.msra.mxu0 0
        %541 = vmatprep.subr.bf16.mxu0 0
        %542 = vmatpush2.bf16.msra.mxu0 0
        %543 = vmatprep.subr.bf16.mxu0 0
        %544 = vmatpush2.bf16.msra.mxu0 0
        %545 = vmatprep.subr.bf16.mxu0 0
        %546 = vmatpush2.bf16.msra.mxu0 0
        %547 = vmatprep.subr.bf16.mxu0 0
        %548 = vmatpush2.bf16.msra.mxu0 0
        %549 = vmatprep.subr.bf16.mxu0 0
        %550 = vmatpush2.bf16.msra.mxu0 0
        %551 = vmatprep.subr.bf16.mxu0 0
        %552 = vmatpush2.bf16.msra.mxu0 0
        %553 = vmatprep.mubr.bf16.mxu0 0
        %554 = vmatmul.mubr.bf16.gmra.mxu0 %v519
        %v555 = vpop.f32.mrf.mxu0
        %v556 = vadd.f32 %v491, %v555
        %v557 = vpop.f32.mrf.mxu0
        %v558 = vpop.f32.mrf.mxu0
        %v559 = vpop.f32.mrf.mxu0
        %560 = vdwg.mxu0
        %v561 = vmax.f32 %v556, 0.0
        %v562 = vpack.c.bf16 %v561, %v561
        %v563 = vld [vmem:[#allocation7] sm:$0xff]
        %v564 = vld [vmem:[#allocation7 + $0x8] sm:$0xff]
        %v565 = vld [vmem:[#allocation7 + $0x10] sm:$0xff]
        %v566 = vld [vmem:[#allocation7 + $0x18] sm:$0xff]
        %v567 = vld [vmem:[#allocation7 + $0x20] sm:$0xff]
        %v568 = vld [vmem:[#allocation7 + $0x28] sm:$0xff]
        %v569 = vld [vmem:[#allocation7 + $0x30] sm:$0xff]
        %v570 = vld [vmem:[#allocation7 + $0x38] sm:$0xff]
        %v571 = vld [vmem:[#allocation7 + $0x40] sm:$0xff]
        %v572 = vld [vmem:[#allocation7 + $0x48] sm:$0xff]
        %v573 = vld [vmem:[#allocation7 + $0x50] sm:$0xff]
        %v574 = vld [vmem:[#allocation7 + $0x58] sm:$0xff]
        %v575 = vld [vmem:[#allocation7 + $0x60] sm:$0xff]
        %v576 = vld [vmem:[#allocation7 + $0x68] sm:$0xff]
        %v577 = vld [vmem:[#allocation7 + $0x70] sm:$0xff]
        %v578 = vld [vmem:[#allocation7 + $0x78] sm:$0xff]
        %v579 = vld [vmem:[#allocation11 + $0x3] sm:$0x3]
        %v581 = vlaneseq
        %v582 = vshrl.u32 %v581, 7
        %v583 = vsub.s32 0, %v582
        %v584 = vrot.slane %v579, %v583
        %v585 = vlaneseq
        %v586 = vshrl.u32 %v585, 7
        %v587 = vsub.s32 1, %v586
        %v588 = vrot.slane %v579, %v587
        %v607 = vunpack.c.l.b16 %v563
        %v608 = vunpack.c.h.b16 %v563
        %v609 = vunpack.c.l.b16 %v564
        %v610 = vunpack.c.h.b16 %v564
        %v611 = vunpack.c.l.b16 %v565
        %v612 = vunpack.c.h.b16 %v565
        %v613 = vunpack.c.l.b16 %v566
        %v614 = vunpack.c.h.b16 %v566
        %v615 = vunpack.c.l.b16 %v567
        %v616 = vunpack.c.h.b16 %v567
        %v617 = vunpack.c.l.b16 %v568
        %v618 = vunpack.c.h.b16 %v568
        %v619 = vunpack.c.l.b16 %v569
        %v620 = vunpack.c.h.b16 %v569
        %v621 = vunpack.c.l.b16 %v570
        %v622 = vunpack.c.h.b16 %v570
        %v623 = vunpack.c.l.b16 %v571
        %v624 = vunpack.c.h.b16 %v571
        %v625 = vunpack.c.l.b16 %v572
        %v626 = vunpack.c.h.b16 %v572
        %v627 = vunpack.c.l.b16 %v573
        %v628 = vunpack.c.h.b16 %v573
        %v629 = vunpack.c.l.b16 %v574
        %v630 = vunpack.c.h.b16 %v574
        %v631 = vunpack.c.l.b16 %v575
        %v632 = vunpack.c.h.b16 %v575
        %v633 = vunpack.c.l.b16 %v576
        %v634 = vunpack.c.h.b16 %v576
        %v635 = vunpack.c.l.b16 %v577
        %v636 = vunpack.c.h.b16 %v577
        %v637 = vunpack.c.l.b16 %v578
        %v638 = vunpack.c.h.b16 %v578
        %v639 = vpack.c.b16 %v609, %v607
        %v640 = vpack.c.b16 %v610, %v608
        %v641 = vpack.c.b16 %v613, %v611
        %v642 = vpack.c.b16 %v614, %v612
        %v643 = vpack.c.b16 %v617, %v615
        %v644 = vpack.c.b16 %v618, %v616
        %v645 = vpack.c.b16 %v621, %v619
        %v646 = vpack.c.b16 %v622, %v620
        %v647 = vpack.c.b16 %v625, %v623
        %v648 = vpack.c.b16 %v626, %v624
        %v649 = vpack.c.b16 %v629, %v627
        %v650 = vpack.c.b16 %v630, %v628
        %v651 = vpack.c.b16 %v633, %v631
        %v652 = vpack.c.b16 %v634, %v632
        %v653 = vpack.c.b16 %v637, %v635
        %v654 = vpack.c.b16 %v638, %v636
        %671 = vmatprep.subr.bf16.mxu0 %v654
        %672 = vmatpush1.bf16.msra.mxu0 %v653
        %673 = vmatprep.subr.bf16.mxu0 %v652
        %674 = vmatpush1.bf16.msra.mxu0 %v651
        %675 = vmatprep.subr.bf16.mxu0 %v650
        %676 = vmatpush1.bf16.msra.mxu0 %v649
        %677 = vmatprep.subr.bf16.mxu0 %v648
        %678 = vmatpush1.bf16.msra.mxu0 %v647
        %679 = vmatprep.subr.bf16.mxu0 %v646
        %680 = vmatpush1.bf16.msra.mxu0 %v645
        %681 = vmatprep.subr.bf16.mxu0 %v644
        %682 = vmatpush1.bf16.msra.mxu0 %v643
        %683 = vmatprep.subr.bf16.mxu0 %v642
        %684 = vmatpush1.bf16.msra.mxu0 %v641
        %685 = vmatprep.subr.bf16.mxu0 %v640
        %686 = vmatpush1.bf16.msra.mxu0 %v639
        %687 = vmatprep.subr.bf16.mxu0 0
        %688 = vmatpush2.bf16.msra.mxu0 0
        %689 = vmatprep.subr.bf16.mxu0 0
        %690 = vmatpush2.bf16.msra.mxu0 0
        %691 = vmatprep.subr.bf16.mxu0 0
        %692 = vmatpush2.bf16.msra.mxu0 0
        %693 = vmatprep.subr.bf16.mxu0 0
        %694 = vmatpush2.bf16.msra.mxu0 0
        %695 = vmatprep.subr.bf16.mxu0 0
        %696 = vmatpush2.bf16.msra.mxu0 0
        %697 = vmatprep.subr.bf16.mxu0 0
        %698 = vmatpush2.bf16.msra.mxu0 0
        %699 = vmatprep.subr.bf16.mxu0 0
        %700 = vmatpush2.bf16.msra.mxu0 0
        %701 = vmatprep.subr.bf16.mxu0 0
        %702 = vmatpush2.bf16.msra.mxu0 0
        %703 = vmatprep.mubr.bf16.mxu0 0
        %704 = vmatmul.mubr.bf16.gmra.mxu0 %v562
        %v705 = vpop.f32.mrf.mxu0
        %v706 = vadd.f32 %v584, %v705
        %v707 = vpop.f32.mrf.mxu0
        %v708 = vadd.f32 %v588, %v707
        %v709 = vpop.f32.mrf.mxu0
        %v710 = vpop.f32.mrf.mxu0
        %711 = vdwg.mxu0
        %v712 = vmax.f32 %v706, 0.0
        %v713 = vmax.f32 %v708, 0.0
        %v714 = vpack.c.bf16 %v712, %v712
        %v715 = vpack.c.bf16 %v713, %v713
        %v716 = vld [vmem:[#allocation8] sm:$0xff]
        %v717 = vld [vmem:[#allocation8 + $0x8] sm:$0xff]
        %v718 = vld [vmem:[#allocation8 + $0x10] sm:$0xff]
        %v719 = vld [vmem:[#allocation8 + $0x18] sm:$0xff]
        %v720 = vld [vmem:[#allocation8 + $0x20] sm:$0xff]
        %v721 = vld [vmem:[#allocation8 + $0x28] sm:$0xff]
        %v722 = vld [vmem:[#allocation8 + $0x30] sm:$0xff]
        %v723 = vld [vmem:[#allocation8 + $0x38] sm:$0xff]
        %v724 = vld [vmem:[#allocation8 + $0x40] sm:$0xff]
        %v725 = vld [vmem:[#allocation8 + $0x48] sm:$0xff]
        %v726 = vld [vmem:[#allocation8 + $0x50] sm:$0xff]
        %v727 = vld [vmem:[#allocation8 + $0x58] sm:$0xff]
        %v728 = vld [vmem:[#allocation8 + $0x60] sm:$0xff]
        %v729 = vld [vmem:[#allocation8 + $0x68] sm:$0xff]
        %v730 = vld [vmem:[#allocation8 + $0x70] sm:$0xff]
        %v731 = vld [vmem:[#allocation8 + $0x78] sm:$0xff]
        %v732 = vld [vmem:[#allocation8 + $0x80] sm:$0xff]
        %v733 = vld [vmem:[#allocation8 + $0x88] sm:$0xff]
        %v734 = vld [vmem:[#allocation8 + $0x90] sm:$0xff]
        %v735 = vld [vmem:[#allocation8 + $0x98] sm:$0xff]
        %v736 = vld [vmem:[#allocation8 + $0xa0] sm:$0xff]
        %v737 = vld [vmem:[#allocation8 + $0xa8] sm:$0xff]
        %v738 = vld [vmem:[#allocation8 + $0xb0] sm:$0xff]
        %v739 = vld [vmem:[#allocation8 + $0xb8] sm:$0xff]
        %v740 = vld [vmem:[#allocation8 + $0xc0] sm:$0xff]
        %v741 = vld [vmem:[#allocation8 + $0xc8] sm:$0xff]
        %v742 = vld [vmem:[#allocation8 + $0xd0] sm:$0xff]
        %v743 = vld [vmem:[#allocation8 + $0xd8] sm:$0xff]
        %v744 = vld [vmem:[#allocation8 + $0xe0] sm:$0xff]
        %v745 = vld [vmem:[#allocation8 + $0xe8] sm:$0xff]
        %v746 = vld [vmem:[#allocation8 + $0xf0] sm:$0xff]
        %v747 = vld [vmem:[#allocation8 + $0xf8] sm:$0xff]
        %v748 = vld [vmem:[#allocation8 + $0x100] sm:$0xff]
        %v749 = vld [vmem:[#allocation8 + $0x108] sm:$0xff]
        %v750 = vld [vmem:[#allocation8 + $0x110] sm:$0xff]
        %v751 = vld [vmem:[#allocation8 + $0x118] sm:$0xff]
        %v752 = vld [vmem:[#allocation8 + $0x120] sm:$0xff]
        %v753 = vld [vmem:[#allocation8 + $0x128] sm:$0xff]
        %v754 = vld [vmem:[#allocation8 + $0x130] sm:$0xff]
        %v755 = vld [vmem:[#allocation8 + $0x138] sm:$0xff]
        %v756 = vld [vmem:[#allocation8 + $0x140] sm:$0xff]
        %v757 = vld [vmem:[#allocation8 + $0x148] sm:$0xff]
        %v758 = vld [vmem:[#allocation8 + $0x150] sm:$0xff]
        %v759 = vld [vmem:[#allocation8 + $0x158] sm:$0xff]
        %v760 = vld [vmem:[#allocation8 + $0x160] sm:$0xff]
        %v761 = vld [vmem:[#allocation8 + $0x168] sm:$0xff]
        %v762 = vld [vmem:[#allocation8 + $0x170] sm:$0xff]
        %v763 = vld [vmem:[#allocation8 + $0x178] sm:$0xff]
        %v764 = vld [vmem:[#allocation8 + $0x180] sm:$0xff]
        %v765 = vld [vmem:[#allocation8 + $0x188] sm:$0xff]
        %v766 = vld [vmem:[#allocation8 + $0x190] sm:$0xff]
        %v767 = vld [vmem:[#allocation8 + $0x198] sm:$0xff]
        %v768 = vld [vmem:[#allocation8 + $0x1a0] sm:$0xff]
        %v769 = vld [vmem:[#allocation8 + $0x1a8] sm:$0xff]
        %v770 = vld [vmem:[#allocation8 + $0x1b0] sm:$0xff]
        %v771 = vld [vmem:[#allocation8 + $0x1b8] sm:$0xff]
        %v772 = vld [vmem:[#allocation8 + $0x1c0] sm:$0xff]
        %v773 = vld [vmem:[#allocation8 + $0x1c8] sm:$0xff]
        %v774 = vld [vmem:[#allocation8 + $0x1d0] sm:$0xff]
        %v775 = vld [vmem:[#allocation8 + $0x1d8] sm:$0xff]
        %v776 = vld [vmem:[#allocation8 + $0x1e0] sm:$0xff]
        %v777 = vld [vmem:[#allocation8 + $0x1e8] sm:$0xff]
        %v778 = vld [vmem:[#allocation8 + $0x1f0] sm:$0xff]
        %v779 = vld [vmem:[#allocation8 + $0x1f8] sm:$0xff]
        %v780 = vld [vmem:[#allocation11 + $0x5] sm:$0xf]
        %v782 = vlaneseq
        %v783 = vshrl.u32 %v782, 7
        %v784 = vsub.s32 0, %v783
        %v785 = vrot.slane %v780, %v784
        %v786 = vlaneseq
        %v787 = vshrl.u32 %v786, 7
        %v788 = vsub.s32 1, %v787
        %v789 = vrot.slane %v780, %v788
        %v790 = vlaneseq
        %v791 = vshrl.u32 %v790, 7
        %v792 = vsub.s32 2, %v791
        %v793 = vrot.slane %v780, %v792
        %v794 = vlaneseq
        %v795 = vshrl.u32 %v794, 7
        %v796 = vsub.s32 3, %v795
        %v797 = vrot.slane %v780, %v796
        %v866 = vunpack.c.l.b16 %v716
        %v867 = vunpack.c.h.b16 %v716
        %v868 = vunpack.c.l.b16 %v717
        %v869 = vunpack.c.h.b16 %v717
        %v870 = vunpack.c.l.b16 %v718
        %v871 = vunpack.c.h.b16 %v718
        %v872 = vunpack.c.l.b16 %v719
        %v873 = vunpack.c.h.b16 %v719
        %v874 = vunpack.c.l.b16 %v720
        %v875 = vunpack.c.h.b16 %v720
        %v876 = vunpack.c.l.b16 %v721
        %v877 = vunpack.c.h.b16 %v721
        %v878 = vunpack.c.l.b16 %v722
        %v879 = vunpack.c.h.b16 %v722
        %v880 = vunpack.c.l.b16 %v723
        %v881 = vunpack.c.h.b16 %v723
        %v882 = vunpack.c.l.b16 %v724
        %v883 = vunpack.c.h.b16 %v724
        %v884 = vunpack.c.l.b16 %v725
        %v885 = vunpack.c.h.b16 %v725
        %v886 = vunpack.c.l.b16 %v726
        %v887 = vunpack.c.h.b16 %v726
        %v888 = vunpack.c.l.b16 %v727
        %v889 = vunpack.c.h.b16 %v727
        %v890 = vunpack.c.l.b16 %v728
        %v891 = vunpack.c.h.b16 %v728
        %v892 = vunpack.c.l.b16 %v729
        %v893 = vunpack.c.h.b16 %v729
        %v894 = vunpack.c.l.b16 %v730
        %v895 = vunpack.c.h.b16 %v730
        %v896 = vunpack.c.l.b16 %v731
        %v897 = vunpack.c.h.b16 %v731
        %v898 = vunpack.c.l.b16 %v732
        %v899 = vunpack.c.h.b16 %v732
        %v900 = vunpack.c.l.b16 %v733
        %v901 = vunpack.c.h.b16 %v733
        %v902 = vunpack.c.l.b16 %v734
        %v903 = vunpack.c.h.b16 %v734
        %v904 = vunpack.c.l.b16 %v735
        %v905 = vunpack.c.h.b16 %v735
        %v906 = vunpack.c.l.b16 %v736
        %v907 = vunpack.c.h.b16 %v736
        %v908 = vunpack.c.l.b16 %v737
        %v909 = vunpack.c.h.b16 %v737
        %v910 = vunpack.c.l.b16 %v738
        %v911 = vunpack.c.h.b16 %v738
        %v912 = vunpack.c.l.b16 %v739
        %v913 = vunpack.c.h.b16 %v739
        %v914 = vunpack.c.l.b16 %v740
        %v915 = vunpack.c.h.b16 %v740
        %v916 = vunpack.c.l.b16 %v741
        %v917 = vunpack.c.h.b16 %v741
        %v918 = vunpack.c.l.b16 %v742
        %v919 = vunpack.c.h.b16 %v742
        %v920 = vunpack.c.l.b16 %v743
        %v921 = vunpack.c.h.b16 %v743
        %v922 = vunpack.c.l.b16 %v744
        %v923 = vunpack.c.h.b16 %v744
        %v924 = vunpack.c.l.b16 %v745
        %v925 = vunpack.c.h.b16 %v745
        %v926 = vunpack.c.l.b16 %v746
        %v927 = vunpack.c.h.b16 %v746
        %v928 = vunpack.c.l.b16 %v747
        %v929 = vunpack.c.h.b16 %v747
        %v930 = vunpack.c.l.b16 %v748
        %v931 = vunpack.c.h.b16 %v748
        %v932 = vunpack.c.l.b16 %v749
        %v933 = vunpack.c.h.b16 %v749
        %v934 = vunpack.c.l.b16 %v750
        %v935 = vunpack.c.h.b16 %v750
        %v936 = vunpack.c.l.b16 %v751
        %v937 = vunpack.c.h.b16 %v751
        %v938 = vunpack.c.l.b16 %v752
        %v939 = vunpack.c.h.b16 %v752
        %v940 = vunpack.c.l.b16 %v753
        %v941 = vunpack.c.h.b16 %v753
        %v942 = vunpack.c.l.b16 %v754
        %v943 = vunpack.c.h.b16 %v754
        %v944 = vunpack.c.l.b16 %v755
        %v945 = vunpack.c.h.b16 %v755
        %v946 = vunpack.c.l.b16 %v756
        %v947 = vunpack.c.h.b16 %v756
        %v948 = vunpack.c.l.b16 %v757
        %v949 = vunpack.c.h.b16 %v757
        %v950 = vunpack.c.l.b16 %v758
        %v951 = vunpack.c.h.b16 %v758
        %v952 = vunpack.c.l.b16 %v759
        %v953 = vunpack.c.h.b16 %v759
        %v954 = vunpack.c.l.b16 %v760
        %v955 = vunpack.c.h.b16 %v760
        %v956 = vunpack.c.l.b16 %v761
        %v957 = vunpack.c.h.b16 %v761
        %v958 = vunpack.c.l.b16 %v762
        %v959 = vunpack.c.h.b16 %v762
        %v960 = vunpack.c.l.b16 %v763
        %v961 = vunpack.c.h.b16 %v763
        %v962 = vunpack.c.l.b16 %v764
        %v963 = vunpack.c.h.b16 %v764
        %v964 = vunpack.c.l.b16 %v765
        %v965 = vunpack.c.h.b16 %v765
        %v966 = vunpack.c.l.b16 %v766
        %v967 = vunpack.c.h.b16 %v766
        %v968 = vunpack.c.l.b16 %v767
        %v969 = vunpack.c.h.b16 %v767
        %v970 = vunpack.c.l.b16 %v768
        %v971 = vunpack.c.h.b16 %v768
        %v972 = vunpack.c.l.b16 %v769
        %v973 = vunpack.c.h.b16 %v769
        %v974 = vunpack.c.l.b16 %v770
        %v975 = vunpack.c.h.b16 %v770
        %v976 = vunpack.c.l.b16 %v771
        %v977 = vunpack.c.h.b16 %v771
        %v978 = vunpack.c.l.b16 %v772
        %v979 = vunpack.c.h.b16 %v772
        %v980 = vunpack.c.l.b16 %v773
        %v981 = vunpack.c.h.b16 %v773
        %v982 = vunpack.c.l.b16 %v774
        %v983 = vunpack.c.h.b16 %v774
        %v984 = vunpack.c.l.b16 %v775
        %v985 = vunpack.c.h.b16 %v775
        %v986 = vunpack.c.l.b16 %v776
        %v987 = vunpack.c.h.b16 %v776
        %v988 = vunpack.c.l.b16 %v777
        %v989 = vunpack.c.h.b16 %v777
        %v990 = vunpack.c.l.b16 %v778
        %v991 = vunpack.c.h.b16 %v778
        %v992 = vunpack.c.l.b16 %v779
        %v993 = vunpack.c.h.b16 %v779
        %v994 = vpack.c.b16 %v870, %v866
        %v995 = vpack.c.b16 %v871, %v867
        %v996 = vpack.c.b16 %v872, %v868
        %v997 = vpack.c.b16 %v873, %v869
        %v998 = vpack.c.b16 %v878, %v874
        %v999 = vpack.c.b16 %v879, %v875
        %v1000 = vpack.c.b16 %v880, %v876
        %v1001 = vpack.c.b16 %v881, %v877
        %v1002 = vpack.c.b16 %v886, %v882
        %v1003 = vpack.c.b16 %v887, %v883
        %v1004 = vpack.c.b16 %v888, %v884
        %v1005 = vpack.c.b16 %v889, %v885
        %v1006 = vpack.c.b16 %v894, %v890
        %v1007 = vpack.c.b16 %v895, %v891
        %v1008 = vpack.c.b16 %v896, %v892
        %v1009 = vpack.c.b16 %v897, %v893
        %v1010 = vpack.c.b16 %v902, %v898
        %v1011 = vpack.c.b16 %v903, %v899
        %v1012 = vpack.c.b16 %v904, %v900
        %v1013 = vpack.c.b16 %v905, %v901
        %v1014 = vpack.c.b16 %v910, %v906
        %v1015 = vpack.c.b16 %v911, %v907
        %v1016 = vpack.c.b16 %v912, %v908
        %v1017 = vpack.c.b16 %v913, %v909
        %v1018 = vpack.c.b16 %v918, %v914
        %v1019 = vpack.c.b16 %v919, %v915
        %v1020 = vpack.c.b16 %v920, %v916
        %v1021 = vpack.c.b16 %v921, %v917
        %v1022 = vpack.c.b16 %v926, %v922
        %v1023 = vpack.c.b16 %v927, %v923
        %v1024 = vpack.c.b16 %v928, %v924
        %v1025 = vpack.c.b16 %v929, %v925
        %v1026 = vpack.c.b16 %v934, %v930
        %v1027 = vpack.c.b16 %v935, %v931
        %v1028 = vpack.c.b16 %v936, %v932
        %v1029 = vpack.c.b16 %v937, %v933
        %v1030 = vpack.c.b16 %v942, %v938
        %v1031 = vpack.c.b16 %v943, %v939
        %v1032 = vpack.c.b16 %v944, %v940
        %v1033 = vpack.c.b16 %v945, %v941
        %v1034 = vpack.c.b16 %v950, %v946
        %v1035 = vpack.c.b16 %v951, %v947
        %v1036 = vpack.c.b16 %v952, %v948
        %v1037 = vpack.c.b16 %v953, %v949
        %v1038 = vpack.c.b16 %v958, %v954
        %v1039 = vpack.c.b16 %v959, %v955
        %v1040 = vpack.c.b16 %v960, %v956
        %v1041 = vpack.c.b16 %v961, %v957
        %v1042 = vpack.c.b16 %v966, %v962
        %v1043 = vpack.c.b16 %v967, %v963
        %v1044 = vpack.c.b16 %v968, %v964
        %v1045 = vpack.c.b16 %v969, %v965
        %v1046 = vpack.c.b16 %v974, %v970
        %v1047 = vpack.c.b16 %v975, %v971
        %v1048 = vpack.c.b16 %v976, %v972
        %v1049 = vpack.c.b16 %v977, %v973
        %v1050 = vpack.c.b16 %v982, %v978
        %v1051 = vpack.c.b16 %v983, %v979
        %v1052 = vpack.c.b16 %v984, %v980
        %v1053 = vpack.c.b16 %v985, %v981
        %v1054 = vpack.c.b16 %v990, %v986
        %v1055 = vpack.c.b16 %v991, %v987
        %v1056 = vpack.c.b16 %v992, %v988
        %v1057 = vpack.c.b16 %v993, %v989
        %1122 = vmatprep.subr.bf16.mxu0 %v1023
        %1123 = vmatpush1.bf16.msra.mxu0 %v1022
        %1124 = vmatprep.subr.bf16.mxu0 %v1019
        %1125 = vmatpush1.bf16.msra.mxu0 %v1018
        %1126 = vmatprep.subr.bf16.mxu0 %v1015
        %1127 = vmatpush1.bf16.msra.mxu0 %v1014
        %1128 = vmatprep.subr.bf16.mxu0 %v1011
        %1129 = vmatpush1.bf16.msra.mxu0 %v1010
        %1130 = vmatprep.subr.bf16.mxu0 %v1007
        %1131 = vmatpush1.bf16.msra.mxu0 %v1006
        %1132 = vmatprep.subr.bf16.mxu0 %v1003
        %1133 = vmatpush1.bf16.msra.mxu0 %v1002
        %1134 = vmatprep.subr.bf16.mxu0 %v999
        %1135 = vmatpush1.bf16.msra.mxu0 %v998
        %1136 = vmatprep.subr.bf16.mxu0 %v995
        %1137 = vmatpush1.bf16.msra.mxu0 %v994
        %1138 = vmatprep.subr.bf16.mxu0 %v1055
        %1139 = vmatpush2.bf16.msra.mxu0 %v1054
        %1140 = vmatprep.subr.bf16.mxu0 %v1051
        %1141 = vmatpush2.bf16.msra.mxu0 %v1050
        %1142 = vmatprep.subr.bf16.mxu0 %v1047
        %1143 = vmatpush2.bf16.msra.mxu0 %v1046
        %1144 = vmatprep.subr.bf16.mxu0 %v1043
        %1145 = vmatpush2.bf16.msra.mxu0 %v1042
        %1146 = vmatprep.subr.bf16.mxu0 %v1039
        %1147 = vmatpush2.bf16.msra.mxu0 %v1038
        %1148 = vmatprep.subr.bf16.mxu0 %v1035
        %1149 = vmatpush2.bf16.msra.mxu0 %v1034
        %1150 = vmatprep.subr.bf16.mxu0 %v1031
        %1151 = vmatpush2.bf16.msra.mxu0 %v1030
        %1152 = vmatprep.subr.bf16.mxu0 %v1027
        %1153 = vmatpush2.bf16.msra.mxu0 %v1026
        %1154 = vmatprep.mubr.bf16.mxu0 %v715
        %1155 = vmatmul.mubr.bf16.gmra.mxu0 %v714
        %v1156 = vpop.f32.mrf.mxu0
        %v1157 = vadd.f32 %v785, %v1156
        %v1158 = vpop.f32.mrf.mxu0
        %v1159 = vadd.f32 %v789, %v1158
        %v1160 = vpop.f32.mrf.mxu0
        %v1161 = vpop.f32.mrf.mxu0
        %1162 = vdwg.mxu0
        %1163 = vmatprep.subr.bf16.mxu0 %v1025
        %1164 = vmatpush1.bf16.msra.mxu0 %v1024
        %1165 = vmatprep.subr.bf16.mxu0 %v1021
        %1166 = vmatpush1.bf16.msra.mxu0 %v1020
        %1167 = vmatprep.subr.bf16.mxu0 %v1017
        %1168 = vmatpush1.bf16.msra.mxu0 %v1016
        %1169 = vmatprep.subr.bf16.mxu0 %v1013
        %1170 = vmatpush1.bf16.msra.mxu0 %v1012
        %1171 = vmatprep.subr.bf16.mxu0 %v1009
        %1172 = vmatpush1.bf16.msra.mxu0 %v1008
        %1173 = vmatprep.subr.bf16.mxu0 %v1005
        %1174 = vmatpush1.bf16.msra.mxu0 %v1004
        %1175 = vmatprep.subr.bf16.mxu0 %v1001
        %1176 = vmatpush1.bf16.msra.mxu0 %v1000
        %1177 = vmatprep.subr.bf16.mxu0 %v997
        %1178 = vmatpush1.bf16.msra.mxu0 %v996
        %1179 = vmatprep.subr.bf16.mxu0 %v1057
        %1180 = vmatpush2.bf16.msra.mxu0 %v1056
        %1181 = vmatprep.subr.bf16.mxu0 %v1053
        %1182 = vmatpush2.bf16.msra.mxu0 %v1052
        %1183 = vmatprep.subr.bf16.mxu0 %v1049
        %1184 = vmatpush2.bf16.msra.mxu0 %v1048
        %1185 = vmatprep.subr.bf16.mxu0 %v1045
        %1186 = vmatpush2.bf16.msra.mxu0 %v1044
        %1187 = vmatprep.subr.bf16.mxu0 %v1041
        %1188 = vmatpush2.bf16.msra.mxu0 %v1040
        %1189 = vmatprep.subr.bf16.mxu0 %v1037
        %1190 = vmatpush2.bf16.msra.mxu0 %v1036
        %1191 = vmatprep.subr.bf16.mxu0 %v1033
        %1192 = vmatpush2.bf16.msra.mxu0 %v1032
        %1193 = vmatprep.subr.bf16.mxu0 %v1029
        %1194 = vmatpush2.bf16.msra.mxu0 %v1028
        %1195 = vmatprep.mubr.bf16.mxu0 %v715
        %1196 = vmatmul.mubr.bf16.gmra.mxu0 %v714
        %v1197 = vpop.f32.mrf.mxu0
        %v1198 = vadd.f32 %v793, %v1197
        %v1199 = vpop.f32.mrf.mxu0
        %v1200 = vadd.f32 %v797, %v1199
        %v1201 = vpop.f32.mrf.mxu0
        %v1202 = vpop.f32.mrf.mxu0
        %1203 = vdwg.mxu0
        %v1204 = vmax.f32 %v1157, 0.0
        %v1205 = vmax.f32 %v1159, 0.0
        %v1206 = vmax.f32 %v1198, 0.0
        %v1207 = vmax.f32 %v1200, 0.0
        %v1208 = vpack.c.bf16 %v1204, %v1204
        %v1209 = vpack.c.bf16 %v1205, %v1205
        %v1210 = vpack.c.bf16 %v1206, %v1206
        %v1211 = vpack.c.bf16 %v1207, %v1207
        %v1212 = vld [vmem:[#allocation10] sm:$0xff]
        %v1213 = vld [vmem:[#allocation10 + $0x8] sm:$0xff]
        %v1214 = vld [vmem:[#allocation10 + $0x10] sm:$0xff]
        %v1215 = vld [vmem:[#allocation10 + $0x18] sm:$0xff]
        %v1216 = vld [vmem:[#allocation10 + $0x20] sm:$0xff]
        %v1217 = vld [vmem:[#allocation10 + $0x28] sm:$0xff]
        %v1218 = vld [vmem:[#allocation10 + $0x30] sm:$0xff]
        %v1219 = vld [vmem:[#allocation10 + $0x38] sm:$0xff]
        %v1220 = vld [vmem:[#allocation10 + $0x40] sm:$0xff]
        %v1221 = vld [vmem:[#allocation10 + $0x48] sm:$0xff]
        %v1222 = vld [vmem:[#allocation10 + $0x50] sm:$0xff]
        %v1223 = vld [vmem:[#allocation10 + $0x58] sm:$0xff]
        %v1224 = vld [vmem:[#allocation10 + $0x60] sm:$0xff]
        %v1225 = vld [vmem:[#allocation10 + $0x68] sm:$0xff]
        %v1226 = vld [vmem:[#allocation10 + $0x70] sm:$0xff]
        %v1227 = vld [vmem:[#allocation10 + $0x78] sm:$0xff]
        %v1228 = vld [vmem:[#allocation10 + $0x80] sm:$0xff]
        %v1229 = vld [vmem:[#allocation10 + $0x88] sm:$0xff]
        %v1230 = vld [vmem:[#allocation10 + $0x90] sm:$0xff]
        %v1231 = vld [vmem:[#allocation10 + $0x98] sm:$0xff]
        %v1232 = vld [vmem:[#allocation10 + $0xa0] sm:$0xff]
        %v1233 = vld [vmem:[#allocation10 + $0xa8] sm:$0xff]
        %v1234 = vld [vmem:[#allocation10 + $0xb0] sm:$0xff]
        %v1235 = vld [vmem:[#allocation10 + $0xb8] sm:$0xff]
        %v1236 = vld [vmem:[#allocation10 + $0xc0] sm:$0xff]
        %v1237 = vld [vmem:[#allocation10 + $0xc8] sm:$0xff]
        %v1238 = vld [vmem:[#allocation10 + $0xd0] sm:$0xff]
        %v1239 = vld [vmem:[#allocation10 + $0xd8] sm:$0xff]
        %v1240 = vld [vmem:[#allocation10 + $0xe0] sm:$0xff]
        %v1241 = vld [vmem:[#allocation10 + $0xe8] sm:$0xff]
        %v1242 = vld [vmem:[#allocation10 + $0xf0] sm:$0xff]
        %v1243 = vld [vmem:[#allocation10 + $0xf8] sm:$0xff]
        %v1244 = vld [vmem:[#allocation10 + $0x100] sm:$0xff]
        %v1245 = vld [vmem:[#allocation10 + $0x108] sm:$0xff]
        %v1246 = vld [vmem:[#allocation10 + $0x110] sm:$0xff]
        %v1247 = vld [vmem:[#allocation10 + $0x118] sm:$0xff]
        %v1248 = vld [vmem:[#allocation10 + $0x120] sm:$0xff]
        %v1249 = vld [vmem:[#allocation10 + $0x128] sm:$0xff]
        %v1250 = vld [vmem:[#allocation10 + $0x130] sm:$0xff]
        %v1251 = vld [vmem:[#allocation10 + $0x138] sm:$0xff]
        %v1252 = vld [vmem:[#allocation10 + $0x140] sm:$0xff]
        %v1253 = vld [vmem:[#allocation10 + $0x148] sm:$0xff]
        %v1254 = vld [vmem:[#allocation10 + $0x150] sm:$0xff]
        %v1255 = vld [vmem:[#allocation10 + $0x158] sm:$0xff]
        %v1256 = vld [vmem:[#allocation10 + $0x160] sm:$0xff]
        %v1257 = vld [vmem:[#allocation10 + $0x168] sm:$0xff]
        %v1258 = vld [vmem:[#allocation10 + $0x170] sm:$0xff]
        %v1259 = vld [vmem:[#allocation10 + $0x178] sm:$0xff]
        %v1260 = vld [vmem:[#allocation10 + $0x180] sm:$0xff]
        %v1261 = vld [vmem:[#allocation10 + $0x188] sm:$0xff]
        %v1262 = vld [vmem:[#allocation10 + $0x190] sm:$0xff]
        %v1263 = vld [vmem:[#allocation10 + $0x198] sm:$0xff]
        %v1264 = vld [vmem:[#allocation10 + $0x1a0] sm:$0xff]
        %v1265 = vld [vmem:[#allocation10 + $0x1a8] sm:$0xff]
        %v1266 = vld [vmem:[#allocation10 + $0x1b0] sm:$0xff]
        %v1267 = vld [vmem:[#allocation10 + $0x1b8] sm:$0xff]
        %v1268 = vld [vmem:[#allocation10 + $0x1c0] sm:$0xff]
        %v1269 = vld [vmem:[#allocation10 + $0x1c8] sm:$0xff]
        %v1270 = vld [vmem:[#allocation10 + $0x1d0] sm:$0xff]
        %v1271 = vld [vmem:[#allocation10 + $0x1d8] sm:$0xff]
        %v1272 = vld [vmem:[#allocation10 + $0x1e0] sm:$0xff]
        %v1273 = vld [vmem:[#allocation10 + $0x1e8] sm:$0xff]
        %v1274 = vld [vmem:[#allocation10 + $0x1f0] sm:$0xff]
        %v1275 = vld [vmem:[#allocation10 + $0x1f8] sm:$0xff]
        %v1276 = vld [vmem:[#allocation10 + $0x200] sm:$0xff]
        %v1277 = vld [vmem:[#allocation10 + $0x208] sm:$0xff]
        %v1278 = vld [vmem:[#allocation10 + $0x210] sm:$0xff]
        %v1279 = vld [vmem:[#allocation10 + $0x218] sm:$0xff]
        %v1280 = vld [vmem:[#allocation10 + $0x220] sm:$0xff]
        %v1281 = vld [vmem:[#allocation10 + $0x228] sm:$0xff]
        %v1282 = vld [vmem:[#allocation10 + $0x230] sm:$0xff]
        %v1283 = vld [vmem:[#allocation10 + $0x238] sm:$0xff]
        %v1284 = vld [vmem:[#allocation10 + $0x240] sm:$0xff]
        %v1285 = vld [vmem:[#allocation10 + $0x248] sm:$0xff]
        %v1286 = vld [vmem:[#allocation10 + $0x250] sm:$0xff]
        %v1287 = vld [vmem:[#allocation10 + $0x258] sm:$0xff]
        %v1288 = vld [vmem:[#allocation10 + $0x260] sm:$0xff]
        %v1289 = vld [vmem:[#allocation10 + $0x268] sm:$0xff]
        %v1290 = vld [vmem:[#allocation10 + $0x270] sm:$0xff]
        %v1291 = vld [vmem:[#allocation10 + $0x278] sm:$0xff]
        %v1292 = vld [vmem:[#allocation10 + $0x280] sm:$0xff]
        %v1293 = vld [vmem:[#allocation10 + $0x288] sm:$0xff]
        %v1294 = vld [vmem:[#allocation10 + $0x290] sm:$0xff]
        %v1295 = vld [vmem:[#allocation10 + $0x298] sm:$0xff]
        %v1296 = vld [vmem:[#allocation10 + $0x2a0] sm:$0xff]
        %v1297 = vld [vmem:[#allocation10 + $0x2a8] sm:$0xff]
        %v1298 = vld [vmem:[#allocation10 + $0x2b0] sm:$0xff]
        %v1299 = vld [vmem:[#allocation10 + $0x2b8] sm:$0xff]
        %v1300 = vld [vmem:[#allocation10 + $0x2c0] sm:$0xff]
        %v1301 = vld [vmem:[#allocation10 + $0x2c8] sm:$0xff]
        %v1302 = vld [vmem:[#allocation10 + $0x2d0] sm:$0xff]
        %v1303 = vld [vmem:[#allocation10 + $0x2d8] sm:$0xff]
        %v1304 = vld [vmem:[#allocation10 + $0x2e0] sm:$0xff]
        %v1305 = vld [vmem:[#allocation10 + $0x2e8] sm:$0xff]
        %v1306 = vld [vmem:[#allocation10 + $0x2f0] sm:$0xff]
        %v1307 = vld [vmem:[#allocation10 + $0x2f8] sm:$0xff]
        %v1308 = vld [vmem:[#allocation10 + $0x300] sm:$0xff]
        %v1309 = vld [vmem:[#allocation10 + $0x308] sm:$0xff]
        %v1310 = vld [vmem:[#allocation10 + $0x310] sm:$0xff]
        %v1311 = vld [vmem:[#allocation10 + $0x318] sm:$0xff]
        %v1312 = vld [vmem:[#allocation10 + $0x320] sm:$0xff]
        %v1313 = vld [vmem:[#allocation10 + $0x328] sm:$0xff]
        %v1314 = vld [vmem:[#allocation10 + $0x330] sm:$0xff]
        %v1315 = vld [vmem:[#allocation10 + $0x338] sm:$0xff]
        %v1316 = vld [vmem:[#allocation10 + $0x340] sm:$0xff]
        %v1317 = vld [vmem:[#allocation10 + $0x348] sm:$0xff]
        %v1318 = vld [vmem:[#allocation10 + $0x350] sm:$0xff]
        %v1319 = vld [vmem:[#allocation10 + $0x358] sm:$0xff]
        %v1320 = vld [vmem:[#allocation10 + $0x360] sm:$0xff]
        %v1321 = vld [vmem:[#allocation10 + $0x368] sm:$0xff]
        %v1322 = vld [vmem:[#allocation10 + $0x370] sm:$0xff]
        %v1323 = vld [vmem:[#allocation10 + $0x378] sm:$0xff]
        %v1324 = vld [vmem:[#allocation10 + $0x380] sm:$0xff]
        %v1325 = vld [vmem:[#allocation10 + $0x388] sm:$0xff]
        %v1326 = vld [vmem:[#allocation10 + $0x390] sm:$0xff]
        %v1327 = vld [vmem:[#allocation10 + $0x398] sm:$0xff]
        %v1328 = vld [vmem:[#allocation10 + $0x3a0] sm:$0xff]
        %v1329 = vld [vmem:[#allocation10 + $0x3a8] sm:$0xff]
        %v1330 = vld [vmem:[#allocation10 + $0x3b0] sm:$0xff]
        %v1331 = vld [vmem:[#allocation10 + $0x3b8] sm:$0xff]
        %v1332 = vld [vmem:[#allocation10 + $0x3c0] sm:$0xff]
        %v1333 = vld [vmem:[#allocation10 + $0x3c8] sm:$0xff]
        %v1334 = vld [vmem:[#allocation10 + $0x3d0] sm:$0xff]
        %v1335 = vld [vmem:[#allocation10 + $0x3d8] sm:$0xff]
        %v1336 = vld [vmem:[#allocation10 + $0x3e0] sm:$0xff]
        %v1337 = vld [vmem:[#allocation10 + $0x3e8] sm:$0xff]
        %v1338 = vld [vmem:[#allocation10 + $0x3f0] sm:$0xff]
        %v1339 = vld [vmem:[#allocation10 + $0x3f8] sm:$0xff]
        %v1340 = vld [vmem:[#allocation10 + $0x400] sm:$0xff]
        %v1341 = vld [vmem:[#allocation10 + $0x408] sm:$0xff]
        %v1342 = vld [vmem:[#allocation10 + $0x410] sm:$0xff]
        %v1343 = vld [vmem:[#allocation10 + $0x418] sm:$0xff]
        %v1344 = vld [vmem:[#allocation10 + $0x420] sm:$0xff]
        %v1345 = vld [vmem:[#allocation10 + $0x428] sm:$0xff]
        %v1346 = vld [vmem:[#allocation10 + $0x430] sm:$0xff]
        %v1347 = vld [vmem:[#allocation10 + $0x438] sm:$0xff]
        %v1348 = vld [vmem:[#allocation10 + $0x440] sm:$0xff]
        %v1349 = vld [vmem:[#allocation10 + $0x448] sm:$0xff]
        %v1350 = vld [vmem:[#allocation10 + $0x450] sm:$0xff]
        %v1351 = vld [vmem:[#allocation10 + $0x458] sm:$0xff]
        %v1352 = vld [vmem:[#allocation10 + $0x460] sm:$0xff]
        %v1353 = vld [vmem:[#allocation10 + $0x468] sm:$0xff]
        %v1354 = vld [vmem:[#allocation10 + $0x470] sm:$0xff]
        %v1355 = vld [vmem:[#allocation10 + $0x478] sm:$0xff]
        %v1356 = vld [vmem:[#allocation10 + $0x480] sm:$0xff]
        %v1357 = vld [vmem:[#allocation10 + $0x488] sm:$0xff]
        %v1358 = vld [vmem:[#allocation10 + $0x490] sm:$0xff]
        %v1359 = vld [vmem:[#allocation10 + $0x498] sm:$0xff]
        %v1360 = vld [vmem:[#allocation10 + $0x4a0] sm:$0xff]
        %v1361 = vld [vmem:[#allocation10 + $0x4a8] sm:$0xff]
        %v1362 = vld [vmem:[#allocation10 + $0x4b0] sm:$0xff]
        %v1363 = vld [vmem:[#allocation10 + $0x4b8] sm:$0xff]
        %v1364 = vld [vmem:[#allocation10 + $0x4c0] sm:$0xff]
        %v1365 = vld [vmem:[#allocation10 + $0x4c8] sm:$0xff]
        %v1366 = vld [vmem:[#allocation10 + $0x4d0] sm:$0xff]
        %v1367 = vld [vmem:[#allocation10 + $0x4d8] sm:$0xff]
        %v1368 = vld [vmem:[#allocation10 + $0x4e0] sm:$0xff]
        %v1369 = vld [vmem:[#allocation10 + $0x4e8] sm:$0xff]
        %v1370 = vld [vmem:[#allocation10 + $0x4f0] sm:$0xff]
        %v1371 = vld [vmem:[#allocation10 + $0x4f8] sm:$0xff]
        %v1372 = vld [vmem:[#allocation10 + $0x500] sm:$0xff]
        %v1373 = vld [vmem:[#allocation10 + $0x508] sm:$0xff]
        %v1374 = vld [vmem:[#allocation10 + $0x510] sm:$0xff]
        %v1375 = vld [vmem:[#allocation10 + $0x518] sm:$0xff]
        %v1376 = vld [vmem:[#allocation10 + $0x520] sm:$0xff]
        %v1377 = vld [vmem:[#allocation10 + $0x528] sm:$0xff]
        %v1378 = vld [vmem:[#allocation10 + $0x530] sm:$0xff]
        %v1379 = vld [vmem:[#allocation10 + $0x538] sm:$0xff]
        %v1380 = vld [vmem:[#allocation10 + $0x540] sm:$0xff]
        %v1381 = vld [vmem:[#allocation10 + $0x548] sm:$0xff]
        %v1382 = vld [vmem:[#allocation10 + $0x550] sm:$0xff]
        %v1383 = vld [vmem:[#allocation10 + $0x558] sm:$0xff]
        %v1384 = vld [vmem:[#allocation10 + $0x560] sm:$0xff]
        %v1385 = vld [vmem:[#allocation10 + $0x568] sm:$0xff]
        %v1386 = vld [vmem:[#allocation10 + $0x570] sm:$0xff]
        %v1387 = vld [vmem:[#allocation10 + $0x578] sm:$0xff]
        %v1388 = vld [vmem:[#allocation10 + $0x580] sm:$0xff]
        %v1389 = vld [vmem:[#allocation10 + $0x588] sm:$0xff]
        %v1390 = vld [vmem:[#allocation10 + $0x590] sm:$0xff]
        %v1391 = vld [vmem:[#allocation10 + $0x598] sm:$0xff]
        %v1392 = vld [vmem:[#allocation10 + $0x5a0] sm:$0xff]
        %v1393 = vld [vmem:[#allocation10 + $0x5a8] sm:$0xff]
        %v1394 = vld [vmem:[#allocation10 + $0x5b0] sm:$0xff]
        %v1395 = vld [vmem:[#allocation10 + $0x5b8] sm:$0xff]
        %v1396 = vld [vmem:[#allocation10 + $0x5c0] sm:$0xff]
        %v1397 = vld [vmem:[#allocation10 + $0x5c8] sm:$0xff]
        %v1398 = vld [vmem:[#allocation10 + $0x5d0] sm:$0xff]
        %v1399 = vld [vmem:[#allocation10 + $0x5d8] sm:$0xff]
        %v1400 = vld [vmem:[#allocation10 + $0x5e0] sm:$0xff]
        %v1401 = vld [vmem:[#allocation10 + $0x5e8] sm:$0xff]
        %v1402 = vld [vmem:[#allocation10 + $0x5f0] sm:$0xff]
        %v1403 = vld [vmem:[#allocation10 + $0x5f8] sm:$0xff]
        %v1404 = vld [vmem:[#allocation10 + $0x600] sm:$0xff]
        %v1405 = vld [vmem:[#allocation10 + $0x608] sm:$0xff]
        %v1406 = vld [vmem:[#allocation10 + $0x610] sm:$0xff]
        %v1407 = vld [vmem:[#allocation10 + $0x618] sm:$0xff]
        %v1408 = vld [vmem:[#allocation10 + $0x620] sm:$0xff]
        %v1409 = vld [vmem:[#allocation10 + $0x628] sm:$0xff]
        %v1410 = vld [vmem:[#allocation10 + $0x630] sm:$0xff]
        %v1411 = vld [vmem:[#allocation10 + $0x638] sm:$0xff]
        %v1412 = vld [vmem:[#allocation10 + $0x640] sm:$0xff]
        %v1413 = vld [vmem:[#allocation10 + $0x648] sm:$0xff]
        %v1414 = vld [vmem:[#allocation10 + $0x650] sm:$0xff]
        %v1415 = vld [vmem:[#allocation10 + $0x658] sm:$0xff]
        %v1416 = vld [vmem:[#allocation10 + $0x660] sm:$0xff]
        %v1417 = vld [vmem:[#allocation10 + $0x668] sm:$0xff]
        %v1418 = vld [vmem:[#allocation10 + $0x670] sm:$0xff]
        %v1419 = vld [vmem:[#allocation10 + $0x678] sm:$0xff]
        %v1420 = vld [vmem:[#allocation10 + $0x680] sm:$0xff]
        %v1421 = vld [vmem:[#allocation10 + $0x688] sm:$0xff]
        %v1422 = vld [vmem:[#allocation10 + $0x690] sm:$0xff]
        %v1423 = vld [vmem:[#allocation10 + $0x698] sm:$0xff]
        %v1424 = vld [vmem:[#allocation10 + $0x6a0] sm:$0xff]
        %v1425 = vld [vmem:[#allocation10 + $0x6a8] sm:$0xff]
        %v1426 = vld [vmem:[#allocation10 + $0x6b0] sm:$0xff]
        %v1427 = vld [vmem:[#allocation10 + $0x6b8] sm:$0xff]
        %v1428 = vld [vmem:[#allocation10 + $0x6c0] sm:$0xff]
        %v1429 = vld [vmem:[#allocation10 + $0x6c8] sm:$0xff]
        %v1430 = vld [vmem:[#allocation10 + $0x6d0] sm:$0xff]
        %v1431 = vld [vmem:[#allocation10 + $0x6d8] sm:$0xff]
        %v1432 = vld [vmem:[#allocation10 + $0x6e0] sm:$0xff]
        %v1433 = vld [vmem:[#allocation10 + $0x6e8] sm:$0xff]
        %v1434 = vld [vmem:[#allocation10 + $0x6f0] sm:$0xff]
        %v1435 = vld [vmem:[#allocation10 + $0x6f8] sm:$0xff]
        %v1436 = vld [vmem:[#allocation10 + $0x700] sm:$0xff]
        %v1437 = vld [vmem:[#allocation10 + $0x708] sm:$0xff]
        %v1438 = vld [vmem:[#allocation10 + $0x710] sm:$0xff]
        %v1439 = vld [vmem:[#allocation10 + $0x718] sm:$0xff]
        %v1440 = vld [vmem:[#allocation10 + $0x720] sm:$0xff]
        %v1441 = vld [vmem:[#allocation10 + $0x728] sm:$0xff]
        %v1442 = vld [vmem:[#allocation10 + $0x730] sm:$0xff]
        %v1443 = vld [vmem:[#allocation10 + $0x738] sm:$0xff]
        %v1444 = vld [vmem:[#allocation10 + $0x740] sm:$0xff]
        %v1445 = vld [vmem:[#allocation10 + $0x748] sm:$0xff]
        %v1446 = vld [vmem:[#allocation10 + $0x750] sm:$0xff]
        %v1447 = vld [vmem:[#allocation10 + $0x758] sm:$0xff]
        %v1448 = vld [vmem:[#allocation10 + $0x760] sm:$0xff]
        %v1449 = vld [vmem:[#allocation10 + $0x768] sm:$0xff]
        %v1450 = vld [vmem:[#allocation10 + $0x770] sm:$0xff]
        %v1451 = vld [vmem:[#allocation10 + $0x778] sm:$0xff]
        %v1452 = vld [vmem:[#allocation10 + $0x780] sm:$0xff]
        %v1453 = vld [vmem:[#allocation10 + $0x788] sm:$0xff]
        %v1454 = vld [vmem:[#allocation10 + $0x790] sm:$0xff]
        %v1455 = vld [vmem:[#allocation10 + $0x798] sm:$0xff]
        %v1456 = vld [vmem:[#allocation10 + $0x7a0] sm:$0xff]
        %v1457 = vld [vmem:[#allocation10 + $0x7a8] sm:$0xff]
        %v1458 = vld [vmem:[#allocation10 + $0x7b0] sm:$0xff]
        %v1459 = vld [vmem:[#allocation10 + $0x7b8] sm:$0xff]
        %v1460 = vld [vmem:[#allocation10 + $0x7c0] sm:$0xff]
        %v1461 = vld [vmem:[#allocation10 + $0x7c8] sm:$0xff]
        %v1462 = vld [vmem:[#allocation10 + $0x7d0] sm:$0xff]
        %v1463 = vld [vmem:[#allocation10 + $0x7d8] sm:$0xff]
        %v1464 = vld [vmem:[#allocation10 + $0x7e0] sm:$0xff]
        %v1465 = vld [vmem:[#allocation10 + $0x7e8] sm:$0xff]
        %v1466 = vld [vmem:[#allocation10 + $0x7f0] sm:$0xff]
        %v1467 = vld [vmem:[#allocation10 + $0x7f8] sm:$0xff]
        %v1468 = vld [vmem:[#allocation11 + $0x9] sm:$0xff]
        %v1470 = vlaneseq
        %v1471 = vshrl.u32 %v1470, 7
        %v1472 = vsub.s32 0, %v1471
        %v1473 = vrot.slane %v1468, %v1472
        %v1474 = vlaneseq
        %v1475 = vshrl.u32 %v1474, 7
        %v1476 = vsub.s32 1, %v1475
        %v1477 = vrot.slane %v1468, %v1476
        %v1478 = vlaneseq
        %v1479 = vshrl.u32 %v1478, 7
        %v1480 = vsub.s32 2, %v1479
        %v1481 = vrot.slane %v1468, %v1480
        %v1482 = vlaneseq
        %v1483 = vshrl.u32 %v1482, 7
        %v1484 = vsub.s32 3, %v1483
        %v1485 = vrot.slane %v1468, %v1484
        %v1486 = vlaneseq
        %v1487 = vshrl.u32 %v1486, 7
        %v1488 = vsub.s32 4, %v1487
        %v1489 = vrot.slane %v1468, %v1488
        %v1490 = vlaneseq
        %v1491 = vshrl.u32 %v1490, 7
        %v1492 = vsub.s32 5, %v1491
        %v1493 = vrot.slane %v1468, %v1492
        %v1494 = vlaneseq
        %v1495 = vshrl.u32 %v1494, 7
        %v1496 = vsub.s32 6, %v1495
        %v1497 = vrot.slane %v1468, %v1496
        %v1498 = vlaneseq
        %v1499 = vshrl.u32 %v1498, 7
        %v1500 = vsub.s32 7, %v1499
        %v1501 = vrot.slane %v1468, %v1500
        %v1766 = vunpack.c.l.b16 %v1212
        %v1767 = vunpack.c.h.b16 %v1212
        %v1768 = vunpack.c.l.b16 %v1213
        %v1769 = vunpack.c.h.b16 %v1213
        %v1770 = vunpack.c.l.b16 %v1214
        %v1771 = vunpack.c.h.b16 %v1214
        %v1772 = vunpack.c.l.b16 %v1215
        %v1773 = vunpack.c.h.b16 %v1215
        %v1774 = vunpack.c.l.b16 %v1216
        %v1775 = vunpack.c.h.b16 %v1216
        %v1776 = vunpack.c.l.b16 %v1217
        %v1777 = vunpack.c.h.b16 %v1217
        %v1778 = vunpack.c.l.b16 %v1218
        %v1779 = vunpack.c.h.b16 %v1218
        %v1780 = vunpack.c.l.b16 %v1219
        %v1781 = vunpack.c.h.b16 %v1219
        %v1782 = vunpack.c.l.b16 %v1220
        %v1783 = vunpack.c.h.b16 %v1220
        %v1784 = vunpack.c.l.b16 %v1221
        %v1785 = vunpack.c.h.b16 %v1221
        %v1786 = vunpack.c.l.b16 %v1222
        %v1787 = vunpack.c.h.b16 %v1222
        %v1788 = vunpack.c.l.b16 %v1223
        %v1789 = vunpack.c.h.b16 %v1223
        %v1790 = vunpack.c.l.b16 %v1224
        %v1791 = vunpack.c.h.b16 %v1224
        %v1792 = vunpack.c.l.b16 %v1225
        %v1793 = vunpack.c.h.b16 %v1225
        %v1794 = vunpack.c.l.b16 %v1226
        %v1795 = vunpack.c.h.b16 %v1226
        %v1796 = vunpack.c.l.b16 %v1227
        %v1797 = vunpack.c.h.b16 %v1227
        %v1798 = vunpack.c.l.b16 %v1228
        %v1799 = vunpack.c.h.b16 %v1228
        %v1800 = vunpack.c.l.b16 %v1229
        %v1801 = vunpack.c.h.b16 %v1229
        %v1802 = vunpack.c.l.b16 %v1230
        %v1803 = vunpack.c.h.b16 %v1230
        %v1804 = vunpack.c.l.b16 %v1231
        %v1805 = vunpack.c.h.b16 %v1231
        %v1806 = vunpack.c.l.b16 %v1232
        %v1807 = vunpack.c.h.b16 %v1232
        %v1808 = vunpack.c.l.b16 %v1233
        %v1809 = vunpack.c.h.b16 %v1233
        %v1810 = vunpack.c.l.b16 %v1234
        %v1811 = vunpack.c.h.b16 %v1234
        %v1812 = vunpack.c.l.b16 %v1235
        %v1813 = vunpack.c.h.b16 %v1235
        %v1814 = vunpack.c.l.b16 %v1236
        %v1815 = vunpack.c.h.b16 %v1236
        %v1816 = vunpack.c.l.b16 %v1237
        %v1817 = vunpack.c.h.b16 %v1237
        %v1818 = vunpack.c.l.b16 %v1238
        %v1819 = vunpack.c.h.b16 %v1238
        %v1820 = vunpack.c.l.b16 %v1239
        %v1821 = vunpack.c.h.b16 %v1239
        %v1822 = vunpack.c.l.b16 %v1240
        %v1823 = vunpack.c.h.b16 %v1240
        %v1824 = vunpack.c.l.b16 %v1241
        %v1825 = vunpack.c.h.b16 %v1241
        %v1826 = vunpack.c.l.b16 %v1242
        %v1827 = vunpack.c.h.b16 %v1242
        %v1828 = vunpack.c.l.b16 %v1243
        %v1829 = vunpack.c.h.b16 %v1243
        %v1830 = vunpack.c.l.b16 %v1244
        %v1831 = vunpack.c.h.b16 %v1244
        %v1832 = vunpack.c.l.b16 %v1245
        %v1833 = vunpack.c.h.b16 %v1245
        %v1834 = vunpack.c.l.b16 %v1246
        %v1835 = vunpack.c.h.b16 %v1246
        %v1836 = vunpack.c.l.b16 %v1247
        %v1837 = vunpack.c.h.b16 %v1247
        %v1838 = vunpack.c.l.b16 %v1248
        %v1839 = vunpack.c.h.b16 %v1248
        %v1840 = vunpack.c.l.b16 %v1249
        %v1841 = vunpack.c.h.b16 %v1249
        %v1842 = vunpack.c.l.b16 %v1250
        %v1843 = vunpack.c.h.b16 %v1250
        %v1844 = vunpack.c.l.b16 %v1251
        %v1845 = vunpack.c.h.b16 %v1251
        %v1846 = vunpack.c.l.b16 %v1252
        %v1847 = vunpack.c.h.b16 %v1252
        %v1848 = vunpack.c.l.b16 %v1253
        %v1849 = vunpack.c.h.b16 %v1253
        %v1850 = vunpack.c.l.b16 %v1254
        %v1851 = vunpack.c.h.b16 %v1254
        %v1852 = vunpack.c.l.b16 %v1255
        %v1853 = vunpack.c.h.b16 %v1255
        %v1854 = vunpack.c.l.b16 %v1256
        %v1855 = vunpack.c.h.b16 %v1256
        %v1856 = vunpack.c.l.b16 %v1257
        %v1857 = vunpack.c.h.b16 %v1257
        %v1858 = vunpack.c.l.b16 %v1258
        %v1859 = vunpack.c.h.b16 %v1258
        %v1860 = vunpack.c.l.b16 %v1259
        %v1861 = vunpack.c.h.b16 %v1259
        %v1862 = vunpack.c.l.b16 %v1260
        %v1863 = vunpack.c.h.b16 %v1260
        %v1864 = vunpack.c.l.b16 %v1261
        %v1865 = vunpack.c.h.b16 %v1261
        %v1866 = vunpack.c.l.b16 %v1262
        %v1867 = vunpack.c.h.b16 %v1262
        %v1868 = vunpack.c.l.b16 %v1263
        %v1869 = vunpack.c.h.b16 %v1263
        %v1870 = vunpack.c.l.b16 %v1264
        %v1871 = vunpack.c.h.b16 %v1264
        %v1872 = vunpack.c.l.b16 %v1265
        %v1873 = vunpack.c.h.b16 %v1265
        %v1874 = vunpack.c.l.b16 %v1266
        %v1875 = vunpack.c.h.b16 %v1266
        %v1876 = vunpack.c.l.b16 %v1267
        %v1877 = vunpack.c.h.b16 %v1267
        %v1878 = vunpack.c.l.b16 %v1268
        %v1879 = vunpack.c.h.b16 %v1268
        %v1880 = vunpack.c.l.b16 %v1269
        %v1881 = vunpack.c.h.b16 %v1269
        %v1882 = vunpack.c.l.b16 %v1270
        %v1883 = vunpack.c.h.b16 %v1270
        %v1884 = vunpack.c.l.b16 %v1271
        %v1885 = vunpack.c.h.b16 %v1271
        %v1886 = vunpack.c.l.b16 %v1272
        %v1887 = vunpack.c.h.b16 %v1272
        %v1888 = vunpack.c.l.b16 %v1273
        %v1889 = vunpack.c.h.b16 %v1273
        %v1890 = vunpack.c.l.b16 %v1274
        %v1891 = vunpack.c.h.b16 %v1274
        %v1892 = vunpack.c.l.b16 %v1275
        %v1893 = vunpack.c.h.b16 %v1275
        %v1894 = vunpack.c.l.b16 %v1276
        %v1895 = vunpack.c.h.b16 %v1276
        %v1896 = vunpack.c.l.b16 %v1277
        %v1897 = vunpack.c.h.b16 %v1277
        %v1898 = vunpack.c.l.b16 %v1278
        %v1899 = vunpack.c.h.b16 %v1278
        %v1900 = vunpack.c.l.b16 %v1279
        %v1901 = vunpack.c.h.b16 %v1279
        %v1902 = vunpack.c.l.b16 %v1280
        %v1903 = vunpack.c.h.b16 %v1280
        %v1904 = vunpack.c.l.b16 %v1281
        %v1905 = vunpack.c.h.b16 %v1281
        %v1906 = vunpack.c.l.b16 %v1282
        %v1907 = vunpack.c.h.b16 %v1282
        %v1908 = vunpack.c.l.b16 %v1283
        %v1909 = vunpack.c.h.b16 %v1283
        %v1910 = vunpack.c.l.b16 %v1284
        %v1911 = vunpack.c.h.b16 %v1284
        %v1912 = vunpack.c.l.b16 %v1285
        %v1913 = vunpack.c.h.b16 %v1285
        %v1914 = vunpack.c.l.b16 %v1286
        %v1915 = vunpack.c.h.b16 %v1286
        %v1916 = vunpack.c.l.b16 %v1287
        %v1917 = vunpack.c.h.b16 %v1287
        %v1918 = vunpack.c.l.b16 %v1288
        %v1919 = vunpack.c.h.b16 %v1288
        %v1920 = vunpack.c.l.b16 %v1289
        %v1921 = vunpack.c.h.b16 %v1289
        %v1922 = vunpack.c.l.b16 %v1290
        %v1923 = vunpack.c.h.b16 %v1290
        %v1924 = vunpack.c.l.b16 %v1291
        %v1925 = vunpack.c.h.b16 %v1291
        %v1926 = vunpack.c.l.b16 %v1292
        %v1927 = vunpack.c.h.b16 %v1292
        %v1928 = vunpack.c.l.b16 %v1293
        %v1929 = vunpack.c.h.b16 %v1293
        %v1930 = vunpack.c.l.b16 %v1294
        %v1931 = vunpack.c.h.b16 %v1294
        %v1932 = vunpack.c.l.b16 %v1295
        %v1933 = vunpack.c.h.b16 %v1295
        %v1934 = vunpack.c.l.b16 %v1296
        %v1935 = vunpack.c.h.b16 %v1296
        %v1936 = vunpack.c.l.b16 %v1297
        %v1937 = vunpack.c.h.b16 %v1297
        %v1938 = vunpack.c.l.b16 %v1298
        %v1939 = vunpack.c.h.b16 %v1298
        %v1940 = vunpack.c.l.b16 %v1299
        %v1941 = vunpack.c.h.b16 %v1299
        %v1942 = vunpack.c.l.b16 %v1300
        %v1943 = vunpack.c.h.b16 %v1300
        %v1944 = vunpack.c.l.b16 %v1301
        %v1945 = vunpack.c.h.b16 %v1301
        %v1946 = vunpack.c.l.b16 %v1302
        %v1947 = vunpack.c.h.b16 %v1302
        %v1948 = vunpack.c.l.b16 %v1303
        %v1949 = vunpack.c.h.b16 %v1303
        %v1950 = vunpack.c.l.b16 %v1304
        %v1951 = vunpack.c.h.b16 %v1304
        %v1952 = vunpack.c.l.b16 %v1305
        %v1953 = vunpack.c.h.b16 %v1305
        %v1954 = vunpack.c.l.b16 %v1306
        %v1955 = vunpack.c.h.b16 %v1306
        %v1956 = vunpack.c.l.b16 %v1307
        %v1957 = vunpack.c.h.b16 %v1307
        %v1958 = vunpack.c.l.b16 %v1308
        %v1959 = vunpack.c.h.b16 %v1308
        %v1960 = vunpack.c.l.b16 %v1309
        %v1961 = vunpack.c.h.b16 %v1309
        %v1962 = vunpack.c.l.b16 %v1310
        %v1963 = vunpack.c.h.b16 %v1310
        %v1964 = vunpack.c.l.b16 %v1311
        %v1965 = vunpack.c.h.b16 %v1311
        %v1966 = vunpack.c.l.b16 %v1312
        %v1967 = vunpack.c.h.b16 %v1312
        %v1968 = vunpack.c.l.b16 %v1313
        %v1969 = vunpack.c.h.b16 %v1313
        %v1970 = vunpack.c.l.b16 %v1314
        %v1971 = vunpack.c.h.b16 %v1314
        %v1972 = vunpack.c.l.b16 %v1315
        %v1973 = vunpack.c.h.b16 %v1315
        %v1974 = vunpack.c.l.b16 %v1316
        %v1975 = vunpack.c.h.b16 %v1316
        %v1976 = vunpack.c.l.b16 %v1317
        %v1977 = vunpack.c.h.b16 %v1317
        %v1978 = vunpack.c.l.b16 %v1318
        %v1979 = vunpack.c.h.b16 %v1318
        %v1980 = vunpack.c.l.b16 %v1319
        %v1981 = vunpack.c.h.b16 %v1319
        %v1982 = vunpack.c.l.b16 %v1320
        %v1983 = vunpack.c.h.b16 %v1320
        %v1984 = vunpack.c.l.b16 %v1321
        %v1985 = vunpack.c.h.b16 %v1321
        %v1986 = vunpack.c.l.b16 %v1322
        %v1987 = vunpack.c.h.b16 %v1322
        %v1988 = vunpack.c.l.b16 %v1323
        %v1989 = vunpack.c.h.b16 %v1323
        %v1990 = vunpack.c.l.b16 %v1324
        %v1991 = vunpack.c.h.b16 %v1324
        %v1992 = vunpack.c.l.b16 %v1325
        %v1993 = vunpack.c.h.b16 %v1325
        %v1994 = vunpack.c.l.b16 %v1326
        %v1995 = vunpack.c.h.b16 %v1326
        %v1996 = vunpack.c.l.b16 %v1327
        %v1997 = vunpack.c.h.b16 %v1327
        %v1998 = vunpack.c.l.b16 %v1328
        %v1999 = vunpack.c.h.b16 %v1328
        %v2000 = vunpack.c.l.b16 %v1329
        %v2001 = vunpack.c.h.b16 %v1329
        %v2002 = vunpack.c.l.b16 %v1330
        %v2003 = vunpack.c.h.b16 %v1330
        %v2004 = vunpack.c.l.b16 %v1331
        %v2005 = vunpack.c.h.b16 %v1331
        %v2006 = vunpack.c.l.b16 %v1332
        %v2007 = vunpack.c.h.b16 %v1332
        %v2008 = vunpack.c.l.b16 %v1333
        %v2009 = vunpack.c.h.b16 %v1333
        %v2010 = vunpack.c.l.b16 %v1334
        %v2011 = vunpack.c.h.b16 %v1334
        %v2012 = vunpack.c.l.b16 %v1335
        %v2013 = vunpack.c.h.b16 %v1335
        %v2014 = vunpack.c.l.b16 %v1336
        %v2015 = vunpack.c.h.b16 %v1336
        %v2016 = vunpack.c.l.b16 %v1337
        %v2017 = vunpack.c.h.b16 %v1337
        %v2018 = vunpack.c.l.b16 %v1338
        %v2019 = vunpack.c.h.b16 %v1338
        %v2020 = vunpack.c.l.b16 %v1339
        %v2021 = vunpack.c.h.b16 %v1339
        %v2022 = vunpack.c.l.b16 %v1340
        %v2023 = vunpack.c.h.b16 %v1340
        %v2024 = vunpack.c.l.b16 %v1341
        %v2025 = vunpack.c.h.b16 %v1341
        %v2026 = vunpack.c.l.b16 %v1342
        %v2027 = vunpack.c.h.b16 %v1342
        %v2028 = vunpack.c.l.b16 %v1343
        %v2029 = vunpack.c.h.b16 %v1343
        %v2030 = vunpack.c.l.b16 %v1344
        %v2031 = vunpack.c.h.b16 %v1344
        %v2032 = vunpack.c.l.b16 %v1345
        %v2033 = vunpack.c.h.b16 %v1345
        %v2034 = vunpack.c.l.b16 %v1346
        %v2035 = vunpack.c.h.b16 %v1346
        %v2036 = vunpack.c.l.b16 %v1347
        %v2037 = vunpack.c.h.b16 %v1347
        %v2038 = vunpack.c.l.b16 %v1348
        %v2039 = vunpack.c.h.b16 %v1348
        %v2040 = vunpack.c.l.b16 %v1349
        %v2041 = vunpack.c.h.b16 %v1349
        %v2042 = vunpack.c.l.b16 %v1350
        %v2043 = vunpack.c.h.b16 %v1350
        %v2044 = vunpack.c.l.b16 %v1351
        %v2045 = vunpack.c.h.b16 %v1351
        %v2046 = vunpack.c.l.b16 %v1352
        %v2047 = vunpack.c.h.b16 %v1352
        %v2048 = vunpack.c.l.b16 %v1353
        %v2049 = vunpack.c.h.b16 %v1353
        %v2050 = vunpack.c.l.b16 %v1354
        %v2051 = vunpack.c.h.b16 %v1354
        %v2052 = vunpack.c.l.b16 %v1355
        %v2053 = vunpack.c.h.b16 %v1355
        %v2054 = vunpack.c.l.b16 %v1356
        %v2055 = vunpack.c.h.b16 %v1356
        %v2056 = vunpack.c.l.b16 %v1357
        %v2057 = vunpack.c.h.b16 %v1357
        %v2058 = vunpack.c.l.b16 %v1358
        %v2059 = vunpack.c.h.b16 %v1358
        %v2060 = vunpack.c.l.b16 %v1359
        %v2061 = vunpack.c.h.b16 %v1359
        %v2062 = vunpack.c.l.b16 %v1360
        %v2063 = vunpack.c.h.b16 %v1360
        %v2064 = vunpack.c.l.b16 %v1361
        %v2065 = vunpack.c.h.b16 %v1361
        %v2066 = vunpack.c.l.b16 %v1362
        %v2067 = vunpack.c.h.b16 %v1362
        %v2068 = vunpack.c.l.b16 %v1363
        %v2069 = vunpack.c.h.b16 %v1363
        %v2070 = vunpack.c.l.b16 %v1364
        %v2071 = vunpack.c.h.b16 %v1364
        %v2072 = vunpack.c.l.b16 %v1365
        %v2073 = vunpack.c.h.b16 %v1365
        %v2074 = vunpack.c.l.b16 %v1366
        %v2075 = vunpack.c.h.b16 %v1366
        %v2076 = vunpack.c.l.b16 %v1367
        %v2077 = vunpack.c.h.b16 %v1367
        %v2078 = vunpack.c.l.b16 %v1368
        %v2079 = vunpack.c.h.b16 %v1368
        %v2080 = vunpack.c.l.b16 %v1369
        %v2081 = vunpack.c.h.b16 %v1369
        %v2082 = vunpack.c.l.b16 %v1370
        %v2083 = vunpack.c.h.b16 %v1370
        %v2084 = vunpack.c.l.b16 %v1371
        %v2085 = vunpack.c.h.b16 %v1371
        %v2086 = vunpack.c.l.b16 %v1372
        %v2087 = vunpack.c.h.b16 %v1372
        %v2088 = vunpack.c.l.b16 %v1373
        %v2089 = vunpack.c.h.b16 %v1373
        %v2090 = vunpack.c.l.b16 %v1374
        %v2091 = vunpack.c.h.b16 %v1374
        %v2092 = vunpack.c.l.b16 %v1375
        %v2093 = vunpack.c.h.b16 %v1375
        %v2094 = vunpack.c.l.b16 %v1376
        %v2095 = vunpack.c.h.b16 %v1376
        %v2096 = vunpack.c.l.b16 %v1377
        %v2097 = vunpack.c.h.b16 %v1377
        %v2098 = vunpack.c.l.b16 %v1378
        %v2099 = vunpack.c.h.b16 %v1378
        %v2100 = vunpack.c.l.b16 %v1379
        %v2101 = vunpack.c.h.b16 %v1379
        %v2102 = vunpack.c.l.b16 %v1380
        %v2103 = vunpack.c.h.b16 %v1380
        %v2104 = vunpack.c.l.b16 %v1381
        %v2105 = vunpack.c.h.b16 %v1381
        %v2106 = vunpack.c.l.b16 %v1382
        %v2107 = vunpack.c.h.b16 %v1382
        %v2108 = vunpack.c.l.b16 %v1383
        %v2109 = vunpack.c.h.b16 %v1383
        %v2110 = vunpack.c.l.b16 %v1384
        %v2111 = vunpack.c.h.b16 %v1384
        %v2112 = vunpack.c.l.b16 %v1385
        %v2113 = vunpack.c.h.b16 %v1385
        %v2114 = vunpack.c.l.b16 %v1386
        %v2115 = vunpack.c.h.b16 %v1386
        %v2116 = vunpack.c.l.b16 %v1387
        %v2117 = vunpack.c.h.b16 %v1387
        %v2118 = vunpack.c.l.b16 %v1388
        %v2119 = vunpack.c.h.b16 %v1388
        %v2120 = vunpack.c.l.b16 %v1389
        %v2121 = vunpack.c.h.b16 %v1389
        %v2122 = vunpack.c.l.b16 %v1390
        %v2123 = vunpack.c.h.b16 %v1390
        %v2124 = vunpack.c.l.b16 %v1391
        %v2125 = vunpack.c.h.b16 %v1391
        %v2126 = vunpack.c.l.b16 %v1392
        %v2127 = vunpack.c.h.b16 %v1392
        %v2128 = vunpack.c.l.b16 %v1393
        %v2129 = vunpack.c.h.b16 %v1393
        %v2130 = vunpack.c.l.b16 %v1394
        %v2131 = vunpack.c.h.b16 %v1394
        %v2132 = vunpack.c.l.b16 %v1395
        %v2133 = vunpack.c.h.b16 %v1395
        %v2134 = vunpack.c.l.b16 %v1396
        %v2135 = vunpack.c.h.b16 %v1396
        %v2136 = vunpack.c.l.b16 %v1397
        %v2137 = vunpack.c.h.b16 %v1397
        %v2138 = vunpack.c.l.b16 %v1398
        %v2139 = vunpack.c.h.b16 %v1398
        %v2140 = vunpack.c.l.b16 %v1399
        %v2141 = vunpack.c.h.b16 %v1399
        %v2142 = vunpack.c.l.b16 %v1400
        %v2143 = vunpack.c.h.b16 %v1400
        %v2144 = vunpack.c.l.b16 %v1401
        %v2145 = vunpack.c.h.b16 %v1401
        %v2146 = vunpack.c.l.b16 %v1402
        %v2147 = vunpack.c.h.b16 %v1402
        %v2148 = vunpack.c.l.b16 %v1403
        %v2149 = vunpack.c.h.b16 %v1403
        %v2150 = vunpack.c.l.b16 %v1404
        %v2151 = vunpack.c.h.b16 %v1404
        %v2152 = vunpack.c.l.b16 %v1405
        %v2153 = vunpack.c.h.b16 %v1405
        %v2154 = vunpack.c.l.b16 %v1406
        %v2155 = vunpack.c.h.b16 %v1406
        %v2156 = vunpack.c.l.b16 %v1407
        %v2157 = vunpack.c.h.b16 %v1407
        %v2158 = vunpack.c.l.b16 %v1408
        %v2159 = vunpack.c.h.b16 %v1408
        %v2160 = vunpack.c.l.b16 %v1409
        %v2161 = vunpack.c.h.b16 %v1409
        %v2162 = vunpack.c.l.b16 %v1410
        %v2163 = vunpack.c.h.b16 %v1410
        %v2164 = vunpack.c.l.b16 %v1411
        %v2165 = vunpack.c.h.b16 %v1411
        %v2166 = vunpack.c.l.b16 %v1412
        %v2167 = vunpack.c.h.b16 %v1412
        %v2168 = vunpack.c.l.b16 %v1413
        %v2169 = vunpack.c.h.b16 %v1413
        %v2170 = vunpack.c.l.b16 %v1414
        %v2171 = vunpack.c.h.b16 %v1414
        %v2172 = vunpack.c.l.b16 %v1415
        %v2173 = vunpack.c.h.b16 %v1415
        %v2174 = vunpack.c.l.b16 %v1416
        %v2175 = vunpack.c.h.b16 %v1416
        %v2176 = vunpack.c.l.b16 %v1417
        %v2177 = vunpack.c.h.b16 %v1417
        %v2178 = vunpack.c.l.b16 %v1418
        %v2179 = vunpack.c.h.b16 %v1418
        %v2180 = vunpack.c.l.b16 %v1419
        %v2181 = vunpack.c.h.b16 %v1419
        %v2182 = vunpack.c.l.b16 %v1420
        %v2183 = vunpack.c.h.b16 %v1420
        %v2184 = vunpack.c.l.b16 %v1421
        %v2185 = vunpack.c.h.b16 %v1421
        %v2186 = vunpack.c.l.b16 %v1422
        %v2187 = vunpack.c.h.b16 %v1422
        %v2188 = vunpack.c.l.b16 %v1423
        %v2189 = vunpack.c.h.b16 %v1423
        %v2190 = vunpack.c.l.b16 %v1424
        %v2191 = vunpack.c.h.b16 %v1424
        %v2192 = vunpack.c.l.b16 %v1425
        %v2193 = vunpack.c.h.b16 %v1425
        %v2194 = vunpack.c.l.b16 %v1426
        %v2195 = vunpack.c.h.b16 %v1426
        %v2196 = vunpack.c.l.b16 %v1427
        %v2197 = vunpack.c.h.b16 %v1427
        %v2198 = vunpack.c.l.b16 %v1428
        %v2199 = vunpack.c.h.b16 %v1428
        %v2200 = vunpack.c.l.b16 %v1429
        %v2201 = vunpack.c.h.b16 %v1429
        %v2202 = vunpack.c.l.b16 %v1430
        %v2203 = vunpack.c.h.b16 %v1430
        %v2204 = vunpack.c.l.b16 %v1431
        %v2205 = vunpack.c.h.b16 %v1431
        %v2206 = vunpack.c.l.b16 %v1432
        %v2207 = vunpack.c.h.b16 %v1432
        %v2208 = vunpack.c.l.b16 %v1433
        %v2209 = vunpack.c.h.b16 %v1433
        %v2210 = vunpack.c.l.b16 %v1434
        %v2211 = vunpack.c.h.b16 %v1434
        %v2212 = vunpack.c.l.b16 %v1435
        %v2213 = vunpack.c.h.b16 %v1435
        %v2214 = vunpack.c.l.b16 %v1436
        %v2215 = vunpack.c.h.b16 %v1436
        %v2216 = vunpack.c.l.b16 %v1437
        %v2217 = vunpack.c.h.b16 %v1437
        %v2218 = vunpack.c.l.b16 %v1438
        %v2219 = vunpack.c.h.b16 %v1438
        %v2220 = vunpack.c.l.b16 %v1439
        %v2221 = vunpack.c.h.b16 %v1439
        %v2222 = vunpack.c.l.b16 %v1440
        %v2223 = vunpack.c.h.b16 %v1440
        %v2224 = vunpack.c.l.b16 %v1441
        %v2225 = vunpack.c.h.b16 %v1441
        %v2226 = vunpack.c.l.b16 %v1442
        %v2227 = vunpack.c.h.b16 %v1442
        %v2228 = vunpack.c.l.b16 %v1443
        %v2229 = vunpack.c.h.b16 %v1443
        %v2230 = vunpack.c.l.b16 %v1444
        %v2231 = vunpack.c.h.b16 %v1444
        %v2232 = vunpack.c.l.b16 %v1445
        %v2233 = vunpack.c.h.b16 %v1445
        %v2234 = vunpack.c.l.b16 %v1446
        %v2235 = vunpack.c.h.b16 %v1446
        %v2236 = vunpack.c.l.b16 %v1447
        %v2237 = vunpack.c.h.b16 %v1447
        %v2238 = vunpack.c.l.b16 %v1448
        %v2239 = vunpack.c.h.b16 %v1448
        %v2240 = vunpack.c.l.b16 %v1449
        %v2241 = vunpack.c.h.b16 %v1449
        %v2242 = vunpack.c.l.b16 %v1450
        %v2243 = vunpack.c.h.b16 %v1450
        %v2244 = vunpack.c.l.b16 %v1451
        %v2245 = vunpack.c.h.b16 %v1451
        %v2246 = vunpack.c.l.b16 %v1452
        %v2247 = vunpack.c.h.b16 %v1452
        %v2248 = vunpack.c.l.b16 %v1453
        %v2249 = vunpack.c.h.b16 %v1453
        %v2250 = vunpack.c.l.b16 %v1454
        %v2251 = vunpack.c.h.b16 %v1454
        %v2252 = vunpack.c.l.b16 %v1455
        %v2253 = vunpack.c.h.b16 %v1455
        %v2254 = vunpack.c.l.b16 %v1456
        %v2255 = vunpack.c.h.b16 %v1456
        %v2256 = vunpack.c.l.b16 %v1457
        %v2257 = vunpack.c.h.b16 %v1457
        %v2258 = vunpack.c.l.b16 %v1458
        %v2259 = vunpack.c.h.b16 %v1458
        %v2260 = vunpack.c.l.b16 %v1459
        %v2261 = vunpack.c.h.b16 %v1459
        %v2262 = vunpack.c.l.b16 %v1460
        %v2263 = vunpack.c.h.b16 %v1460
        %v2264 = vunpack.c.l.b16 %v1461
        %v2265 = vunpack.c.h.b16 %v1461
        %v2266 = vunpack.c.l.b16 %v1462
        %v2267 = vunpack.c.h.b16 %v1462
        %v2268 = vunpack.c.l.b16 %v1463
        %v2269 = vunpack.c.h.b16 %v1463
        %v2270 = vunpack.c.l.b16 %v1464
        %v2271 = vunpack.c.h.b16 %v1464
        %v2272 = vunpack.c.l.b16 %v1465
        %v2273 = vunpack.c.h.b16 %v1465
        %v2274 = vunpack.c.l.b16 %v1466
        %v2275 = vunpack.c.h.b16 %v1466
        %v2276 = vunpack.c.l.b16 %v1467
        %v2277 = vunpack.c.h.b16 %v1467
        %v2278 = vpack.c.b16 %v1774, %v1766
        %v2279 = vpack.c.b16 %v1775, %v1767
        %v2280 = vpack.c.b16 %v1776, %v1768
        %v2281 = vpack.c.b16 %v1777, %v1769
        %v2282 = vpack.c.b16 %v1778, %v1770
        %v2283 = vpack.c.b16 %v1779, %v1771
        %v2284 = vpack.c.b16 %v1780, %v1772
        %v2285 = vpack.c.b16 %v1781, %v1773
        %v2286 = vpack.c.b16 %v1790, %v1782
        %v2287 = vpack.c.b16 %v1791, %v1783
        %v2288 = vpack.c.b16 %v1792, %v1784
        %v2289 = vpack.c.b16 %v1793, %v1785
        %v2290 = vpack.c.b16 %v1794, %v1786
        %v2291 = vpack.c.b16 %v1795, %v1787
        %v2292 = vpack.c.b16 %v1796, %v1788
        %v2293 = vpack.c.b16 %v1797, %v1789
        %v2294 = vpack.c.b16 %v1806, %v1798
        %v2295 = vpack.c.b16 %v1807, %v1799
        %v2296 = vpack.c.b16 %v1808, %v1800
        %v2297 = vpack.c.b16 %v1809, %v1801
        %v2298 = vpack.c.b16 %v1810, %v1802
        %v2299 = vpack.c.b16 %v1811, %v1803
        %v2300 = vpack.c.b16 %v1812, %v1804
        %v2301 = vpack.c.b16 %v1813, %v1805
        %v2302 = vpack.c.b16 %v1822, %v1814
        %v2303 = vpack.c.b16 %v1823, %v1815
        %v2304 = vpack.c.b16 %v1824, %v1816
        %v2305 = vpack.c.b16 %v1825, %v1817
        %v2306 = vpack.c.b16 %v1826, %v1818
        %v2307 = vpack.c.b16 %v1827, %v1819
        %v2308 = vpack.c.b16 %v1828, %v1820
        %v2309 = vpack.c.b16 %v1829, %v1821
        %v2310 = vpack.c.b16 %v1838, %v1830
        %v2311 = vpack.c.b16 %v1839, %v1831
        %v2312 = vpack.c.b16 %v1840, %v1832
        %v2313 = vpack.c.b16 %v1841, %v1833
        %v2314 = vpack.c.b16 %v1842, %v1834
        %v2315 = vpack.c.b16 %v1843, %v1835
        %v2316 = vpack.c.b16 %v1844, %v1836
        %v2317 = vpack.c.b16 %v1845, %v1837
        %v2318 = vpack.c.b16 %v1854, %v1846
        %v2319 = vpack.c.b16 %v1855, %v1847
        %v2320 = vpack.c.b16 %v1856, %v1848
        %v2321 = vpack.c.b16 %v1857, %v1849
        %v2322 = vpack.c.b16 %v1858, %v1850
        %v2323 = vpack.c.b16 %v1859, %v1851
        %v2324 = vpack.c.b16 %v1860, %v1852
        %v2325 = vpack.c.b16 %v1861, %v1853
        %v2326 = vpack.c.b16 %v1870, %v1862
        %v2327 = vpack.c.b16 %v1871, %v1863
        %v2328 = vpack.c.b16 %v1872, %v1864
        %v2329 = vpack.c.b16 %v1873, %v1865
        %v2330 = vpack.c.b16 %v1874, %v1866
        %v2331 = vpack.c.b16 %v1875, %v1867
        %v2332 = vpack.c.b16 %v1876, %v1868
        %v2333 = vpack.c.b16 %v1877, %v1869
        %v2334 = vpack.c.b16 %v1886, %v1878
        %v2335 = vpack.c.b16 %v1887, %v1879
        %v2336 = vpack.c.b16 %v1888, %v1880
        %v2337 = vpack.c.b16 %v1889, %v1881
        %v2338 = vpack.c.b16 %v1890, %v1882
        %v2339 = vpack.c.b16 %v1891, %v1883
        %v2340 = vpack.c.b16 %v1892, %v1884
        %v2341 = vpack.c.b16 %v1893, %v1885
        %v2342 = vpack.c.b16 %v1902, %v1894
        %v2343 = vpack.c.b16 %v1903, %v1895
        %v2344 = vpack.c.b16 %v1904, %v1896
        %v2345 = vpack.c.b16 %v1905, %v1897
        %v2346 = vpack.c.b16 %v1906, %v1898
        %v2347 = vpack.c.b16 %v1907, %v1899
        %v2348 = vpack.c.b16 %v1908, %v1900
        %v2349 = vpack.c.b16 %v1909, %v1901
        %v2350 = vpack.c.b16 %v1918, %v1910
        %v2351 = vpack.c.b16 %v1919, %v1911
        %v2352 = vpack.c.b16 %v1920, %v1912
        %v2353 = vpack.c.b16 %v1921, %v1913
        %v2354 = vpack.c.b16 %v1922, %v1914
        %v2355 = vpack.c.b16 %v1923, %v1915
        %v2356 = vpack.c.b16 %v1924, %v1916
        %v2357 = vpack.c.b16 %v1925, %v1917
        %v2358 = vpack.c.b16 %v1934, %v1926
        %v2359 = vpack.c.b16 %v1935, %v1927
        %v2360 = vpack.c.b16 %v1936, %v1928
        %v2361 = vpack.c.b16 %v1937, %v1929
        %v2362 = vpack.c.b16 %v1938, %v1930
        %v2363 = vpack.c.b16 %v1939, %v1931
        %v2364 = vpack.c.b16 %v1940, %v1932
        %v2365 = vpack.c.b16 %v1941, %v1933
        %v2366 = vpack.c.b16 %v1950, %v1942
        %v2367 = vpack.c.b16 %v1951, %v1943
        %v2368 = vpack.c.b16 %v1952, %v1944
        %v2369 = vpack.c.b16 %v1953, %v1945
        %v2370 = vpack.c.b16 %v1954, %v1946
        %v2371 = vpack.c.b16 %v1955, %v1947
        %v2372 = vpack.c.b16 %v1956, %v1948
        %v2373 = vpack.c.b16 %v1957, %v1949
        %v2374 = vpack.c.b16 %v1966, %v1958
        %v2375 = vpack.c.b16 %v1967, %v1959
        %v2376 = vpack.c.b16 %v1968, %v1960
        %v2377 = vpack.c.b16 %v1969, %v1961
        %v2378 = vpack.c.b16 %v1970, %v1962
        %v2379 = vpack.c.b16 %v1971, %v1963
        %v2380 = vpack.c.b16 %v1972, %v1964
        %v2381 = vpack.c.b16 %v1973, %v1965
        %v2382 = vpack.c.b16 %v1982, %v1974
        %v2383 = vpack.c.b16 %v1983, %v1975
        %v2384 = vpack.c.b16 %v1984, %v1976
        %v2385 = vpack.c.b16 %v1985, %v1977
        %v2386 = vpack.c.b16 %v1986, %v1978
        %v2387 = vpack.c.b16 %v1987, %v1979
        %v2388 = vpack.c.b16 %v1988, %v1980
        %v2389 = vpack.c.b16 %v1989, %v1981
        %v2390 = vpack.c.b16 %v1998, %v1990
        %v2391 = vpack.c.b16 %v1999, %v1991
        %v2392 = vpack.c.b16 %v2000, %v1992
        %v2393 = vpack.c.b16 %v2001, %v1993
        %v2394 = vpack.c.b16 %v2002, %v1994
        %v2395 = vpack.c.b16 %v2003, %v1995
        %v2396 = vpack.c.b16 %v2004, %v1996
        %v2397 = vpack.c.b16 %v2005, %v1997
        %v2398 = vpack.c.b16 %v2014, %v2006
        %v2399 = vpack.c.b16 %v2015, %v2007
        %v2400 = vpack.c.b16 %v2016, %v2008
        %v2401 = vpack.c.b16 %v2017, %v2009
        %v2402 = vpack.c.b16 %v2018, %v2010
        %v2403 = vpack.c.b16 %v2019, %v2011
        %v2404 = vpack.c.b16 %v2020, %v2012
        %v2405 = vpack.c.b16 %v2021, %v2013
        %v2406 = vpack.c.b16 %v2030, %v2022
        %v2407 = vpack.c.b16 %v2031, %v2023
        %v2408 = vpack.c.b16 %v2032, %v2024
        %v2409 = vpack.c.b16 %v2033, %v2025
        %v2410 = vpack.c.b16 %v2034, %v2026
        %v2411 = vpack.c.b16 %v2035, %v2027
        %v2412 = vpack.c.b16 %v2036, %v2028
        %v2413 = vpack.c.b16 %v2037, %v2029
        %v2414 = vpack.c.b16 %v2046, %v2038
        %v2415 = vpack.c.b16 %v2047, %v2039
        %v2416 = vpack.c.b16 %v2048, %v2040
        %v2417 = vpack.c.b16 %v2049, %v2041
        %v2418 = vpack.c.b16 %v2050, %v2042
        %v2419 = vpack.c.b16 %v2051, %v2043
        %v2420 = vpack.c.b16 %v2052, %v2044
        %v2421 = vpack.c.b16 %v2053, %v2045
        %v2422 = vpack.c.b16 %v2062, %v2054
        %v2423 = vpack.c.b16 %v2063, %v2055
        %v2424 = vpack.c.b16 %v2064, %v2056
        %v2425 = vpack.c.b16 %v2065, %v2057
        %v2426 = vpack.c.b16 %v2066, %v2058
        %v2427 = vpack.c.b16 %v2067, %v2059
        %v2428 = vpack.c.b16 %v2068, %v2060
        %v2429 = vpack.c.b16 %v2069, %v2061
        %v2430 = vpack.c.b16 %v2078, %v2070
        %v2431 = vpack.c.b16 %v2079, %v2071
        %v2432 = vpack.c.b16 %v2080, %v2072
        %v2433 = vpack.c.b16 %v2081, %v2073
        %v2434 = vpack.c.b16 %v2082, %v2074
        %v2435 = vpack.c.b16 %v2083, %v2075
        %v2436 = vpack.c.b16 %v2084, %v2076
        %v2437 = vpack.c.b16 %v2085, %v2077
        %v2438 = vpack.c.b16 %v2094, %v2086
        %v2439 = vpack.c.b16 %v2095, %v2087
        %v2440 = vpack.c.b16 %v2096, %v2088
        %v2441 = vpack.c.b16 %v2097, %v2089
        %v2442 = vpack.c.b16 %v2098, %v2090
        %v2443 = vpack.c.b16 %v2099, %v2091
        %v2444 = vpack.c.b16 %v2100, %v2092
        %v2445 = vpack.c.b16 %v2101, %v2093
        %v2446 = vpack.c.b16 %v2110, %v2102
        %v2447 = vpack.c.b16 %v2111, %v2103
        %v2448 = vpack.c.b16 %v2112, %v2104
        %v2449 = vpack.c.b16 %v2113, %v2105
        %v2450 = vpack.c.b16 %v2114, %v2106
        %v2451 = vpack.c.b16 %v2115, %v2107
        %v2452 = vpack.c.b16 %v2116, %v2108
        %v2453 = vpack.c.b16 %v2117, %v2109
        %v2454 = vpack.c.b16 %v2126, %v2118
        %v2455 = vpack.c.b16 %v2127, %v2119
        %v2456 = vpack.c.b16 %v2128, %v2120
        %v2457 = vpack.c.b16 %v2129, %v2121
        %v2458 = vpack.c.b16 %v2130, %v2122
        %v2459 = vpack.c.b16 %v2131, %v2123
        %v2460 = vpack.c.b16 %v2132, %v2124
        %v2461 = vpack.c.b16 %v2133, %v2125
        %v2462 = vpack.c.b16 %v2142, %v2134
        %v2463 = vpack.c.b16 %v2143, %v2135
        %v2464 = vpack.c.b16 %v2144, %v2136
        %v2465 = vpack.c.b16 %v2145, %v2137
        %v2466 = vpack.c.b16 %v2146, %v2138
        %v2467 = vpack.c.b16 %v2147, %v2139
        %v2468 = vpack.c.b16 %v2148, %v2140
        %v2469 = vpack.c.b16 %v2149, %v2141
        %v2470 = vpack.c.b16 %v2158, %v2150
        %v2471 = vpack.c.b16 %v2159, %v2151
        %v2472 = vpack.c.b16 %v2160, %v2152
        %v2473 = vpack.c.b16 %v2161, %v2153
        %v2474 = vpack.c.b16 %v2162, %v2154
        %v2475 = vpack.c.b16 %v2163, %v2155
        %v2476 = vpack.c.b16 %v2164, %v2156
        %v2477 = vpack.c.b16 %v2165, %v2157
        %v2478 = vpack.c.b16 %v2174, %v2166
        %v2479 = vpack.c.b16 %v2175, %v2167
        %v2480 = vpack.c.b16 %v2176, %v2168
        %v2481 = vpack.c.b16 %v2177, %v2169
        %v2482 = vpack.c.b16 %v2178, %v2170
        %v2483 = vpack.c.b16 %v2179, %v2171
        %v2484 = vpack.c.b16 %v2180, %v2172
        %v2485 = vpack.c.b16 %v2181, %v2173
        %v2486 = vpack.c.b16 %v2190, %v2182
        %v2487 = vpack.c.b16 %v2191, %v2183
        %v2488 = vpack.c.b16 %v2192, %v2184
        %v2489 = vpack.c.b16 %v2193, %v2185
        %v2490 = vpack.c.b16 %v2194, %v2186
        %v2491 = vpack.c.b16 %v2195, %v2187
        %v2492 = vpack.c.b16 %v2196, %v2188
        %v2493 = vpack.c.b16 %v2197, %v2189
        %v2494 = vpack.c.b16 %v2206, %v2198
        %v2495 = vpack.c.b16 %v2207, %v2199
        %v2496 = vpack.c.b16 %v2208, %v2200
        %v2497 = vpack.c.b16 %v2209, %v2201
        %v2498 = vpack.c.b16 %v2210, %v2202
        %v2499 = vpack.c.b16 %v2211, %v2203
        %v2500 = vpack.c.b16 %v2212, %v2204
        %v2501 = vpack.c.b16 %v2213, %v2205
        %v2502 = vpack.c.b16 %v2222, %v2214
        %v2503 = vpack.c.b16 %v2223, %v2215
        %v2504 = vpack.c.b16 %v2224, %v2216
        %v2505 = vpack.c.b16 %v2225, %v2217
        %v2506 = vpack.c.b16 %v2226, %v2218
        %v2507 = vpack.c.b16 %v2227, %v2219
        %v2508 = vpack.c.b16 %v2228, %v2220
        %v2509 = vpack.c.b16 %v2229, %v2221
        %v2510 = vpack.c.b16 %v2238, %v2230
        %v2511 = vpack.c.b16 %v2239, %v2231
        %v2512 = vpack.c.b16 %v2240, %v2232
        %v2513 = vpack.c.b16 %v2241, %v2233
        %v2514 = vpack.c.b16 %v2242, %v2234
        %v2515 = vpack.c.b16 %v2243, %v2235
        %v2516 = vpack.c.b16 %v2244, %v2236
        %v2517 = vpack.c.b16 %v2245, %v2237
        %v2518 = vpack.c.b16 %v2254, %v2246
        %v2519 = vpack.c.b16 %v2255, %v2247
        %v2520 = vpack.c.b16 %v2256, %v2248
        %v2521 = vpack.c.b16 %v2257, %v2249
        %v2522 = vpack.c.b16 %v2258, %v2250
        %v2523 = vpack.c.b16 %v2259, %v2251
        %v2524 = vpack.c.b16 %v2260, %v2252
        %v2525 = vpack.c.b16 %v2261, %v2253
        %v2526 = vpack.c.b16 %v2270, %v2262
        %v2527 = vpack.c.b16 %v2271, %v2263
        %v2528 = vpack.c.b16 %v2272, %v2264
        %v2529 = vpack.c.b16 %v2273, %v2265
        %v2530 = vpack.c.b16 %v2274, %v2266
        %v2531 = vpack.c.b16 %v2275, %v2267
        %v2532 = vpack.c.b16 %v2276, %v2268
        %v2533 = vpack.c.b16 %v2277, %v2269
        %2790 = vmatprep.subr.bf16.mxu0 %v2335
        %2791 = vmatpush1.bf16.msra.mxu0 %v2334
        %2792 = vmatprep.subr.bf16.mxu0 %v2327
        %2793 = vmatpush1.bf16.msra.mxu0 %v2326
        %2794 = vmatprep.subr.bf16.mxu0 %v2319
        %2795 = vmatpush1.bf16.msra.mxu0 %v2318
        %2796 = vmatprep.subr.bf16.mxu0 %v2311
        %2797 = vmatpush1.bf16.msra.mxu0 %v2310
        %2798 = vmatprep.subr.bf16.mxu0 %v2303
        %2799 = vmatpush1.bf16.msra.mxu0 %v2302
        %2800 = vmatprep.subr.bf16.mxu0 %v2295
        %2801 = vmatpush1.bf16.msra.mxu0 %v2294
        %2802 = vmatprep.subr.bf16.mxu0 %v2287
        %2803 = vmatpush1.bf16.msra.mxu0 %v2286
        %2804 = vmatprep.subr.bf16.mxu0 %v2279
        %2805 = vmatpush1.bf16.msra.mxu0 %v2278
        %2806 = vmatprep.subr.bf16.mxu0 %v2399
        %2807 = vmatpush2.bf16.msra.mxu0 %v2398
        %2808 = vmatprep.subr.bf16.mxu0 %v2391
        %2809 = vmatpush2.bf16.msra.mxu0 %v2390
        %2810 = vmatprep.subr.bf16.mxu0 %v2383
        %2811 = vmatpush2.bf16.msra.mxu0 %v2382
        %2812 = vmatprep.subr.bf16.mxu0 %v2375
        %2813 = vmatpush2.bf16.msra.mxu0 %v2374
        %2814 = vmatprep.subr.bf16.mxu0 %v2367
        %2815 = vmatpush2.bf16.msra.mxu0 %v2366
        %2816 = vmatprep.subr.bf16.mxu0 %v2359
        %2817 = vmatpush2.bf16.msra.mxu0 %v2358
        %2818 = vmatprep.subr.bf16.mxu0 %v2351
        %2819 = vmatpush2.bf16.msra.mxu0 %v2350
        %2820 = vmatprep.subr.bf16.mxu0 %v2343
        %2821 = vmatpush2.bf16.msra.mxu0 %v2342
        %2822 = vmatprep.mubr.bf16.mxu0 %v1209
        %2823 = vmatmul.mubr.bf16.gmra.mxu0 %v1208
        %v2824 = vpop.f32.mrf.mxu0
        %v2825 = vadd.f32 %v1473, %v2824
        %v2826 = vpop.f32.mrf.mxu0
        %v2827 = vadd.f32 %v1477, %v2826
        %v2828 = vpop.f32.mrf.mxu0
        %v2829 = vpop.f32.mrf.mxu0
        %2830 = vdwg.mxu0
        %2831 = vmatprep.subr.bf16.mxu0 %v2463
        %2832 = vmatpush1.bf16.msra.mxu0 %v2462
        %2833 = vmatprep.subr.bf16.mxu0 %v2455
        %2834 = vmatpush1.bf16.msra.mxu0 %v2454
        %2835 = vmatprep.subr.bf16.mxu0 %v2447
        %2836 = vmatpush1.bf16.msra.mxu0 %v2446
        %2837 = vmatprep.subr.bf16.mxu0 %v2439
        %2838 = vmatpush1.bf16.msra.mxu0 %v2438
        %2839 = vmatprep.subr.bf16.mxu0 %v2431
        %2840 = vmatpush1.bf16.msra.mxu0 %v2430
        %2841 = vmatprep.subr.bf16.mxu0 %v2423
        %2842 = vmatpush1.bf16.msra.mxu0 %v2422
        %2843 = vmatprep.subr.bf16.mxu0 %v2415
        %2844 = vmatpush1.bf16.msra.mxu0 %v2414
        %2845 = vmatprep.subr.bf16.mxu0 %v2407
        %2846 = vmatpush1.bf16.msra.mxu0 %v2406
        %2847 = vmatprep.subr.bf16.mxu0 %v2527
        %2848 = vmatpush2.bf16.msra.mxu0 %v2526
        %2849 = vmatprep.subr.bf16.mxu0 %v2519
        %2850 = vmatpush2.bf16.msra.mxu0 %v2518
        %2851 = vmatprep.subr.bf16.mxu0 %v2511
        %2852 = vmatpush2.bf16.msra.mxu0 %v2510
        %2853 = vmatprep.subr.bf16.mxu0 %v2503
        %2854 = vmatpush2.bf16.msra.mxu0 %v2502
        %2855 = vmatprep.subr.bf16.mxu0 %v2495
        %2856 = vmatpush2.bf16.msra.mxu0 %v2494
        %2857 = vmatprep.subr.bf16.mxu0 %v2487
        %2858 = vmatpush2.bf16.msra.mxu0 %v2486
        %2859 = vmatprep.subr.bf16.mxu0 %v2479
        %2860 = vmatpush2.bf16.msra.mxu0 %v2478
        %2861 = vmatprep.subr.bf16.mxu0 %v2471
        %2862 = vmatpush2.bf16.msra.mxu0 %v2470
        %2863 = vmatprep.mubr.bf16.mxu0 %v1211
        %2864 = vmatmul.mubr.bf16.gmra.mxu0 %v1210
        %v2865 = vpop.f32.mrf.mxu0
        %v2866 = vadd.f32 %v2825, %v2865
        %v2867 = vpop.f32.mrf.mxu0
        %v2868 = vadd.f32 %v2827, %v2867
        %v2869 = vpop.f32.mrf.mxu0
        %v2870 = vpop.f32.mrf.mxu0
        %2871 = vdwg.mxu0
        %2872 = vmatprep.subr.bf16.mxu0 %v2337
        %2873 = vmatpush1.bf16.msra.mxu0 %v2336
        %2874 = vmatprep.subr.bf16.mxu0 %v2329
        %2875 = vmatpush1.bf16.msra.mxu0 %v2328
        %2876 = vmatprep.subr.bf16.mxu0 %v2321
        %2877 = vmatpush1.bf16.msra.mxu0 %v2320
        %2878 = vmatprep.subr.bf16.mxu0 %v2313
        %2879 = vmatpush1.bf16.msra.mxu0 %v2312
        %2880 = vmatprep.subr.bf16.mxu0 %v2305
        %2881 = vmatpush1.bf16.msra.mxu0 %v2304
        %2882 = vmatprep.subr.bf16.mxu0 %v2297
        %2883 = vmatpush1.bf16.msra.mxu0 %v2296
        %2884 = vmatprep.subr.bf16.mxu0 %v2289
        %2885 = vmatpush1.bf16.msra.mxu0 %v2288
        %2886 = vmatprep.subr.bf16.mxu0 %v2281
        %2887 = vmatpush1.bf16.msra.mxu0 %v2280
        %2888 = vmatprep.subr.bf16.mxu0 %v2401
        %2889 = vmatpush2.bf16.msra.mxu0 %v2400
        %2890 = vmatprep.subr.bf16.mxu0 %v2393
        %2891 = vmatpush2.bf16.msra.mxu0 %v2392
        %2892 = vmatprep.subr.bf16.mxu0 %v2385
        %2893 = vmatpush2.bf16.msra.mxu0 %v2384
        %2894 = vmatprep.subr.bf16.mxu0 %v2377
        %2895 = vmatpush2.bf16.msra.mxu0 %v2376
        %2896 = vmatprep.subr.bf16.mxu0 %v2369
        %2897 = vmatpush2.bf16.msra.mxu0 %v2368
        %2898 = vmatprep.subr.bf16.mxu0 %v2361
        %2899 = vmatpush2.bf16.msra.mxu0 %v2360
        %2900 = vmatprep.subr.bf16.mxu0 %v2353
        %2901 = vmatpush2.bf16.msra.mxu0 %v2352
        %2902 = vmatprep.subr.bf16.mxu0 %v2345
        %2903 = vmatpush2.bf16.msra.mxu0 %v2344
        %2904 = vmatprep.mubr.bf16.mxu0 %v1209
        %2905 = vmatmul.mubr.bf16.gmra.mxu0 %v1208
        %v2906 = vpop.f32.mrf.mxu0
        %v2907 = vadd.f32 %v1481, %v2906
        %v2908 = vpop.f32.mrf.mxu0
        %v2909 = vadd.f32 %v1485, %v2908
        %v2910 = vpop.f32.mrf.mxu0
        %v2911 = vpop.f32.mrf.mxu0
        %2912 = vdwg.mxu0
        %2913 = vmatprep.subr.bf16.mxu0 %v2465
        %2914 = vmatpush1.bf16.msra.mxu0 %v2464
        %2915 = vmatprep.subr.bf16.mxu0 %v2457
        %2916 = vmatpush1.bf16.msra.mxu0 %v2456
        %2917 = vmatprep.subr.bf16.mxu0 %v2449
        %2918 = vmatpush1.bf16.msra.mxu0 %v2448
        %2919 = vmatprep.subr.bf16.mxu0 %v2441
        %2920 = vmatpush1.bf16.msra.mxu0 %v2440
        %2921 = vmatprep.subr.bf16.mxu0 %v2433
        %2922 = vmatpush1.bf16.msra.mxu0 %v2432
        %2923 = vmatprep.subr.bf16.mxu0 %v2425
        %2924 = vmatpush1.bf16.msra.mxu0 %v2424
        %2925 = vmatprep.subr.bf16.mxu0 %v2417
        %2926 = vmatpush1.bf16.msra.mxu0 %v2416
        %2927 = vmatprep.subr.bf16.mxu0 %v2409
        %2928 = vmatpush1.bf16.msra.mxu0 %v2408
        %2929 = vmatprep.subr.bf16.mxu0 %v2529
        %2930 = vmatpush2.bf16.msra.mxu0 %v2528
        %2931 = vmatprep.subr.bf16.mxu0 %v2521
        %2932 = vmatpush2.bf16.msra.mxu0 %v2520
        %2933 = vmatprep.subr.bf16.mxu0 %v2513
        %2934 = vmatpush2.bf16.msra.mxu0 %v2512
        %2935 = vmatprep.subr.bf16.mxu0 %v2505
        %2936 = vmatpush2.bf16.msra.mxu0 %v2504
        %2937 = vmatprep.subr.bf16.mxu0 %v2497
        %2938 = vmatpush2.bf16.msra.mxu0 %v2496
        %2939 = vmatprep.subr.bf16.mxu0 %v2489
        %2940 = vmatpush2.bf16.msra.mxu0 %v2488
        %2941 = vmatprep.subr.bf16.mxu0 %v2481
        %2942 = vmatpush2.bf16.msra.mxu0 %v2480
        %2943 = vmatprep.subr.bf16.mxu0 %v2473
        %2944 = vmatpush2.bf16.msra.mxu0 %v2472
        %2945 = vmatprep.mubr.bf16.mxu0 %v1211
        %2946 = vmatmul.mubr.bf16.gmra.mxu0 %v1210
        %v2947 = vpop.f32.mrf.mxu0
        %v2948 = vadd.f32 %v2907, %v2947
        %v2949 = vpop.f32.mrf.mxu0
        %v2950 = vadd.f32 %v2909, %v2949
        %v2951 = vpop.f32.mrf.mxu0
        %v2952 = vpop.f32.mrf.mxu0
        %2953 = vdwg.mxu0
        %2954 = vmatprep.subr.bf16.mxu0 %v2339
        %2955 = vmatpush1.bf16.msra.mxu0 %v2338
        %2956 = vmatprep.subr.bf16.mxu0 %v2331
        %2957 = vmatpush1.bf16.msra.mxu0 %v2330
        %2958 = vmatprep.subr.bf16.mxu0 %v2323
        %2959 = vmatpush1.bf16.msra.mxu0 %v2322
        %2960 = vmatprep.subr.bf16.mxu0 %v2315
        %2961 = vmatpush1.bf16.msra.mxu0 %v2314
        %2962 = vmatprep.subr.bf16.mxu0 %v2307
        %2963 = vmatpush1.bf16.msra.mxu0 %v2306
        %2964 = vmatprep.subr.bf16.mxu0 %v2299
        %2965 = vmatpush1.bf16.msra.mxu0 %v2298
        %2966 = vmatprep.subr.bf16.mxu0 %v2291
        %2967 = vmatpush1.bf16.msra.mxu0 %v2290
        %2968 = vmatprep.subr.bf16.mxu0 %v2283
        %2969 = vmatpush1.bf16.msra.mxu0 %v2282
        %2970 = vmatprep.subr.bf16.mxu0 %v2403
        %2971 = vmatpush2.bf16.msra.mxu0 %v2402
        %2972 = vmatprep.subr.bf16.mxu0 %v2395
        %2973 = vmatpush2.bf16.msra.mxu0 %v2394
        %2974 = vmatprep.subr.bf16.mxu0 %v2387
        %2975 = vmatpush2.bf16.msra.mxu0 %v2386
        %2976 = vmatprep.subr.bf16.mxu0 %v2379
        %2977 = vmatpush2.bf16.msra.mxu0 %v2378
        %2978 = vmatprep.subr.bf16.mxu0 %v2371
        %2979 = vmatpush2.bf16.msra.mxu0 %v2370
        %2980 = vmatprep.subr.bf16.mxu0 %v2363
        %2981 = vmatpush2.bf16.msra.mxu0 %v2362
        %2982 = vmatprep.subr.bf16.mxu0 %v2355
        %2983 = vmatpush2.bf16.msra.mxu0 %v2354
        %2984 = vmatprep.subr.bf16.mxu0 %v2347
        %2985 = vmatpush2.bf16.msra.mxu0 %v2346
        %2986 = vmatprep.mubr.bf16.mxu0 %v1209
        %2987 = vmatmul.mubr.bf16.gmra.mxu0 %v1208
        %v2988 = vpop.f32.mrf.mxu0
        %v2989 = vadd.f32 %v1489, %v2988
        %v2990 = vpop.f32.mrf.mxu0
        %v2991 = vadd.f32 %v1493, %v2990
        %v2992 = vpop.f32.mrf.mxu0
        %v2993 = vpop.f32.mrf.mxu0
        %2994 = vdwg.mxu0
        %2995 = vmatprep.subr.bf16.mxu0 %v2467
        %2996 = vmatpush1.bf16.msra.mxu0 %v2466
        %2997 = vmatprep.subr.bf16.mxu0 %v2459
        %2998 = vmatpush1.bf16.msra.mxu0 %v2458
        %2999 = vmatprep.subr.bf16.mxu0 %v2451
        %3000 = vmatpush1.bf16.msra.mxu0 %v2450
        %3001 = vmatprep.subr.bf16.mxu0 %v2443
        %3002 = vmatpush1.bf16.msra.mxu0 %v2442
        %3003 = vmatprep.subr.bf16.mxu0 %v2435
        %3004 = vmatpush1.bf16.msra.mxu0 %v2434
        %3005 = vmatprep.subr.bf16.mxu0 %v2427
        %3006 = vmatpush1.bf16.msra.mxu0 %v2426
        %3007 = vmatprep.subr.bf16.mxu0 %v2419
        %3008 = vmatpush1.bf16.msra.mxu0 %v2418
        %3009 = vmatprep.subr.bf16.mxu0 %v2411
        %3010 = vmatpush1.bf16.msra.mxu0 %v2410
        %3011 = vmatprep.subr.bf16.mxu0 %v2531
        %3012 = vmatpush2.bf16.msra.mxu0 %v2530
        %3013 = vmatprep.subr.bf16.mxu0 %v2523
        %3014 = vmatpush2.bf16.msra.mxu0 %v2522
        %3015 = vmatprep.subr.bf16.mxu0 %v2515
        %3016 = vmatpush2.bf16.msra.mxu0 %v2514
        %3017 = vmatprep.subr.bf16.mxu0 %v2507
        %3018 = vmatpush2.bf16.msra.mxu0 %v2506
        %3019 = vmatprep.subr.bf16.mxu0 %v2499
        %3020 = vmatpush2.bf16.msra.mxu0 %v2498
        %3021 = vmatprep.subr.bf16.mxu0 %v2491
        %3022 = vmatpush2.bf16.msra.mxu0 %v2490
        %3023 = vmatprep.subr.bf16.mxu0 %v2483
        %3024 = vmatpush2.bf16.msra.mxu0 %v2482
        %3025 = vmatprep.subr.bf16.mxu0 %v2475
        %3026 = vmatpush2.bf16.msra.mxu0 %v2474
        %3027 = vmatprep.mubr.bf16.mxu0 %v1211
        %3028 = vmatmul.mubr.bf16.gmra.mxu0 %v1210
        %v3029 = vpop.f32.mrf.mxu0
        %v3030 = vadd.f32 %v2989, %v3029
        %v3031 = vpop.f32.mrf.mxu0
        %v3032 = vadd.f32 %v2991, %v3031
        %v3033 = vpop.f32.mrf.mxu0
        %v3034 = vpop.f32.mrf.mxu0
        %3035 = vdwg.mxu0
        %3036 = vmatprep.subr.bf16.mxu0 %v2341
        %3037 = vmatpush1.bf16.msra.mxu0 %v2340
        %3038 = vmatprep.subr.bf16.mxu0 %v2333
        %3039 = vmatpush1.bf16.msra.mxu0 %v2332
        %3040 = vmatprep.subr.bf16.mxu0 %v2325
        %3041 = vmatpush1.bf16.msra.mxu0 %v2324
        %3042 = vmatprep.subr.bf16.mxu0 %v2317
        %3043 = vmatpush1.bf16.msra.mxu0 %v2316
        %3044 = vmatprep.subr.bf16.mxu0 %v2309
        %3045 = vmatpush1.bf16.msra.mxu0 %v2308
        %3046 = vmatprep.subr.bf16.mxu0 %v2301
        %3047 = vmatpush1.bf16.msra.mxu0 %v2300
        %3048 = vmatprep.subr.bf16.mxu0 %v2293
        %3049 = vmatpush1.bf16.msra.mxu0 %v2292
        %3050 = vmatprep.subr.bf16.mxu0 %v2285
        %3051 = vmatpush1.bf16.msra.mxu0 %v2284
        %3052 = vmatprep.subr.bf16.mxu0 %v2405
        %3053 = vmatpush2.bf16.msra.mxu0 %v2404
        %3054 = vmatprep.subr.bf16.mxu0 %v2397
        %3055 = vmatpush2.bf16.msra.mxu0 %v2396
        %3056 = vmatprep.subr.bf16.mxu0 %v2389
        %3057 = vmatpush2.bf16.msra.mxu0 %v2388
        %3058 = vmatprep.subr.bf16.mxu0 %v2381
        %3059 = vmatpush2.bf16.msra.mxu0 %v2380
        %3060 = vmatprep.subr.bf16.mxu0 %v2373
        %3061 = vmatpush2.bf16.msra.mxu0 %v2372
        %3062 = vmatprep.subr.bf16.mxu0 %v2365
        %3063 = vmatpush2.bf16.msra.mxu0 %v2364
        %3064 = vmatprep.subr.bf16.mxu0 %v2357
        %3065 = vmatpush2.bf16.msra.mxu0 %v2356
        %3066 = vmatprep.subr.bf16.mxu0 %v2349
        %3067 = vmatpush2.bf16.msra.mxu0 %v2348
        %3068 = vmatprep.mubr.bf16.mxu0 %v1209
        %3069 = vmatmul.mubr.bf16.gmra.mxu0 %v1208
        %v3070 = vpop.f32.mrf.mxu0
        %v3071 = vadd.f32 %v1497, %v3070
        %v3072 = vpop.f32.mrf.mxu0
        %v3073 = vadd.f32 %v1501, %v3072
        %v3074 = vpop.f32.mrf.mxu0
        %v3075 = vpop.f32.mrf.mxu0
        %3076 = vdwg.mxu0
        %3077 = vmatprep.subr.bf16.mxu0 %v2469
        %3078 = vmatpush1.bf16.msra.mxu0 %v2468
        %3079 = vmatprep.subr.bf16.mxu0 %v2461
        %3080 = vmatpush1.bf16.msra.mxu0 %v2460
        %3081 = vmatprep.subr.bf16.mxu0 %v2453
        %3082 = vmatpush1.bf16.msra.mxu0 %v2452
        %3083 = vmatprep.subr.bf16.mxu0 %v2445
        %3084 = vmatpush1.bf16.msra.mxu0 %v2444
        %3085 = vmatprep.subr.bf16.mxu0 %v2437
        %3086 = vmatpush1.bf16.msra.mxu0 %v2436
        %3087 = vmatprep.subr.bf16.mxu0 %v2429
        %3088 = vmatpush1.bf16.msra.mxu0 %v2428
        %3089 = vmatprep.subr.bf16.mxu0 %v2421
        %3090 = vmatpush1.bf16.msra.mxu0 %v2420
        %3091 = vmatprep.subr.bf16.mxu0 %v2413
        %3092 = vmatpush1.bf16.msra.mxu0 %v2412
        %3093 = vmatprep.subr.bf16.mxu0 %v2533
        %3094 = vmatpush2.bf16.msra.mxu0 %v2532
        %3095 = vmatprep.subr.bf16.mxu0 %v2525
        %3096 = vmatpush2.bf16.msra.mxu0 %v2524
        %3097 = vmatprep.subr.bf16.mxu0 %v2517
        %3098 = vmatpush2.bf16.msra.mxu0 %v2516
        %3099 = vmatprep.subr.bf16.mxu0 %v2509
        %3100 = vmatpush2.bf16.msra.mxu0 %v2508
        %3101 = vmatprep.subr.bf16.mxu0 %v2501
        %3102 = vmatpush2.bf16.msra.mxu0 %v2500
        %3103 = vmatprep.subr.bf16.mxu0 %v2493
        %3104 = vmatpush2.bf16.msra.mxu0 %v2492
        %3105 = vmatprep.subr.bf16.mxu0 %v2485
        %3106 = vmatpush2.bf16.msra.mxu0 %v2484
        %3107 = vmatprep.subr.bf16.mxu0 %v2477
        %3108 = vmatpush2.bf16.msra.mxu0 %v2476
        %3109 = vmatprep.mubr.bf16.mxu0 %v1211
        %3110 = vmatmul.mubr.bf16.gmra.mxu0 %v1210
        %v3111 = vpop.f32.mrf.mxu0
        %v3112 = vadd.f32 %v3071, %v3111
        %v3113 = vpop.f32.mrf.mxu0
        %v3114 = vadd.f32 %v3073, %v3113
        %v3115 = vpop.f32.mrf.mxu0
        %v3116 = vpop.f32.mrf.mxu0
        %3117 = vdwg.mxu0
        %v3118 = vmax.f32 %v2866, 0.0
        %v3119 = vmax.f32 %v2868, 0.0
        %v3120 = vmax.f32 %v2948, 0.0
        %v3121 = vmax.f32 %v2950, 0.0
        %v3122 = vmax.f32 %v3030, 0.0
        %v3123 = vmax.f32 %v3032, 0.0
        %v3124 = vmax.f32 %v3112, 0.0
        %v3125 = vmax.f32 %v3114, 0.0
        %v3126 = vpack.c.bf16 %v3118, %v3118
        %v3127 = vpack.c.bf16 %v3119, %v3119
        %v3128 = vpack.c.bf16 %v3120, %v3120
        %v3129 = vpack.c.bf16 %v3121, %v3121
        %v3130 = vpack.c.bf16 %v3122, %v3122
        %v3131 = vpack.c.bf16 %v3123, %v3123
        %v3132 = vpack.c.bf16 %v3124, %v3124
        %v3133 = vpack.c.bf16 %v3125, %v3125
        %v3134 = vld [vmem:[#allocation10 + $0x800] sm:$0xff]
        %v3135 = vld [vmem:[#allocation10 + $0x808] sm:$0xff]
        %v3136 = vld [vmem:[#allocation10 + $0x810] sm:$0xff]
        %v3137 = vld [vmem:[#allocation10 + $0x818] sm:$0xff]
        %v3138 = vld [vmem:[#allocation10 + $0x820] sm:$0xff]
        %v3139 = vld [vmem:[#allocation10 + $0x828] sm:$0xff]
        %v3140 = vld [vmem:[#allocation10 + $0x830] sm:$0xff]
        %v3141 = vld [vmem:[#allocation10 + $0x838] sm:$0xff]
        %v3142 = vld [vmem:[#allocation10 + $0x840] sm:$0xff]
        %v3143 = vld [vmem:[#allocation10 + $0x848] sm:$0xff]
        %v3144 = vld [vmem:[#allocation10 + $0x850] sm:$0xff]
        %v3145 = vld [vmem:[#allocation10 + $0x858] sm:$0xff]
        %v3146 = vld [vmem:[#allocation10 + $0x860] sm:$0xff]
        %v3147 = vld [vmem:[#allocation10 + $0x868] sm:$0xff]
        %v3148 = vld [vmem:[#allocation10 + $0x870] sm:$0xff]
        %v3149 = vld [vmem:[#allocation10 + $0x878] sm:$0xff]
        %v3150 = vld [vmem:[#allocation10 + $0x880] sm:$0xff]
        %v3151 = vld [vmem:[#allocation10 + $0x888] sm:$0xff]
        %v3152 = vld [vmem:[#allocation10 + $0x890] sm:$0xff]
        %v3153 = vld [vmem:[#allocation10 + $0x898] sm:$0xff]
        %v3154 = vld [vmem:[#allocation10 + $0x8a0] sm:$0xff]
        %v3155 = vld [vmem:[#allocation10 + $0x8a8] sm:$0xff]
        %v3156 = vld [vmem:[#allocation10 + $0x8b0] sm:$0xff]
        %v3157 = vld [vmem:[#allocation10 + $0x8b8] sm:$0xff]
        %v3158 = vld [vmem:[#allocation10 + $0x8c0] sm:$0xff]
        %v3159 = vld [vmem:[#allocation10 + $0x8c8] sm:$0xff]
        %v3160 = vld [vmem:[#allocation10 + $0x8d0] sm:$0xff]
        %v3161 = vld [vmem:[#allocation10 + $0x8d8] sm:$0xff]
        %v3162 = vld [vmem:[#allocation10 + $0x8e0] sm:$0xff]
        %v3163 = vld [vmem:[#allocation10 + $0x8e8] sm:$0xff]
        %v3164 = vld [vmem:[#allocation10 + $0x8f0] sm:$0xff]
        %v3165 = vld [vmem:[#allocation10 + $0x8f8] sm:$0xff]
        %v3166 = vld [vmem:[#allocation10 + $0x900] sm:$0xff]
        %v3167 = vld [vmem:[#allocation10 + $0x908] sm:$0xff]
        %v3168 = vld [vmem:[#allocation10 + $0x910] sm:$0xff]
        %v3169 = vld [vmem:[#allocation10 + $0x918] sm:$0xff]
        %v3170 = vld [vmem:[#allocation10 + $0x920] sm:$0xff]
        %v3171 = vld [vmem:[#allocation10 + $0x928] sm:$0xff]
        %v3172 = vld [vmem:[#allocation10 + $0x930] sm:$0xff]
        %v3173 = vld [vmem:[#allocation10 + $0x938] sm:$0xff]
        %v3174 = vld [vmem:[#allocation10 + $0x940] sm:$0xff]
        %v3175 = vld [vmem:[#allocation10 + $0x948] sm:$0xff]
        %v3176 = vld [vmem:[#allocation10 + $0x950] sm:$0xff]
        %v3177 = vld [vmem:[#allocation10 + $0x958] sm:$0xff]
        %v3178 = vld [vmem:[#allocation10 + $0x960] sm:$0xff]
        %v3179 = vld [vmem:[#allocation10 + $0x968] sm:$0xff]
        %v3180 = vld [vmem:[#allocation10 + $0x970] sm:$0xff]
        %v3181 = vld [vmem:[#allocation10 + $0x978] sm:$0xff]
        %v3182 = vld [vmem:[#allocation10 + $0x980] sm:$0xff]
        %v3183 = vld [vmem:[#allocation10 + $0x988] sm:$0xff]
        %v3184 = vld [vmem:[#allocation10 + $0x990] sm:$0xff]
        %v3185 = vld [vmem:[#allocation10 + $0x998] sm:$0xff]
        %v3186 = vld [vmem:[#allocation10 + $0x9a0] sm:$0xff]
        %v3187 = vld [vmem:[#allocation10 + $0x9a8] sm:$0xff]
        %v3188 = vld [vmem:[#allocation10 + $0x9b0] sm:$0xff]
        %v3189 = vld [vmem:[#allocation10 + $0x9b8] sm:$0xff]
        %v3190 = vld [vmem:[#allocation10 + $0x9c0] sm:$0xff]
        %v3191 = vld [vmem:[#allocation10 + $0x9c8] sm:$0xff]
        %v3192 = vld [vmem:[#allocation10 + $0x9d0] sm:$0xff]
        %v3193 = vld [vmem:[#allocation10 + $0x9d8] sm:$0xff]
        %v3194 = vld [vmem:[#allocation10 + $0x9e0] sm:$0xff]
        %v3195 = vld [vmem:[#allocation10 + $0x9e8] sm:$0xff]
        %v3196 = vld [vmem:[#allocation10 + $0x9f0] sm:$0xff]
        %v3197 = vld [vmem:[#allocation10 + $0x9f8] sm:$0xff]
        %v3198 = vld [vmem:[#allocation10 + $0xa00] sm:$0xff]
        %v3199 = vld [vmem:[#allocation10 + $0xa08] sm:$0xff]
        %v3200 = vld [vmem:[#allocation10 + $0xa10] sm:$0xff]
        %v3201 = vld [vmem:[#allocation10 + $0xa18] sm:$0xff]
        %v3202 = vld [vmem:[#allocation10 + $0xa20] sm:$0xff]
        %v3203 = vld [vmem:[#allocation10 + $0xa28] sm:$0xff]
        %v3204 = vld [vmem:[#allocation10 + $0xa30] sm:$0xff]
        %v3205 = vld [vmem:[#allocation10 + $0xa38] sm:$0xff]
        %v3206 = vld [vmem:[#allocation10 + $0xa40] sm:$0xff]
        %v3207 = vld [vmem:[#allocation10 + $0xa48] sm:$0xff]
        %v3208 = vld [vmem:[#allocation10 + $0xa50] sm:$0xff]
        %v3209 = vld [vmem:[#allocation10 + $0xa58] sm:$0xff]
        %v3210 = vld [vmem:[#allocation10 + $0xa60] sm:$0xff]
        %v3211 = vld [vmem:[#allocation10 + $0xa68] sm:$0xff]
        %v3212 = vld [vmem:[#allocation10 + $0xa70] sm:$0xff]
        %v3213 = vld [vmem:[#allocation10 + $0xa78] sm:$0xff]
        %v3214 = vld [vmem:[#allocation10 + $0xa80] sm:$0xff]
        %v3215 = vld [vmem:[#allocation10 + $0xa88] sm:$0xff]
        %v3216 = vld [vmem:[#allocation10 + $0xa90] sm:$0xff]
        %v3217 = vld [vmem:[#allocation10 + $0xa98] sm:$0xff]
        %v3218 = vld [vmem:[#allocation10 + $0xaa0] sm:$0xff]
        %v3219 = vld [vmem:[#allocation10 + $0xaa8] sm:$0xff]
        %v3220 = vld [vmem:[#allocation10 + $0xab0] sm:$0xff]
        %v3221 = vld [vmem:[#allocation10 + $0xab8] sm:$0xff]
        %v3222 = vld [vmem:[#allocation10 + $0xac0] sm:$0xff]
        %v3223 = vld [vmem:[#allocation10 + $0xac8] sm:$0xff]
        %v3224 = vld [vmem:[#allocation10 + $0xad0] sm:$0xff]
        %v3225 = vld [vmem:[#allocation10 + $0xad8] sm:$0xff]
        %v3226 = vld [vmem:[#allocation10 + $0xae0] sm:$0xff]
        %v3227 = vld [vmem:[#allocation10 + $0xae8] sm:$0xff]
        %v3228 = vld [vmem:[#allocation10 + $0xaf0] sm:$0xff]
        %v3229 = vld [vmem:[#allocation10 + $0xaf8] sm:$0xff]
        %v3230 = vld [vmem:[#allocation10 + $0xb00] sm:$0xff]
        %v3231 = vld [vmem:[#allocation10 + $0xb08] sm:$0xff]
        %v3232 = vld [vmem:[#allocation10 + $0xb10] sm:$0xff]
        %v3233 = vld [vmem:[#allocation10 + $0xb18] sm:$0xff]
        %v3234 = vld [vmem:[#allocation10 + $0xb20] sm:$0xff]
        %v3235 = vld [vmem:[#allocation10 + $0xb28] sm:$0xff]
        %v3236 = vld [vmem:[#allocation10 + $0xb30] sm:$0xff]
        %v3237 = vld [vmem:[#allocation10 + $0xb38] sm:$0xff]
        %v3238 = vld [vmem:[#allocation10 + $0xb40] sm:$0xff]
        %v3239 = vld [vmem:[#allocation10 + $0xb48] sm:$0xff]
        %v3240 = vld [vmem:[#allocation10 + $0xb50] sm:$0xff]
        %v3241 = vld [vmem:[#allocation10 + $0xb58] sm:$0xff]
        %v3242 = vld [vmem:[#allocation10 + $0xb60] sm:$0xff]
        %v3243 = vld [vmem:[#allocation10 + $0xb68] sm:$0xff]
        %v3244 = vld [vmem:[#allocation10 + $0xb70] sm:$0xff]
        %v3245 = vld [vmem:[#allocation10 + $0xb78] sm:$0xff]
        %v3246 = vld [vmem:[#allocation10 + $0xb80] sm:$0xff]
        %v3247 = vld [vmem:[#allocation10 + $0xb88] sm:$0xff]
        %v3248 = vld [vmem:[#allocation10 + $0xb90] sm:$0xff]
        %v3249 = vld [vmem:[#allocation10 + $0xb98] sm:$0xff]
        %v3250 = vld [vmem:[#allocation10 + $0xba0] sm:$0xff]
        %v3251 = vld [vmem:[#allocation10 + $0xba8] sm:$0xff]
        %v3252 = vld [vmem:[#allocation10 + $0xbb0] sm:$0xff]
        %v3253 = vld [vmem:[#allocation10 + $0xbb8] sm:$0xff]
        %v3254 = vld [vmem:[#allocation10 + $0xbc0] sm:$0xff]
        %v3255 = vld [vmem:[#allocation10 + $0xbc8] sm:$0xff]
        %v3256 = vld [vmem:[#allocation10 + $0xbd0] sm:$0xff]
        %v3257 = vld [vmem:[#allocation10 + $0xbd8] sm:$0xff]
        %v3258 = vld [vmem:[#allocation10 + $0xbe0] sm:$0xff]
        %v3259 = vld [vmem:[#allocation10 + $0xbe8] sm:$0xff]
        %v3260 = vld [vmem:[#allocation10 + $0xbf0] sm:$0xff]
        %v3261 = vld [vmem:[#allocation10 + $0xbf8] sm:$0xff]
        %v3262 = vld [vmem:[#allocation10 + $0xc00] sm:$0xff]
        %v3263 = vld [vmem:[#allocation10 + $0xc08] sm:$0xff]
        %v3264 = vld [vmem:[#allocation10 + $0xc10] sm:$0xff]
        %v3265 = vld [vmem:[#allocation10 + $0xc18] sm:$0xff]
        %v3266 = vld [vmem:[#allocation10 + $0xc20] sm:$0xff]
        %v3267 = vld [vmem:[#allocation10 + $0xc28] sm:$0xff]
        %v3268 = vld [vmem:[#allocation10 + $0xc30] sm:$0xff]
        %v3269 = vld [vmem:[#allocation10 + $0xc38] sm:$0xff]
        %v3270 = vld [vmem:[#allocation10 + $0xc40] sm:$0xff]
        %v3271 = vld [vmem:[#allocation10 + $0xc48] sm:$0xff]
        %v3272 = vld [vmem:[#allocation10 + $0xc50] sm:$0xff]
        %v3273 = vld [vmem:[#allocation10 + $0xc58] sm:$0xff]
        %v3274 = vld [vmem:[#allocation10 + $0xc60] sm:$0xff]
        %v3275 = vld [vmem:[#allocation10 + $0xc68] sm:$0xff]
        %v3276 = vld [vmem:[#allocation10 + $0xc70] sm:$0xff]
        %v3277 = vld [vmem:[#allocation10 + $0xc78] sm:$0xff]
        %v3278 = vld [vmem:[#allocation10 + $0xc80] sm:$0xff]
        %v3279 = vld [vmem:[#allocation10 + $0xc88] sm:$0xff]
        %v3280 = vld [vmem:[#allocation10 + $0xc90] sm:$0xff]
        %v3281 = vld [vmem:[#allocation10 + $0xc98] sm:$0xff]
        %v3282 = vld [vmem:[#allocation10 + $0xca0] sm:$0xff]
        %v3283 = vld [vmem:[#allocation10 + $0xca8] sm:$0xff]
        %v3284 = vld [vmem:[#allocation10 + $0xcb0] sm:$0xff]
        %v3285 = vld [vmem:[#allocation10 + $0xcb8] sm:$0xff]
        %v3286 = vld [vmem:[#allocation10 + $0xcc0] sm:$0xff]
        %v3287 = vld [vmem:[#allocation10 + $0xcc8] sm:$0xff]
        %v3288 = vld [vmem:[#allocation10 + $0xcd0] sm:$0xff]
        %v3289 = vld [vmem:[#allocation10 + $0xcd8] sm:$0xff]
        %v3290 = vld [vmem:[#allocation10 + $0xce0] sm:$0xff]
        %v3291 = vld [vmem:[#allocation10 + $0xce8] sm:$0xff]
        %v3292 = vld [vmem:[#allocation10 + $0xcf0] sm:$0xff]
        %v3293 = vld [vmem:[#allocation10 + $0xcf8] sm:$0xff]
        %v3294 = vld [vmem:[#allocation10 + $0xd00] sm:$0xff]
        %v3295 = vld [vmem:[#allocation10 + $0xd08] sm:$0xff]
        %v3296 = vld [vmem:[#allocation10 + $0xd10] sm:$0xff]
        %v3297 = vld [vmem:[#allocation10 + $0xd18] sm:$0xff]
        %v3298 = vld [vmem:[#allocation10 + $0xd20] sm:$0xff]
        %v3299 = vld [vmem:[#allocation10 + $0xd28] sm:$0xff]
        %v3300 = vld [vmem:[#allocation10 + $0xd30] sm:$0xff]
        %v3301 = vld [vmem:[#allocation10 + $0xd38] sm:$0xff]
        %v3302 = vld [vmem:[#allocation10 + $0xd40] sm:$0xff]
        %v3303 = vld [vmem:[#allocation10 + $0xd48] sm:$0xff]
        %v3304 = vld [vmem:[#allocation10 + $0xd50] sm:$0xff]
        %v3305 = vld [vmem:[#allocation10 + $0xd58] sm:$0xff]
        %v3306 = vld [vmem:[#allocation10 + $0xd60] sm:$0xff]
        %v3307 = vld [vmem:[#allocation10 + $0xd68] sm:$0xff]
        %v3308 = vld [vmem:[#allocation10 + $0xd70] sm:$0xff]
        %v3309 = vld [vmem:[#allocation10 + $0xd78] sm:$0xff]
        %v3310 = vld [vmem:[#allocation10 + $0xd80] sm:$0xff]
        %v3311 = vld [vmem:[#allocation10 + $0xd88] sm:$0xff]
        %v3312 = vld [vmem:[#allocation10 + $0xd90] sm:$0xff]
        %v3313 = vld [vmem:[#allocation10 + $0xd98] sm:$0xff]
        %v3314 = vld [vmem:[#allocation10 + $0xda0] sm:$0xff]
        %v3315 = vld [vmem:[#allocation10 + $0xda8] sm:$0xff]
        %v3316 = vld [vmem:[#allocation10 + $0xdb0] sm:$0xff]
        %v3317 = vld [vmem:[#allocation10 + $0xdb8] sm:$0xff]
        %v3318 = vld [vmem:[#allocation10 + $0xdc0] sm:$0xff]
        %v3319 = vld [vmem:[#allocation10 + $0xdc8] sm:$0xff]
        %v3320 = vld [vmem:[#allocation10 + $0xdd0] sm:$0xff]
        %v3321 = vld [vmem:[#allocation10 + $0xdd8] sm:$0xff]
        %v3322 = vld [vmem:[#allocation10 + $0xde0] sm:$0xff]
        %v3323 = vld [vmem:[#allocation10 + $0xde8] sm:$0xff]
        %v3324 = vld [vmem:[#allocation10 + $0xdf0] sm:$0xff]
        %v3325 = vld [vmem:[#allocation10 + $0xdf8] sm:$0xff]
        %v3326 = vld [vmem:[#allocation10 + $0xe00] sm:$0xff]
        %v3327 = vld [vmem:[#allocation10 + $0xe08] sm:$0xff]
        %v3328 = vld [vmem:[#allocation10 + $0xe10] sm:$0xff]
        %v3329 = vld [vmem:[#allocation10 + $0xe18] sm:$0xff]
        %v3330 = vld [vmem:[#allocation10 + $0xe20] sm:$0xff]
        %v3331 = vld [vmem:[#allocation10 + $0xe28] sm:$0xff]
        %v3332 = vld [vmem:[#allocation10 + $0xe30] sm:$0xff]
        %v3333 = vld [vmem:[#allocation10 + $0xe38] sm:$0xff]
        %v3334 = vld [vmem:[#allocation10 + $0xe40] sm:$0xff]
        %v3335 = vld [vmem:[#allocation10 + $0xe48] sm:$0xff]
        %v3336 = vld [vmem:[#allocation10 + $0xe50] sm:$0xff]
        %v3337 = vld [vmem:[#allocation10 + $0xe58] sm:$0xff]
        %v3338 = vld [vmem:[#allocation10 + $0xe60] sm:$0xff]
        %v3339 = vld [vmem:[#allocation10 + $0xe68] sm:$0xff]
        %v3340 = vld [vmem:[#allocation10 + $0xe70] sm:$0xff]
        %v3341 = vld [vmem:[#allocation10 + $0xe78] sm:$0xff]
        %v3342 = vld [vmem:[#allocation10 + $0xe80] sm:$0xff]
        %v3343 = vld [vmem:[#allocation10 + $0xe88] sm:$0xff]
        %v3344 = vld [vmem:[#allocation10 + $0xe90] sm:$0xff]
        %v3345 = vld [vmem:[#allocation10 + $0xe98] sm:$0xff]
        %v3346 = vld [vmem:[#allocation10 + $0xea0] sm:$0xff]
        %v3347 = vld [vmem:[#allocation10 + $0xea8] sm:$0xff]
        %v3348 = vld [vmem:[#allocation10 + $0xeb0] sm:$0xff]
        %v3349 = vld [vmem:[#allocation10 + $0xeb8] sm:$0xff]
        %v3350 = vld [vmem:[#allocation10 + $0xec0] sm:$0xff]
        %v3351 = vld [vmem:[#allocation10 + $0xec8] sm:$0xff]
        %v3352 = vld [vmem:[#allocation10 + $0xed0] sm:$0xff]
        %v3353 = vld [vmem:[#allocation10 + $0xed8] sm:$0xff]
        %v3354 = vld [vmem:[#allocation10 + $0xee0] sm:$0xff]
        %v3355 = vld [vmem:[#allocation10 + $0xee8] sm:$0xff]
        %v3356 = vld [vmem:[#allocation10 + $0xef0] sm:$0xff]
        %v3357 = vld [vmem:[#allocation10 + $0xef8] sm:$0xff]
        %v3358 = vld [vmem:[#allocation10 + $0xf00] sm:$0xff]
        %v3359 = vld [vmem:[#allocation10 + $0xf08] sm:$0xff]
        %v3360 = vld [vmem:[#allocation10 + $0xf10] sm:$0xff]
        %v3361 = vld [vmem:[#allocation10 + $0xf18] sm:$0xff]
        %v3362 = vld [vmem:[#allocation10 + $0xf20] sm:$0xff]
        %v3363 = vld [vmem:[#allocation10 + $0xf28] sm:$0xff]
        %v3364 = vld [vmem:[#allocation10 + $0xf30] sm:$0xff]
        %v3365 = vld [vmem:[#allocation10 + $0xf38] sm:$0xff]
        %v3366 = vld [vmem:[#allocation10 + $0xf40] sm:$0xff]
        %v3367 = vld [vmem:[#allocation10 + $0xf48] sm:$0xff]
        %v3368 = vld [vmem:[#allocation10 + $0xf50] sm:$0xff]
        %v3369 = vld [vmem:[#allocation10 + $0xf58] sm:$0xff]
        %v3370 = vld [vmem:[#allocation10 + $0xf60] sm:$0xff]
        %v3371 = vld [vmem:[#allocation10 + $0xf68] sm:$0xff]
        %v3372 = vld [vmem:[#allocation10 + $0xf70] sm:$0xff]
        %v3373 = vld [vmem:[#allocation10 + $0xf78] sm:$0xff]
        %v3374 = vld [vmem:[#allocation10 + $0xf80] sm:$0xff]
        %v3375 = vld [vmem:[#allocation10 + $0xf88] sm:$0xff]
        %v3376 = vld [vmem:[#allocation10 + $0xf90] sm:$0xff]
        %v3377 = vld [vmem:[#allocation10 + $0xf98] sm:$0xff]
        %v3378 = vld [vmem:[#allocation10 + $0xfa0] sm:$0xff]
        %v3379 = vld [vmem:[#allocation10 + $0xfa8] sm:$0xff]
        %v3380 = vld [vmem:[#allocation10 + $0xfb0] sm:$0xff]
        %v3381 = vld [vmem:[#allocation10 + $0xfb8] sm:$0xff]
        %v3382 = vld [vmem:[#allocation10 + $0xfc0] sm:$0xff]
        %v3383 = vld [vmem:[#allocation10 + $0xfc8] sm:$0xff]
        %v3384 = vld [vmem:[#allocation10 + $0xfd0] sm:$0xff]
        %v3385 = vld [vmem:[#allocation10 + $0xfd8] sm:$0xff]
        %v3386 = vld [vmem:[#allocation10 + $0xfe0] sm:$0xff]
        %v3387 = vld [vmem:[#allocation10 + $0xfe8] sm:$0xff]
        %v3388 = vld [vmem:[#allocation10 + $0xff0] sm:$0xff]
        %v3389 = vld [vmem:[#allocation10 + $0xff8] sm:$0xff]
        %v3390 = vld [vmem:[#allocation10 + $0x1000] sm:$0xff]
        %v3391 = vld [vmem:[#allocation10 + $0x1008] sm:$0xff]
        %v3392 = vld [vmem:[#allocation10 + $0x1010] sm:$0xff]
        %v3393 = vld [vmem:[#allocation10 + $0x1018] sm:$0xff]
        %v3394 = vld [vmem:[#allocation10 + $0x1020] sm:$0xff]
        %v3395 = vld [vmem:[#allocation10 + $0x1028] sm:$0xff]
        %v3396 = vld [vmem:[#allocation10 + $0x1030] sm:$0xff]
        %v3397 = vld [vmem:[#allocation10 + $0x1038] sm:$0xff]
        %v3398 = vld [vmem:[#allocation10 + $0x1040] sm:$0xff]
        %v3399 = vld [vmem:[#allocation10 + $0x1048] sm:$0xff]
        %v3400 = vld [vmem:[#allocation10 + $0x1050] sm:$0xff]
        %v3401 = vld [vmem:[#allocation10 + $0x1058] sm:$0xff]
        %v3402 = vld [vmem:[#allocation10 + $0x1060] sm:$0xff]
        %v3403 = vld [vmem:[#allocation10 + $0x1068] sm:$0xff]
        %v3404 = vld [vmem:[#allocation10 + $0x1070] sm:$0xff]
        %v3405 = vld [vmem:[#allocation10 + $0x1078] sm:$0xff]
        %v3406 = vld [vmem:[#allocation10 + $0x1080] sm:$0xff]
        %v3407 = vld [vmem:[#allocation10 + $0x1088] sm:$0xff]
        %v3408 = vld [vmem:[#allocation10 + $0x1090] sm:$0xff]
        %v3409 = vld [vmem:[#allocation10 + $0x1098] sm:$0xff]
        %v3410 = vld [vmem:[#allocation10 + $0x10a0] sm:$0xff]
        %v3411 = vld [vmem:[#allocation10 + $0x10a8] sm:$0xff]
        %v3412 = vld [vmem:[#allocation10 + $0x10b0] sm:$0xff]
        %v3413 = vld [vmem:[#allocation10 + $0x10b8] sm:$0xff]
        %v3414 = vld [vmem:[#allocation10 + $0x10c0] sm:$0xff]
        %v3415 = vld [vmem:[#allocation10 + $0x10c8] sm:$0xff]
        %v3416 = vld [vmem:[#allocation10 + $0x10d0] sm:$0xff]
        %v3417 = vld [vmem:[#allocation10 + $0x10d8] sm:$0xff]
        %v3418 = vld [vmem:[#allocation10 + $0x10e0] sm:$0xff]
        %v3419 = vld [vmem:[#allocation10 + $0x10e8] sm:$0xff]
        %v3420 = vld [vmem:[#allocation10 + $0x10f0] sm:$0xff]
        %v3421 = vld [vmem:[#allocation10 + $0x10f8] sm:$0xff]
        %v3422 = vld [vmem:[#allocation10 + $0x1100] sm:$0xff]
        %v3423 = vld [vmem:[#allocation10 + $0x1108] sm:$0xff]
        %v3424 = vld [vmem:[#allocation10 + $0x1110] sm:$0xff]
        %v3425 = vld [vmem:[#allocation10 + $0x1118] sm:$0xff]
        %v3426 = vld [vmem:[#allocation10 + $0x1120] sm:$0xff]
        %v3427 = vld [vmem:[#allocation10 + $0x1128] sm:$0xff]
        %v3428 = vld [vmem:[#allocation10 + $0x1130] sm:$0xff]
        %v3429 = vld [vmem:[#allocation10 + $0x1138] sm:$0xff]
        %v3430 = vld [vmem:[#allocation10 + $0x1140] sm:$0xff]
        %v3431 = vld [vmem:[#allocation10 + $0x1148] sm:$0xff]
        %v3432 = vld [vmem:[#allocation10 + $0x1150] sm:$0xff]
        %v3433 = vld [vmem:[#allocation10 + $0x1158] sm:$0xff]
        %v3434 = vld [vmem:[#allocation10 + $0x1160] sm:$0xff]
        %v3435 = vld [vmem:[#allocation10 + $0x1168] sm:$0xff]
        %v3436 = vld [vmem:[#allocation10 + $0x1170] sm:$0xff]
        %v3437 = vld [vmem:[#allocation10 + $0x1178] sm:$0xff]
        %v3438 = vld [vmem:[#allocation10 + $0x1180] sm:$0xff]
        %v3439 = vld [vmem:[#allocation10 + $0x1188] sm:$0xff]
        %v3440 = vld [vmem:[#allocation10 + $0x1190] sm:$0xff]
        %v3441 = vld [vmem:[#allocation10 + $0x1198] sm:$0xff]
        %v3442 = vld [vmem:[#allocation10 + $0x11a0] sm:$0xff]
        %v3443 = vld [vmem:[#allocation10 + $0x11a8] sm:$0xff]
        %v3444 = vld [vmem:[#allocation10 + $0x11b0] sm:$0xff]
        %v3445 = vld [vmem:[#allocation10 + $0x11b8] sm:$0xff]
        %v3446 = vld [vmem:[#allocation10 + $0x11c0] sm:$0xff]
        %v3447 = vld [vmem:[#allocation10 + $0x11c8] sm:$0xff]
        %v3448 = vld [vmem:[#allocation10 + $0x11d0] sm:$0xff]
        %v3449 = vld [vmem:[#allocation10 + $0x11d8] sm:$0xff]
        %v3450 = vld [vmem:[#allocation10 + $0x11e0] sm:$0xff]
        %v3451 = vld [vmem:[#allocation10 + $0x11e8] sm:$0xff]
        %v3452 = vld [vmem:[#allocation10 + $0x11f0] sm:$0xff]
        %v3453 = vld [vmem:[#allocation10 + $0x11f8] sm:$0xff]
        %v3454 = vld [vmem:[#allocation10 + $0x1200] sm:$0xff]
        %v3455 = vld [vmem:[#allocation10 + $0x1208] sm:$0xff]
        %v3456 = vld [vmem:[#allocation10 + $0x1210] sm:$0xff]
        %v3457 = vld [vmem:[#allocation10 + $0x1218] sm:$0xff]
        %v3458 = vld [vmem:[#allocation10 + $0x1220] sm:$0xff]
        %v3459 = vld [vmem:[#allocation10 + $0x1228] sm:$0xff]
        %v3460 = vld [vmem:[#allocation10 + $0x1230] sm:$0xff]
        %v3461 = vld [vmem:[#allocation10 + $0x1238] sm:$0xff]
        %v3462 = vld [vmem:[#allocation10 + $0x1240] sm:$0xff]
        %v3463 = vld [vmem:[#allocation10 + $0x1248] sm:$0xff]
        %v3464 = vld [vmem:[#allocation10 + $0x1250] sm:$0xff]
        %v3465 = vld [vmem:[#allocation10 + $0x1258] sm:$0xff]
        %v3466 = vld [vmem:[#allocation10 + $0x1260] sm:$0xff]
        %v3467 = vld [vmem:[#allocation10 + $0x1268] sm:$0xff]
        %v3468 = vld [vmem:[#allocation10 + $0x1270] sm:$0xff]
        %v3469 = vld [vmem:[#allocation10 + $0x1278] sm:$0xff]
        %v3470 = vld [vmem:[#allocation10 + $0x1280] sm:$0xff]
        %v3471 = vld [vmem:[#allocation10 + $0x1288] sm:$0xff]
        %v3472 = vld [vmem:[#allocation10 + $0x1290] sm:$0xff]
        %v3473 = vld [vmem:[#allocation10 + $0x1298] sm:$0xff]
        %v3474 = vld [vmem:[#allocation10 + $0x12a0] sm:$0xff]
        %v3475 = vld [vmem:[#allocation10 + $0x12a8] sm:$0xff]
        %v3476 = vld [vmem:[#allocation10 + $0x12b0] sm:$0xff]
        %v3477 = vld [vmem:[#allocation10 + $0x12b8] sm:$0xff]
        %v3478 = vld [vmem:[#allocation10 + $0x12c0] sm:$0xff]
        %v3479 = vld [vmem:[#allocation10 + $0x12c8] sm:$0xff]
        %v3480 = vld [vmem:[#allocation10 + $0x12d0] sm:$0xff]
        %v3481 = vld [vmem:[#allocation10 + $0x12d8] sm:$0xff]
        %v3482 = vld [vmem:[#allocation10 + $0x12e0] sm:$0xff]
        %v3483 = vld [vmem:[#allocation10 + $0x12e8] sm:$0xff]
        %v3484 = vld [vmem:[#allocation10 + $0x12f0] sm:$0xff]
        %v3485 = vld [vmem:[#allocation10 + $0x12f8] sm:$0xff]
        %v3486 = vld [vmem:[#allocation10 + $0x1300] sm:$0xff]
        %v3487 = vld [vmem:[#allocation10 + $0x1308] sm:$0xff]
        %v3488 = vld [vmem:[#allocation10 + $0x1310] sm:$0xff]
        %v3489 = vld [vmem:[#allocation10 + $0x1318] sm:$0xff]
        %v3490 = vld [vmem:[#allocation10 + $0x1320] sm:$0xff]
        %v3491 = vld [vmem:[#allocation10 + $0x1328] sm:$0xff]
        %v3492 = vld [vmem:[#allocation10 + $0x1330] sm:$0xff]
        %v3493 = vld [vmem:[#allocation10 + $0x1338] sm:$0xff]
        %v3494 = vld [vmem:[#allocation10 + $0x1340] sm:$0xff]
        %v3495 = vld [vmem:[#allocation10 + $0x1348] sm:$0xff]
        %v3496 = vld [vmem:[#allocation10 + $0x1350] sm:$0xff]
        %v3497 = vld [vmem:[#allocation10 + $0x1358] sm:$0xff]
        %v3498 = vld [vmem:[#allocation10 + $0x1360] sm:$0xff]
        %v3499 = vld [vmem:[#allocation10 + $0x1368] sm:$0xff]
        %v3500 = vld [vmem:[#allocation10 + $0x1370] sm:$0xff]
        %v3501 = vld [vmem:[#allocation10 + $0x1378] sm:$0xff]
        %v3502 = vld [vmem:[#allocation10 + $0x1380] sm:$0xff]
        %v3503 = vld [vmem:[#allocation10 + $0x1388] sm:$0xff]
        %v3504 = vld [vmem:[#allocation10 + $0x1390] sm:$0xff]
        %v3505 = vld [vmem:[#allocation10 + $0x1398] sm:$0xff]
        %v3506 = vld [vmem:[#allocation10 + $0x13a0] sm:$0xff]
        %v3507 = vld [vmem:[#allocation10 + $0x13a8] sm:$0xff]
        %v3508 = vld [vmem:[#allocation10 + $0x13b0] sm:$0xff]
        %v3509 = vld [vmem:[#allocation10 + $0x13b8] sm:$0xff]
        %v3510 = vld [vmem:[#allocation10 + $0x13c0] sm:$0xff]
        %v3511 = vld [vmem:[#allocation10 + $0x13c8] sm:$0xff]
        %v3512 = vld [vmem:[#allocation10 + $0x13d0] sm:$0xff]
        %v3513 = vld [vmem:[#allocation10 + $0x13d8] sm:$0xff]
        %v3514 = vld [vmem:[#allocation10 + $0x13e0] sm:$0xff]
        %v3515 = vld [vmem:[#allocation10 + $0x13e8] sm:$0xff]
        %v3516 = vld [vmem:[#allocation10 + $0x13f0] sm:$0xff]
        %v3517 = vld [vmem:[#allocation10 + $0x13f8] sm:$0xff]
        %v3518 = vld [vmem:[#allocation10 + $0x1400] sm:$0xff]
        %v3519 = vld [vmem:[#allocation10 + $0x1408] sm:$0xff]
        %v3520 = vld [vmem:[#allocation10 + $0x1410] sm:$0xff]
        %v3521 = vld [vmem:[#allocation10 + $0x1418] sm:$0xff]
        %v3522 = vld [vmem:[#allocation10 + $0x1420] sm:$0xff]
        %v3523 = vld [vmem:[#allocation10 + $0x1428] sm:$0xff]
        %v3524 = vld [vmem:[#allocation10 + $0x1430] sm:$0xff]
        %v3525 = vld [vmem:[#allocation10 + $0x1438] sm:$0xff]
        %v3526 = vld [vmem:[#allocation10 + $0x1440] sm:$0xff]
        %v3527 = vld [vmem:[#allocation10 + $0x1448] sm:$0xff]
        %v3528 = vld [vmem:[#allocation10 + $0x1450] sm:$0xff]
        %v3529 = vld [vmem:[#allocation10 + $0x1458] sm:$0xff]
        %v3530 = vld [vmem:[#allocation10 + $0x1460] sm:$0xff]
        %v3531 = vld [vmem:[#allocation10 + $0x1468] sm:$0xff]
        %v3532 = vld [vmem:[#allocation10 + $0x1470] sm:$0xff]
        %v3533 = vld [vmem:[#allocation10 + $0x1478] sm:$0xff]
        %v3534 = vld [vmem:[#allocation10 + $0x1480] sm:$0xff]
        %v3535 = vld [vmem:[#allocation10 + $0x1488] sm:$0xff]
        %v3536 = vld [vmem:[#allocation10 + $0x1490] sm:$0xff]
        %v3537 = vld [vmem:[#allocation10 + $0x1498] sm:$0xff]
        %v3538 = vld [vmem:[#allocation10 + $0x14a0] sm:$0xff]
        %v3539 = vld [vmem:[#allocation10 + $0x14a8] sm:$0xff]
        %v3540 = vld [vmem:[#allocation10 + $0x14b0] sm:$0xff]
        %v3541 = vld [vmem:[#allocation10 + $0x14b8] sm:$0xff]
        %v3542 = vld [vmem:[#allocation10 + $0x14c0] sm:$0xff]
        %v3543 = vld [vmem:[#allocation10 + $0x14c8] sm:$0xff]
        %v3544 = vld [vmem:[#allocation10 + $0x14d0] sm:$0xff]
        %v3545 = vld [vmem:[#allocation10 + $0x14d8] sm:$0xff]
        %v3546 = vld [vmem:[#allocation10 + $0x14e0] sm:$0xff]
        %v3547 = vld [vmem:[#allocation10 + $0x14e8] sm:$0xff]
        %v3548 = vld [vmem:[#allocation10 + $0x14f0] sm:$0xff]
        %v3549 = vld [vmem:[#allocation10 + $0x14f8] sm:$0xff]
        %v3550 = vld [vmem:[#allocation10 + $0x1500] sm:$0xff]
        %v3551 = vld [vmem:[#allocation10 + $0x1508] sm:$0xff]
        %v3552 = vld [vmem:[#allocation10 + $0x1510] sm:$0xff]
        %v3553 = vld [vmem:[#allocation10 + $0x1518] sm:$0xff]
        %v3554 = vld [vmem:[#allocation10 + $0x1520] sm:$0xff]
        %v3555 = vld [vmem:[#allocation10 + $0x1528] sm:$0xff]
        %v3556 = vld [vmem:[#allocation10 + $0x1530] sm:$0xff]
        %v3557 = vld [vmem:[#allocation10 + $0x1538] sm:$0xff]
        %v3558 = vld [vmem:[#allocation10 + $0x1540] sm:$0xff]
        %v3559 = vld [vmem:[#allocation10 + $0x1548] sm:$0xff]
        %v3560 = vld [vmem:[#allocation10 + $0x1550] sm:$0xff]
        %v3561 = vld [vmem:[#allocation10 + $0x1558] sm:$0xff]
        %v3562 = vld [vmem:[#allocation10 + $0x1560] sm:$0xff]
        %v3563 = vld [vmem:[#allocation10 + $0x1568] sm:$0xff]
        %v3564 = vld [vmem:[#allocation10 + $0x1570] sm:$0xff]
        %v3565 = vld [vmem:[#allocation10 + $0x1578] sm:$0xff]
        %v3566 = vld [vmem:[#allocation10 + $0x1580] sm:$0xff]
        %v3567 = vld [vmem:[#allocation10 + $0x1588] sm:$0xff]
        %v3568 = vld [vmem:[#allocation10 + $0x1590] sm:$0xff]
        %v3569 = vld [vmem:[#allocation10 + $0x1598] sm:$0xff]
        %v3570 = vld [vmem:[#allocation10 + $0x15a0] sm:$0xff]
        %v3571 = vld [vmem:[#allocation10 + $0x15a8] sm:$0xff]
        %v3572 = vld [vmem:[#allocation10 + $0x15b0] sm:$0xff]
        %v3573 = vld [vmem:[#allocation10 + $0x15b8] sm:$0xff]
        %v3574 = vld [vmem:[#allocation10 + $0x15c0] sm:$0xff]
        %v3575 = vld [vmem:[#allocation10 + $0x15c8] sm:$0xff]
        %v3576 = vld [vmem:[#allocation10 + $0x15d0] sm:$0xff]
        %v3577 = vld [vmem:[#allocation10 + $0x15d8] sm:$0xff]
        %v3578 = vld [vmem:[#allocation10 + $0x15e0] sm:$0xff]
        %v3579 = vld [vmem:[#allocation10 + $0x15e8] sm:$0xff]
        %v3580 = vld [vmem:[#allocation10 + $0x15f0] sm:$0xff]
        %v3581 = vld [vmem:[#allocation10 + $0x15f8] sm:$0xff]
        %v3582 = vld [vmem:[#allocation10 + $0x1600] sm:$0xff]
        %v3583 = vld [vmem:[#allocation10 + $0x1608] sm:$0xff]
        %v3584 = vld [vmem:[#allocation10 + $0x1610] sm:$0xff]
        %v3585 = vld [vmem:[#allocation10 + $0x1618] sm:$0xff]
        %v3586 = vld [vmem:[#allocation10 + $0x1620] sm:$0xff]
        %v3587 = vld [vmem:[#allocation10 + $0x1628] sm:$0xff]
        %v3588 = vld [vmem:[#allocation10 + $0x1630] sm:$0xff]
        %v3589 = vld [vmem:[#allocation10 + $0x1638] sm:$0xff]
        %v3590 = vld [vmem:[#allocation10 + $0x1640] sm:$0xff]
        %v3591 = vld [vmem:[#allocation10 + $0x1648] sm:$0xff]
        %v3592 = vld [vmem:[#allocation10 + $0x1650] sm:$0xff]
        %v3593 = vld [vmem:[#allocation10 + $0x1658] sm:$0xff]
        %v3594 = vld [vmem:[#allocation10 + $0x1660] sm:$0xff]
        %v3595 = vld [vmem:[#allocation10 + $0x1668] sm:$0xff]
        %v3596 = vld [vmem:[#allocation10 + $0x1670] sm:$0xff]
        %v3597 = vld [vmem:[#allocation10 + $0x1678] sm:$0xff]
        %v3598 = vld [vmem:[#allocation10 + $0x1680] sm:$0xff]
        %v3599 = vld [vmem:[#allocation10 + $0x1688] sm:$0xff]
        %v3600 = vld [vmem:[#allocation10 + $0x1690] sm:$0xff]
        %v3601 = vld [vmem:[#allocation10 + $0x1698] sm:$0xff]
        %v3602 = vld [vmem:[#allocation10 + $0x16a0] sm:$0xff]
        %v3603 = vld [vmem:[#allocation10 + $0x16a8] sm:$0xff]
        %v3604 = vld [vmem:[#allocation10 + $0x16b0] sm:$0xff]
        %v3605 = vld [vmem:[#allocation10 + $0x16b8] sm:$0xff]
        %v3606 = vld [vmem:[#allocation10 + $0x16c0] sm:$0xff]
        %v3607 = vld [vmem:[#allocation10 + $0x16c8] sm:$0xff]
        %v3608 = vld [vmem:[#allocation10 + $0x16d0] sm:$0xff]
        %v3609 = vld [vmem:[#allocation10 + $0x16d8] sm:$0xff]
        %v3610 = vld [vmem:[#allocation10 + $0x16e0] sm:$0xff]
        %v3611 = vld [vmem:[#allocation10 + $0x16e8] sm:$0xff]
        %v3612 = vld [vmem:[#allocation10 + $0x16f0] sm:$0xff]
        %v3613 = vld [vmem:[#allocation10 + $0x16f8] sm:$0xff]
        %v3614 = vld [vmem:[#allocation10 + $0x1700] sm:$0xff]
        %v3615 = vld [vmem:[#allocation10 + $0x1708] sm:$0xff]
        %v3616 = vld [vmem:[#allocation10 + $0x1710] sm:$0xff]
        %v3617 = vld [vmem:[#allocation10 + $0x1718] sm:$0xff]
        %v3618 = vld [vmem:[#allocation10 + $0x1720] sm:$0xff]
        %v3619 = vld [vmem:[#allocation10 + $0x1728] sm:$0xff]
        %v3620 = vld [vmem:[#allocation10 + $0x1730] sm:$0xff]
        %v3621 = vld [vmem:[#allocation10 + $0x1738] sm:$0xff]
        %v3622 = vld [vmem:[#allocation10 + $0x1740] sm:$0xff]
        %v3623 = vld [vmem:[#allocation10 + $0x1748] sm:$0xff]
        %v3624 = vld [vmem:[#allocation10 + $0x1750] sm:$0xff]
        %v3625 = vld [vmem:[#allocation10 + $0x1758] sm:$0xff]
        %v3626 = vld [vmem:[#allocation10 + $0x1760] sm:$0xff]
        %v3627 = vld [vmem:[#allocation10 + $0x1768] sm:$0xff]
        %v3628 = vld [vmem:[#allocation10 + $0x1770] sm:$0xff]
        %v3629 = vld [vmem:[#allocation10 + $0x1778] sm:$0xff]
        %v3630 = vld [vmem:[#allocation10 + $0x1780] sm:$0xff]
        %v3631 = vld [vmem:[#allocation10 + $0x1788] sm:$0xff]
        %v3632 = vld [vmem:[#allocation10 + $0x1790] sm:$0xff]
        %v3633 = vld [vmem:[#allocation10 + $0x1798] sm:$0xff]
        %v3634 = vld [vmem:[#allocation10 + $0x17a0] sm:$0xff]
        %v3635 = vld [vmem:[#allocation10 + $0x17a8] sm:$0xff]
        %v3636 = vld [vmem:[#allocation10 + $0x17b0] sm:$0xff]
        %v3637 = vld [vmem:[#allocation10 + $0x17b8] sm:$0xff]
        %v3638 = vld [vmem:[#allocation10 + $0x17c0] sm:$0xff]
        %v3639 = vld [vmem:[#allocation10 + $0x17c8] sm:$0xff]
        %v3640 = vld [vmem:[#allocation10 + $0x17d0] sm:$0xff]
        %v3641 = vld [vmem:[#allocation10 + $0x17d8] sm:$0xff]
        %v3642 = vld [vmem:[#allocation10 + $0x17e0] sm:$0xff]
        %v3643 = vld [vmem:[#allocation10 + $0x17e8] sm:$0xff]
        %v3644 = vld [vmem:[#allocation10 + $0x17f0] sm:$0xff]
        %v3645 = vld [vmem:[#allocation10 + $0x17f8] sm:$0xff]
        %v3646 = vld [vmem:[#allocation11 + $0x11] sm:$0xff]
        %v3648 = vlaneseq
        %v3649 = vshrl.u32 %v3648, 7
        %v3650 = vsub.s32 0, %v3649
        %v3651 = vrot.slane %v3646, %v3650
        %v3652 = vlaneseq
        %v3653 = vshrl.u32 %v3652, 7
        %v3654 = vsub.s32 1, %v3653
        %v3655 = vrot.slane %v3646, %v3654
        %v3656 = vlaneseq
        %v3657 = vshrl.u32 %v3656, 7
        %v3658 = vsub.s32 2, %v3657
        %v3659 = vrot.slane %v3646, %v3658
        %v3660 = vlaneseq
        %v3661 = vshrl.u32 %v3660, 7
        %v3662 = vsub.s32 3, %v3661
        %v3663 = vrot.slane %v3646, %v3662
        %v3664 = vlaneseq
        %v3665 = vshrl.u32 %v3664, 7
        %v3666 = vsub.s32 4, %v3665
        %v3667 = vrot.slane %v3646, %v3666
        %v3668 = vlaneseq
        %v3669 = vshrl.u32 %v3668, 7
        %v3670 = vsub.s32 5, %v3669
        %v3671 = vrot.slane %v3646, %v3670
        %v3672 = vlaneseq
        %v3673 = vshrl.u32 %v3672, 7
        %v3674 = vsub.s32 6, %v3673
        %v3675 = vrot.slane %v3646, %v3674
        %v3676 = vlaneseq
        %v3677 = vshrl.u32 %v3676, 7
        %v3678 = vsub.s32 7, %v3677
        %v3679 = vrot.slane %v3646, %v3678
        %v4200 = vunpack.c.l.b16 %v3134
        %v4201 = vunpack.c.h.b16 %v3134
        %v4202 = vunpack.c.l.b16 %v3135
        %v4203 = vunpack.c.h.b16 %v3135
        %v4204 = vunpack.c.l.b16 %v3136
        %v4205 = vunpack.c.h.b16 %v3136
        %v4206 = vunpack.c.l.b16 %v3137
        %v4207 = vunpack.c.h.b16 %v3137
        %v4208 = vunpack.c.l.b16 %v3138
        %v4209 = vunpack.c.h.b16 %v3138
        %v4210 = vunpack.c.l.b16 %v3139
        %v4211 = vunpack.c.h.b16 %v3139
        %v4212 = vunpack.c.l.b16 %v3140
        %v4213 = vunpack.c.h.b16 %v3140
        %v4214 = vunpack.c.l.b16 %v3141
        %v4215 = vunpack.c.h.b16 %v3141
        %v4216 = vunpack.c.l.b16 %v3142
        %v4217 = vunpack.c.h.b16 %v3142
        %v4218 = vunpack.c.l.b16 %v3143
        %v4219 = vunpack.c.h.b16 %v3143
        %v4220 = vunpack.c.l.b16 %v3144
        %v4221 = vunpack.c.h.b16 %v3144
        %v4222 = vunpack.c.l.b16 %v3145
        %v4223 = vunpack.c.h.b16 %v3145
        %v4224 = vunpack.c.l.b16 %v3146
        %v4225 = vunpack.c.h.b16 %v3146
        %v4226 = vunpack.c.l.b16 %v3147
        %v4227 = vunpack.c.h.b16 %v3147
        %v4228 = vunpack.c.l.b16 %v3148
        %v4229 = vunpack.c.h.b16 %v3148
        %v4230 = vunpack.c.l.b16 %v3149
        %v4231 = vunpack.c.h.b16 %v3149
        %v4232 = vunpack.c.l.b16 %v3150
        %v4233 = vunpack.c.h.b16 %v3150
        %v4234 = vunpack.c.l.b16 %v3151
        %v4235 = vunpack.c.h.b16 %v3151
        %v4236 = vunpack.c.l.b16 %v3152
        %v4237 = vunpack.c.h.b16 %v3152
        %v4238 = vunpack.c.l.b16 %v3153
        %v4239 = vunpack.c.h.b16 %v3153
        %v4240 = vunpack.c.l.b16 %v3154
        %v4241 = vunpack.c.h.b16 %v3154
        %v4242 = vunpack.c.l.b16 %v3155
        %v4243 = vunpack.c.h.b16 %v3155
        %v4244 = vunpack.c.l.b16 %v3156
        %v4245 = vunpack.c.h.b16 %v3156
        %v4246 = vunpack.c.l.b16 %v3157
        %v4247 = vunpack.c.h.b16 %v3157
        %v4248 = vunpack.c.l.b16 %v3158
        %v4249 = vunpack.c.h.b16 %v3158
        %v4250 = vunpack.c.l.b16 %v3159
        %v4251 = vunpack.c.h.b16 %v3159
        %v4252 = vunpack.c.l.b16 %v3160
        %v4253 = vunpack.c.h.b16 %v3160
        %v4254 = vunpack.c.l.b16 %v3161
        %v4255 = vunpack.c.h.b16 %v3161
        %v4256 = vunpack.c.l.b16 %v3162
        %v4257 = vunpack.c.h.b16 %v3162
        %v4258 = vunpack.c.l.b16 %v3163
        %v4259 = vunpack.c.h.b16 %v3163
        %v4260 = vunpack.c.l.b16 %v3164
        %v4261 = vunpack.c.h.b16 %v3164
        %v4262 = vunpack.c.l.b16 %v3165
        %v4263 = vunpack.c.h.b16 %v3165
        %v4264 = vunpack.c.l.b16 %v3166
        %v4265 = vunpack.c.h.b16 %v3166
        %v4266 = vunpack.c.l.b16 %v3167
        %v4267 = vunpack.c.h.b16 %v3167
        %v4268 = vunpack.c.l.b16 %v3168
        %v4269 = vunpack.c.h.b16 %v3168
        %v4270 = vunpack.c.l.b16 %v3169
        %v4271 = vunpack.c.h.b16 %v3169
        %v4272 = vunpack.c.l.b16 %v3170
        %v4273 = vunpack.c.h.b16 %v3170
        %v4274 = vunpack.c.l.b16 %v3171
        %v4275 = vunpack.c.h.b16 %v3171
        %v4276 = vunpack.c.l.b16 %v3172
        %v4277 = vunpack.c.h.b16 %v3172
        %v4278 = vunpack.c.l.b16 %v3173
        %v4279 = vunpack.c.h.b16 %v3173
        %v4280 = vunpack.c.l.b16 %v3174
        %v4281 = vunpack.c.h.b16 %v3174
        %v4282 = vunpack.c.l.b16 %v3175
        %v4283 = vunpack.c.h.b16 %v3175
        %v4284 = vunpack.c.l.b16 %v3176
        %v4285 = vunpack.c.h.b16 %v3176
        %v4286 = vunpack.c.l.b16 %v3177
        %v4287 = vunpack.c.h.b16 %v3177
        %v4288 = vunpack.c.l.b16 %v3178
        %v4289 = vunpack.c.h.b16 %v3178
        %v4290 = vunpack.c.l.b16 %v3179
        %v4291 = vunpack.c.h.b16 %v3179
        %v4292 = vunpack.c.l.b16 %v3180
        %v4293 = vunpack.c.h.b16 %v3180
        %v4294 = vunpack.c.l.b16 %v3181
        %v4295 = vunpack.c.h.b16 %v3181
        %v4296 = vunpack.c.l.b16 %v3182
        %v4297 = vunpack.c.h.b16 %v3182
        %v4298 = vunpack.c.l.b16 %v3183
        %v4299 = vunpack.c.h.b16 %v3183
        %v4300 = vunpack.c.l.b16 %v3184
        %v4301 = vunpack.c.h.b16 %v3184
        %v4302 = vunpack.c.l.b16 %v3185
        %v4303 = vunpack.c.h.b16 %v3185
        %v4304 = vunpack.c.l.b16 %v3186
        %v4305 = vunpack.c.h.b16 %v3186
        %v4306 = vunpack.c.l.b16 %v3187
        %v4307 = vunpack.c.h.b16 %v3187
        %v4308 = vunpack.c.l.b16 %v3188
        %v4309 = vunpack.c.h.b16 %v3188
        %v4310 = vunpack.c.l.b16 %v3189
        %v4311 = vunpack.c.h.b16 %v3189
        %v4312 = vunpack.c.l.b16 %v3190
        %v4313 = vunpack.c.h.b16 %v3190
        %v4314 = vunpack.c.l.b16 %v3191
        %v4315 = vunpack.c.h.b16 %v3191
        %v4316 = vunpack.c.l.b16 %v3192
        %v4317 = vunpack.c.h.b16 %v3192
        %v4318 = vunpack.c.l.b16 %v3193
        %v4319 = vunpack.c.h.b16 %v3193
        %v4320 = vunpack.c.l.b16 %v3194
        %v4321 = vunpack.c.h.b16 %v3194
        %v4322 = vunpack.c.l.b16 %v3195
        %v4323 = vunpack.c.h.b16 %v3195
        %v4324 = vunpack.c.l.b16 %v3196
        %v4325 = vunpack.c.h.b16 %v3196
        %v4326 = vunpack.c.l.b16 %v3197
        %v4327 = vunpack.c.h.b16 %v3197
        %v4328 = vunpack.c.l.b16 %v3198
        %v4329 = vunpack.c.h.b16 %v3198
        %v4330 = vunpack.c.l.b16 %v3199
        %v4331 = vunpack.c.h.b16 %v3199
        %v4332 = vunpack.c.l.b16 %v3200
        %v4333 = vunpack.c.h.b16 %v3200
        %v4334 = vunpack.c.l.b16 %v3201
        %v4335 = vunpack.c.h.b16 %v3201
        %v4336 = vunpack.c.l.b16 %v3202
        %v4337 = vunpack.c.h.b16 %v3202
        %v4338 = vunpack.c.l.b16 %v3203
        %v4339 = vunpack.c.h.b16 %v3203
        %v4340 = vunpack.c.l.b16 %v3204
        %v4341 = vunpack.c.h.b16 %v3204
        %v4342 = vunpack.c.l.b16 %v3205
        %v4343 = vunpack.c.h.b16 %v3205
        %v4344 = vunpack.c.l.b16 %v3206
        %v4345 = vunpack.c.h.b16 %v3206
        %v4346 = vunpack.c.l.b16 %v3207
        %v4347 = vunpack.c.h.b16 %v3207
        %v4348 = vunpack.c.l.b16 %v3208
        %v4349 = vunpack.c.h.b16 %v3208
        %v4350 = vunpack.c.l.b16 %v3209
        %v4351 = vunpack.c.h.b16 %v3209
        %v4352 = vunpack.c.l.b16 %v3210
        %v4353 = vunpack.c.h.b16 %v3210
        %v4354 = vunpack.c.l.b16 %v3211
        %v4355 = vunpack.c.h.b16 %v3211
        %v4356 = vunpack.c.l.b16 %v3212
        %v4357 = vunpack.c.h.b16 %v3212
        %v4358 = vunpack.c.l.b16 %v3213
        %v4359 = vunpack.c.h.b16 %v3213
        %v4360 = vunpack.c.l.b16 %v3214
        %v4361 = vunpack.c.h.b16 %v3214
        %v4362 = vunpack.c.l.b16 %v3215
        %v4363 = vunpack.c.h.b16 %v3215
        %v4364 = vunpack.c.l.b16 %v3216
        %v4365 = vunpack.c.h.b16 %v3216
        %v4366 = vunpack.c.l.b16 %v3217
        %v4367 = vunpack.c.h.b16 %v3217
        %v4368 = vunpack.c.l.b16 %v3218
        %v4369 = vunpack.c.h.b16 %v3218
        %v4370 = vunpack.c.l.b16 %v3219
        %v4371 = vunpack.c.h.b16 %v3219
        %v4372 = vunpack.c.l.b16 %v3220
        %v4373 = vunpack.c.h.b16 %v3220
        %v4374 = vunpack.c.l.b16 %v3221
        %v4375 = vunpack.c.h.b16 %v3221
        %v4376 = vunpack.c.l.b16 %v3222
        %v4377 = vunpack.c.h.b16 %v3222
        %v4378 = vunpack.c.l.b16 %v3223
        %v4379 = vunpack.c.h.b16 %v3223
        %v4380 = vunpack.c.l.b16 %v3224
        %v4381 = vunpack.c.h.b16 %v3224
        %v4382 = vunpack.c.l.b16 %v3225
        %v4383 = vunpack.c.h.b16 %v3225
        %v4384 = vunpack.c.l.b16 %v3226
        %v4385 = vunpack.c.h.b16 %v3226
        %v4386 = vunpack.c.l.b16 %v3227
        %v4387 = vunpack.c.h.b16 %v3227
        %v4388 = vunpack.c.l.b16 %v3228
        %v4389 = vunpack.c.h.b16 %v3228
        %v4390 = vunpack.c.l.b16 %v3229
        %v4391 = vunpack.c.h.b16 %v3229
        %v4392 = vunpack.c.l.b16 %v3230
        %v4393 = vunpack.c.h.b16 %v3230
        %v4394 = vunpack.c.l.b16 %v3231
        %v4395 = vunpack.c.h.b16 %v3231
        %v4396 = vunpack.c.l.b16 %v3232
        %v4397 = vunpack.c.h.b16 %v3232
        %v4398 = vunpack.c.l.b16 %v3233
        %v4399 = vunpack.c.h.b16 %v3233
        %v4400 = vunpack.c.l.b16 %v3234
        %v4401 = vunpack.c.h.b16 %v3234
        %v4402 = vunpack.c.l.b16 %v3235
        %v4403 = vunpack.c.h.b16 %v3235
        %v4404 = vunpack.c.l.b16 %v3236
        %v4405 = vunpack.c.h.b16 %v3236
        %v4406 = vunpack.c.l.b16 %v3237
        %v4407 = vunpack.c.h.b16 %v3237
        %v4408 = vunpack.c.l.b16 %v3238
        %v4409 = vunpack.c.h.b16 %v3238
        %v4410 = vunpack.c.l.b16 %v3239
        %v4411 = vunpack.c.h.b16 %v3239
        %v4412 = vunpack.c.l.b16 %v3240
        %v4413 = vunpack.c.h.b16 %v3240
        %v4414 = vunpack.c.l.b16 %v3241
        %v4415 = vunpack.c.h.b16 %v3241
        %v4416 = vunpack.c.l.b16 %v3242
        %v4417 = vunpack.c.h.b16 %v3242
        %v4418 = vunpack.c.l.b16 %v3243
        %v4419 = vunpack.c.h.b16 %v3243
        %v4420 = vunpack.c.l.b16 %v3244
        %v4421 = vunpack.c.h.b16 %v3244
        %v4422 = vunpack.c.l.b16 %v3245
        %v4423 = vunpack.c.h.b16 %v3245
        %v4424 = vunpack.c.l.b16 %v3246
        %v4425 = vunpack.c.h.b16 %v3246
        %v4426 = vunpack.c.l.b16 %v3247
        %v4427 = vunpack.c.h.b16 %v3247
        %v4428 = vunpack.c.l.b16 %v3248
        %v4429 = vunpack.c.h.b16 %v3248
        %v4430 = vunpack.c.l.b16 %v3249
        %v4431 = vunpack.c.h.b16 %v3249
        %v4432 = vunpack.c.l.b16 %v3250
        %v4433 = vunpack.c.h.b16 %v3250
        %v4434 = vunpack.c.l.b16 %v3251
        %v4435 = vunpack.c.h.b16 %v3251
        %v4436 = vunpack.c.l.b16 %v3252
        %v4437 = vunpack.c.h.b16 %v3252
        %v4438 = vunpack.c.l.b16 %v3253
        %v4439 = vunpack.c.h.b16 %v3253
        %v4440 = vunpack.c.l.b16 %v3254
        %v4441 = vunpack.c.h.b16 %v3254
        %v4442 = vunpack.c.l.b16 %v3255
        %v4443 = vunpack.c.h.b16 %v3255
        %v4444 = vunpack.c.l.b16 %v3256
        %v4445 = vunpack.c.h.b16 %v3256
        %v4446 = vunpack.c.l.b16 %v3257
        %v4447 = vunpack.c.h.b16 %v3257
        %v4448 = vunpack.c.l.b16 %v3258
        %v4449 = vunpack.c.h.b16 %v3258
        %v4450 = vunpack.c.l.b16 %v3259
        %v4451 = vunpack.c.h.b16 %v3259
        %v4452 = vunpack.c.l.b16 %v3260
        %v4453 = vunpack.c.h.b16 %v3260
        %v4454 = vunpack.c.l.b16 %v3261
        %v4455 = vunpack.c.h.b16 %v3261
        %v4456 = vunpack.c.l.b16 %v3262
        %v4457 = vunpack.c.h.b16 %v3262
        %v4458 = vunpack.c.l.b16 %v3263
        %v4459 = vunpack.c.h.b16 %v3263
        %v4460 = vunpack.c.l.b16 %v3264
        %v4461 = vunpack.c.h.b16 %v3264
        %v4462 = vunpack.c.l.b16 %v3265
        %v4463 = vunpack.c.h.b16 %v3265
        %v4464 = vunpack.c.l.b16 %v3266
        %v4465 = vunpack.c.h.b16 %v3266
        %v4466 = vunpack.c.l.b16 %v3267
        %v4467 = vunpack.c.h.b16 %v3267
        %v4468 = vunpack.c.l.b16 %v3268
        %v4469 = vunpack.c.h.b16 %v3268
        %v4470 = vunpack.c.l.b16 %v3269
        %v4471 = vunpack.c.h.b16 %v3269
        %v4472 = vunpack.c.l.b16 %v3270
        %v4473 = vunpack.c.h.b16 %v3270
        %v4474 = vunpack.c.l.b16 %v3271
        %v4475 = vunpack.c.h.b16 %v3271
        %v4476 = vunpack.c.l.b16 %v3272
        %v4477 = vunpack.c.h.b16 %v3272
        %v4478 = vunpack.c.l.b16 %v3273
        %v4479 = vunpack.c.h.b16 %v3273
        %v4480 = vunpack.c.l.b16 %v3274
        %v4481 = vunpack.c.h.b16 %v3274
        %v4482 = vunpack.c.l.b16 %v3275
        %v4483 = vunpack.c.h.b16 %v3275
        %v4484 = vunpack.c.l.b16 %v3276
        %v4485 = vunpack.c.h.b16 %v3276
        %v4486 = vunpack.c.l.b16 %v3277
        %v4487 = vunpack.c.h.b16 %v3277
        %v4488 = vunpack.c.l.b16 %v3278
        %v4489 = vunpack.c.h.b16 %v3278
        %v4490 = vunpack.c.l.b16 %v3279
        %v4491 = vunpack.c.h.b16 %v3279
        %v4492 = vunpack.c.l.b16 %v3280
        %v4493 = vunpack.c.h.b16 %v3280
        %v4494 = vunpack.c.l.b16 %v3281
        %v4495 = vunpack.c.h.b16 %v3281
        %v4496 = vunpack.c.l.b16 %v3282
        %v4497 = vunpack.c.h.b16 %v3282
        %v4498 = vunpack.c.l.b16 %v3283
        %v4499 = vunpack.c.h.b16 %v3283
        %v4500 = vunpack.c.l.b16 %v3284
        %v4501 = vunpack.c.h.b16 %v3284
        %v4502 = vunpack.c.l.b16 %v3285
        %v4503 = vunpack.c.h.b16 %v3285
        %v4504 = vunpack.c.l.b16 %v3286
        %v4505 = vunpack.c.h.b16 %v3286
        %v4506 = vunpack.c.l.b16 %v3287
        %v4507 = vunpack.c.h.b16 %v3287
        %v4508 = vunpack.c.l.b16 %v3288
        %v4509 = vunpack.c.h.b16 %v3288
        %v4510 = vunpack.c.l.b16 %v3289
        %v4511 = vunpack.c.h.b16 %v3289
        %v4512 = vunpack.c.l.b16 %v3290
        %v4513 = vunpack.c.h.b16 %v3290
        %v4514 = vunpack.c.l.b16 %v3291
        %v4515 = vunpack.c.h.b16 %v3291
        %v4516 = vunpack.c.l.b16 %v3292
        %v4517 = vunpack.c.h.b16 %v3292
        %v4518 = vunpack.c.l.b16 %v3293
        %v4519 = vunpack.c.h.b16 %v3293
        %v4520 = vunpack.c.l.b16 %v3294
        %v4521 = vunpack.c.h.b16 %v3294
        %v4522 = vunpack.c.l.b16 %v3295
        %v4523 = vunpack.c.h.b16 %v3295
        %v4524 = vunpack.c.l.b16 %v3296
        %v4525 = vunpack.c.h.b16 %v3296
        %v4526 = vunpack.c.l.b16 %v3297
        %v4527 = vunpack.c.h.b16 %v3297
        %v4528 = vunpack.c.l.b16 %v3298
        %v4529 = vunpack.c.h.b16 %v3298
        %v4530 = vunpack.c.l.b16 %v3299
        %v4531 = vunpack.c.h.b16 %v3299
        %v4532 = vunpack.c.l.b16 %v3300
        %v4533 = vunpack.c.h.b16 %v3300
        %v4534 = vunpack.c.l.b16 %v3301
        %v4535 = vunpack.c.h.b16 %v3301
        %v4536 = vunpack.c.l.b16 %v3302
        %v4537 = vunpack.c.h.b16 %v3302
        %v4538 = vunpack.c.l.b16 %v3303
        %v4539 = vunpack.c.h.b16 %v3303
        %v4540 = vunpack.c.l.b16 %v3304
        %v4541 = vunpack.c.h.b16 %v3304
        %v4542 = vunpack.c.l.b16 %v3305
        %v4543 = vunpack.c.h.b16 %v3305
        %v4544 = vunpack.c.l.b16 %v3306
        %v4545 = vunpack.c.h.b16 %v3306
        %v4546 = vunpack.c.l.b16 %v3307
        %v4547 = vunpack.c.h.b16 %v3307
        %v4548 = vunpack.c.l.b16 %v3308
        %v4549 = vunpack.c.h.b16 %v3308
        %v4550 = vunpack.c.l.b16 %v3309
        %v4551 = vunpack.c.h.b16 %v3309
        %v4552 = vunpack.c.l.b16 %v3310
        %v4553 = vunpack.c.h.b16 %v3310
        %v4554 = vunpack.c.l.b16 %v3311
        %v4555 = vunpack.c.h.b16 %v3311
        %v4556 = vunpack.c.l.b16 %v3312
        %v4557 = vunpack.c.h.b16 %v3312
        %v4558 = vunpack.c.l.b16 %v3313
        %v4559 = vunpack.c.h.b16 %v3313
        %v4560 = vunpack.c.l.b16 %v3314
        %v4561 = vunpack.c.h.b16 %v3314
        %v4562 = vunpack.c.l.b16 %v3315
        %v4563 = vunpack.c.h.b16 %v3315
        %v4564 = vunpack.c.l.b16 %v3316
        %v4565 = vunpack.c.h.b16 %v3316
        %v4566 = vunpack.c.l.b16 %v3317
        %v4567 = vunpack.c.h.b16 %v3317
        %v4568 = vunpack.c.l.b16 %v3318
        %v4569 = vunpack.c.h.b16 %v3318
        %v4570 = vunpack.c.l.b16 %v3319
        %v4571 = vunpack.c.h.b16 %v3319
        %v4572 = vunpack.c.l.b16 %v3320
        %v4573 = vunpack.c.h.b16 %v3320
        %v4574 = vunpack.c.l.b16 %v3321
        %v4575 = vunpack.c.h.b16 %v3321
        %v4576 = vunpack.c.l.b16 %v3322
        %v4577 = vunpack.c.h.b16 %v3322
        %v4578 = vunpack.c.l.b16 %v3323
        %v4579 = vunpack.c.h.b16 %v3323
        %v4580 = vunpack.c.l.b16 %v3324
        %v4581 = vunpack.c.h.b16 %v3324
        %v4582 = vunpack.c.l.b16 %v3325
        %v4583 = vunpack.c.h.b16 %v3325
        %v4584 = vunpack.c.l.b16 %v3326
        %v4585 = vunpack.c.h.b16 %v3326
        %v4586 = vunpack.c.l.b16 %v3327
        %v4587 = vunpack.c.h.b16 %v3327
        %v4588 = vunpack.c.l.b16 %v3328
        %v4589 = vunpack.c.h.b16 %v3328
        %v4590 = vunpack.c.l.b16 %v3329
        %v4591 = vunpack.c.h.b16 %v3329
        %v4592 = vunpack.c.l.b16 %v3330
        %v4593 = vunpack.c.h.b16 %v3330
        %v4594 = vunpack.c.l.b16 %v3331
        %v4595 = vunpack.c.h.b16 %v3331
        %v4596 = vunpack.c.l.b16 %v3332
        %v4597 = vunpack.c.h.b16 %v3332
        %v4598 = vunpack.c.l.b16 %v3333
        %v4599 = vunpack.c.h.b16 %v3333
        %v4600 = vunpack.c.l.b16 %v3334
        %v4601 = vunpack.c.h.b16 %v3334
        %v4602 = vunpack.c.l.b16 %v3335
        %v4603 = vunpack.c.h.b16 %v3335
        %v4604 = vunpack.c.l.b16 %v3336
        %v4605 = vunpack.c.h.b16 %v3336
        %v4606 = vunpack.c.l.b16 %v3337
        %v4607 = vunpack.c.h.b16 %v3337
        %v4608 = vunpack.c.l.b16 %v3338
        %v4609 = vunpack.c.h.b16 %v3338
        %v4610 = vunpack.c.l.b16 %v3339
        %v4611 = vunpack.c.h.b16 %v3339
        %v4612 = vunpack.c.l.b16 %v3340
        %v4613 = vunpack.c.h.b16 %v3340
        %v4614 = vunpack.c.l.b16 %v3341
        %v4615 = vunpack.c.h.b16 %v3341
        %v4616 = vunpack.c.l.b16 %v3342
        %v4617 = vunpack.c.h.b16 %v3342
        %v4618 = vunpack.c.l.b16 %v3343
        %v4619 = vunpack.c.h.b16 %v3343
        %v4620 = vunpack.c.l.b16 %v3344
        %v4621 = vunpack.c.h.b16 %v3344
        %v4622 = vunpack.c.l.b16 %v3345
        %v4623 = vunpack.c.h.b16 %v3345
        %v4624 = vunpack.c.l.b16 %v3346
        %v4625 = vunpack.c.h.b16 %v3346
        %v4626 = vunpack.c.l.b16 %v3347
        %v4627 = vunpack.c.h.b16 %v3347
        %v4628 = vunpack.c.l.b16 %v3348
        %v4629 = vunpack.c.h.b16 %v3348
        %v4630 = vunpack.c.l.b16 %v3349
        %v4631 = vunpack.c.h.b16 %v3349
        %v4632 = vunpack.c.l.b16 %v3350
        %v4633 = vunpack.c.h.b16 %v3350
        %v4634 = vunpack.c.l.b16 %v3351
        %v4635 = vunpack.c.h.b16 %v3351
        %v4636 = vunpack.c.l.b16 %v3352
        %v4637 = vunpack.c.h.b16 %v3352
        %v4638 = vunpack.c.l.b16 %v3353
        %v4639 = vunpack.c.h.b16 %v3353
        %v4640 = vunpack.c.l.b16 %v3354
        %v4641 = vunpack.c.h.b16 %v3354
        %v4642 = vunpack.c.l.b16 %v3355
        %v4643 = vunpack.c.h.b16 %v3355
        %v4644 = vunpack.c.l.b16 %v3356
        %v4645 = vunpack.c.h.b16 %v3356
        %v4646 = vunpack.c.l.b16 %v3357
        %v4647 = vunpack.c.h.b16 %v3357
        %v4648 = vunpack.c.l.b16 %v3358
        %v4649 = vunpack.c.h.b16 %v3358
        %v4650 = vunpack.c.l.b16 %v3359
        %v4651 = vunpack.c.h.b16 %v3359
        %v4652 = vunpack.c.l.b16 %v3360
        %v4653 = vunpack.c.h.b16 %v3360
        %v4654 = vunpack.c.l.b16 %v3361
        %v4655 = vunpack.c.h.b16 %v3361
        %v4656 = vunpack.c.l.b16 %v3362
        %v4657 = vunpack.c.h.b16 %v3362
        %v4658 = vunpack.c.l.b16 %v3363
        %v4659 = vunpack.c.h.b16 %v3363
        %v4660 = vunpack.c.l.b16 %v3364
        %v4661 = vunpack.c.h.b16 %v3364
        %v4662 = vunpack.c.l.b16 %v3365
        %v4663 = vunpack.c.h.b16 %v3365
        %v4664 = vunpack.c.l.b16 %v3366
        %v4665 = vunpack.c.h.b16 %v3366
        %v4666 = vunpack.c.l.b16 %v3367
        %v4667 = vunpack.c.h.b16 %v3367
        %v4668 = vunpack.c.l.b16 %v3368
        %v4669 = vunpack.c.h.b16 %v3368
        %v4670 = vunpack.c.l.b16 %v3369
        %v4671 = vunpack.c.h.b16 %v3369
        %v4672 = vunpack.c.l.b16 %v3370
        %v4673 = vunpack.c.h.b16 %v3370
        %v4674 = vunpack.c.l.b16 %v3371
        %v4675 = vunpack.c.h.b16 %v3371
        %v4676 = vunpack.c.l.b16 %v3372
        %v4677 = vunpack.c.h.b16 %v3372
        %v4678 = vunpack.c.l.b16 %v3373
        %v4679 = vunpack.c.h.b16 %v3373
        %v4680 = vunpack.c.l.b16 %v3374
        %v4681 = vunpack.c.h.b16 %v3374
        %v4682 = vunpack.c.l.b16 %v3375
        %v4683 = vunpack.c.h.b16 %v3375
        %v4684 = vunpack.c.l.b16 %v3376
        %v4685 = vunpack.c.h.b16 %v3376
        %v4686 = vunpack.c.l.b16 %v3377
        %v4687 = vunpack.c.h.b16 %v3377
        %v4688 = vunpack.c.l.b16 %v3378
        %v4689 = vunpack.c.h.b16 %v3378
        %v4690 = vunpack.c.l.b16 %v3379
        %v4691 = vunpack.c.h.b16 %v3379
        %v4692 = vunpack.c.l.b16 %v3380
        %v4693 = vunpack.c.h.b16 %v3380
        %v4694 = vunpack.c.l.b16 %v3381
        %v4695 = vunpack.c.h.b16 %v3381
        %v4696 = vunpack.c.l.b16 %v3382
        %v4697 = vunpack.c.h.b16 %v3382
        %v4698 = vunpack.c.l.b16 %v3383
        %v4699 = vunpack.c.h.b16 %v3383
        %v4700 = vunpack.c.l.b16 %v3384
        %v4701 = vunpack.c.h.b16 %v3384
        %v4702 = vunpack.c.l.b16 %v3385
        %v4703 = vunpack.c.h.b16 %v3385
        %v4704 = vunpack.c.l.b16 %v3386
        %v4705 = vunpack.c.h.b16 %v3386
        %v4706 = vunpack.c.l.b16 %v3387
        %v4707 = vunpack.c.h.b16 %v3387
        %v4708 = vunpack.c.l.b16 %v3388
        %v4709 = vunpack.c.h.b16 %v3388
        %v4710 = vunpack.c.l.b16 %v3389
        %v4711 = vunpack.c.h.b16 %v3389
        %v4712 = vunpack.c.l.b16 %v3390
        %v4713 = vunpack.c.h.b16 %v3390
        %v4714 = vunpack.c.l.b16 %v3391
        %v4715 = vunpack.c.h.b16 %v3391
        %v4716 = vunpack.c.l.b16 %v3392
        %v4717 = vunpack.c.h.b16 %v3392
        %v4718 = vunpack.c.l.b16 %v3393
        %v4719 = vunpack.c.h.b16 %v3393
        %v4720 = vunpack.c.l.b16 %v3394
        %v4721 = vunpack.c.h.b16 %v3394
        %v4722 = vunpack.c.l.b16 %v3395
        %v4723 = vunpack.c.h.b16 %v3395
        %v4724 = vunpack.c.l.b16 %v3396
        %v4725 = vunpack.c.h.b16 %v3396
        %v4726 = vunpack.c.l.b16 %v3397
        %v4727 = vunpack.c.h.b16 %v3397
        %v4728 = vunpack.c.l.b16 %v3398
        %v4729 = vunpack.c.h.b16 %v3398
        %v4730 = vunpack.c.l.b16 %v3399
        %v4731 = vunpack.c.h.b16 %v3399
        %v4732 = vunpack.c.l.b16 %v3400
        %v4733 = vunpack.c.h.b16 %v3400
        %v4734 = vunpack.c.l.b16 %v3401
        %v4735 = vunpack.c.h.b16 %v3401
        %v4736 = vunpack.c.l.b16 %v3402
        %v4737 = vunpack.c.h.b16 %v3402
        %v4738 = vunpack.c.l.b16 %v3403
        %v4739 = vunpack.c.h.b16 %v3403
        %v4740 = vunpack.c.l.b16 %v3404
        %v4741 = vunpack.c.h.b16 %v3404
        %v4742 = vunpack.c.l.b16 %v3405
        %v4743 = vunpack.c.h.b16 %v3405
        %v4744 = vunpack.c.l.b16 %v3406
        %v4745 = vunpack.c.h.b16 %v3406
        %v4746 = vunpack.c.l.b16 %v3407
        %v4747 = vunpack.c.h.b16 %v3407
        %v4748 = vunpack.c.l.b16 %v3408
        %v4749 = vunpack.c.h.b16 %v3408
        %v4750 = vunpack.c.l.b16 %v3409
        %v4751 = vunpack.c.h.b16 %v3409
        %v4752 = vunpack.c.l.b16 %v3410
        %v4753 = vunpack.c.h.b16 %v3410
        %v4754 = vunpack.c.l.b16 %v3411
        %v4755 = vunpack.c.h.b16 %v3411
        %v4756 = vunpack.c.l.b16 %v3412
        %v4757 = vunpack.c.h.b16 %v3412
        %v4758 = vunpack.c.l.b16 %v3413
        %v4759 = vunpack.c.h.b16 %v3413
        %v4760 = vunpack.c.l.b16 %v3414
        %v4761 = vunpack.c.h.b16 %v3414
        %v4762 = vunpack.c.l.b16 %v3415
        %v4763 = vunpack.c.h.b16 %v3415
        %v4764 = vunpack.c.l.b16 %v3416
        %v4765 = vunpack.c.h.b16 %v3416
        %v4766 = vunpack.c.l.b16 %v3417
        %v4767 = vunpack.c.h.b16 %v3417
        %v4768 = vunpack.c.l.b16 %v3418
        %v4769 = vunpack.c.h.b16 %v3418
        %v4770 = vunpack.c.l.b16 %v3419
        %v4771 = vunpack.c.h.b16 %v3419
        %v4772 = vunpack.c.l.b16 %v3420
        %v4773 = vunpack.c.h.b16 %v3420
        %v4774 = vunpack.c.l.b16 %v3421
        %v4775 = vunpack.c.h.b16 %v3421
        %v4776 = vunpack.c.l.b16 %v3422
        %v4777 = vunpack.c.h.b16 %v3422
        %v4778 = vunpack.c.l.b16 %v3423
        %v4779 = vunpack.c.h.b16 %v3423
        %v4780 = vunpack.c.l.b16 %v3424
        %v4781 = vunpack.c.h.b16 %v3424
        %v4782 = vunpack.c.l.b16 %v3425
        %v4783 = vunpack.c.h.b16 %v3425
        %v4784 = vunpack.c.l.b16 %v3426
        %v4785 = vunpack.c.h.b16 %v3426
        %v4786 = vunpack.c.l.b16 %v3427
        %v4787 = vunpack.c.h.b16 %v3427
        %v4788 = vunpack.c.l.b16 %v3428
        %v4789 = vunpack.c.h.b16 %v3428
        %v4790 = vunpack.c.l.b16 %v3429
        %v4791 = vunpack.c.h.b16 %v3429
        %v4792 = vunpack.c.l.b16 %v3430
        %v4793 = vunpack.c.h.b16 %v3430
        %v4794 = vunpack.c.l.b16 %v3431
        %v4795 = vunpack.c.h.b16 %v3431
        %v4796 = vunpack.c.l.b16 %v3432
        %v4797 = vunpack.c.h.b16 %v3432
        %v4798 = vunpack.c.l.b16 %v3433
        %v4799 = vunpack.c.h.b16 %v3433
        %v4800 = vunpack.c.l.b16 %v3434
        %v4801 = vunpack.c.h.b16 %v3434
        %v4802 = vunpack.c.l.b16 %v3435
        %v4803 = vunpack.c.h.b16 %v3435
        %v4804 = vunpack.c.l.b16 %v3436
        %v4805 = vunpack.c.h.b16 %v3436
        %v4806 = vunpack.c.l.b16 %v3437
        %v4807 = vunpack.c.h.b16 %v3437
        %v4808 = vunpack.c.l.b16 %v3438
        %v4809 = vunpack.c.h.b16 %v3438
        %v4810 = vunpack.c.l.b16 %v3439
        %v4811 = vunpack.c.h.b16 %v3439
        %v4812 = vunpack.c.l.b16 %v3440
        %v4813 = vunpack.c.h.b16 %v3440
        %v4814 = vunpack.c.l.b16 %v3441
        %v4815 = vunpack.c.h.b16 %v3441
        %v4816 = vunpack.c.l.b16 %v3442
        %v4817 = vunpack.c.h.b16 %v3442
        %v4818 = vunpack.c.l.b16 %v3443
        %v4819 = vunpack.c.h.b16 %v3443
        %v4820 = vunpack.c.l.b16 %v3444
        %v4821 = vunpack.c.h.b16 %v3444
        %v4822 = vunpack.c.l.b16 %v3445
        %v4823 = vunpack.c.h.b16 %v3445
        %v4824 = vunpack.c.l.b16 %v3446
        %v4825 = vunpack.c.h.b16 %v3446
        %v4826 = vunpack.c.l.b16 %v3447
        %v4827 = vunpack.c.h.b16 %v3447
        %v4828 = vunpack.c.l.b16 %v3448
        %v4829 = vunpack.c.h.b16 %v3448
        %v4830 = vunpack.c.l.b16 %v3449
        %v4831 = vunpack.c.h.b16 %v3449
        %v4832 = vunpack.c.l.b16 %v3450
        %v4833 = vunpack.c.h.b16 %v3450
        %v4834 = vunpack.c.l.b16 %v3451
        %v4835 = vunpack.c.h.b16 %v3451
        %v4836 = vunpack.c.l.b16 %v3452
        %v4837 = vunpack.c.h.b16 %v3452
        %v4838 = vunpack.c.l.b16 %v3453
        %v4839 = vunpack.c.h.b16 %v3453
        %v4840 = vunpack.c.l.b16 %v3454
        %v4841 = vunpack.c.h.b16 %v3454
        %v4842 = vunpack.c.l.b16 %v3455
        %v4843 = vunpack.c.h.b16 %v3455
        %v4844 = vunpack.c.l.b16 %v3456
        %v4845 = vunpack.c.h.b16 %v3456
        %v4846 = vunpack.c.l.b16 %v3457
        %v4847 = vunpack.c.h.b16 %v3457
        %v4848 = vunpack.c.l.b16 %v3458
        %v4849 = vunpack.c.h.b16 %v3458
        %v4850 = vunpack.c.l.b16 %v3459
        %v4851 = vunpack.c.h.b16 %v3459
        %v4852 = vunpack.c.l.b16 %v3460
        %v4853 = vunpack.c.h.b16 %v3460
        %v4854 = vunpack.c.l.b16 %v3461
        %v4855 = vunpack.c.h.b16 %v3461
        %v4856 = vunpack.c.l.b16 %v3462
        %v4857 = vunpack.c.h.b16 %v3462
        %v4858 = vunpack.c.l.b16 %v3463
        %v4859 = vunpack.c.h.b16 %v3463
        %v4860 = vunpack.c.l.b16 %v3464
        %v4861 = vunpack.c.h.b16 %v3464
        %v4862 = vunpack.c.l.b16 %v3465
        %v4863 = vunpack.c.h.b16 %v3465
        %v4864 = vunpack.c.l.b16 %v3466
        %v4865 = vunpack.c.h.b16 %v3466
        %v4866 = vunpack.c.l.b16 %v3467
        %v4867 = vunpack.c.h.b16 %v3467
        %v4868 = vunpack.c.l.b16 %v3468
        %v4869 = vunpack.c.h.b16 %v3468
        %v4870 = vunpack.c.l.b16 %v3469
        %v4871 = vunpack.c.h.b16 %v3469
        %v4872 = vunpack.c.l.b16 %v3470
        %v4873 = vunpack.c.h.b16 %v3470
        %v4874 = vunpack.c.l.b16 %v3471
        %v4875 = vunpack.c.h.b16 %v3471
        %v4876 = vunpack.c.l.b16 %v3472
        %v4877 = vunpack.c.h.b16 %v3472
        %v4878 = vunpack.c.l.b16 %v3473
        %v4879 = vunpack.c.h.b16 %v3473
        %v4880 = vunpack.c.l.b16 %v3474
        %v4881 = vunpack.c.h.b16 %v3474
        %v4882 = vunpack.c.l.b16 %v3475
        %v4883 = vunpack.c.h.b16 %v3475
        %v4884 = vunpack.c.l.b16 %v3476
        %v4885 = vunpack.c.h.b16 %v3476
        %v4886 = vunpack.c.l.b16 %v3477
        %v4887 = vunpack.c.h.b16 %v3477
        %v4888 = vunpack.c.l.b16 %v3478
        %v4889 = vunpack.c.h.b16 %v3478
        %v4890 = vunpack.c.l.b16 %v3479
        %v4891 = vunpack.c.h.b16 %v3479
        %v4892 = vunpack.c.l.b16 %v3480
        %v4893 = vunpack.c.h.b16 %v3480
        %v4894 = vunpack.c.l.b16 %v3481
        %v4895 = vunpack.c.h.b16 %v3481
        %v4896 = vunpack.c.l.b16 %v3482
        %v4897 = vunpack.c.h.b16 %v3482
        %v4898 = vunpack.c.l.b16 %v3483
        %v4899 = vunpack.c.h.b16 %v3483
        %v4900 = vunpack.c.l.b16 %v3484
        %v4901 = vunpack.c.h.b16 %v3484
        %v4902 = vunpack.c.l.b16 %v3485
        %v4903 = vunpack.c.h.b16 %v3485
        %v4904 = vunpack.c.l.b16 %v3486
        %v4905 = vunpack.c.h.b16 %v3486
        %v4906 = vunpack.c.l.b16 %v3487
        %v4907 = vunpack.c.h.b16 %v3487
        %v4908 = vunpack.c.l.b16 %v3488
        %v4909 = vunpack.c.h.b16 %v3488
        %v4910 = vunpack.c.l.b16 %v3489
        %v4911 = vunpack.c.h.b16 %v3489
        %v4912 = vunpack.c.l.b16 %v3490
        %v4913 = vunpack.c.h.b16 %v3490
        %v4914 = vunpack.c.l.b16 %v3491
        %v4915 = vunpack.c.h.b16 %v3491
        %v4916 = vunpack.c.l.b16 %v3492
        %v4917 = vunpack.c.h.b16 %v3492
        %v4918 = vunpack.c.l.b16 %v3493
        %v4919 = vunpack.c.h.b16 %v3493
        %v4920 = vunpack.c.l.b16 %v3494
        %v4921 = vunpack.c.h.b16 %v3494
        %v4922 = vunpack.c.l.b16 %v3495
        %v4923 = vunpack.c.h.b16 %v3495
        %v4924 = vunpack.c.l.b16 %v3496
        %v4925 = vunpack.c.h.b16 %v3496
        %v4926 = vunpack.c.l.b16 %v3497
        %v4927 = vunpack.c.h.b16 %v3497
        %v4928 = vunpack.c.l.b16 %v3498
        %v4929 = vunpack.c.h.b16 %v3498
        %v4930 = vunpack.c.l.b16 %v3499
        %v4931 = vunpack.c.h.b16 %v3499
        %v4932 = vunpack.c.l.b16 %v3500
        %v4933 = vunpack.c.h.b16 %v3500
        %v4934 = vunpack.c.l.b16 %v3501
        %v4935 = vunpack.c.h.b16 %v3501
        %v4936 = vunpack.c.l.b16 %v3502
        %v4937 = vunpack.c.h.b16 %v3502
        %v4938 = vunpack.c.l.b16 %v3503
        %v4939 = vunpack.c.h.b16 %v3503
        %v4940 = vunpack.c.l.b16 %v3504
        %v4941 = vunpack.c.h.b16 %v3504
        %v4942 = vunpack.c.l.b16 %v3505
        %v4943 = vunpack.c.h.b16 %v3505
        %v4944 = vunpack.c.l.b16 %v3506
        %v4945 = vunpack.c.h.b16 %v3506
        %v4946 = vunpack.c.l.b16 %v3507
        %v4947 = vunpack.c.h.b16 %v3507
        %v4948 = vunpack.c.l.b16 %v3508
        %v4949 = vunpack.c.h.b16 %v3508
        %v4950 = vunpack.c.l.b16 %v3509
        %v4951 = vunpack.c.h.b16 %v3509
        %v4952 = vunpack.c.l.b16 %v3510
        %v4953 = vunpack.c.h.b16 %v3510
        %v4954 = vunpack.c.l.b16 %v3511
        %v4955 = vunpack.c.h.b16 %v3511
        %v4956 = vunpack.c.l.b16 %v3512
        %v4957 = vunpack.c.h.b16 %v3512
        %v4958 = vunpack.c.l.b16 %v3513
        %v4959 = vunpack.c.h.b16 %v3513
        %v4960 = vunpack.c.l.b16 %v3514
        %v4961 = vunpack.c.h.b16 %v3514
        %v4962 = vunpack.c.l.b16 %v3515
        %v4963 = vunpack.c.h.b16 %v3515
        %v4964 = vunpack.c.l.b16 %v3516
        %v4965 = vunpack.c.h.b16 %v3516
        %v4966 = vunpack.c.l.b16 %v3517
        %v4967 = vunpack.c.h.b16 %v3517
        %v4968 = vunpack.c.l.b16 %v3518
        %v4969 = vunpack.c.h.b16 %v3518
        %v4970 = vunpack.c.l.b16 %v3519
        %v4971 = vunpack.c.h.b16 %v3519
        %v4972 = vunpack.c.l.b16 %v3520
        %v4973 = vunpack.c.h.b16 %v3520
        %v4974 = vunpack.c.l.b16 %v3521
        %v4975 = vunpack.c.h.b16 %v3521
        %v4976 = vunpack.c.l.b16 %v3522
        %v4977 = vunpack.c.h.b16 %v3522
        %v4978 = vunpack.c.l.b16 %v3523
        %v4979 = vunpack.c.h.b16 %v3523
        %v4980 = vunpack.c.l.b16 %v3524
        %v4981 = vunpack.c.h.b16 %v3524
        %v4982 = vunpack.c.l.b16 %v3525
        %v4983 = vunpack.c.h.b16 %v3525
        %v4984 = vunpack.c.l.b16 %v3526
        %v4985 = vunpack.c.h.b16 %v3526
        %v4986 = vunpack.c.l.b16 %v3527
        %v4987 = vunpack.c.h.b16 %v3527
        %v4988 = vunpack.c.l.b16 %v3528
        %v4989 = vunpack.c.h.b16 %v3528
        %v4990 = vunpack.c.l.b16 %v3529
        %v4991 = vunpack.c.h.b16 %v3529
        %v4992 = vunpack.c.l.b16 %v3530
        %v4993 = vunpack.c.h.b16 %v3530
        %v4994 = vunpack.c.l.b16 %v3531
        %v4995 = vunpack.c.h.b16 %v3531
        %v4996 = vunpack.c.l.b16 %v3532
        %v4997 = vunpack.c.h.b16 %v3532
        %v4998 = vunpack.c.l.b16 %v3533
        %v4999 = vunpack.c.h.b16 %v3533
        %v5000 = vunpack.c.l.b16 %v3534
        %v5001 = vunpack.c.h.b16 %v3534
        %v5002 = vunpack.c.l.b16 %v3535
        %v5003 = vunpack.c.h.b16 %v3535
        %v5004 = vunpack.c.l.b16 %v3536
        %v5005 = vunpack.c.h.b16 %v3536
        %v5006 = vunpack.c.l.b16 %v3537
        %v5007 = vunpack.c.h.b16 %v3537
        %v5008 = vunpack.c.l.b16 %v3538
        %v5009 = vunpack.c.h.b16 %v3538
        %v5010 = vunpack.c.l.b16 %v3539
        %v5011 = vunpack.c.h.b16 %v3539
        %v5012 = vunpack.c.l.b16 %v3540
        %v5013 = vunpack.c.h.b16 %v3540
        %v5014 = vunpack.c.l.b16 %v3541
        %v5015 = vunpack.c.h.b16 %v3541
        %v5016 = vunpack.c.l.b16 %v3542
        %v5017 = vunpack.c.h.b16 %v3542
        %v5018 = vunpack.c.l.b16 %v3543
        %v5019 = vunpack.c.h.b16 %v3543
        %v5020 = vunpack.c.l.b16 %v3544
        %v5021 = vunpack.c.h.b16 %v3544
        %v5022 = vunpack.c.l.b16 %v3545
        %v5023 = vunpack.c.h.b16 %v3545
        %v5024 = vunpack.c.l.b16 %v3546
        %v5025 = vunpack.c.h.b16 %v3546
        %v5026 = vunpack.c.l.b16 %v3547
        %v5027 = vunpack.c.h.b16 %v3547
        %v5028 = vunpack.c.l.b16 %v3548
        %v5029 = vunpack.c.h.b16 %v3548
        %v5030 = vunpack.c.l.b16 %v3549
        %v5031 = vunpack.c.h.b16 %v3549
        %v5032 = vunpack.c.l.b16 %v3550
        %v5033 = vunpack.c.h.b16 %v3550
        %v5034 = vunpack.c.l.b16 %v3551
        %v5035 = vunpack.c.h.b16 %v3551
        %v5036 = vunpack.c.l.b16 %v3552
        %v5037 = vunpack.c.h.b16 %v3552
        %v5038 = vunpack.c.l.b16 %v3553
        %v5039 = vunpack.c.h.b16 %v3553
        %v5040 = vunpack.c.l.b16 %v3554
        %v5041 = vunpack.c.h.b16 %v3554
        %v5042 = vunpack.c.l.b16 %v3555
        %v5043 = vunpack.c.h.b16 %v3555
        %v5044 = vunpack.c.l.b16 %v3556
        %v5045 = vunpack.c.h.b16 %v3556
        %v5046 = vunpack.c.l.b16 %v3557
        %v5047 = vunpack.c.h.b16 %v3557
        %v5048 = vunpack.c.l.b16 %v3558
        %v5049 = vunpack.c.h.b16 %v3558
        %v5050 = vunpack.c.l.b16 %v3559
        %v5051 = vunpack.c.h.b16 %v3559
        %v5052 = vunpack.c.l.b16 %v3560
        %v5053 = vunpack.c.h.b16 %v3560
        %v5054 = vunpack.c.l.b16 %v3561
        %v5055 = vunpack.c.h.b16 %v3561
        %v5056 = vunpack.c.l.b16 %v3562
        %v5057 = vunpack.c.h.b16 %v3562
        %v5058 = vunpack.c.l.b16 %v3563
        %v5059 = vunpack.c.h.b16 %v3563
        %v5060 = vunpack.c.l.b16 %v3564
        %v5061 = vunpack.c.h.b16 %v3564
        %v5062 = vunpack.c.l.b16 %v3565
        %v5063 = vunpack.c.h.b16 %v3565
        %v5064 = vunpack.c.l.b16 %v3566
        %v5065 = vunpack.c.h.b16 %v3566
        %v5066 = vunpack.c.l.b16 %v3567
        %v5067 = vunpack.c.h.b16 %v3567
        %v5068 = vunpack.c.l.b16 %v3568
        %v5069 = vunpack.c.h.b16 %v3568
        %v5070 = vunpack.c.l.b16 %v3569
        %v5071 = vunpack.c.h.b16 %v3569
        %v5072 = vunpack.c.l.b16 %v3570
        %v5073 = vunpack.c.h.b16 %v3570
        %v5074 = vunpack.c.l.b16 %v3571
        %v5075 = vunpack.c.h.b16 %v3571
        %v5076 = vunpack.c.l.b16 %v3572
        %v5077 = vunpack.c.h.b16 %v3572
        %v5078 = vunpack.c.l.b16 %v3573
        %v5079 = vunpack.c.h.b16 %v3573
        %v5080 = vunpack.c.l.b16 %v3574
        %v5081 = vunpack.c.h.b16 %v3574
        %v5082 = vunpack.c.l.b16 %v3575
        %v5083 = vunpack.c.h.b16 %v3575
        %v5084 = vunpack.c.l.b16 %v3576
        %v5085 = vunpack.c.h.b16 %v3576
        %v5086 = vunpack.c.l.b16 %v3577
        %v5087 = vunpack.c.h.b16 %v3577
        %v5088 = vunpack.c.l.b16 %v3578
        %v5089 = vunpack.c.h.b16 %v3578
        %v5090 = vunpack.c.l.b16 %v3579
        %v5091 = vunpack.c.h.b16 %v3579
        %v5092 = vunpack.c.l.b16 %v3580
        %v5093 = vunpack.c.h.b16 %v3580
        %v5094 = vunpack.c.l.b16 %v3581
        %v5095 = vunpack.c.h.b16 %v3581
        %v5096 = vunpack.c.l.b16 %v3582
        %v5097 = vunpack.c.h.b16 %v3582
        %v5098 = vunpack.c.l.b16 %v3583
        %v5099 = vunpack.c.h.b16 %v3583
        %v5100 = vunpack.c.l.b16 %v3584
        %v5101 = vunpack.c.h.b16 %v3584
        %v5102 = vunpack.c.l.b16 %v3585
        %v5103 = vunpack.c.h.b16 %v3585
        %v5104 = vunpack.c.l.b16 %v3586
        %v5105 = vunpack.c.h.b16 %v3586
        %v5106 = vunpack.c.l.b16 %v3587
        %v5107 = vunpack.c.h.b16 %v3587
        %v5108 = vunpack.c.l.b16 %v3588
        %v5109 = vunpack.c.h.b16 %v3588
        %v5110 = vunpack.c.l.b16 %v3589
        %v5111 = vunpack.c.h.b16 %v3589
        %v5112 = vunpack.c.l.b16 %v3590
        %v5113 = vunpack.c.h.b16 %v3590
        %v5114 = vunpack.c.l.b16 %v3591
        %v5115 = vunpack.c.h.b16 %v3591
        %v5116 = vunpack.c.l.b16 %v3592
        %v5117 = vunpack.c.h.b16 %v3592
        %v5118 = vunpack.c.l.b16 %v3593
        %v5119 = vunpack.c.h.b16 %v3593
        %v5120 = vunpack.c.l.b16 %v3594
        %v5121 = vunpack.c.h.b16 %v3594
        %v5122 = vunpack.c.l.b16 %v3595
        %v5123 = vunpack.c.h.b16 %v3595
        %v5124 = vunpack.c.l.b16 %v3596
        %v5125 = vunpack.c.h.b16 %v3596
        %v5126 = vunpack.c.l.b16 %v3597
        %v5127 = vunpack.c.h.b16 %v3597
        %v5128 = vunpack.c.l.b16 %v3598
        %v5129 = vunpack.c.h.b16 %v3598
        %v5130 = vunpack.c.l.b16 %v3599
        %v5131 = vunpack.c.h.b16 %v3599
        %v5132 = vunpack.c.l.b16 %v3600
        %v5133 = vunpack.c.h.b16 %v3600
        %v5134 = vunpack.c.l.b16 %v3601
        %v5135 = vunpack.c.h.b16 %v3601
        %v5136 = vunpack.c.l.b16 %v3602
        %v5137 = vunpack.c.h.b16 %v3602
        %v5138 = vunpack.c.l.b16 %v3603
        %v5139 = vunpack.c.h.b16 %v3603
        %v5140 = vunpack.c.l.b16 %v3604
        %v5141 = vunpack.c.h.b16 %v3604
        %v5142 = vunpack.c.l.b16 %v3605
        %v5143 = vunpack.c.h.b16 %v3605
        %v5144 = vunpack.c.l.b16 %v3606
        %v5145 = vunpack.c.h.b16 %v3606
        %v5146 = vunpack.c.l.b16 %v3607
        %v5147 = vunpack.c.h.b16 %v3607
        %v5148 = vunpack.c.l.b16 %v3608
        %v5149 = vunpack.c.h.b16 %v3608
        %v5150 = vunpack.c.l.b16 %v3609
        %v5151 = vunpack.c.h.b16 %v3609
        %v5152 = vunpack.c.l.b16 %v3610
        %v5153 = vunpack.c.h.b16 %v3610
        %v5154 = vunpack.c.l.b16 %v3611
        %v5155 = vunpack.c.h.b16 %v3611
        %v5156 = vunpack.c.l.b16 %v3612
        %v5157 = vunpack.c.h.b16 %v3612
        %v5158 = vunpack.c.l.b16 %v3613
        %v5159 = vunpack.c.h.b16 %v3613
        %v5160 = vunpack.c.l.b16 %v3614
        %v5161 = vunpack.c.h.b16 %v3614
        %v5162 = vunpack.c.l.b16 %v3615
        %v5163 = vunpack.c.h.b16 %v3615
        %v5164 = vunpack.c.l.b16 %v3616
        %v5165 = vunpack.c.h.b16 %v3616
        %v5166 = vunpack.c.l.b16 %v3617
        %v5167 = vunpack.c.h.b16 %v3617
        %v5168 = vunpack.c.l.b16 %v3618
        %v5169 = vunpack.c.h.b16 %v3618
        %v5170 = vunpack.c.l.b16 %v3619
        %v5171 = vunpack.c.h.b16 %v3619
        %v5172 = vunpack.c.l.b16 %v3620
        %v5173 = vunpack.c.h.b16 %v3620
        %v5174 = vunpack.c.l.b16 %v3621
        %v5175 = vunpack.c.h.b16 %v3621
        %v5176 = vunpack.c.l.b16 %v3622
        %v5177 = vunpack.c.h.b16 %v3622
        %v5178 = vunpack.c.l.b16 %v3623
        %v5179 = vunpack.c.h.b16 %v3623
        %v5180 = vunpack.c.l.b16 %v3624
        %v5181 = vunpack.c.h.b16 %v3624
        %v5182 = vunpack.c.l.b16 %v3625
        %v5183 = vunpack.c.h.b16 %v3625
        %v5184 = vunpack.c.l.b16 %v3626
        %v5185 = vunpack.c.h.b16 %v3626
        %v5186 = vunpack.c.l.b16 %v3627
        %v5187 = vunpack.c.h.b16 %v3627
        %v5188 = vunpack.c.l.b16 %v3628
        %v5189 = vunpack.c.h.b16 %v3628
        %v5190 = vunpack.c.l.b16 %v3629
        %v5191 = vunpack.c.h.b16 %v3629
        %v5192 = vunpack.c.l.b16 %v3630
        %v5193 = vunpack.c.h.b16 %v3630
        %v5194 = vunpack.c.l.b16 %v3631
        %v5195 = vunpack.c.h.b16 %v3631
        %v5196 = vunpack.c.l.b16 %v3632
        %v5197 = vunpack.c.h.b16 %v3632
        %v5198 = vunpack.c.l.b16 %v3633
        %v5199 = vunpack.c.h.b16 %v3633
        %v5200 = vunpack.c.l.b16 %v3634
        %v5201 = vunpack.c.h.b16 %v3634
        %v5202 = vunpack.c.l.b16 %v3635
        %v5203 = vunpack.c.h.b16 %v3635
        %v5204 = vunpack.c.l.b16 %v3636
        %v5205 = vunpack.c.h.b16 %v3636
        %v5206 = vunpack.c.l.b16 %v3637
        %v5207 = vunpack.c.h.b16 %v3637
        %v5208 = vunpack.c.l.b16 %v3638
        %v5209 = vunpack.c.h.b16 %v3638
        %v5210 = vunpack.c.l.b16 %v3639
        %v5211 = vunpack.c.h.b16 %v3639
        %v5212 = vunpack.c.l.b16 %v3640
        %v5213 = vunpack.c.h.b16 %v3640
        %v5214 = vunpack.c.l.b16 %v3641
        %v5215 = vunpack.c.h.b16 %v3641
        %v5216 = vunpack.c.l.b16 %v3642
        %v5217 = vunpack.c.h.b16 %v3642
        %v5218 = vunpack.c.l.b16 %v3643
        %v5219 = vunpack.c.h.b16 %v3643
        %v5220 = vunpack.c.l.b16 %v3644
        %v5221 = vunpack.c.h.b16 %v3644
        %v5222 = vunpack.c.l.b16 %v3645
        %v5223 = vunpack.c.h.b16 %v3645
        %v5224 = vpack.c.b16 %v4208, %v4200
        %v5225 = vpack.c.b16 %v4209, %v4201
        %v5226 = vpack.c.b16 %v4210, %v4202
        %v5227 = vpack.c.b16 %v4211, %v4203
        %v5228 = vpack.c.b16 %v4212, %v4204
        %v5229 = vpack.c.b16 %v4213, %v4205
        %v5230 = vpack.c.b16 %v4214, %v4206
        %v5231 = vpack.c.b16 %v4215, %v4207
        %v5232 = vpack.c.b16 %v4224, %v4216
        %v5233 = vpack.c.b16 %v4225, %v4217
        %v5234 = vpack.c.b16 %v4226, %v4218
        %v5235 = vpack.c.b16 %v4227, %v4219
        %v5236 = vpack.c.b16 %v4228, %v4220
        %v5237 = vpack.c.b16 %v4229, %v4221
        %v5238 = vpack.c.b16 %v4230, %v4222
        %v5239 = vpack.c.b16 %v4231, %v4223
        %v5240 = vpack.c.b16 %v4240, %v4232
        %v5241 = vpack.c.b16 %v4241, %v4233
        %v5242 = vpack.c.b16 %v4242, %v4234
        %v5243 = vpack.c.b16 %v4243, %v4235
        %v5244 = vpack.c.b16 %v4244, %v4236
        %v5245 = vpack.c.b16 %v4245, %v4237
        %v5246 = vpack.c.b16 %v4246, %v4238
        %v5247 = vpack.c.b16 %v4247, %v4239
        %v5248 = vpack.c.b16 %v4256, %v4248
        %v5249 = vpack.c.b16 %v4257, %v4249
        %v5250 = vpack.c.b16 %v4258, %v4250
        %v5251 = vpack.c.b16 %v4259, %v4251
        %v5252 = vpack.c.b16 %v4260, %v4252
        %v5253 = vpack.c.b16 %v4261, %v4253
        %v5254 = vpack.c.b16 %v4262, %v4254
        %v5255 = vpack.c.b16 %v4263, %v4255
        %v5256 = vpack.c.b16 %v4272, %v4264
        %v5257 = vpack.c.b16 %v4273, %v4265
        %v5258 = vpack.c.b16 %v4274, %v4266
        %v5259 = vpack.c.b16 %v4275, %v4267
        %v5260 = vpack.c.b16 %v4276, %v4268
        %v5261 = vpack.c.b16 %v4277, %v4269
        %v5262 = vpack.c.b16 %v4278, %v4270
        %v5263 = vpack.c.b16 %v4279, %v4271
        %v5264 = vpack.c.b16 %v4288, %v4280
        %v5265 = vpack.c.b16 %v4289, %v4281
        %v5266 = vpack.c.b16 %v4290, %v4282
        %v5267 = vpack.c.b16 %v4291, %v4283
        %v5268 = vpack.c.b16 %v4292, %v4284
        %v5269 = vpack.c.b16 %v4293, %v4285
        %v5270 = vpack.c.b16 %v4294, %v4286
        %v5271 = vpack.c.b16 %v4295, %v4287
        %v5272 = vpack.c.b16 %v4304, %v4296
        %v5273 = vpack.c.b16 %v4305, %v4297
        %v5274 = vpack.c.b16 %v4306, %v4298
        %v5275 = vpack.c.b16 %v4307, %v4299
        %v5276 = vpack.c.b16 %v4308, %v4300
        %v5277 = vpack.c.b16 %v4309, %v4301
        %v5278 = vpack.c.b16 %v4310, %v4302
        %v5279 = vpack.c.b16 %v4311, %v4303
        %v5280 = vpack.c.b16 %v4320, %v4312
        %v5281 = vpack.c.b16 %v4321, %v4313
        %v5282 = vpack.c.b16 %v4322, %v4314
        %v5283 = vpack.c.b16 %v4323, %v4315
        %v5284 = vpack.c.b16 %v4324, %v4316
        %v5285 = vpack.c.b16 %v4325, %v4317
        %v5286 = vpack.c.b16 %v4326, %v4318
        %v5287 = vpack.c.b16 %v4327, %v4319
        %v5288 = vpack.c.b16 %v4336, %v4328
        %v5289 = vpack.c.b16 %v4337, %v4329
        %v5290 = vpack.c.b16 %v4338, %v4330
        %v5291 = vpack.c.b16 %v4339, %v4331
        %v5292 = vpack.c.b16 %v4340, %v4332
        %v5293 = vpack.c.b16 %v4341, %v4333
        %v5294 = vpack.c.b16 %v4342, %v4334
        %v5295 = vpack.c.b16 %v4343, %v4335
        %v5296 = vpack.c.b16 %v4352, %v4344
        %v5297 = vpack.c.b16 %v4353, %v4345
        %v5298 = vpack.c.b16 %v4354, %v4346
        %v5299 = vpack.c.b16 %v4355, %v4347
        %v5300 = vpack.c.b16 %v4356, %v4348
        %v5301 = vpack.c.b16 %v4357, %v4349
        %v5302 = vpack.c.b16 %v4358, %v4350
        %v5303 = vpack.c.b16 %v4359, %v4351
        %v5304 = vpack.c.b16 %v4368, %v4360
        %v5305 = vpack.c.b16 %v4369, %v4361
        %v5306 = vpack.c.b16 %v4370, %v4362
        %v5307 = vpack.c.b16 %v4371, %v4363
        %v5308 = vpack.c.b16 %v4372, %v4364
        %v5309 = vpack.c.b16 %v4373, %v4365
        %v5310 = vpack.c.b16 %v4374, %v4366
        %v5311 = vpack.c.b16 %v4375, %v4367
        %v5312 = vpack.c.b16 %v4384, %v4376
        %v5313 = vpack.c.b16 %v4385, %v4377
        %v5314 = vpack.c.b16 %v4386, %v4378
        %v5315 = vpack.c.b16 %v4387, %v4379
        %v5316 = vpack.c.b16 %v4388, %v4380
        %v5317 = vpack.c.b16 %v4389, %v4381
        %v5318 = vpack.c.b16 %v4390, %v4382
        %v5319 = vpack.c.b16 %v4391, %v4383
        %v5320 = vpack.c.b16 %v4400, %v4392
        %v5321 = vpack.c.b16 %v4401, %v4393
        %v5322 = vpack.c.b16 %v4402, %v4394
        %v5323 = vpack.c.b16 %v4403, %v4395
        %v5324 = vpack.c.b16 %v4404, %v4396
        %v5325 = vpack.c.b16 %v4405, %v4397
        %v5326 = vpack.c.b16 %v4406, %v4398
        %v5327 = vpack.c.b16 %v4407, %v4399
        %v5328 = vpack.c.b16 %v4416, %v4408
        %v5329 = vpack.c.b16 %v4417, %v4409
        %v5330 = vpack.c.b16 %v4418, %v4410
        %v5331 = vpack.c.b16 %v4419, %v4411
        %v5332 = vpack.c.b16 %v4420, %v4412
        %v5333 = vpack.c.b16 %v4421, %v4413
        %v5334 = vpack.c.b16 %v4422, %v4414
        %v5335 = vpack.c.b16 %v4423, %v4415
        %v5336 = vpack.c.b16 %v4432, %v4424
        %v5337 = vpack.c.b16 %v4433, %v4425
        %v5338 = vpack.c.b16 %v4434, %v4426
        %v5339 = vpack.c.b16 %v4435, %v4427
        %v5340 = vpack.c.b16 %v4436, %v4428
        %v5341 = vpack.c.b16 %v4437, %v4429
        %v5342 = vpack.c.b16 %v4438, %v4430
        %v5343 = vpack.c.b16 %v4439, %v4431
        %v5344 = vpack.c.b16 %v4448, %v4440
        %v5345 = vpack.c.b16 %v4449, %v4441
        %v5346 = vpack.c.b16 %v4450, %v4442
        %v5347 = vpack.c.b16 %v4451, %v4443
        %v5348 = vpack.c.b16 %v4452, %v4444
        %v5349 = vpack.c.b16 %v4453, %v4445
        %v5350 = vpack.c.b16 %v4454, %v4446
        %v5351 = vpack.c.b16 %v4455, %v4447
        %v5352 = vpack.c.b16 %v4464, %v4456
        %v5353 = vpack.c.b16 %v4465, %v4457
        %v5354 = vpack.c.b16 %v4466, %v4458
        %v5355 = vpack.c.b16 %v4467, %v4459
        %v5356 = vpack.c.b16 %v4468, %v4460
        %v5357 = vpack.c.b16 %v4469, %v4461
        %v5358 = vpack.c.b16 %v4470, %v4462
        %v5359 = vpack.c.b16 %v4471, %v4463
        %v5360 = vpack.c.b16 %v4480, %v4472
        %v5361 = vpack.c.b16 %v4481, %v4473
        %v5362 = vpack.c.b16 %v4482, %v4474
        %v5363 = vpack.c.b16 %v4483, %v4475
        %v5364 = vpack.c.b16 %v4484, %v4476
        %v5365 = vpack.c.b16 %v4485, %v4477
        %v5366 = vpack.c.b16 %v4486, %v4478
        %v5367 = vpack.c.b16 %v4487, %v4479
        %v5368 = vpack.c.b16 %v4496, %v4488
        %v5369 = vpack.c.b16 %v4497, %v4489
        %v5370 = vpack.c.b16 %v4498, %v4490
        %v5371 = vpack.c.b16 %v4499, %v4491
        %v5372 = vpack.c.b16 %v4500, %v4492
        %v5373 = vpack.c.b16 %v4501, %v4493
        %v5374 = vpack.c.b16 %v4502, %v4494
        %v5375 = vpack.c.b16 %v4503, %v4495
        %v5376 = vpack.c.b16 %v4512, %v4504
        %v5377 = vpack.c.b16 %v4513, %v4505
        %v5378 = vpack.c.b16 %v4514, %v4506
        %v5379 = vpack.c.b16 %v4515, %v4507
        %v5380 = vpack.c.b16 %v4516, %v4508
        %v5381 = vpack.c.b16 %v4517, %v4509
        %v5382 = vpack.c.b16 %v4518, %v4510
        %v5383 = vpack.c.b16 %v4519, %v4511
        %v5384 = vpack.c.b16 %v4528, %v4520
        %v5385 = vpack.c.b16 %v4529, %v4521
        %v5386 = vpack.c.b16 %v4530, %v4522
        %v5387 = vpack.c.b16 %v4531, %v4523
        %v5388 = vpack.c.b16 %v4532, %v4524
        %v5389 = vpack.c.b16 %v4533, %v4525
        %v5390 = vpack.c.b16 %v4534, %v4526
        %v5391 = vpack.c.b16 %v4535, %v4527
        %v5392 = vpack.c.b16 %v4544, %v4536
        %v5393 = vpack.c.b16 %v4545, %v4537
        %v5394 = vpack.c.b16 %v4546, %v4538
        %v5395 = vpack.c.b16 %v4547, %v4539
        %v5396 = vpack.c.b16 %v4548, %v4540
        %v5397 = vpack.c.b16 %v4549, %v4541
        %v5398 = vpack.c.b16 %v4550, %v4542
        %v5399 = vpack.c.b16 %v4551, %v4543
        %v5400 = vpack.c.b16 %v4560, %v4552
        %v5401 = vpack.c.b16 %v4561, %v4553
        %v5402 = vpack.c.b16 %v4562, %v4554
        %v5403 = vpack.c.b16 %v4563, %v4555
        %v5404 = vpack.c.b16 %v4564, %v4556
        %v5405 = vpack.c.b16 %v4565, %v4557
        %v5406 = vpack.c.b16 %v4566, %v4558
        %v5407 = vpack.c.b16 %v4567, %v4559
        %v5408 = vpack.c.b16 %v4576, %v4568
        %v5409 = vpack.c.b16 %v4577, %v4569
        %v5410 = vpack.c.b16 %v4578, %v4570
        %v5411 = vpack.c.b16 %v4579, %v4571
        %v5412 = vpack.c.b16 %v4580, %v4572
        %v5413 = vpack.c.b16 %v4581, %v4573
        %v5414 = vpack.c.b16 %v4582, %v4574
        %v5415 = vpack.c.b16 %v4583, %v4575
        %v5416 = vpack.c.b16 %v4592, %v4584
        %v5417 = vpack.c.b16 %v4593, %v4585
        %v5418 = vpack.c.b16 %v4594, %v4586
        %v5419 = vpack.c.b16 %v4595, %v4587
        %v5420 = vpack.c.b16 %v4596, %v4588
        %v5421 = vpack.c.b16 %v4597, %v4589
        %v5422 = vpack.c.b16 %v4598, %v4590
        %v5423 = vpack.c.b16 %v4599, %v4591
        %v5424 = vpack.c.b16 %v4608, %v4600
        %v5425 = vpack.c.b16 %v4609, %v4601
        %v5426 = vpack.c.b16 %v4610, %v4602
        %v5427 = vpack.c.b16 %v4611, %v4603
        %v5428 = vpack.c.b16 %v4612, %v4604
        %v5429 = vpack.c.b16 %v4613, %v4605
        %v5430 = vpack.c.b16 %v4614, %v4606
        %v5431 = vpack.c.b16 %v4615, %v4607
        %v5432 = vpack.c.b16 %v4624, %v4616
        %v5433 = vpack.c.b16 %v4625, %v4617
        %v5434 = vpack.c.b16 %v4626, %v4618
        %v5435 = vpack.c.b16 %v4627, %v4619
        %v5436 = vpack.c.b16 %v4628, %v4620
        %v5437 = vpack.c.b16 %v4629, %v4621
        %v5438 = vpack.c.b16 %v4630, %v4622
        %v5439 = vpack.c.b16 %v4631, %v4623
        %v5440 = vpack.c.b16 %v4640, %v4632
        %v5441 = vpack.c.b16 %v4641, %v4633
        %v5442 = vpack.c.b16 %v4642, %v4634
        %v5443 = vpack.c.b16 %v4643, %v4635
        %v5444 = vpack.c.b16 %v4644, %v4636
        %v5445 = vpack.c.b16 %v4645, %v4637
        %v5446 = vpack.c.b16 %v4646, %v4638
        %v5447 = vpack.c.b16 %v4647, %v4639
        %v5448 = vpack.c.b16 %v4656, %v4648
        %v5449 = vpack.c.b16 %v4657, %v4649
        %v5450 = vpack.c.b16 %v4658, %v4650
        %v5451 = vpack.c.b16 %v4659, %v4651
        %v5452 = vpack.c.b16 %v4660, %v4652
        %v5453 = vpack.c.b16 %v4661, %v4653
        %v5454 = vpack.c.b16 %v4662, %v4654
        %v5455 = vpack.c.b16 %v4663, %v4655
        %v5456 = vpack.c.b16 %v4672, %v4664
        %v5457 = vpack.c.b16 %v4673, %v4665
        %v5458 = vpack.c.b16 %v4674, %v4666
        %v5459 = vpack.c.b16 %v4675, %v4667
        %v5460 = vpack.c.b16 %v4676, %v4668
        %v5461 = vpack.c.b16 %v4677, %v4669
        %v5462 = vpack.c.b16 %v4678, %v4670
        %v5463 = vpack.c.b16 %v4679, %v4671
        %v5464 = vpack.c.b16 %v4688, %v4680
        %v5465 = vpack.c.b16 %v4689, %v4681
        %v5466 = vpack.c.b16 %v4690, %v4682
        %v5467 = vpack.c.b16 %v4691, %v4683
        %v5468 = vpack.c.b16 %v4692, %v4684
        %v5469 = vpack.c.b16 %v4693, %v4685
        %v5470 = vpack.c.b16 %v4694, %v4686
        %v5471 = vpack.c.b16 %v4695, %v4687
        %v5472 = vpack.c.b16 %v4704, %v4696
        %v5473 = vpack.c.b16 %v4705, %v4697
        %v5474 = vpack.c.b16 %v4706, %v4698
        %v5475 = vpack.c.b16 %v4707, %v4699
        %v5476 = vpack.c.b16 %v4708, %v4700
        %v5477 = vpack.c.b16 %v4709, %v4701
        %v5478 = vpack.c.b16 %v4710, %v4702
        %v5479 = vpack.c.b16 %v4711, %v4703
        %v5480 = vpack.c.b16 %v4720, %v4712
        %v5481 = vpack.c.b16 %v4721, %v4713
        %v5482 = vpack.c.b16 %v4722, %v4714
        %v5483 = vpack.c.b16 %v4723, %v4715
        %v5484 = vpack.c.b16 %v4724, %v4716
        %v5485 = vpack.c.b16 %v4725, %v4717
        %v5486 = vpack.c.b16 %v4726, %v4718
        %v5487 = vpack.c.b16 %v4727, %v4719
        %v5488 = vpack.c.b16 %v4736, %v4728
        %v5489 = vpack.c.b16 %v4737, %v4729
        %v5490 = vpack.c.b16 %v4738, %v4730
        %v5491 = vpack.c.b16 %v4739, %v4731
        %v5492 = vpack.c.b16 %v4740, %v4732
        %v5493 = vpack.c.b16 %v4741, %v4733
        %v5494 = vpack.c.b16 %v4742, %v4734
        %v5495 = vpack.c.b16 %v4743, %v4735
        %v5496 = vpack.c.b16 %v4752, %v4744
        %v5497 = vpack.c.b16 %v4753, %v4745
        %v5498 = vpack.c.b16 %v4754, %v4746
        %v5499 = vpack.c.b16 %v4755, %v4747
        %v5500 = vpack.c.b16 %v4756, %v4748
        %v5501 = vpack.c.b16 %v4757, %v4749
        %v5502 = vpack.c.b16 %v4758, %v4750
        %v5503 = vpack.c.b16 %v4759, %v4751
        %v5504 = vpack.c.b16 %v4768, %v4760
        %v5505 = vpack.c.b16 %v4769, %v4761
        %v5506 = vpack.c.b16 %v4770, %v4762
        %v5507 = vpack.c.b16 %v4771, %v4763
        %v5508 = vpack.c.b16 %v4772, %v4764
        %v5509 = vpack.c.b16 %v4773, %v4765
        %v5510 = vpack.c.b16 %v4774, %v4766
        %v5511 = vpack.c.b16 %v4775, %v4767
        %v5512 = vpack.c.b16 %v4784, %v4776
        %v5513 = vpack.c.b16 %v4785, %v4777
        %v5514 = vpack.c.b16 %v4786, %v4778
        %v5515 = vpack.c.b16 %v4787, %v4779
        %v5516 = vpack.c.b16 %v4788, %v4780
        %v5517 = vpack.c.b16 %v4789, %v4781
        %v5518 = vpack.c.b16 %v4790, %v4782
        %v5519 = vpack.c.b16 %v4791, %v4783
        %v5520 = vpack.c.b16 %v4800, %v4792
        %v5521 = vpack.c.b16 %v4801, %v4793
        %v5522 = vpack.c.b16 %v4802, %v4794
        %v5523 = vpack.c.b16 %v4803, %v4795
        %v5524 = vpack.c.b16 %v4804, %v4796
        %v5525 = vpack.c.b16 %v4805, %v4797
        %v5526 = vpack.c.b16 %v4806, %v4798
        %v5527 = vpack.c.b16 %v4807, %v4799
        %v5528 = vpack.c.b16 %v4816, %v4808
        %v5529 = vpack.c.b16 %v4817, %v4809
        %v5530 = vpack.c.b16 %v4818, %v4810
        %v5531 = vpack.c.b16 %v4819, %v4811
        %v5532 = vpack.c.b16 %v4820, %v4812
        %v5533 = vpack.c.b16 %v4821, %v4813
        %v5534 = vpack.c.b16 %v4822, %v4814
        %v5535 = vpack.c.b16 %v4823, %v4815
        %v5536 = vpack.c.b16 %v4832, %v4824
        %v5537 = vpack.c.b16 %v4833, %v4825
        %v5538 = vpack.c.b16 %v4834, %v4826
        %v5539 = vpack.c.b16 %v4835, %v4827
        %v5540 = vpack.c.b16 %v4836, %v4828
        %v5541 = vpack.c.b16 %v4837, %v4829
        %v5542 = vpack.c.b16 %v4838, %v4830
        %v5543 = vpack.c.b16 %v4839, %v4831
        %v5544 = vpack.c.b16 %v4848, %v4840
        %v5545 = vpack.c.b16 %v4849, %v4841
        %v5546 = vpack.c.b16 %v4850, %v4842
        %v5547 = vpack.c.b16 %v4851, %v4843
        %v5548 = vpack.c.b16 %v4852, %v4844
        %v5549 = vpack.c.b16 %v4853, %v4845
        %v5550 = vpack.c.b16 %v4854, %v4846
        %v5551 = vpack.c.b16 %v4855, %v4847
        %v5552 = vpack.c.b16 %v4864, %v4856
        %v5553 = vpack.c.b16 %v4865, %v4857
        %v5554 = vpack.c.b16 %v4866, %v4858
        %v5555 = vpack.c.b16 %v4867, %v4859
        %v5556 = vpack.c.b16 %v4868, %v4860
        %v5557 = vpack.c.b16 %v4869, %v4861
        %v5558 = vpack.c.b16 %v4870, %v4862
        %v5559 = vpack.c.b16 %v4871, %v4863
        %v5560 = vpack.c.b16 %v4880, %v4872
        %v5561 = vpack.c.b16 %v4881, %v4873
        %v5562 = vpack.c.b16 %v4882, %v4874
        %v5563 = vpack.c.b16 %v4883, %v4875
        %v5564 = vpack.c.b16 %v4884, %v4876
        %v5565 = vpack.c.b16 %v4885, %v4877
        %v5566 = vpack.c.b16 %v4886, %v4878
        %v5567 = vpack.c.b16 %v4887, %v4879
        %v5568 = vpack.c.b16 %v4896, %v4888
        %v5569 = vpack.c.b16 %v4897, %v4889
        %v5570 = vpack.c.b16 %v4898, %v4890
        %v5571 = vpack.c.b16 %v4899, %v4891
        %v5572 = vpack.c.b16 %v4900, %v4892
        %v5573 = vpack.c.b16 %v4901, %v4893
        %v5574 = vpack.c.b16 %v4902, %v4894
        %v5575 = vpack.c.b16 %v4903, %v4895
        %v5576 = vpack.c.b16 %v4912, %v4904
        %v5577 = vpack.c.b16 %v4913, %v4905
        %v5578 = vpack.c.b16 %v4914, %v4906
        %v5579 = vpack.c.b16 %v4915, %v4907
        %v5580 = vpack.c.b16 %v4916, %v4908
        %v5581 = vpack.c.b16 %v4917, %v4909
        %v5582 = vpack.c.b16 %v4918, %v4910
        %v5583 = vpack.c.b16 %v4919, %v4911
        %v5584 = vpack.c.b16 %v4928, %v4920
        %v5585 = vpack.c.b16 %v4929, %v4921
        %v5586 = vpack.c.b16 %v4930, %v4922
        %v5587 = vpack.c.b16 %v4931, %v4923
        %v5588 = vpack.c.b16 %v4932, %v4924
        %v5589 = vpack.c.b16 %v4933, %v4925
        %v5590 = vpack.c.b16 %v4934, %v4926
        %v5591 = vpack.c.b16 %v4935, %v4927
        %v5592 = vpack.c.b16 %v4944, %v4936
        %v5593 = vpack.c.b16 %v4945, %v4937
        %v5594 = vpack.c.b16 %v4946, %v4938
        %v5595 = vpack.c.b16 %v4947, %v4939
        %v5596 = vpack.c.b16 %v4948, %v4940
        %v5597 = vpack.c.b16 %v4949, %v4941
        %v5598 = vpack.c.b16 %v4950, %v4942
        %v5599 = vpack.c.b16 %v4951, %v4943
        %v5600 = vpack.c.b16 %v4960, %v4952
        %v5601 = vpack.c.b16 %v4961, %v4953
        %v5602 = vpack.c.b16 %v4962, %v4954
        %v5603 = vpack.c.b16 %v4963, %v4955
        %v5604 = vpack.c.b16 %v4964, %v4956
        %v5605 = vpack.c.b16 %v4965, %v4957
        %v5606 = vpack.c.b16 %v4966, %v4958
        %v5607 = vpack.c.b16 %v4967, %v4959
        %v5608 = vpack.c.b16 %v4976, %v4968
        %v5609 = vpack.c.b16 %v4977, %v4969
        %v5610 = vpack.c.b16 %v4978, %v4970
        %v5611 = vpack.c.b16 %v4979, %v4971
        %v5612 = vpack.c.b16 %v4980, %v4972
        %v5613 = vpack.c.b16 %v4981, %v4973
        %v5614 = vpack.c.b16 %v4982, %v4974
        %v5615 = vpack.c.b16 %v4983, %v4975
        %v5616 = vpack.c.b16 %v4992, %v4984
        %v5617 = vpack.c.b16 %v4993, %v4985
        %v5618 = vpack.c.b16 %v4994, %v4986
        %v5619 = vpack.c.b16 %v4995, %v4987
        %v5620 = vpack.c.b16 %v4996, %v4988
        %v5621 = vpack.c.b16 %v4997, %v4989
        %v5622 = vpack.c.b16 %v4998, %v4990
        %v5623 = vpack.c.b16 %v4999, %v4991
        %v5624 = vpack.c.b16 %v5008, %v5000
        %v5625 = vpack.c.b16 %v5009, %v5001
        %v5626 = vpack.c.b16 %v5010, %v5002
        %v5627 = vpack.c.b16 %v5011, %v5003
        %v5628 = vpack.c.b16 %v5012, %v5004
        %v5629 = vpack.c.b16 %v5013, %v5005
        %v5630 = vpack.c.b16 %v5014, %v5006
        %v5631 = vpack.c.b16 %v5015, %v5007
        %v5632 = vpack.c.b16 %v5024, %v5016
        %v5633 = vpack.c.b16 %v5025, %v5017
        %v5634 = vpack.c.b16 %v5026, %v5018
        %v5635 = vpack.c.b16 %v5027, %v5019
        %v5636 = vpack.c.b16 %v5028, %v5020
        %v5637 = vpack.c.b16 %v5029, %v5021
        %v5638 = vpack.c.b16 %v5030, %v5022
        %v5639 = vpack.c.b16 %v5031, %v5023
        %v5640 = vpack.c.b16 %v5040, %v5032
        %v5641 = vpack.c.b16 %v5041, %v5033
        %v5642 = vpack.c.b16 %v5042, %v5034
        %v5643 = vpack.c.b16 %v5043, %v5035
        %v5644 = vpack.c.b16 %v5044, %v5036
        %v5645 = vpack.c.b16 %v5045, %v5037
        %v5646 = vpack.c.b16 %v5046, %v5038
        %v5647 = vpack.c.b16 %v5047, %v5039
        %v5648 = vpack.c.b16 %v5056, %v5048
        %v5649 = vpack.c.b16 %v5057, %v5049
        %v5650 = vpack.c.b16 %v5058, %v5050
        %v5651 = vpack.c.b16 %v5059, %v5051
        %v5652 = vpack.c.b16 %v5060, %v5052
        %v5653 = vpack.c.b16 %v5061, %v5053
        %v5654 = vpack.c.b16 %v5062, %v5054
        %v5655 = vpack.c.b16 %v5063, %v5055
        %v5656 = vpack.c.b16 %v5072, %v5064
        %v5657 = vpack.c.b16 %v5073, %v5065
        %v5658 = vpack.c.b16 %v5074, %v5066
        %v5659 = vpack.c.b16 %v5075, %v5067
        %v5660 = vpack.c.b16 %v5076, %v5068
        %v5661 = vpack.c.b16 %v5077, %v5069
        %v5662 = vpack.c.b16 %v5078, %v5070
        %v5663 = vpack.c.b16 %v5079, %v5071
        %v5664 = vpack.c.b16 %v5088, %v5080
        %v5665 = vpack.c.b16 %v5089, %v5081
        %v5666 = vpack.c.b16 %v5090, %v5082
        %v5667 = vpack.c.b16 %v5091, %v5083
        %v5668 = vpack.c.b16 %v5092, %v5084
        %v5669 = vpack.c.b16 %v5093, %v5085
        %v5670 = vpack.c.b16 %v5094, %v5086
        %v5671 = vpack.c.b16 %v5095, %v5087
        %v5672 = vpack.c.b16 %v5104, %v5096
        %v5673 = vpack.c.b16 %v5105, %v5097
        %v5674 = vpack.c.b16 %v5106, %v5098
        %v5675 = vpack.c.b16 %v5107, %v5099
        %v5676 = vpack.c.b16 %v5108, %v5100
        %v5677 = vpack.c.b16 %v5109, %v5101
        %v5678 = vpack.c.b16 %v5110, %v5102
        %v5679 = vpack.c.b16 %v5111, %v5103
        %v5680 = vpack.c.b16 %v5120, %v5112
        %v5681 = vpack.c.b16 %v5121, %v5113
        %v5682 = vpack.c.b16 %v5122, %v5114
        %v5683 = vpack.c.b16 %v5123, %v5115
        %v5684 = vpack.c.b16 %v5124, %v5116
        %v5685 = vpack.c.b16 %v5125, %v5117
        %v5686 = vpack.c.b16 %v5126, %v5118
        %v5687 = vpack.c.b16 %v5127, %v5119
        %v5688 = vpack.c.b16 %v5136, %v5128
        %v5689 = vpack.c.b16 %v5137, %v5129
        %v5690 = vpack.c.b16 %v5138, %v5130
        %v5691 = vpack.c.b16 %v5139, %v5131
        %v5692 = vpack.c.b16 %v5140, %v5132
        %v5693 = vpack.c.b16 %v5141, %v5133
        %v5694 = vpack.c.b16 %v5142, %v5134
        %v5695 = vpack.c.b16 %v5143, %v5135
        %v5696 = vpack.c.b16 %v5152, %v5144
        %v5697 = vpack.c.b16 %v5153, %v5145
        %v5698 = vpack.c.b16 %v5154, %v5146
        %v5699 = vpack.c.b16 %v5155, %v5147
        %v5700 = vpack.c.b16 %v5156, %v5148
        %v5701 = vpack.c.b16 %v5157, %v5149
        %v5702 = vpack.c.b16 %v5158, %v5150
        %v5703 = vpack.c.b16 %v5159, %v5151
        %v5704 = vpack.c.b16 %v5168, %v5160
        %v5705 = vpack.c.b16 %v5169, %v5161
        %v5706 = vpack.c.b16 %v5170, %v5162
        %v5707 = vpack.c.b16 %v5171, %v5163
        %v5708 = vpack.c.b16 %v5172, %v5164
        %v5709 = vpack.c.b16 %v5173, %v5165
        %v5710 = vpack.c.b16 %v5174, %v5166
        %v5711 = vpack.c.b16 %v5175, %v5167
        %v5712 = vpack.c.b16 %v5184, %v5176
        %v5713 = vpack.c.b16 %v5185, %v5177
        %v5714 = vpack.c.b16 %v5186, %v5178
        %v5715 = vpack.c.b16 %v5187, %v5179
        %v5716 = vpack.c.b16 %v5188, %v5180
        %v5717 = vpack.c.b16 %v5189, %v5181
        %v5718 = vpack.c.b16 %v5190, %v5182
        %v5719 = vpack.c.b16 %v5191, %v5183
        %v5720 = vpack.c.b16 %v5200, %v5192
        %v5721 = vpack.c.b16 %v5201, %v5193
        %v5722 = vpack.c.b16 %v5202, %v5194
        %v5723 = vpack.c.b16 %v5203, %v5195
        %v5724 = vpack.c.b16 %v5204, %v5196
        %v5725 = vpack.c.b16 %v5205, %v5197
        %v5726 = vpack.c.b16 %v5206, %v5198
        %v5727 = vpack.c.b16 %v5207, %v5199
        %v5728 = vpack.c.b16 %v5216, %v5208
        %v5729 = vpack.c.b16 %v5217, %v5209
        %v5730 = vpack.c.b16 %v5218, %v5210
        %v5731 = vpack.c.b16 %v5219, %v5211
        %v5732 = vpack.c.b16 %v5220, %v5212
        %v5733 = vpack.c.b16 %v5221, %v5213
        %v5734 = vpack.c.b16 %v5222, %v5214
        %v5735 = vpack.c.b16 %v5223, %v5215
        %6248 = vmatprep.subr.bf16.mxu0 %v5281
        %6249 = vmatpush1.bf16.msra.mxu0 %v5280
        %6250 = vmatprep.subr.bf16.mxu0 %v5273
        %6251 = vmatpush1.bf16.msra.mxu0 %v5272
        %6252 = vmatprep.subr.bf16.mxu0 %v5265
        %6253 = vmatpush1.bf16.msra.mxu0 %v5264
        %6254 = vmatprep.subr.bf16.mxu0 %v5257
        %6255 = vmatpush1.bf16.msra.mxu0 %v5256
        %6256 = vmatprep.subr.bf16.mxu0 %v5249
        %6257 = vmatpush1.bf16.msra.mxu0 %v5248
        %6258 = vmatprep.subr.bf16.mxu0 %v5241
        %6259 = vmatpush1.bf16.msra.mxu0 %v5240
        %6260 = vmatprep.subr.bf16.mxu0 %v5233
        %6261 = vmatpush1.bf16.msra.mxu0 %v5232
        %6262 = vmatprep.subr.bf16.mxu0 %v5225
        %6263 = vmatpush1.bf16.msra.mxu0 %v5224
        %6264 = vmatprep.subr.bf16.mxu0 %v5345
        %6265 = vmatpush2.bf16.msra.mxu0 %v5344
        %6266 = vmatprep.subr.bf16.mxu0 %v5337
        %6267 = vmatpush2.bf16.msra.mxu0 %v5336
        %6268 = vmatprep.subr.bf16.mxu0 %v5329
        %6269 = vmatpush2.bf16.msra.mxu0 %v5328
        %6270 = vmatprep.subr.bf16.mxu0 %v5321
        %6271 = vmatpush2.bf16.msra.mxu0 %v5320
        %6272 = vmatprep.subr.bf16.mxu0 %v5313
        %6273 = vmatpush2.bf16.msra.mxu0 %v5312
        %6274 = vmatprep.subr.bf16.mxu0 %v5305
        %6275 = vmatpush2.bf16.msra.mxu0 %v5304
        %6276 = vmatprep.subr.bf16.mxu0 %v5297
        %6277 = vmatpush2.bf16.msra.mxu0 %v5296
        %6278 = vmatprep.subr.bf16.mxu0 %v5289
        %6279 = vmatpush2.bf16.msra.mxu0 %v5288
        %6280 = vmatprep.mubr.bf16.mxu0 %v3127
        %6281 = vmatmul.mubr.bf16.gmra.mxu0 %v3126
        %v6282 = vpop.f32.mrf.mxu0
        %v6283 = vadd.f32 %v3651, %v6282
        %v6284 = vpop.f32.mrf.mxu0
        %v6285 = vadd.f32 %v3655, %v6284
        %v6286 = vpop.f32.mrf.mxu0
        %v6287 = vpop.f32.mrf.mxu0
        %6288 = vdwg.mxu0
        %6289 = vmatprep.subr.bf16.mxu0 %v5409
        %6290 = vmatpush1.bf16.msra.mxu0 %v5408
        %6291 = vmatprep.subr.bf16.mxu0 %v5401
        %6292 = vmatpush1.bf16.msra.mxu0 %v5400
        %6293 = vmatprep.subr.bf16.mxu0 %v5393
        %6294 = vmatpush1.bf16.msra.mxu0 %v5392
        %6295 = vmatprep.subr.bf16.mxu0 %v5385
        %6296 = vmatpush1.bf16.msra.mxu0 %v5384
        %6297 = vmatprep.subr.bf16.mxu0 %v5377
        %6298 = vmatpush1.bf16.msra.mxu0 %v5376
        %6299 = vmatprep.subr.bf16.mxu0 %v5369
        %6300 = vmatpush1.bf16.msra.mxu0 %v5368
        %6301 = vmatprep.subr.bf16.mxu0 %v5361
        %6302 = vmatpush1.bf16.msra.mxu0 %v5360
        %6303 = vmatprep.subr.bf16.mxu0 %v5353
        %6304 = vmatpush1.bf16.msra.mxu0 %v5352
        %6305 = vmatprep.subr.bf16.mxu0 %v5473
        %6306 = vmatpush2.bf16.msra.mxu0 %v5472
        %6307 = vmatprep.subr.bf16.mxu0 %v5465
        %6308 = vmatpush2.bf16.msra.mxu0 %v5464
        %6309 = vmatprep.subr.bf16.mxu0 %v5457
        %6310 = vmatpush2.bf16.msra.mxu0 %v5456
        %6311 = vmatprep.subr.bf16.mxu0 %v5449
        %6312 = vmatpush2.bf16.msra.mxu0 %v5448
        %6313 = vmatprep.subr.bf16.mxu0 %v5441
        %6314 = vmatpush2.bf16.msra.mxu0 %v5440
        %6315 = vmatprep.subr.bf16.mxu0 %v5433
        %6316 = vmatpush2.bf16.msra.mxu0 %v5432
        %6317 = vmatprep.subr.bf16.mxu0 %v5425
        %6318 = vmatpush2.bf16.msra.mxu0 %v5424
        %6319 = vmatprep.subr.bf16.mxu0 %v5417
        %6320 = vmatpush2.bf16.msra.mxu0 %v5416
        %6321 = vmatprep.mubr.bf16.mxu0 %v3129
        %6322 = vmatmul.mubr.bf16.gmra.mxu0 %v3128
        %v6323 = vpop.f32.mrf.mxu0
        %v6324 = vadd.f32 %v6283, %v6323
        %v6325 = vpop.f32.mrf.mxu0
        %v6326 = vadd.f32 %v6285, %v6325
        %v6327 = vpop.f32.mrf.mxu0
        %v6328 = vpop.f32.mrf.mxu0
        %6329 = vdwg.mxu0
        %6330 = vmatprep.subr.bf16.mxu0 %v5537
        %6331 = vmatpush1.bf16.msra.mxu0 %v5536
        %6332 = vmatprep.subr.bf16.mxu0 %v5529
        %6333 = vmatpush1.bf16.msra.mxu0 %v5528
        %6334 = vmatprep.subr.bf16.mxu0 %v5521
        %6335 = vmatpush1.bf16.msra.mxu0 %v5520
        %6336 = vmatprep.subr.bf16.mxu0 %v5513
        %6337 = vmatpush1.bf16.msra.mxu0 %v5512
        %6338 = vmatprep.subr.bf16.mxu0 %v5505
        %6339 = vmatpush1.bf16.msra.mxu0 %v5504
        %6340 = vmatprep.subr.bf16.mxu0 %v5497
        %6341 = vmatpush1.bf16.msra.mxu0 %v5496
        %6342 = vmatprep.subr.bf16.mxu0 %v5489
        %6343 = vmatpush1.bf16.msra.mxu0 %v5488
        %6344 = vmatprep.subr.bf16.mxu0 %v5481
        %6345 = vmatpush1.bf16.msra.mxu0 %v5480
        %6346 = vmatprep.subr.bf16.mxu0 %v5601
        %6347 = vmatpush2.bf16.msra.mxu0 %v5600
        %6348 = vmatprep.subr.bf16.mxu0 %v5593
        %6349 = vmatpush2.bf16.msra.mxu0 %v5592
        %6350 = vmatprep.subr.bf16.mxu0 %v5585
        %6351 = vmatpush2.bf16.msra.mxu0 %v5584
        %6352 = vmatprep.subr.bf16.mxu0 %v5577
        %6353 = vmatpush2.bf16.msra.mxu0 %v5576
        %6354 = vmatprep.subr.bf16.mxu0 %v5569
        %6355 = vmatpush2.bf16.msra.mxu0 %v5568
        %6356 = vmatprep.subr.bf16.mxu0 %v5561
        %6357 = vmatpush2.bf16.msra.mxu0 %v5560
        %6358 = vmatprep.subr.bf16.mxu0 %v5553
        %6359 = vmatpush2.bf16.msra.mxu0 %v5552
        %6360 = vmatprep.subr.bf16.mxu0 %v5545
        %6361 = vmatpush2.bf16.msra.mxu0 %v5544
        %6362 = vmatprep.mubr.bf16.mxu0 %v3131
        %6363 = vmatmul.mubr.bf16.gmra.mxu0 %v3130
        %v6364 = vpop.f32.mrf.mxu0
        %v6365 = vadd.f32 %v6324, %v6364
        %v6366 = vpop.f32.mrf.mxu0
        %v6367 = vadd.f32 %v6326, %v6366
        %v6368 = vpop.f32.mrf.mxu0
        %v6369 = vpop.f32.mrf.mxu0
        %6370 = vdwg.mxu0
        %6371 = vmatprep.subr.bf16.mxu0 %v5665
        %6372 = vmatpush1.bf16.msra.mxu0 %v5664
        %6373 = vmatprep.subr.bf16.mxu0 %v5657
        %6374 = vmatpush1.bf16.msra.mxu0 %v5656
        %6375 = vmatprep.subr.bf16.mxu0 %v5649
        %6376 = vmatpush1.bf16.msra.mxu0 %v5648
        %6377 = vmatprep.subr.bf16.mxu0 %v5641
        %6378 = vmatpush1.bf16.msra.mxu0 %v5640
        %6379 = vmatprep.subr.bf16.mxu0 %v5633
        %6380 = vmatpush1.bf16.msra.mxu0 %v5632
        %6381 = vmatprep.subr.bf16.mxu0 %v5625
        %6382 = vmatpush1.bf16.msra.mxu0 %v5624
        %6383 = vmatprep.subr.bf16.mxu0 %v5617
        %6384 = vmatpush1.bf16.msra.mxu0 %v5616
        %6385 = vmatprep.subr.bf16.mxu0 %v5609
        %6386 = vmatpush1.bf16.msra.mxu0 %v5608
        %6387 = vmatprep.subr.bf16.mxu0 %v5729
        %6388 = vmatpush2.bf16.msra.mxu0 %v5728
        %6389 = vmatprep.subr.bf16.mxu0 %v5721
        %6390 = vmatpush2.bf16.msra.mxu0 %v5720
        %6391 = vmatprep.subr.bf16.mxu0 %v5713
        %6392 = vmatpush2.bf16.msra.mxu0 %v5712
        %6393 = vmatprep.subr.bf16.mxu0 %v5705
        %6394 = vmatpush2.bf16.msra.mxu0 %v5704
        %6395 = vmatprep.subr.bf16.mxu0 %v5697
        %6396 = vmatpush2.bf16.msra.mxu0 %v5696
        %6397 = vmatprep.subr.bf16.mxu0 %v5689
        %6398 = vmatpush2.bf16.msra.mxu0 %v5688
        %6399 = vmatprep.subr.bf16.mxu0 %v5681
        %6400 = vmatpush2.bf16.msra.mxu0 %v5680
        %6401 = vmatprep.subr.bf16.mxu0 %v5673
        %6402 = vmatpush2.bf16.msra.mxu0 %v5672
        %6403 = vmatprep.mubr.bf16.mxu0 %v3133
        %6404 = vmatmul.mubr.bf16.gmra.mxu0 %v3132
        %v6405 = vpop.f32.mrf.mxu0
        %v6406 = vadd.f32 %v6365, %v6405
        %v6407 = vpop.f32.mrf.mxu0
        %v6408 = vadd.f32 %v6367, %v6407
        %v6409 = vpop.f32.mrf.mxu0
        %v6410 = vpop.f32.mrf.mxu0
        %6411 = vdwg.mxu0
        %6412 = vmatprep.subr.bf16.mxu0 %v5283
        %6413 = vmatpush1.bf16.msra.mxu0 %v5282
        %6414 = vmatprep.subr.bf16.mxu0 %v5275
        %6415 = vmatpush1.bf16.msra.mxu0 %v5274
        %6416 = vmatprep.subr.bf16.mxu0 %v5267
        %6417 = vmatpush1.bf16.msra.mxu0 %v5266
        %6418 = vmatprep.subr.bf16.mxu0 %v5259
        %6419 = vmatpush1.bf16.msra.mxu0 %v5258
        %6420 = vmatprep.subr.bf16.mxu0 %v5251
        %6421 = vmatpush1.bf16.msra.mxu0 %v5250
        %6422 = vmatprep.subr.bf16.mxu0 %v5243
        %6423 = vmatpush1.bf16.msra.mxu0 %v5242
        %6424 = vmatprep.subr.bf16.mxu0 %v5235
        %6425 = vmatpush1.bf16.msra.mxu0 %v5234
        %6426 = vmatprep.subr.bf16.mxu0 %v5227
        %6427 = vmatpush1.bf16.msra.mxu0 %v5226
        %6428 = vmatprep.subr.bf16.mxu0 %v5347
        %6429 = vmatpush2.bf16.msra.mxu0 %v5346
        %6430 = vmatprep.subr.bf16.mxu0 %v5339
        %6431 = vmatpush2.bf16.msra.mxu0 %v5338
        %6432 = vmatprep.subr.bf16.mxu0 %v5331
        %6433 = vmatpush2.bf16.msra.mxu0 %v5330
        %6434 = vmatprep.subr.bf16.mxu0 %v5323
        %6435 = vmatpush2.bf16.msra.mxu0 %v5322
        %6436 = vmatprep.subr.bf16.mxu0 %v5315
        %6437 = vmatpush2.bf16.msra.mxu0 %v5314
        %6438 = vmatprep.subr.bf16.mxu0 %v5307
        %6439 = vmatpush2.bf16.msra.mxu0 %v5306
        %6440 = vmatprep.subr.bf16.mxu0 %v5299
        %6441 = vmatpush2.bf16.msra.mxu0 %v5298
        %6442 = vmatprep.subr.bf16.mxu0 %v5291
        %6443 = vmatpush2.bf16.msra.mxu0 %v5290
        %6444 = vmatprep.mubr.bf16.mxu0 %v3127
        %6445 = vmatmul.mubr.bf16.gmra.mxu0 %v3126
        %v6446 = vpop.f32.mrf.mxu0
        %v6447 = vadd.f32 %v3659, %v6446
        %v6448 = vpop.f32.mrf.mxu0
        %v6449 = vadd.f32 %v3663, %v6448
        %v6450 = vpop.f32.mrf.mxu0
        %v6451 = vpop.f32.mrf.mxu0
        %6452 = vdwg.mxu0
        %6453 = vmatprep.subr.bf16.mxu0 %v5411
        %6454 = vmatpush1.bf16.msra.mxu0 %v5410
        %6455 = vmatprep.subr.bf16.mxu0 %v5403
        %6456 = vmatpush1.bf16.msra.mxu0 %v5402
        %6457 = vmatprep.subr.bf16.mxu0 %v5395
        %6458 = vmatpush1.bf16.msra.mxu0 %v5394
        %6459 = vmatprep.subr.bf16.mxu0 %v5387
        %6460 = vmatpush1.bf16.msra.mxu0 %v5386
        %6461 = vmatprep.subr.bf16.mxu0 %v5379
        %6462 = vmatpush1.bf16.msra.mxu0 %v5378
        %6463 = vmatprep.subr.bf16.mxu0 %v5371
        %6464 = vmatpush1.bf16.msra.mxu0 %v5370
        %6465 = vmatprep.subr.bf16.mxu0 %v5363
        %6466 = vmatpush1.bf16.msra.mxu0 %v5362
        %6467 = vmatprep.subr.bf16.mxu0 %v5355
        %6468 = vmatpush1.bf16.msra.mxu0 %v5354
        %6469 = vmatprep.subr.bf16.mxu0 %v5475
        %6470 = vmatpush2.bf16.msra.mxu0 %v5474
        %6471 = vmatprep.subr.bf16.mxu0 %v5467
        %6472 = vmatpush2.bf16.msra.mxu0 %v5466
        %6473 = vmatprep.subr.bf16.mxu0 %v5459
        %6474 = vmatpush2.bf16.msra.mxu0 %v5458
        %6475 = vmatprep.subr.bf16.mxu0 %v5451
        %6476 = vmatpush2.bf16.msra.mxu0 %v5450
        %6477 = vmatprep.subr.bf16.mxu0 %v5443
        %6478 = vmatpush2.bf16.msra.mxu0 %v5442
        %6479 = vmatprep.subr.bf16.mxu0 %v5435
        %6480 = vmatpush2.bf16.msra.mxu0 %v5434
        %6481 = vmatprep.subr.bf16.mxu0 %v5427
        %6482 = vmatpush2.bf16.msra.mxu0 %v5426
        %6483 = vmatprep.subr.bf16.mxu0 %v5419
        %6484 = vmatpush2.bf16.msra.mxu0 %v5418
        %6485 = vmatprep.mubr.bf16.mxu0 %v3129
        %6486 = vmatmul.mubr.bf16.gmra.mxu0 %v3128
        %v6487 = vpop.f32.mrf.mxu0
        %v6488 = vadd.f32 %v6447, %v6487
        %v6489 = vpop.f32.mrf.mxu0
        %v6490 = vadd.f32 %v6449, %v6489
        %v6491 = vpop.f32.mrf.mxu0
        %v6492 = vpop.f32.mrf.mxu0
        %6493 = vdwg.mxu0
        %6494 = vmatprep.subr.bf16.mxu0 %v5539
        %6495 = vmatpush1.bf16.msra.mxu0 %v5538
        %6496 = vmatprep.subr.bf16.mxu0 %v5531
        %6497 = vmatpush1.bf16.msra.mxu0 %v5530
        %6498 = vmatprep.subr.bf16.mxu0 %v5523
        %6499 = vmatpush1.bf16.msra.mxu0 %v5522
        %6500 = vmatprep.subr.bf16.mxu0 %v5515
        %6501 = vmatpush1.bf16.msra.mxu0 %v5514
        %6502 = vmatprep.subr.bf16.mxu0 %v5507
        %6503 = vmatpush1.bf16.msra.mxu0 %v5506
        %6504 = vmatprep.subr.bf16.mxu0 %v5499
        %6505 = vmatpush1.bf16.msra.mxu0 %v5498
        %6506 = vmatprep.subr.bf16.mxu0 %v5491
        %6507 = vmatpush1.bf16.msra.mxu0 %v5490
        %6508 = vmatprep.subr.bf16.mxu0 %v5483
        %6509 = vmatpush1.bf16.msra.mxu0 %v5482
        %6510 = vmatprep.subr.bf16.mxu0 %v5603
        %6511 = vmatpush2.bf16.msra.mxu0 %v5602
        %6512 = vmatprep.subr.bf16.mxu0 %v5595
        %6513 = vmatpush2.bf16.msra.mxu0 %v5594
        %6514 = vmatprep.subr.bf16.mxu0 %v5587
        %6515 = vmatpush2.bf16.msra.mxu0 %v5586
        %6516 = vmatprep.subr.bf16.mxu0 %v5579
        %6517 = vmatpush2.bf16.msra.mxu0 %v5578
        %6518 = vmatprep.subr.bf16.mxu0 %v5571
        %6519 = vmatpush2.bf16.msra.mxu0 %v5570
        %6520 = vmatprep.subr.bf16.mxu0 %v5563
        %6521 = vmatpush2.bf16.msra.mxu0 %v5562
        %6522 = vmatprep.subr.bf16.mxu0 %v5555
        %6523 = vmatpush2.bf16.msra.mxu0 %v5554
        %6524 = vmatprep.subr.bf16.mxu0 %v5547
        %6525 = vmatpush2.bf16.msra.mxu0 %v5546
        %6526 = vmatprep.mubr.bf16.mxu0 %v3131
        %6527 = vmatmul.mubr.bf16.gmra.mxu0 %v3130
        %v6528 = vpop.f32.mrf.mxu0
        %v6529 = vadd.f32 %v6488, %v6528
        %v6530 = vpop.f32.mrf.mxu0
        %v6531 = vadd.f32 %v6490, %v6530
        %v6532 = vpop.f32.mrf.mxu0
        %v6533 = vpop.f32.mrf.mxu0
        %6534 = vdwg.mxu0
        %6535 = vmatprep.subr.bf16.mxu0 %v5667
        %6536 = vmatpush1.bf16.msra.mxu0 %v5666
        %6537 = vmatprep.subr.bf16.mxu0 %v5659
        %6538 = vmatpush1.bf16.msra.mxu0 %v5658
        %6539 = vmatprep.subr.bf16.mxu0 %v5651
        %6540 = vmatpush1.bf16.msra.mxu0 %v5650
        %6541 = vmatprep.subr.bf16.mxu0 %v5643
        %6542 = vmatpush1.bf16.msra.mxu0 %v5642
        %6543 = vmatprep.subr.bf16.mxu0 %v5635
        %6544 = vmatpush1.bf16.msra.mxu0 %v5634
        %6545 = vmatprep.subr.bf16.mxu0 %v5627
        %6546 = vmatpush1.bf16.msra.mxu0 %v5626
        %6547 = vmatprep.subr.bf16.mxu0 %v5619
        %6548 = vmatpush1.bf16.msra.mxu0 %v5618
        %6549 = vmatprep.subr.bf16.mxu0 %v5611
        %6550 = vmatpush1.bf16.msra.mxu0 %v5610
        %6551 = vmatprep.subr.bf16.mxu0 %v5731
        %6552 = vmatpush2.bf16.msra.mxu0 %v5730
        %6553 = vmatprep.subr.bf16.mxu0 %v5723
        %6554 = vmatpush2.bf16.msra.mxu0 %v5722
        %6555 = vmatprep.subr.bf16.mxu0 %v5715
        %6556 = vmatpush2.bf16.msra.mxu0 %v5714
        %6557 = vmatprep.subr.bf16.mxu0 %v5707
        %6558 = vmatpush2.bf16.msra.mxu0 %v5706
        %6559 = vmatprep.subr.bf16.mxu0 %v5699
        %6560 = vmatpush2.bf16.msra.mxu0 %v5698
        %6561 = vmatprep.subr.bf16.mxu0 %v5691
        %6562 = vmatpush2.bf16.msra.mxu0 %v5690
        %6563 = vmatprep.subr.bf16.mxu0 %v5683
        %6564 = vmatpush2.bf16.msra.mxu0 %v5682
        %6565 = vmatprep.subr.bf16.mxu0 %v5675
        %6566 = vmatpush2.bf16.msra.mxu0 %v5674
        %6567 = vmatprep.mubr.bf16.mxu0 %v3133
        %6568 = vmatmul.mubr.bf16.gmra.mxu0 %v3132
        %v6569 = vpop.f32.mrf.mxu0
        %v6570 = vadd.f32 %v6529, %v6569
        %v6571 = vpop.f32.mrf.mxu0
        %v6572 = vadd.f32 %v6531, %v6571
        %v6573 = vpop.f32.mrf.mxu0
        %v6574 = vpop.f32.mrf.mxu0
        %6575 = vdwg.mxu0
        %6576 = vmatprep.subr.bf16.mxu0 %v5285
        %6577 = vmatpush1.bf16.msra.mxu0 %v5284
        %6578 = vmatprep.subr.bf16.mxu0 %v5277
        %6579 = vmatpush1.bf16.msra.mxu0 %v5276
        %6580 = vmatprep.subr.bf16.mxu0 %v5269
        %6581 = vmatpush1.bf16.msra.mxu0 %v5268
        %6582 = vmatprep.subr.bf16.mxu0 %v5261
        %6583 = vmatpush1.bf16.msra.mxu0 %v5260
        %6584 = vmatprep.subr.bf16.mxu0 %v5253
        %6585 = vmatpush1.bf16.msra.mxu0 %v5252
        %6586 = vmatprep.subr.bf16.mxu0 %v5245
        %6587 = vmatpush1.bf16.msra.mxu0 %v5244
        %6588 = vmatprep.subr.bf16.mxu0 %v5237
        %6589 = vmatpush1.bf16.msra.mxu0 %v5236
        %6590 = vmatprep.subr.bf16.mxu0 %v5229
        %6591 = vmatpush1.bf16.msra.mxu0 %v5228
        %6592 = vmatprep.subr.bf16.mxu0 %v5349
        %6593 = vmatpush2.bf16.msra.mxu0 %v5348
        %6594 = vmatprep.subr.bf16.mxu0 %v5341
        %6595 = vmatpush2.bf16.msra.mxu0 %v5340
        %6596 = vmatprep.subr.bf16.mxu0 %v5333
        %6597 = vmatpush2.bf16.msra.mxu0 %v5332
        %6598 = vmatprep.subr.bf16.mxu0 %v5325
        %6599 = vmatpush2.bf16.msra.mxu0 %v5324
        %6600 = vmatprep.subr.bf16.mxu0 %v5317
        %6601 = vmatpush2.bf16.msra.mxu0 %v5316
        %6602 = vmatprep.subr.bf16.mxu0 %v5309
        %6603 = vmatpush2.bf16.msra.mxu0 %v5308
        %6604 = vmatprep.subr.bf16.mxu0 %v5301
        %6605 = vmatpush2.bf16.msra.mxu0 %v5300
        %6606 = vmatprep.subr.bf16.mxu0 %v5293
        %6607 = vmatpush2.bf16.msra.mxu0 %v5292
        %6608 = vmatprep.mubr.bf16.mxu0 %v3127
        %6609 = vmatmul.mubr.bf16.gmra.mxu0 %v3126
        %v6610 = vpop.f32.mrf.mxu0
        %v6611 = vadd.f32 %v3667, %v6610
        %v6612 = vpop.f32.mrf.mxu0
        %v6613 = vadd.f32 %v3671, %v6612
        %v6614 = vpop.f32.mrf.mxu0
        %v6615 = vpop.f32.mrf.mxu0
        %6616 = vdwg.mxu0
        %6617 = vmatprep.subr.bf16.mxu0 %v5413
        %6618 = vmatpush1.bf16.msra.mxu0 %v5412
        %6619 = vmatprep.subr.bf16.mxu0 %v5405
        %6620 = vmatpush1.bf16.msra.mxu0 %v5404
        %6621 = vmatprep.subr.bf16.mxu0 %v5397
        %6622 = vmatpush1.bf16.msra.mxu0 %v5396
        %6623 = vmatprep.subr.bf16.mxu0 %v5389
        %6624 = vmatpush1.bf16.msra.mxu0 %v5388
        %6625 = vmatprep.subr.bf16.mxu0 %v5381
        %6626 = vmatpush1.bf16.msra.mxu0 %v5380
        %6627 = vmatprep.subr.bf16.mxu0 %v5373
        %6628 = vmatpush1.bf16.msra.mxu0 %v5372
        %6629 = vmatprep.subr.bf16.mxu0 %v5365
        %6630 = vmatpush1.bf16.msra.mxu0 %v5364
        %6631 = vmatprep.subr.bf16.mxu0 %v5357
        %6632 = vmatpush1.bf16.msra.mxu0 %v5356
        %6633 = vmatprep.subr.bf16.mxu0 %v5477
        %6634 = vmatpush2.bf16.msra.mxu0 %v5476
        %6635 = vmatprep.subr.bf16.mxu0 %v5469
        %6636 = vmatpush2.bf16.msra.mxu0 %v5468
        %6637 = vmatprep.subr.bf16.mxu0 %v5461
        %6638 = vmatpush2.bf16.msra.mxu0 %v5460
        %6639 = vmatprep.subr.bf16.mxu0 %v5453
        %6640 = vmatpush2.bf16.msra.mxu0 %v5452
        %6641 = vmatprep.subr.bf16.mxu0 %v5445
        %6642 = vmatpush2.bf16.msra.mxu0 %v5444
        %6643 = vmatprep.subr.bf16.mxu0 %v5437
        %6644 = vmatpush2.bf16.msra.mxu0 %v5436
        %6645 = vmatprep.subr.bf16.mxu0 %v5429
        %6646 = vmatpush2.bf16.msra.mxu0 %v5428
        %6647 = vmatprep.subr.bf16.mxu0 %v5421
        %6648 = vmatpush2.bf16.msra.mxu0 %v5420
        %6649 = vmatprep.mubr.bf16.mxu0 %v3129
        %6650 = vmatmul.mubr.bf16.gmra.mxu0 %v3128
        %v6651 = vpop.f32.mrf.mxu0
        %v6652 = vadd.f32 %v6611, %v6651
        %v6653 = vpop.f32.mrf.mxu0
        %v6654 = vadd.f32 %v6613, %v6653
        %v6655 = vpop.f32.mrf.mxu0
        %v6656 = vpop.f32.mrf.mxu0
        %6657 = vdwg.mxu0
        %6658 = vmatprep.subr.bf16.mxu0 %v5541
        %6659 = vmatpush1.bf16.msra.mxu0 %v5540
        %6660 = vmatprep.subr.bf16.mxu0 %v5533
        %6661 = vmatpush1.bf16.msra.mxu0 %v5532
        %6662 = vmatprep.subr.bf16.mxu0 %v5525
        %6663 = vmatpush1.bf16.msra.mxu0 %v5524
        %6664 = vmatprep.subr.bf16.mxu0 %v5517
        %6665 = vmatpush1.bf16.msra.mxu0 %v5516
        %6666 = vmatprep.subr.bf16.mxu0 %v5509
        %6667 = vmatpush1.bf16.msra.mxu0 %v5508
        %6668 = vmatprep.subr.bf16.mxu0 %v5501
        %6669 = vmatpush1.bf16.msra.mxu0 %v5500
        %6670 = vmatprep.subr.bf16.mxu0 %v5493
        %6671 = vmatpush1.bf16.msra.mxu0 %v5492
        %6672 = vmatprep.subr.bf16.mxu0 %v5485
        %6673 = vmatpush1.bf16.msra.mxu0 %v5484
        %6674 = vmatprep.subr.bf16.mxu0 %v5605
        %6675 = vmatpush2.bf16.msra.mxu0 %v5604
        %6676 = vmatprep.subr.bf16.mxu0 %v5597
        %6677 = vmatpush2.bf16.msra.mxu0 %v5596
        %6678 = vmatprep.subr.bf16.mxu0 %v5589
        %6679 = vmatpush2.bf16.msra.mxu0 %v5588
        %6680 = vmatprep.subr.bf16.mxu0 %v5581
        %6681 = vmatpush2.bf16.msra.mxu0 %v5580
        %6682 = vmatprep.subr.bf16.mxu0 %v5573
        %6683 = vmatpush2.bf16.msra.mxu0 %v5572
        %6684 = vmatprep.subr.bf16.mxu0 %v5565
        %6685 = vmatpush2.bf16.msra.mxu0 %v5564
        %6686 = vmatprep.subr.bf16.mxu0 %v5557
        %6687 = vmatpush2.bf16.msra.mxu0 %v5556
        %6688 = vmatprep.subr.bf16.mxu0 %v5549
        %6689 = vmatpush2.bf16.msra.mxu0 %v5548
        %6690 = vmatprep.mubr.bf16.mxu0 %v3131
        %6691 = vmatmul.mubr.bf16.gmra.mxu0 %v3130
        %v6692 = vpop.f32.mrf.mxu0
        %v6693 = vadd.f32 %v6652, %v6692
        %v6694 = vpop.f32.mrf.mxu0
        %v6695 = vadd.f32 %v6654, %v6694
        %v6696 = vpop.f32.mrf.mxu0
        %v6697 = vpop.f32.mrf.mxu0
        %6698 = vdwg.mxu0
        %6699 = vmatprep.subr.bf16.mxu0 %v5669
        %6700 = vmatpush1.bf16.msra.mxu0 %v5668
        %6701 = vmatprep.subr.bf16.mxu0 %v5661
        %6702 = vmatpush1.bf16.msra.mxu0 %v5660
        %6703 = vmatprep.subr.bf16.mxu0 %v5653
        %6704 = vmatpush1.bf16.msra.mxu0 %v5652
        %6705 = vmatprep.subr.bf16.mxu0 %v5645
        %6706 = vmatpush1.bf16.msra.mxu0 %v5644
        %6707 = vmatprep.subr.bf16.mxu0 %v5637
        %6708 = vmatpush1.bf16.msra.mxu0 %v5636
        %6709 = vmatprep.subr.bf16.mxu0 %v5629
        %6710 = vmatpush1.bf16.msra.mxu0 %v5628
        %6711 = vmatprep.subr.bf16.mxu0 %v5621
        %6712 = vmatpush1.bf16.msra.mxu0 %v5620
        %6713 = vmatprep.subr.bf16.mxu0 %v5613
        %6714 = vmatpush1.bf16.msra.mxu0 %v5612
        %6715 = vmatprep.subr.bf16.mxu0 %v5733
        %6716 = vmatpush2.bf16.msra.mxu0 %v5732
        %6717 = vmatprep.subr.bf16.mxu0 %v5725
        %6718 = vmatpush2.bf16.msra.mxu0 %v5724
        %6719 = vmatprep.subr.bf16.mxu0 %v5717
        %6720 = vmatpush2.bf16.msra.mxu0 %v5716
        %6721 = vmatprep.subr.bf16.mxu0 %v5709
        %6722 = vmatpush2.bf16.msra.mxu0 %v5708
        %6723 = vmatprep.subr.bf16.mxu0 %v5701
        %6724 = vmatpush2.bf16.msra.mxu0 %v5700
        %6725 = vmatprep.subr.bf16.mxu0 %v5693
        %6726 = vmatpush2.bf16.msra.mxu0 %v5692
        %6727 = vmatprep.subr.bf16.mxu0 %v5685
        %6728 = vmatpush2.bf16.msra.mxu0 %v5684
        %6729 = vmatprep.subr.bf16.mxu0 %v5677
        %6730 = vmatpush2.bf16.msra.mxu0 %v5676
        %6731 = vmatprep.mubr.bf16.mxu0 %v3133
        %6732 = vmatmul.mubr.bf16.gmra.mxu0 %v3132
        %v6733 = vpop.f32.mrf.mxu0
        %v6734 = vadd.f32 %v6693, %v6733
        %v6735 = vpop.f32.mrf.mxu0
        %v6736 = vadd.f32 %v6695, %v6735
        %v6737 = vpop.f32.mrf.mxu0
        %v6738 = vpop.f32.mrf.mxu0
        %6739 = vdwg.mxu0
        %6740 = vmatprep.subr.bf16.mxu0 %v5287
        %6741 = vmatpush1.bf16.msra.mxu0 %v5286
        %6742 = vmatprep.subr.bf16.mxu0 %v5279
        %6743 = vmatpush1.bf16.msra.mxu0 %v5278
        %6744 = vmatprep.subr.bf16.mxu0 %v5271
        %6745 = vmatpush1.bf16.msra.mxu0 %v5270
        %6746 = vmatprep.subr.bf16.mxu0 %v5263
        %6747 = vmatpush1.bf16.msra.mxu0 %v5262
        %6748 = vmatprep.subr.bf16.mxu0 %v5255
        %6749 = vmatpush1.bf16.msra.mxu0 %v5254
        %6750 = vmatprep.subr.bf16.mxu0 %v5247
        %6751 = vmatpush1.bf16.msra.mxu0 %v5246
        %6752 = vmatprep.subr.bf16.mxu0 %v5239
        %6753 = vmatpush1.bf16.msra.mxu0 %v5238
        %6754 = vmatprep.subr.bf16.mxu0 %v5231
        %6755 = vmatpush1.bf16.msra.mxu0 %v5230
        %6756 = vmatprep.subr.bf16.mxu0 %v5351
        %6757 = vmatpush2.bf16.msra.mxu0 %v5350
        %6758 = vmatprep.subr.bf16.mxu0 %v5343
        %6759 = vmatpush2.bf16.msra.mxu0 %v5342
        %6760 = vmatprep.subr.bf16.mxu0 %v5335
        %6761 = vmatpush2.bf16.msra.mxu0 %v5334
        %6762 = vmatprep.subr.bf16.mxu0 %v5327
        %6763 = vmatpush2.bf16.msra.mxu0 %v5326
        %6764 = vmatprep.subr.bf16.mxu0 %v5319
        %6765 = vmatpush2.bf16.msra.mxu0 %v5318
        %6766 = vmatprep.subr.bf16.mxu0 %v5311
        %6767 = vmatpush2.bf16.msra.mxu0 %v5310
        %6768 = vmatprep.subr.bf16.mxu0 %v5303
        %6769 = vmatpush2.bf16.msra.mxu0 %v5302
        %6770 = vmatprep.subr.bf16.mxu0 %v5295
        %6771 = vmatpush2.bf16.msra.mxu0 %v5294
        %6772 = vmatprep.mubr.bf16.mxu0 %v3127
        %6773 = vmatmul.mubr.bf16.gmra.mxu0 %v3126
        %v6774 = vpop.f32.mrf.mxu0
        %v6775 = vadd.f32 %v3675, %v6774
        %v6776 = vpop.f32.mrf.mxu0
        %v6777 = vadd.f32 %v3679, %v6776
        %v6778 = vpop.f32.mrf.mxu0
        %v6779 = vpop.f32.mrf.mxu0
        %6780 = vdwg.mxu0
        %6781 = vmatprep.subr.bf16.mxu0 %v5415
        %6782 = vmatpush1.bf16.msra.mxu0 %v5414
        %6783 = vmatprep.subr.bf16.mxu0 %v5407
        %6784 = vmatpush1.bf16.msra.mxu0 %v5406
        %6785 = vmatprep.subr.bf16.mxu0 %v5399
        %6786 = vmatpush1.bf16.msra.mxu0 %v5398
        %6787 = vmatprep.subr.bf16.mxu0 %v5391
        %6788 = vmatpush1.bf16.msra.mxu0 %v5390
        %6789 = vmatprep.subr.bf16.mxu0 %v5383
        %6790 = vmatpush1.bf16.msra.mxu0 %v5382
        %6791 = vmatprep.subr.bf16.mxu0 %v5375
        %6792 = vmatpush1.bf16.msra.mxu0 %v5374
        %6793 = vmatprep.subr.bf16.mxu0 %v5367
        %6794 = vmatpush1.bf16.msra.mxu0 %v5366
        %6795 = vmatprep.subr.bf16.mxu0 %v5359
        %6796 = vmatpush1.bf16.msra.mxu0 %v5358
        %6797 = vmatprep.subr.bf16.mxu0 %v5479
        %6798 = vmatpush2.bf16.msra.mxu0 %v5478
        %6799 = vmatprep.subr.bf16.mxu0 %v5471
        %6800 = vmatpush2.bf16.msra.mxu0 %v5470
        %6801 = vmatprep.subr.bf16.mxu0 %v5463
        %6802 = vmatpush2.bf16.msra.mxu0 %v5462
        %6803 = vmatprep.subr.bf16.mxu0 %v5455
        %6804 = vmatpush2.bf16.msra.mxu0 %v5454
        %6805 = vmatprep.subr.bf16.mxu0 %v5447
        %6806 = vmatpush2.bf16.msra.mxu0 %v5446
        %6807 = vmatprep.subr.bf16.mxu0 %v5439
        %6808 = vmatpush2.bf16.msra.mxu0 %v5438
        %6809 = vmatprep.subr.bf16.mxu0 %v5431
        %6810 = vmatpush2.bf16.msra.mxu0 %v5430
        %6811 = vmatprep.subr.bf16.mxu0 %v5423
        %6812 = vmatpush2.bf16.msra.mxu0 %v5422
        %6813 = vmatprep.mubr.bf16.mxu0 %v3129
        %6814 = vmatmul.mubr.bf16.gmra.mxu0 %v3128
        %v6815 = vpop.f32.mrf.mxu0
        %v6816 = vadd.f32 %v6775, %v6815
        %v6817 = vpop.f32.mrf.mxu0
        %v6818 = vadd.f32 %v6777, %v6817
        %v6819 = vpop.f32.mrf.mxu0
        %v6820 = vpop.f32.mrf.mxu0
        %6821 = vdwg.mxu0
        %6822 = vmatprep.subr.bf16.mxu0 %v5543
        %6823 = vmatpush1.bf16.msra.mxu0 %v5542
        %6824 = vmatprep.subr.bf16.mxu0 %v5535
        %6825 = vmatpush1.bf16.msra.mxu0 %v5534
        %6826 = vmatprep.subr.bf16.mxu0 %v5527
        %6827 = vmatpush1.bf16.msra.mxu0 %v5526
        %6828 = vmatprep.subr.bf16.mxu0 %v5519
        %6829 = vmatpush1.bf16.msra.mxu0 %v5518
        %6830 = vmatprep.subr.bf16.mxu0 %v5511
        %6831 = vmatpush1.bf16.msra.mxu0 %v5510
        %6832 = vmatprep.subr.bf16.mxu0 %v5503
        %6833 = vmatpush1.bf16.msra.mxu0 %v5502
        %6834 = vmatprep.subr.bf16.mxu0 %v5495
        %6835 = vmatpush1.bf16.msra.mxu0 %v5494
        %6836 = vmatprep.subr.bf16.mxu0 %v5487
        %6837 = vmatpush1.bf16.msra.mxu0 %v5486
        %6838 = vmatprep.subr.bf16.mxu0 %v5607
        %6839 = vmatpush2.bf16.msra.mxu0 %v5606
        %6840 = vmatprep.subr.bf16.mxu0 %v5599
        %6841 = vmatpush2.bf16.msra.mxu0 %v5598
        %6842 = vmatprep.subr.bf16.mxu0 %v5591
        %6843 = vmatpush2.bf16.msra.mxu0 %v5590
        %6844 = vmatprep.subr.bf16.mxu0 %v5583
        %6845 = vmatpush2.bf16.msra.mxu0 %v5582
        %6846 = vmatprep.subr.bf16.mxu0 %v5575
        %6847 = vmatpush2.bf16.msra.mxu0 %v5574
        %6848 = vmatprep.subr.bf16.mxu0 %v5567
        %6849 = vmatpush2.bf16.msra.mxu0 %v5566
        %6850 = vmatprep.subr.bf16.mxu0 %v5559
        %6851 = vmatpush2.bf16.msra.mxu0 %v5558
        %6852 = vmatprep.subr.bf16.mxu0 %v5551
        %6853 = vmatpush2.bf16.msra.mxu0 %v5550
        %6854 = vmatprep.mubr.bf16.mxu0 %v3131
        %6855 = vmatmul.mubr.bf16.gmra.mxu0 %v3130
        %v6856 = vpop.f32.mrf.mxu0
        %v6857 = vadd.f32 %v6816, %v6856
        %v6858 = vpop.f32.mrf.mxu0
        %v6859 = vadd.f32 %v6818, %v6858
        %v6860 = vpop.f32.mrf.mxu0
        %v6861 = vpop.f32.mrf.mxu0
        %6862 = vdwg.mxu0
        %6863 = vmatprep.subr.bf16.mxu0 %v5671
        %6864 = vmatpush1.bf16.msra.mxu0 %v5670
        %6865 = vmatprep.subr.bf16.mxu0 %v5663
        %6866 = vmatpush1.bf16.msra.mxu0 %v5662
        %6867 = vmatprep.subr.bf16.mxu0 %v5655
        %6868 = vmatpush1.bf16.msra.mxu0 %v5654
        %6869 = vmatprep.subr.bf16.mxu0 %v5647
        %6870 = vmatpush1.bf16.msra.mxu0 %v5646
        %6871 = vmatprep.subr.bf16.mxu0 %v5639
        %6872 = vmatpush1.bf16.msra.mxu0 %v5638
        %6873 = vmatprep.subr.bf16.mxu0 %v5631
        %6874 = vmatpush1.bf16.msra.mxu0 %v5630
        %6875 = vmatprep.subr.bf16.mxu0 %v5623
        %6876 = vmatpush1.bf16.msra.mxu0 %v5622
        %6877 = vmatprep.subr.bf16.mxu0 %v5615
        %6878 = vmatpush1.bf16.msra.mxu0 %v5614
        %6879 = vmatprep.subr.bf16.mxu0 %v5735
        %6880 = vmatpush2.bf16.msra.mxu0 %v5734
        %6881 = vmatprep.subr.bf16.mxu0 %v5727
        %6882 = vmatpush2.bf16.msra.mxu0 %v5726
        %6883 = vmatprep.subr.bf16.mxu0 %v5719
        %6884 = vmatpush2.bf16.msra.mxu0 %v5718
        %6885 = vmatprep.subr.bf16.mxu0 %v5711
        %6886 = vmatpush2.bf16.msra.mxu0 %v5710
        %6887 = vmatprep.subr.bf16.mxu0 %v5703
        %6888 = vmatpush2.bf16.msra.mxu0 %v5702
        %6889 = vmatprep.subr.bf16.mxu0 %v5695
        %6890 = vmatpush2.bf16.msra.mxu0 %v5694
        %6891 = vmatprep.subr.bf16.mxu0 %v5687
        %6892 = vmatpush2.bf16.msra.mxu0 %v5686
        %6893 = vmatprep.subr.bf16.mxu0 %v5679
        %6894 = vmatpush2.bf16.msra.mxu0 %v5678
        %6895 = vmatprep.mubr.bf16.mxu0 %v3133
        %6896 = vmatmul.mubr.bf16.gmra.mxu0 %v3132
        %v6897 = vpop.f32.mrf.mxu0
        %v6898 = vadd.f32 %v6857, %v6897
        %v6899 = vpop.f32.mrf.mxu0
        %v6900 = vadd.f32 %v6859, %v6899
        %v6901 = vpop.f32.mrf.mxu0
        %v6902 = vpop.f32.mrf.mxu0
        %6903 = vdwg.mxu0
        %v6904 = vmax.f32 %v6406, 0.0
        %v6905 = vmax.f32 %v6408, 0.0
        %v6906 = vmax.f32 %v6570, 0.0
        %v6907 = vmax.f32 %v6572, 0.0
        %v6908 = vmax.f32 %v6734, 0.0
        %v6909 = vmax.f32 %v6736, 0.0
        %v6910 = vmax.f32 %v6898, 0.0
        %v6911 = vmax.f32 %v6900, 0.0
        %v6912 = vpack.c.bf16 %v6904, %v6904
        %v6913 = vpack.c.bf16 %v6905, %v6905
        %v6914 = vpack.c.bf16 %v6906, %v6906
        %v6915 = vpack.c.bf16 %v6907, %v6907
        %v6916 = vpack.c.bf16 %v6908, %v6908
        %v6917 = vpack.c.bf16 %v6909, %v6909
        %v6918 = vpack.c.bf16 %v6910, %v6910
        %v6919 = vpack.c.bf16 %v6911, %v6911
        %v6920 = vld [vmem:[#allocation8 + $0x200] sm:$0xff]
        %v6921 = vld [vmem:[#allocation8 + $0x208] sm:$0xff]
        %v6922 = vld [vmem:[#allocation8 + $0x210] sm:$0xff]
        %v6923 = vld [vmem:[#allocation8 + $0x218] sm:$0xff]
        %v6924 = vld [vmem:[#allocation8 + $0x220] sm:$0xff]
        %v6925 = vld [vmem:[#allocation8 + $0x228] sm:$0xff]
        %v6926 = vld [vmem:[#allocation8 + $0x230] sm:$0xff]
        %v6927 = vld [vmem:[#allocation8 + $0x238] sm:$0xff]
        %v6928 = vld [vmem:[#allocation8 + $0x240] sm:$0xff]
        %v6929 = vld [vmem:[#allocation8 + $0x248] sm:$0xff]
        %v6930 = vld [vmem:[#allocation8 + $0x250] sm:$0xff]
        %v6931 = vld [vmem:[#allocation8 + $0x258] sm:$0xff]
        %v6932 = vld [vmem:[#allocation8 + $0x260] sm:$0xff]
        %v6933 = vld [vmem:[#allocation8 + $0x268] sm:$0xff]
        %v6934 = vld [vmem:[#allocation8 + $0x270] sm:$0xff]
        %v6935 = vld [vmem:[#allocation8 + $0x278] sm:$0xff]
        %v6936 = vld [vmem:[#allocation8 + $0x280] sm:$0xff]
        %v6937 = vld [vmem:[#allocation8 + $0x288] sm:$0xff]
        %v6938 = vld [vmem:[#allocation8 + $0x290] sm:$0xff]
        %v6939 = vld [vmem:[#allocation8 + $0x298] sm:$0xff]
        %v6940 = vld [vmem:[#allocation8 + $0x2a0] sm:$0xff]
        %v6941 = vld [vmem:[#allocation8 + $0x2a8] sm:$0xff]
        %v6942 = vld [vmem:[#allocation8 + $0x2b0] sm:$0xff]
        %v6943 = vld [vmem:[#allocation8 + $0x2b8] sm:$0xff]
        %v6944 = vld [vmem:[#allocation8 + $0x2c0] sm:$0xff]
        %v6945 = vld [vmem:[#allocation8 + $0x2c8] sm:$0xff]
        %v6946 = vld [vmem:[#allocation8 + $0x2d0] sm:$0xff]
        %v6947 = vld [vmem:[#allocation8 + $0x2d8] sm:$0xff]
        %v6948 = vld [vmem:[#allocation8 + $0x2e0] sm:$0xff]
        %v6949 = vld [vmem:[#allocation8 + $0x2e8] sm:$0xff]
        %v6950 = vld [vmem:[#allocation8 + $0x2f0] sm:$0xff]
        %v6951 = vld [vmem:[#allocation8 + $0x2f8] sm:$0xff]
        %v6952 = vld [vmem:[#allocation8 + $0x300] sm:$0xff]
        %v6953 = vld [vmem:[#allocation8 + $0x308] sm:$0xff]
        %v6954 = vld [vmem:[#allocation8 + $0x310] sm:$0xff]
        %v6955 = vld [vmem:[#allocation8 + $0x318] sm:$0xff]
        %v6956 = vld [vmem:[#allocation8 + $0x320] sm:$0xff]
        %v6957 = vld [vmem:[#allocation8 + $0x328] sm:$0xff]
        %v6958 = vld [vmem:[#allocation8 + $0x330] sm:$0xff]
        %v6959 = vld [vmem:[#allocation8 + $0x338] sm:$0xff]
        %v6960 = vld [vmem:[#allocation8 + $0x340] sm:$0xff]
        %v6961 = vld [vmem:[#allocation8 + $0x348] sm:$0xff]
        %v6962 = vld [vmem:[#allocation8 + $0x350] sm:$0xff]
        %v6963 = vld [vmem:[#allocation8 + $0x358] sm:$0xff]
        %v6964 = vld [vmem:[#allocation8 + $0x360] sm:$0xff]
        %v6965 = vld [vmem:[#allocation8 + $0x368] sm:$0xff]
        %v6966 = vld [vmem:[#allocation8 + $0x370] sm:$0xff]
        %v6967 = vld [vmem:[#allocation8 + $0x378] sm:$0xff]
        %v6968 = vld [vmem:[#allocation8 + $0x380] sm:$0xff]
        %v6969 = vld [vmem:[#allocation8 + $0x388] sm:$0xff]
        %v6970 = vld [vmem:[#allocation8 + $0x390] sm:$0xff]
        %v6971 = vld [vmem:[#allocation8 + $0x398] sm:$0xff]
        %v6972 = vld [vmem:[#allocation8 + $0x3a0] sm:$0xff]
        %v6973 = vld [vmem:[#allocation8 + $0x3a8] sm:$0xff]
        %v6974 = vld [vmem:[#allocation8 + $0x3b0] sm:$0xff]
        %v6975 = vld [vmem:[#allocation8 + $0x3b8] sm:$0xff]
        %v6976 = vld [vmem:[#allocation8 + $0x3c0] sm:$0xff]
        %v6977 = vld [vmem:[#allocation8 + $0x3c8] sm:$0xff]
        %v6978 = vld [vmem:[#allocation8 + $0x3d0] sm:$0xff]
        %v6979 = vld [vmem:[#allocation8 + $0x3d8] sm:$0xff]
        %v6980 = vld [vmem:[#allocation8 + $0x3e0] sm:$0xff]
        %v6981 = vld [vmem:[#allocation8 + $0x3e8] sm:$0xff]
        %v6982 = vld [vmem:[#allocation8 + $0x3f0] sm:$0xff]
        %v6983 = vld [vmem:[#allocation8 + $0x3f8] sm:$0xff]
        %v6984 = vld [vmem:[#allocation8 + $0x400] sm:$0xff]
        %v6985 = vld [vmem:[#allocation8 + $0x408] sm:$0xff]
        %v6986 = vld [vmem:[#allocation8 + $0x410] sm:$0xff]
        %v6987 = vld [vmem:[#allocation8 + $0x418] sm:$0xff]
        %v6988 = vld [vmem:[#allocation8 + $0x420] sm:$0xff]
        %v6989 = vld [vmem:[#allocation8 + $0x428] sm:$0xff]
        %v6990 = vld [vmem:[#allocation8 + $0x430] sm:$0xff]
        %v6991 = vld [vmem:[#allocation8 + $0x438] sm:$0xff]
        %v6992 = vld [vmem:[#allocation8 + $0x440] sm:$0xff]
        %v6993 = vld [vmem:[#allocation8 + $0x448] sm:$0xff]
        %v6994 = vld [vmem:[#allocation8 + $0x450] sm:$0xff]
        %v6995 = vld [vmem:[#allocation8 + $0x458] sm:$0xff]
        %v6996 = vld [vmem:[#allocation8 + $0x460] sm:$0xff]
        %v6997 = vld [vmem:[#allocation8 + $0x468] sm:$0xff]
        %v6998 = vld [vmem:[#allocation8 + $0x470] sm:$0xff]
        %v6999 = vld [vmem:[#allocation8 + $0x478] sm:$0xff]
        %v7000 = vld [vmem:[#allocation8 + $0x480] sm:$0xff]
        %v7001 = vld [vmem:[#allocation8 + $0x488] sm:$0xff]
        %v7002 = vld [vmem:[#allocation8 + $0x490] sm:$0xff]
        %v7003 = vld [vmem:[#allocation8 + $0x498] sm:$0xff]
        %v7004 = vld [vmem:[#allocation8 + $0x4a0] sm:$0xff]
        %v7005 = vld [vmem:[#allocation8 + $0x4a8] sm:$0xff]
        %v7006 = vld [vmem:[#allocation8 + $0x4b0] sm:$0xff]
        %v7007 = vld [vmem:[#allocation8 + $0x4b8] sm:$0xff]
        %v7008 = vld [vmem:[#allocation8 + $0x4c0] sm:$0xff]
        %v7009 = vld [vmem:[#allocation8 + $0x4c8] sm:$0xff]
        %v7010 = vld [vmem:[#allocation8 + $0x4d0] sm:$0xff]
        %v7011 = vld [vmem:[#allocation8 + $0x4d8] sm:$0xff]
        %v7012 = vld [vmem:[#allocation8 + $0x4e0] sm:$0xff]
        %v7013 = vld [vmem:[#allocation8 + $0x4e8] sm:$0xff]
        %v7014 = vld [vmem:[#allocation8 + $0x4f0] sm:$0xff]
        %v7015 = vld [vmem:[#allocation8 + $0x4f8] sm:$0xff]
        %v7016 = vld [vmem:[#allocation8 + $0x500] sm:$0xff]
        %v7017 = vld [vmem:[#allocation8 + $0x508] sm:$0xff]
        %v7018 = vld [vmem:[#allocation8 + $0x510] sm:$0xff]
        %v7019 = vld [vmem:[#allocation8 + $0x518] sm:$0xff]
        %v7020 = vld [vmem:[#allocation8 + $0x520] sm:$0xff]
        %v7021 = vld [vmem:[#allocation8 + $0x528] sm:$0xff]
        %v7022 = vld [vmem:[#allocation8 + $0x530] sm:$0xff]
        %v7023 = vld [vmem:[#allocation8 + $0x538] sm:$0xff]
        %v7024 = vld [vmem:[#allocation8 + $0x540] sm:$0xff]
        %v7025 = vld [vmem:[#allocation8 + $0x548] sm:$0xff]
        %v7026 = vld [vmem:[#allocation8 + $0x550] sm:$0xff]
        %v7027 = vld [vmem:[#allocation8 + $0x558] sm:$0xff]
        %v7028 = vld [vmem:[#allocation8 + $0x560] sm:$0xff]
        %v7029 = vld [vmem:[#allocation8 + $0x568] sm:$0xff]
        %v7030 = vld [vmem:[#allocation8 + $0x570] sm:$0xff]
        %v7031 = vld [vmem:[#allocation8 + $0x578] sm:$0xff]
        %v7032 = vld [vmem:[#allocation8 + $0x580] sm:$0xff]
        %v7033 = vld [vmem:[#allocation8 + $0x588] sm:$0xff]
        %v7034 = vld [vmem:[#allocation8 + $0x590] sm:$0xff]
        %v7035 = vld [vmem:[#allocation8 + $0x598] sm:$0xff]
        %v7036 = vld [vmem:[#allocation8 + $0x5a0] sm:$0xff]
        %v7037 = vld [vmem:[#allocation8 + $0x5a8] sm:$0xff]
        %v7038 = vld [vmem:[#allocation8 + $0x5b0] sm:$0xff]
        %v7039 = vld [vmem:[#allocation8 + $0x5b8] sm:$0xff]
        %v7040 = vld [vmem:[#allocation8 + $0x5c0] sm:$0xff]
        %v7041 = vld [vmem:[#allocation8 + $0x5c8] sm:$0xff]
        %v7042 = vld [vmem:[#allocation8 + $0x5d0] sm:$0xff]
        %v7043 = vld [vmem:[#allocation8 + $0x5d8] sm:$0xff]
        %v7044 = vld [vmem:[#allocation8 + $0x5e0] sm:$0xff]
        %v7045 = vld [vmem:[#allocation8 + $0x5e8] sm:$0xff]
        %v7046 = vld [vmem:[#allocation8 + $0x5f0] sm:$0xff]
        %v7047 = vld [vmem:[#allocation8 + $0x5f8] sm:$0xff]
        %v7048 = vld [vmem:[#allocation8 + $0x600] sm:$0xff]
        %v7049 = vld [vmem:[#allocation8 + $0x608] sm:$0xff]
        %v7050 = vld [vmem:[#allocation8 + $0x610] sm:$0xff]
        %v7051 = vld [vmem:[#allocation8 + $0x618] sm:$0xff]
        %v7052 = vld [vmem:[#allocation8 + $0x620] sm:$0xff]
        %v7053 = vld [vmem:[#allocation8 + $0x628] sm:$0xff]
        %v7054 = vld [vmem:[#allocation8 + $0x630] sm:$0xff]
        %v7055 = vld [vmem:[#allocation8 + $0x638] sm:$0xff]
        %v7056 = vld [vmem:[#allocation8 + $0x640] sm:$0xff]
        %v7057 = vld [vmem:[#allocation8 + $0x648] sm:$0xff]
        %v7058 = vld [vmem:[#allocation8 + $0x650] sm:$0xff]
        %v7059 = vld [vmem:[#allocation8 + $0x658] sm:$0xff]
        %v7060 = vld [vmem:[#allocation8 + $0x660] sm:$0xff]
        %v7061 = vld [vmem:[#allocation8 + $0x668] sm:$0xff]
        %v7062 = vld [vmem:[#allocation8 + $0x670] sm:$0xff]
        %v7063 = vld [vmem:[#allocation8 + $0x678] sm:$0xff]
        %v7064 = vld [vmem:[#allocation8 + $0x680] sm:$0xff]
        %v7065 = vld [vmem:[#allocation8 + $0x688] sm:$0xff]
        %v7066 = vld [vmem:[#allocation8 + $0x690] sm:$0xff]
        %v7067 = vld [vmem:[#allocation8 + $0x698] sm:$0xff]
        %v7068 = vld [vmem:[#allocation8 + $0x6a0] sm:$0xff]
        %v7069 = vld [vmem:[#allocation8 + $0x6a8] sm:$0xff]
        %v7070 = vld [vmem:[#allocation8 + $0x6b0] sm:$0xff]
        %v7071 = vld [vmem:[#allocation8 + $0x6b8] sm:$0xff]
        %v7072 = vld [vmem:[#allocation8 + $0x6c0] sm:$0xff]
        %v7073 = vld [vmem:[#allocation8 + $0x6c8] sm:$0xff]
        %v7074 = vld [vmem:[#allocation8 + $0x6d0] sm:$0xff]
        %v7075 = vld [vmem:[#allocation8 + $0x6d8] sm:$0xff]
        %v7076 = vld [vmem:[#allocation8 + $0x6e0] sm:$0xff]
        %v7077 = vld [vmem:[#allocation8 + $0x6e8] sm:$0xff]
        %v7078 = vld [vmem:[#allocation8 + $0x6f0] sm:$0xff]
        %v7079 = vld [vmem:[#allocation8 + $0x6f8] sm:$0xff]
        %v7080 = vld [vmem:[#allocation8 + $0x700] sm:$0xff]
        %v7081 = vld [vmem:[#allocation8 + $0x708] sm:$0xff]
        %v7082 = vld [vmem:[#allocation8 + $0x710] sm:$0xff]
        %v7083 = vld [vmem:[#allocation8 + $0x718] sm:$0xff]
        %v7084 = vld [vmem:[#allocation8 + $0x720] sm:$0xff]
        %v7085 = vld [vmem:[#allocation8 + $0x728] sm:$0xff]
        %v7086 = vld [vmem:[#allocation8 + $0x730] sm:$0xff]
        %v7087 = vld [vmem:[#allocation8 + $0x738] sm:$0xff]
        %v7088 = vld [vmem:[#allocation8 + $0x740] sm:$0xff]
        %v7089 = vld [vmem:[#allocation8 + $0x748] sm:$0xff]
        %v7090 = vld [vmem:[#allocation8 + $0x750] sm:$0xff]
        %v7091 = vld [vmem:[#allocation8 + $0x758] sm:$0xff]
        %v7092 = vld [vmem:[#allocation8 + $0x760] sm:$0xff]
        %v7093 = vld [vmem:[#allocation8 + $0x768] sm:$0xff]
        %v7094 = vld [vmem:[#allocation8 + $0x770] sm:$0xff]
        %v7095 = vld [vmem:[#allocation8 + $0x778] sm:$0xff]
        %v7096 = vld [vmem:[#allocation8 + $0x780] sm:$0xff]
        %v7097 = vld [vmem:[#allocation8 + $0x788] sm:$0xff]
        %v7098 = vld [vmem:[#allocation8 + $0x790] sm:$0xff]
        %v7099 = vld [vmem:[#allocation8 + $0x798] sm:$0xff]
        %v7100 = vld [vmem:[#allocation8 + $0x7a0] sm:$0xff]
        %v7101 = vld [vmem:[#allocation8 + $0x7a8] sm:$0xff]
        %v7102 = vld [vmem:[#allocation8 + $0x7b0] sm:$0xff]
        %v7103 = vld [vmem:[#allocation8 + $0x7b8] sm:$0xff]
        %v7104 = vld [vmem:[#allocation8 + $0x7c0] sm:$0xff]
        %v7105 = vld [vmem:[#allocation8 + $0x7c8] sm:$0xff]
        %v7106 = vld [vmem:[#allocation8 + $0x7d0] sm:$0xff]
        %v7107 = vld [vmem:[#allocation8 + $0x7d8] sm:$0xff]
        %v7108 = vld [vmem:[#allocation8 + $0x7e0] sm:$0xff]
        %v7109 = vld [vmem:[#allocation8 + $0x7e8] sm:$0xff]
        %v7110 = vld [vmem:[#allocation8 + $0x7f0] sm:$0xff]
        %v7111 = vld [vmem:[#allocation8 + $0x7f8] sm:$0xff]
        %v7112 = vld [vmem:[#allocation8 + $0x800] sm:$0xff]
        %v7113 = vld [vmem:[#allocation8 + $0x808] sm:$0xff]
        %v7114 = vld [vmem:[#allocation8 + $0x810] sm:$0xff]
        %v7115 = vld [vmem:[#allocation8 + $0x818] sm:$0xff]
        %v7116 = vld [vmem:[#allocation8 + $0x820] sm:$0xff]
        %v7117 = vld [vmem:[#allocation8 + $0x828] sm:$0xff]
        %v7118 = vld [vmem:[#allocation8 + $0x830] sm:$0xff]
        %v7119 = vld [vmem:[#allocation8 + $0x838] sm:$0xff]
        %v7120 = vld [vmem:[#allocation8 + $0x840] sm:$0xff]
        %v7121 = vld [vmem:[#allocation8 + $0x848] sm:$0xff]
        %v7122 = vld [vmem:[#allocation8 + $0x850] sm:$0xff]
        %v7123 = vld [vmem:[#allocation8 + $0x858] sm:$0xff]
        %v7124 = vld [vmem:[#allocation8 + $0x860] sm:$0xff]
        %v7125 = vld [vmem:[#allocation8 + $0x868] sm:$0xff]
        %v7126 = vld [vmem:[#allocation8 + $0x870] sm:$0xff]
        %v7127 = vld [vmem:[#allocation8 + $0x878] sm:$0xff]
        %v7128 = vld [vmem:[#allocation8 + $0x880] sm:$0xff]
        %v7129 = vld [vmem:[#allocation8 + $0x888] sm:$0xff]
        %v7130 = vld [vmem:[#allocation8 + $0x890] sm:$0xff]
        %v7131 = vld [vmem:[#allocation8 + $0x898] sm:$0xff]
        %v7132 = vld [vmem:[#allocation8 + $0x8a0] sm:$0xff]
        %v7133 = vld [vmem:[#allocation8 + $0x8a8] sm:$0xff]
        %v7134 = vld [vmem:[#allocation8 + $0x8b0] sm:$0xff]
        %v7135 = vld [vmem:[#allocation8 + $0x8b8] sm:$0xff]
        %v7136 = vld [vmem:[#allocation8 + $0x8c0] sm:$0xff]
        %v7137 = vld [vmem:[#allocation8 + $0x8c8] sm:$0xff]
        %v7138 = vld [vmem:[#allocation8 + $0x8d0] sm:$0xff]
        %v7139 = vld [vmem:[#allocation8 + $0x8d8] sm:$0xff]
        %v7140 = vld [vmem:[#allocation8 + $0x8e0] sm:$0xff]
        %v7141 = vld [vmem:[#allocation8 + $0x8e8] sm:$0xff]
        %v7142 = vld [vmem:[#allocation8 + $0x8f0] sm:$0xff]
        %v7143 = vld [vmem:[#allocation8 + $0x8f8] sm:$0xff]
        %v7144 = vld [vmem:[#allocation8 + $0x900] sm:$0xff]
        %v7145 = vld [vmem:[#allocation8 + $0x908] sm:$0xff]
        %v7146 = vld [vmem:[#allocation8 + $0x910] sm:$0xff]
        %v7147 = vld [vmem:[#allocation8 + $0x918] sm:$0xff]
        %v7148 = vld [vmem:[#allocation8 + $0x920] sm:$0xff]
        %v7149 = vld [vmem:[#allocation8 + $0x928] sm:$0xff]
        %v7150 = vld [vmem:[#allocation8 + $0x930] sm:$0xff]
        %v7151 = vld [vmem:[#allocation8 + $0x938] sm:$0xff]
        %v7152 = vld [vmem:[#allocation8 + $0x940] sm:$0xff]
        %v7153 = vld [vmem:[#allocation8 + $0x948] sm:$0xff]
        %v7154 = vld [vmem:[#allocation8 + $0x950] sm:$0xff]
        %v7155 = vld [vmem:[#allocation8 + $0x958] sm:$0xff]
        %v7156 = vld [vmem:[#allocation8 + $0x960] sm:$0xff]
        %v7157 = vld [vmem:[#allocation8 + $0x968] sm:$0xff]
        %v7158 = vld [vmem:[#allocation8 + $0x970] sm:$0xff]
        %v7159 = vld [vmem:[#allocation8 + $0x978] sm:$0xff]
        %v7160 = vld [vmem:[#allocation8 + $0x980] sm:$0xff]
        %v7161 = vld [vmem:[#allocation8 + $0x988] sm:$0xff]
        %v7162 = vld [vmem:[#allocation8 + $0x990] sm:$0xff]
        %v7163 = vld [vmem:[#allocation8 + $0x998] sm:$0xff]
        %v7164 = vld [vmem:[#allocation8 + $0x9a0] sm:$0xff]
        %v7165 = vld [vmem:[#allocation8 + $0x9a8] sm:$0xff]
        %v7166 = vld [vmem:[#allocation8 + $0x9b0] sm:$0xff]
        %v7167 = vld [vmem:[#allocation8 + $0x9b8] sm:$0xff]
        %v7168 = vld [vmem:[#allocation8 + $0x9c0] sm:$0xff]
        %v7169 = vld [vmem:[#allocation8 + $0x9c8] sm:$0xff]
        %v7170 = vld [vmem:[#allocation8 + $0x9d0] sm:$0xff]
        %v7171 = vld [vmem:[#allocation8 + $0x9d8] sm:$0xff]
        %v7172 = vld [vmem:[#allocation8 + $0x9e0] sm:$0xff]
        %v7173 = vld [vmem:[#allocation8 + $0x9e8] sm:$0xff]
        %v7174 = vld [vmem:[#allocation8 + $0x9f0] sm:$0xff]
        %v7175 = vld [vmem:[#allocation8 + $0x9f8] sm:$0xff]
        %v7176 = vld [vmem:[#allocation11 + $0x19] sm:$0xf]
        %v7178 = vlaneseq
        %v7179 = vshrl.u32 %v7178, 7
        %v7180 = vsub.s32 0, %v7179
        %v7181 = vrot.slane %v7176, %v7180
        %v7182 = vlaneseq
        %v7183 = vshrl.u32 %v7182, 7
        %v7184 = vsub.s32 1, %v7183
        %v7185 = vrot.slane %v7176, %v7184
        %v7186 = vlaneseq
        %v7187 = vshrl.u32 %v7186, 7
        %v7188 = vsub.s32 2, %v7187
        %v7189 = vrot.slane %v7176, %v7188
        %v7190 = vlaneseq
        %v7191 = vshrl.u32 %v7190, 7
        %v7192 = vsub.s32 3, %v7191
        %v7193 = vrot.slane %v7176, %v7192
        %v7454 = vunpack.c.l.b16 %v6920
        %v7455 = vunpack.c.h.b16 %v6920
        %v7456 = vunpack.c.l.b16 %v6921
        %v7457 = vunpack.c.h.b16 %v6921
        %v7458 = vunpack.c.l.b16 %v6922
        %v7459 = vunpack.c.h.b16 %v6922
        %v7460 = vunpack.c.l.b16 %v6923
        %v7461 = vunpack.c.h.b16 %v6923
        %v7462 = vunpack.c.l.b16 %v6924
        %v7463 = vunpack.c.h.b16 %v6924
        %v7464 = vunpack.c.l.b16 %v6925
        %v7465 = vunpack.c.h.b16 %v6925
        %v7466 = vunpack.c.l.b16 %v6926
        %v7467 = vunpack.c.h.b16 %v6926
        %v7468 = vunpack.c.l.b16 %v6927
        %v7469 = vunpack.c.h.b16 %v6927
        %v7470 = vunpack.c.l.b16 %v6928
        %v7471 = vunpack.c.h.b16 %v6928
        %v7472 = vunpack.c.l.b16 %v6929
        %v7473 = vunpack.c.h.b16 %v6929
        %v7474 = vunpack.c.l.b16 %v6930
        %v7475 = vunpack.c.h.b16 %v6930
        %v7476 = vunpack.c.l.b16 %v6931
        %v7477 = vunpack.c.h.b16 %v6931
        %v7478 = vunpack.c.l.b16 %v6932
        %v7479 = vunpack.c.h.b16 %v6932
        %v7480 = vunpack.c.l.b16 %v6933
        %v7481 = vunpack.c.h.b16 %v6933
        %v7482 = vunpack.c.l.b16 %v6934
        %v7483 = vunpack.c.h.b16 %v6934
        %v7484 = vunpack.c.l.b16 %v6935
        %v7485 = vunpack.c.h.b16 %v6935
        %v7486 = vunpack.c.l.b16 %v6936
        %v7487 = vunpack.c.h.b16 %v6936
        %v7488 = vunpack.c.l.b16 %v6937
        %v7489 = vunpack.c.h.b16 %v6937
        %v7490 = vunpack.c.l.b16 %v6938
        %v7491 = vunpack.c.h.b16 %v6938
        %v7492 = vunpack.c.l.b16 %v6939
        %v7493 = vunpack.c.h.b16 %v6939
        %v7494 = vunpack.c.l.b16 %v6940
        %v7495 = vunpack.c.h.b16 %v6940
        %v7496 = vunpack.c.l.b16 %v6941
        %v7497 = vunpack.c.h.b16 %v6941
        %v7498 = vunpack.c.l.b16 %v6942
        %v7499 = vunpack.c.h.b16 %v6942
        %v7500 = vunpack.c.l.b16 %v6943
        %v7501 = vunpack.c.h.b16 %v6943
        %v7502 = vunpack.c.l.b16 %v6944
        %v7503 = vunpack.c.h.b16 %v6944
        %v7504 = vunpack.c.l.b16 %v6945
        %v7505 = vunpack.c.h.b16 %v6945
        %v7506 = vunpack.c.l.b16 %v6946
        %v7507 = vunpack.c.h.b16 %v6946
        %v7508 = vunpack.c.l.b16 %v6947
        %v7509 = vunpack.c.h.b16 %v6947
        %v7510 = vunpack.c.l.b16 %v6948
        %v7511 = vunpack.c.h.b16 %v6948
        %v7512 = vunpack.c.l.b16 %v6949
        %v7513 = vunpack.c.h.b16 %v6949
        %v7514 = vunpack.c.l.b16 %v6950
        %v7515 = vunpack.c.h.b16 %v6950
        %v7516 = vunpack.c.l.b16 %v6951
        %v7517 = vunpack.c.h.b16 %v6951
        %v7518 = vunpack.c.l.b16 %v6952
        %v7519 = vunpack.c.h.b16 %v6952
        %v7520 = vunpack.c.l.b16 %v6953
        %v7521 = vunpack.c.h.b16 %v6953
        %v7522 = vunpack.c.l.b16 %v6954
        %v7523 = vunpack.c.h.b16 %v6954
        %v7524 = vunpack.c.l.b16 %v6955
        %v7525 = vunpack.c.h.b16 %v6955
        %v7526 = vunpack.c.l.b16 %v6956
        %v7527 = vunpack.c.h.b16 %v6956
        %v7528 = vunpack.c.l.b16 %v6957
        %v7529 = vunpack.c.h.b16 %v6957
        %v7530 = vunpack.c.l.b16 %v6958
        %v7531 = vunpack.c.h.b16 %v6958
        %v7532 = vunpack.c.l.b16 %v6959
        %v7533 = vunpack.c.h.b16 %v6959
        %v7534 = vunpack.c.l.b16 %v6960
        %v7535 = vunpack.c.h.b16 %v6960
        %v7536 = vunpack.c.l.b16 %v6961
        %v7537 = vunpack.c.h.b16 %v6961
        %v7538 = vunpack.c.l.b16 %v6962
        %v7539 = vunpack.c.h.b16 %v6962
        %v7540 = vunpack.c.l.b16 %v6963
        %v7541 = vunpack.c.h.b16 %v6963
        %v7542 = vunpack.c.l.b16 %v6964
        %v7543 = vunpack.c.h.b16 %v6964
        %v7544 = vunpack.c.l.b16 %v6965
        %v7545 = vunpack.c.h.b16 %v6965
        %v7546 = vunpack.c.l.b16 %v6966
        %v7547 = vunpack.c.h.b16 %v6966
        %v7548 = vunpack.c.l.b16 %v6967
        %v7549 = vunpack.c.h.b16 %v6967
        %v7550 = vunpack.c.l.b16 %v6968
        %v7551 = vunpack.c.h.b16 %v6968
        %v7552 = vunpack.c.l.b16 %v6969
        %v7553 = vunpack.c.h.b16 %v6969
        %v7554 = vunpack.c.l.b16 %v6970
        %v7555 = vunpack.c.h.b16 %v6970
        %v7556 = vunpack.c.l.b16 %v6971
        %v7557 = vunpack.c.h.b16 %v6971
        %v7558 = vunpack.c.l.b16 %v6972
        %v7559 = vunpack.c.h.b16 %v6972
        %v7560 = vunpack.c.l.b16 %v6973
        %v7561 = vunpack.c.h.b16 %v6973
        %v7562 = vunpack.c.l.b16 %v6974
        %v7563 = vunpack.c.h.b16 %v6974
        %v7564 = vunpack.c.l.b16 %v6975
        %v7565 = vunpack.c.h.b16 %v6975
        %v7566 = vunpack.c.l.b16 %v6976
        %v7567 = vunpack.c.h.b16 %v6976
        %v7568 = vunpack.c.l.b16 %v6977
        %v7569 = vunpack.c.h.b16 %v6977
        %v7570 = vunpack.c.l.b16 %v6978
        %v7571 = vunpack.c.h.b16 %v6978
        %v7572 = vunpack.c.l.b16 %v6979
        %v7573 = vunpack.c.h.b16 %v6979
        %v7574 = vunpack.c.l.b16 %v6980
        %v7575 = vunpack.c.h.b16 %v6980
        %v7576 = vunpack.c.l.b16 %v6981
        %v7577 = vunpack.c.h.b16 %v6981
        %v7578 = vunpack.c.l.b16 %v6982
        %v7579 = vunpack.c.h.b16 %v6982
        %v7580 = vunpack.c.l.b16 %v6983
        %v7581 = vunpack.c.h.b16 %v6983
        %v7582 = vunpack.c.l.b16 %v6984
        %v7583 = vunpack.c.h.b16 %v6984
        %v7584 = vunpack.c.l.b16 %v6985
        %v7585 = vunpack.c.h.b16 %v6985
        %v7586 = vunpack.c.l.b16 %v6986
        %v7587 = vunpack.c.h.b16 %v6986
        %v7588 = vunpack.c.l.b16 %v6987
        %v7589 = vunpack.c.h.b16 %v6987
        %v7590 = vunpack.c.l.b16 %v6988
        %v7591 = vunpack.c.h.b16 %v6988
        %v7592 = vunpack.c.l.b16 %v6989
        %v7593 = vunpack.c.h.b16 %v6989
        %v7594 = vunpack.c.l.b16 %v6990
        %v7595 = vunpack.c.h.b16 %v6990
        %v7596 = vunpack.c.l.b16 %v6991
        %v7597 = vunpack.c.h.b16 %v6991
        %v7598 = vunpack.c.l.b16 %v6992
        %v7599 = vunpack.c.h.b16 %v6992
        %v7600 = vunpack.c.l.b16 %v6993
        %v7601 = vunpack.c.h.b16 %v6993
        %v7602 = vunpack.c.l.b16 %v6994
        %v7603 = vunpack.c.h.b16 %v6994
        %v7604 = vunpack.c.l.b16 %v6995
        %v7605 = vunpack.c.h.b16 %v6995
        %v7606 = vunpack.c.l.b16 %v6996
        %v7607 = vunpack.c.h.b16 %v6996
        %v7608 = vunpack.c.l.b16 %v6997
        %v7609 = vunpack.c.h.b16 %v6997
        %v7610 = vunpack.c.l.b16 %v6998
        %v7611 = vunpack.c.h.b16 %v6998
        %v7612 = vunpack.c.l.b16 %v6999
        %v7613 = vunpack.c.h.b16 %v6999
        %v7614 = vunpack.c.l.b16 %v7000
        %v7615 = vunpack.c.h.b16 %v7000
        %v7616 = vunpack.c.l.b16 %v7001
        %v7617 = vunpack.c.h.b16 %v7001
        %v7618 = vunpack.c.l.b16 %v7002
        %v7619 = vunpack.c.h.b16 %v7002
        %v7620 = vunpack.c.l.b16 %v7003
        %v7621 = vunpack.c.h.b16 %v7003
        %v7622 = vunpack.c.l.b16 %v7004
        %v7623 = vunpack.c.h.b16 %v7004
        %v7624 = vunpack.c.l.b16 %v7005
        %v7625 = vunpack.c.h.b16 %v7005
        %v7626 = vunpack.c.l.b16 %v7006
        %v7627 = vunpack.c.h.b16 %v7006
        %v7628 = vunpack.c.l.b16 %v7007
        %v7629 = vunpack.c.h.b16 %v7007
        %v7630 = vunpack.c.l.b16 %v7008
        %v7631 = vunpack.c.h.b16 %v7008
        %v7632 = vunpack.c.l.b16 %v7009
        %v7633 = vunpack.c.h.b16 %v7009
        %v7634 = vunpack.c.l.b16 %v7010
        %v7635 = vunpack.c.h.b16 %v7010
        %v7636 = vunpack.c.l.b16 %v7011
        %v7637 = vunpack.c.h.b16 %v7011
        %v7638 = vunpack.c.l.b16 %v7012
        %v7639 = vunpack.c.h.b16 %v7012
        %v7640 = vunpack.c.l.b16 %v7013
        %v7641 = vunpack.c.h.b16 %v7013
        %v7642 = vunpack.c.l.b16 %v7014
        %v7643 = vunpack.c.h.b16 %v7014
        %v7644 = vunpack.c.l.b16 %v7015
        %v7645 = vunpack.c.h.b16 %v7015
        %v7646 = vunpack.c.l.b16 %v7016
        %v7647 = vunpack.c.h.b16 %v7016
        %v7648 = vunpack.c.l.b16 %v7017
        %v7649 = vunpack.c.h.b16 %v7017
        %v7650 = vunpack.c.l.b16 %v7018
        %v7651 = vunpack.c.h.b16 %v7018
        %v7652 = vunpack.c.l.b16 %v7019
        %v7653 = vunpack.c.h.b16 %v7019
        %v7654 = vunpack.c.l.b16 %v7020
        %v7655 = vunpack.c.h.b16 %v7020
        %v7656 = vunpack.c.l.b16 %v7021
        %v7657 = vunpack.c.h.b16 %v7021
        %v7658 = vunpack.c.l.b16 %v7022
        %v7659 = vunpack.c.h.b16 %v7022
        %v7660 = vunpack.c.l.b16 %v7023
        %v7661 = vunpack.c.h.b16 %v7023
        %v7662 = vunpack.c.l.b16 %v7024
        %v7663 = vunpack.c.h.b16 %v7024
        %v7664 = vunpack.c.l.b16 %v7025
        %v7665 = vunpack.c.h.b16 %v7025
        %v7666 = vunpack.c.l.b16 %v7026
        %v7667 = vunpack.c.h.b16 %v7026
        %v7668 = vunpack.c.l.b16 %v7027
        %v7669 = vunpack.c.h.b16 %v7027
        %v7670 = vunpack.c.l.b16 %v7028
        %v7671 = vunpack.c.h.b16 %v7028
        %v7672 = vunpack.c.l.b16 %v7029
        %v7673 = vunpack.c.h.b16 %v7029
        %v7674 = vunpack.c.l.b16 %v7030
        %v7675 = vunpack.c.h.b16 %v7030
        %v7676 = vunpack.c.l.b16 %v7031
        %v7677 = vunpack.c.h.b16 %v7031
        %v7678 = vunpack.c.l.b16 %v7032
        %v7679 = vunpack.c.h.b16 %v7032
        %v7680 = vunpack.c.l.b16 %v7033
        %v7681 = vunpack.c.h.b16 %v7033
        %v7682 = vunpack.c.l.b16 %v7034
        %v7683 = vunpack.c.h.b16 %v7034
        %v7684 = vunpack.c.l.b16 %v7035
        %v7685 = vunpack.c.h.b16 %v7035
        %v7686 = vunpack.c.l.b16 %v7036
        %v7687 = vunpack.c.h.b16 %v7036
        %v7688 = vunpack.c.l.b16 %v7037
        %v7689 = vunpack.c.h.b16 %v7037
        %v7690 = vunpack.c.l.b16 %v7038
        %v7691 = vunpack.c.h.b16 %v7038
        %v7692 = vunpack.c.l.b16 %v7039
        %v7693 = vunpack.c.h.b16 %v7039
        %v7694 = vunpack.c.l.b16 %v7040
        %v7695 = vunpack.c.h.b16 %v7040
        %v7696 = vunpack.c.l.b16 %v7041
        %v7697 = vunpack.c.h.b16 %v7041
        %v7698 = vunpack.c.l.b16 %v7042
        %v7699 = vunpack.c.h.b16 %v7042
        %v7700 = vunpack.c.l.b16 %v7043
        %v7701 = vunpack.c.h.b16 %v7043
        %v7702 = vunpack.c.l.b16 %v7044
        %v7703 = vunpack.c.h.b16 %v7044
        %v7704 = vunpack.c.l.b16 %v7045
        %v7705 = vunpack.c.h.b16 %v7045
        %v7706 = vunpack.c.l.b16 %v7046
        %v7707 = vunpack.c.h.b16 %v7046
        %v7708 = vunpack.c.l.b16 %v7047
        %v7709 = vunpack.c.h.b16 %v7047
        %v7710 = vunpack.c.l.b16 %v7048
        %v7711 = vunpack.c.h.b16 %v7048
        %v7712 = vunpack.c.l.b16 %v7049
        %v7713 = vunpack.c.h.b16 %v7049
        %v7714 = vunpack.c.l.b16 %v7050
        %v7715 = vunpack.c.h.b16 %v7050
        %v7716 = vunpack.c.l.b16 %v7051
        %v7717 = vunpack.c.h.b16 %v7051
        %v7718 = vunpack.c.l.b16 %v7052
        %v7719 = vunpack.c.h.b16 %v7052
        %v7720 = vunpack.c.l.b16 %v7053
        %v7721 = vunpack.c.h.b16 %v7053
        %v7722 = vunpack.c.l.b16 %v7054
        %v7723 = vunpack.c.h.b16 %v7054
        %v7724 = vunpack.c.l.b16 %v7055
        %v7725 = vunpack.c.h.b16 %v7055
        %v7726 = vunpack.c.l.b16 %v7056
        %v7727 = vunpack.c.h.b16 %v7056
        %v7728 = vunpack.c.l.b16 %v7057
        %v7729 = vunpack.c.h.b16 %v7057
        %v7730 = vunpack.c.l.b16 %v7058
        %v7731 = vunpack.c.h.b16 %v7058
        %v7732 = vunpack.c.l.b16 %v7059
        %v7733 = vunpack.c.h.b16 %v7059
        %v7734 = vunpack.c.l.b16 %v7060
        %v7735 = vunpack.c.h.b16 %v7060
        %v7736 = vunpack.c.l.b16 %v7061
        %v7737 = vunpack.c.h.b16 %v7061
        %v7738 = vunpack.c.l.b16 %v7062
        %v7739 = vunpack.c.h.b16 %v7062
        %v7740 = vunpack.c.l.b16 %v7063
        %v7741 = vunpack.c.h.b16 %v7063
        %v7742 = vunpack.c.l.b16 %v7064
        %v7743 = vunpack.c.h.b16 %v7064
        %v7744 = vunpack.c.l.b16 %v7065
        %v7745 = vunpack.c.h.b16 %v7065
        %v7746 = vunpack.c.l.b16 %v7066
        %v7747 = vunpack.c.h.b16 %v7066
        %v7748 = vunpack.c.l.b16 %v7067
        %v7749 = vunpack.c.h.b16 %v7067
        %v7750 = vunpack.c.l.b16 %v7068
        %v7751 = vunpack.c.h.b16 %v7068
        %v7752 = vunpack.c.l.b16 %v7069
        %v7753 = vunpack.c.h.b16 %v7069
        %v7754 = vunpack.c.l.b16 %v7070
        %v7755 = vunpack.c.h.b16 %v7070
        %v7756 = vunpack.c.l.b16 %v7071
        %v7757 = vunpack.c.h.b16 %v7071
        %v7758 = vunpack.c.l.b16 %v7072
        %v7759 = vunpack.c.h.b16 %v7072
        %v7760 = vunpack.c.l.b16 %v7073
        %v7761 = vunpack.c.h.b16 %v7073
        %v7762 = vunpack.c.l.b16 %v7074
        %v7763 = vunpack.c.h.b16 %v7074
        %v7764 = vunpack.c.l.b16 %v7075
        %v7765 = vunpack.c.h.b16 %v7075
        %v7766 = vunpack.c.l.b16 %v7076
        %v7767 = vunpack.c.h.b16 %v7076
        %v7768 = vunpack.c.l.b16 %v7077
        %v7769 = vunpack.c.h.b16 %v7077
        %v7770 = vunpack.c.l.b16 %v7078
        %v7771 = vunpack.c.h.b16 %v7078
        %v7772 = vunpack.c.l.b16 %v7079
        %v7773 = vunpack.c.h.b16 %v7079
        %v7774 = vunpack.c.l.b16 %v7080
        %v7775 = vunpack.c.h.b16 %v7080
        %v7776 = vunpack.c.l.b16 %v7081
        %v7777 = vunpack.c.h.b16 %v7081
        %v7778 = vunpack.c.l.b16 %v7082
        %v7779 = vunpack.c.h.b16 %v7082
        %v7780 = vunpack.c.l.b16 %v7083
        %v7781 = vunpack.c.h.b16 %v7083
        %v7782 = vunpack.c.l.b16 %v7084
        %v7783 = vunpack.c.h.b16 %v7084
        %v7784 = vunpack.c.l.b16 %v7085
        %v7785 = vunpack.c.h.b16 %v7085
        %v7786 = vunpack.c.l.b16 %v7086
        %v7787 = vunpack.c.h.b16 %v7086
        %v7788 = vunpack.c.l.b16 %v7087
        %v7789 = vunpack.c.h.b16 %v7087
        %v7790 = vunpack.c.l.b16 %v7088
        %v7791 = vunpack.c.h.b16 %v7088
        %v7792 = vunpack.c.l.b16 %v7089
        %v7793 = vunpack.c.h.b16 %v7089
        %v7794 = vunpack.c.l.b16 %v7090
        %v7795 = vunpack.c.h.b16 %v7090
        %v7796 = vunpack.c.l.b16 %v7091
        %v7797 = vunpack.c.h.b16 %v7091
        %v7798 = vunpack.c.l.b16 %v7092
        %v7799 = vunpack.c.h.b16 %v7092
        %v7800 = vunpack.c.l.b16 %v7093
        %v7801 = vunpack.c.h.b16 %v7093
        %v7802 = vunpack.c.l.b16 %v7094
        %v7803 = vunpack.c.h.b16 %v7094
        %v7804 = vunpack.c.l.b16 %v7095
        %v7805 = vunpack.c.h.b16 %v7095
        %v7806 = vunpack.c.l.b16 %v7096
        %v7807 = vunpack.c.h.b16 %v7096
        %v7808 = vunpack.c.l.b16 %v7097
        %v7809 = vunpack.c.h.b16 %v7097
        %v7810 = vunpack.c.l.b16 %v7098
        %v7811 = vunpack.c.h.b16 %v7098
        %v7812 = vunpack.c.l.b16 %v7099
        %v7813 = vunpack.c.h.b16 %v7099
        %v7814 = vunpack.c.l.b16 %v7100
        %v7815 = vunpack.c.h.b16 %v7100
        %v7816 = vunpack.c.l.b16 %v7101
        %v7817 = vunpack.c.h.b16 %v7101
        %v7818 = vunpack.c.l.b16 %v7102
        %v7819 = vunpack.c.h.b16 %v7102
        %v7820 = vunpack.c.l.b16 %v7103
        %v7821 = vunpack.c.h.b16 %v7103
        %v7822 = vunpack.c.l.b16 %v7104
        %v7823 = vunpack.c.h.b16 %v7104
        %v7824 = vunpack.c.l.b16 %v7105
        %v7825 = vunpack.c.h.b16 %v7105
        %v7826 = vunpack.c.l.b16 %v7106
        %v7827 = vunpack.c.h.b16 %v7106
        %v7828 = vunpack.c.l.b16 %v7107
        %v7829 = vunpack.c.h.b16 %v7107
        %v7830 = vunpack.c.l.b16 %v7108
        %v7831 = vunpack.c.h.b16 %v7108
        %v7832 = vunpack.c.l.b16 %v7109
        %v7833 = vunpack.c.h.b16 %v7109
        %v7834 = vunpack.c.l.b16 %v7110
        %v7835 = vunpack.c.h.b16 %v7110
        %v7836 = vunpack.c.l.b16 %v7111
        %v7837 = vunpack.c.h.b16 %v7111
        %v7838 = vunpack.c.l.b16 %v7112
        %v7839 = vunpack.c.h.b16 %v7112
        %v7840 = vunpack.c.l.b16 %v7113
        %v7841 = vunpack.c.h.b16 %v7113
        %v7842 = vunpack.c.l.b16 %v7114
        %v7843 = vunpack.c.h.b16 %v7114
        %v7844 = vunpack.c.l.b16 %v7115
        %v7845 = vunpack.c.h.b16 %v7115
        %v7846 = vunpack.c.l.b16 %v7116
        %v7847 = vunpack.c.h.b16 %v7116
        %v7848 = vunpack.c.l.b16 %v7117
        %v7849 = vunpack.c.h.b16 %v7117
        %v7850 = vunpack.c.l.b16 %v7118
        %v7851 = vunpack.c.h.b16 %v7118
        %v7852 = vunpack.c.l.b16 %v7119
        %v7853 = vunpack.c.h.b16 %v7119
        %v7854 = vunpack.c.l.b16 %v7120
        %v7855 = vunpack.c.h.b16 %v7120
        %v7856 = vunpack.c.l.b16 %v7121
        %v7857 = vunpack.c.h.b16 %v7121
        %v7858 = vunpack.c.l.b16 %v7122
        %v7859 = vunpack.c.h.b16 %v7122
        %v7860 = vunpack.c.l.b16 %v7123
        %v7861 = vunpack.c.h.b16 %v7123
        %v7862 = vunpack.c.l.b16 %v7124
        %v7863 = vunpack.c.h.b16 %v7124
        %v7864 = vunpack.c.l.b16 %v7125
        %v7865 = vunpack.c.h.b16 %v7125
        %v7866 = vunpack.c.l.b16 %v7126
        %v7867 = vunpack.c.h.b16 %v7126
        %v7868 = vunpack.c.l.b16 %v7127
        %v7869 = vunpack.c.h.b16 %v7127
        %v7870 = vunpack.c.l.b16 %v7128
        %v7871 = vunpack.c.h.b16 %v7128
        %v7872 = vunpack.c.l.b16 %v7129
        %v7873 = vunpack.c.h.b16 %v7129
        %v7874 = vunpack.c.l.b16 %v7130
        %v7875 = vunpack.c.h.b16 %v7130
        %v7876 = vunpack.c.l.b16 %v7131
        %v7877 = vunpack.c.h.b16 %v7131
        %v7878 = vunpack.c.l.b16 %v7132
        %v7879 = vunpack.c.h.b16 %v7132
        %v7880 = vunpack.c.l.b16 %v7133
        %v7881 = vunpack.c.h.b16 %v7133
        %v7882 = vunpack.c.l.b16 %v7134
        %v7883 = vunpack.c.h.b16 %v7134
        %v7884 = vunpack.c.l.b16 %v7135
        %v7885 = vunpack.c.h.b16 %v7135
        %v7886 = vunpack.c.l.b16 %v7136
        %v7887 = vunpack.c.h.b16 %v7136
        %v7888 = vunpack.c.l.b16 %v7137
        %v7889 = vunpack.c.h.b16 %v7137
        %v7890 = vunpack.c.l.b16 %v7138
        %v7891 = vunpack.c.h.b16 %v7138
        %v7892 = vunpack.c.l.b16 %v7139
        %v7893 = vunpack.c.h.b16 %v7139
        %v7894 = vunpack.c.l.b16 %v7140
        %v7895 = vunpack.c.h.b16 %v7140
        %v7896 = vunpack.c.l.b16 %v7141
        %v7897 = vunpack.c.h.b16 %v7141
        %v7898 = vunpack.c.l.b16 %v7142
        %v7899 = vunpack.c.h.b16 %v7142
        %v7900 = vunpack.c.l.b16 %v7143
        %v7901 = vunpack.c.h.b16 %v7143
        %v7902 = vunpack.c.l.b16 %v7144
        %v7903 = vunpack.c.h.b16 %v7144
        %v7904 = vunpack.c.l.b16 %v7145
        %v7905 = vunpack.c.h.b16 %v7145
        %v7906 = vunpack.c.l.b16 %v7146
        %v7907 = vunpack.c.h.b16 %v7146
        %v7908 = vunpack.c.l.b16 %v7147
        %v7909 = vunpack.c.h.b16 %v7147
        %v7910 = vunpack.c.l.b16 %v7148
        %v7911 = vunpack.c.h.b16 %v7148
        %v7912 = vunpack.c.l.b16 %v7149
        %v7913 = vunpack.c.h.b16 %v7149
        %v7914 = vunpack.c.l.b16 %v7150
        %v7915 = vunpack.c.h.b16 %v7150
        %v7916 = vunpack.c.l.b16 %v7151
        %v7917 = vunpack.c.h.b16 %v7151
        %v7918 = vunpack.c.l.b16 %v7152
        %v7919 = vunpack.c.h.b16 %v7152
        %v7920 = vunpack.c.l.b16 %v7153
        %v7921 = vunpack.c.h.b16 %v7153
        %v7922 = vunpack.c.l.b16 %v7154
        %v7923 = vunpack.c.h.b16 %v7154
        %v7924 = vunpack.c.l.b16 %v7155
        %v7925 = vunpack.c.h.b16 %v7155
        %v7926 = vunpack.c.l.b16 %v7156
        %v7927 = vunpack.c.h.b16 %v7156
        %v7928 = vunpack.c.l.b16 %v7157
        %v7929 = vunpack.c.h.b16 %v7157
        %v7930 = vunpack.c.l.b16 %v7158
        %v7931 = vunpack.c.h.b16 %v7158
        %v7932 = vunpack.c.l.b16 %v7159
        %v7933 = vunpack.c.h.b16 %v7159
        %v7934 = vunpack.c.l.b16 %v7160
        %v7935 = vunpack.c.h.b16 %v7160
        %v7936 = vunpack.c.l.b16 %v7161
        %v7937 = vunpack.c.h.b16 %v7161
        %v7938 = vunpack.c.l.b16 %v7162
        %v7939 = vunpack.c.h.b16 %v7162
        %v7940 = vunpack.c.l.b16 %v7163
        %v7941 = vunpack.c.h.b16 %v7163
        %v7942 = vunpack.c.l.b16 %v7164
        %v7943 = vunpack.c.h.b16 %v7164
        %v7944 = vunpack.c.l.b16 %v7165
        %v7945 = vunpack.c.h.b16 %v7165
        %v7946 = vunpack.c.l.b16 %v7166
        %v7947 = vunpack.c.h.b16 %v7166
        %v7948 = vunpack.c.l.b16 %v7167
        %v7949 = vunpack.c.h.b16 %v7167
        %v7950 = vunpack.c.l.b16 %v7168
        %v7951 = vunpack.c.h.b16 %v7168
        %v7952 = vunpack.c.l.b16 %v7169
        %v7953 = vunpack.c.h.b16 %v7169
        %v7954 = vunpack.c.l.b16 %v7170
        %v7955 = vunpack.c.h.b16 %v7170
        %v7956 = vunpack.c.l.b16 %v7171
        %v7957 = vunpack.c.h.b16 %v7171
        %v7958 = vunpack.c.l.b16 %v7172
        %v7959 = vunpack.c.h.b16 %v7172
        %v7960 = vunpack.c.l.b16 %v7173
        %v7961 = vunpack.c.h.b16 %v7173
        %v7962 = vunpack.c.l.b16 %v7174
        %v7963 = vunpack.c.h.b16 %v7174
        %v7964 = vunpack.c.l.b16 %v7175
        %v7965 = vunpack.c.h.b16 %v7175
        %v7966 = vpack.c.b16 %v7458, %v7454
        %v7967 = vpack.c.b16 %v7459, %v7455
        %v7968 = vpack.c.b16 %v7460, %v7456
        %v7969 = vpack.c.b16 %v7461, %v7457
        %v7970 = vpack.c.b16 %v7466, %v7462
        %v7971 = vpack.c.b16 %v7467, %v7463
        %v7972 = vpack.c.b16 %v7468, %v7464
        %v7973 = vpack.c.b16 %v7469, %v7465
        %v7974 = vpack.c.b16 %v7474, %v7470
        %v7975 = vpack.c.b16 %v7475, %v7471
        %v7976 = vpack.c.b16 %v7476, %v7472
        %v7977 = vpack.c.b16 %v7477, %v7473
        %v7978 = vpack.c.b16 %v7482, %v7478
        %v7979 = vpack.c.b16 %v7483, %v7479
        %v7980 = vpack.c.b16 %v7484, %v7480
        %v7981 = vpack.c.b16 %v7485, %v7481
        %v7982 = vpack.c.b16 %v7490, %v7486
        %v7983 = vpack.c.b16 %v7491, %v7487
        %v7984 = vpack.c.b16 %v7492, %v7488
        %v7985 = vpack.c.b16 %v7493, %v7489
        %v7986 = vpack.c.b16 %v7498, %v7494
        %v7987 = vpack.c.b16 %v7499, %v7495
        %v7988 = vpack.c.b16 %v7500, %v7496
        %v7989 = vpack.c.b16 %v7501, %v7497
        %v7990 = vpack.c.b16 %v7506, %v7502
        %v7991 = vpack.c.b16 %v7507, %v7503
        %v7992 = vpack.c.b16 %v7508, %v7504
        %v7993 = vpack.c.b16 %v7509, %v7505
        %v7994 = vpack.c.b16 %v7514, %v7510
        %v7995 = vpack.c.b16 %v7515, %v7511
        %v7996 = vpack.c.b16 %v7516, %v7512
        %v7997 = vpack.c.b16 %v7517, %v7513
        %v7998 = vpack.c.b16 %v7522, %v7518
        %v7999 = vpack.c.b16 %v7523, %v7519
        %v8000 = vpack.c.b16 %v7524, %v7520
        %v8001 = vpack.c.b16 %v7525, %v7521
        %v8002 = vpack.c.b16 %v7530, %v7526
        %v8003 = vpack.c.b16 %v7531, %v7527
        %v8004 = vpack.c.b16 %v7532, %v7528
        %v8005 = vpack.c.b16 %v7533, %v7529
        %v8006 = vpack.c.b16 %v7538, %v7534
        %v8007 = vpack.c.b16 %v7539, %v7535
        %v8008 = vpack.c.b16 %v7540, %v7536
        %v8009 = vpack.c.b16 %v7541, %v7537
        %v8010 = vpack.c.b16 %v7546, %v7542
        %v8011 = vpack.c.b16 %v7547, %v7543
        %v8012 = vpack.c.b16 %v7548, %v7544
        %v8013 = vpack.c.b16 %v7549, %v7545
        %v8014 = vpack.c.b16 %v7554, %v7550
        %v8015 = vpack.c.b16 %v7555, %v7551
        %v8016 = vpack.c.b16 %v7556, %v7552
        %v8017 = vpack.c.b16 %v7557, %v7553
        %v8018 = vpack.c.b16 %v7562, %v7558
        %v8019 = vpack.c.b16 %v7563, %v7559
        %v8020 = vpack.c.b16 %v7564, %v7560
        %v8021 = vpack.c.b16 %v7565, %v7561
        %v8022 = vpack.c.b16 %v7570, %v7566
        %v8023 = vpack.c.b16 %v7571, %v7567
        %v8024 = vpack.c.b16 %v7572, %v7568
        %v8025 = vpack.c.b16 %v7573, %v7569
        %v8026 = vpack.c.b16 %v7578, %v7574
        %v8027 = vpack.c.b16 %v7579, %v7575
        %v8028 = vpack.c.b16 %v7580, %v7576
        %v8029 = vpack.c.b16 %v7581, %v7577
        %v8030 = vpack.c.b16 %v7586, %v7582
        %v8031 = vpack.c.b16 %v7587, %v7583
        %v8032 = vpack.c.b16 %v7588, %v7584
        %v8033 = vpack.c.b16 %v7589, %v7585
        %v8034 = vpack.c.b16 %v7594, %v7590
        %v8035 = vpack.c.b16 %v7595, %v7591
        %v8036 = vpack.c.b16 %v7596, %v7592
        %v8037 = vpack.c.b16 %v7597, %v7593
        %v8038 = vpack.c.b16 %v7602, %v7598
        %v8039 = vpack.c.b16 %v7603, %v7599
        %v8040 = vpack.c.b16 %v7604, %v7600
        %v8041 = vpack.c.b16 %v7605, %v7601
        %v8042 = vpack.c.b16 %v7610, %v7606
        %v8043 = vpack.c.b16 %v7611, %v7607
        %v8044 = vpack.c.b16 %v7612, %v7608
        %v8045 = vpack.c.b16 %v7613, %v7609
        %v8046 = vpack.c.b16 %v7618, %v7614
        %v8047 = vpack.c.b16 %v7619, %v7615
        %v8048 = vpack.c.b16 %v7620, %v7616
        %v8049 = vpack.c.b16 %v7621, %v7617
        %v8050 = vpack.c.b16 %v7626, %v7622
        %v8051 = vpack.c.b16 %v7627, %v7623
        %v8052 = vpack.c.b16 %v7628, %v7624
        %v8053 = vpack.c.b16 %v7629, %v7625
        %v8054 = vpack.c.b16 %v7634, %v7630
        %v8055 = vpack.c.b16 %v7635, %v7631
        %v8056 = vpack.c.b16 %v7636, %v7632
        %v8057 = vpack.c.b16 %v7637, %v7633
        %v8058 = vpack.c.b16 %v7642, %v7638
        %v8059 = vpack.c.b16 %v7643, %v7639
        %v8060 = vpack.c.b16 %v7644, %v7640
        %v8061 = vpack.c.b16 %v7645, %v7641
        %v8062 = vpack.c.b16 %v7650, %v7646
        %v8063 = vpack.c.b16 %v7651, %v7647
        %v8064 = vpack.c.b16 %v7652, %v7648
        %v8065 = vpack.c.b16 %v7653, %v7649
        %v8066 = vpack.c.b16 %v7658, %v7654
        %v8067 = vpack.c.b16 %v7659, %v7655
        %v8068 = vpack.c.b16 %v7660, %v7656
        %v8069 = vpack.c.b16 %v7661, %v7657
        %v8070 = vpack.c.b16 %v7666, %v7662
        %v8071 = vpack.c.b16 %v7667, %v7663
        %v8072 = vpack.c.b16 %v7668, %v7664
        %v8073 = vpack.c.b16 %v7669, %v7665
        %v8074 = vpack.c.b16 %v7674, %v7670
        %v8075 = vpack.c.b16 %v7675, %v7671
        %v8076 = vpack.c.b16 %v7676, %v7672
        %v8077 = vpack.c.b16 %v7677, %v7673
        %v8078 = vpack.c.b16 %v7682, %v7678
        %v8079 = vpack.c.b16 %v7683, %v7679
        %v8080 = vpack.c.b16 %v7684, %v7680
        %v8081 = vpack.c.b16 %v7685, %v7681
        %v8082 = vpack.c.b16 %v7690, %v7686
        %v8083 = vpack.c.b16 %v7691, %v7687
        %v8084 = vpack.c.b16 %v7692, %v7688
        %v8085 = vpack.c.b16 %v7693, %v7689
        %v8086 = vpack.c.b16 %v7698, %v7694
        %v8087 = vpack.c.b16 %v7699, %v7695
        %v8088 = vpack.c.b16 %v7700, %v7696
        %v8089 = vpack.c.b16 %v7701, %v7697
        %v8090 = vpack.c.b16 %v7706, %v7702
        %v8091 = vpack.c.b16 %v7707, %v7703
        %v8092 = vpack.c.b16 %v7708, %v7704
        %v8093 = vpack.c.b16 %v7709, %v7705
        %v8094 = vpack.c.b16 %v7714, %v7710
        %v8095 = vpack.c.b16 %v7715, %v7711
        %v8096 = vpack.c.b16 %v7716, %v7712
        %v8097 = vpack.c.b16 %v7717, %v7713
        %v8098 = vpack.c.b16 %v7722, %v7718
        %v8099 = vpack.c.b16 %v7723, %v7719
        %v8100 = vpack.c.b16 %v7724, %v7720
        %v8101 = vpack.c.b16 %v7725, %v7721
        %v8102 = vpack.c.b16 %v7730, %v7726
        %v8103 = vpack.c.b16 %v7731, %v7727
        %v8104 = vpack.c.b16 %v7732, %v7728
        %v8105 = vpack.c.b16 %v7733, %v7729
        %v8106 = vpack.c.b16 %v7738, %v7734
        %v8107 = vpack.c.b16 %v7739, %v7735
        %v8108 = vpack.c.b16 %v7740, %v7736
        %v8109 = vpack.c.b16 %v7741, %v7737
        %v8110 = vpack.c.b16 %v7746, %v7742
        %v8111 = vpack.c.b16 %v7747, %v7743
        %v8112 = vpack.c.b16 %v7748, %v7744
        %v8113 = vpack.c.b16 %v7749, %v7745
        %v8114 = vpack.c.b16 %v7754, %v7750
        %v8115 = vpack.c.b16 %v7755, %v7751
        %v8116 = vpack.c.b16 %v7756, %v7752
        %v8117 = vpack.c.b16 %v7757, %v7753
        %v8118 = vpack.c.b16 %v7762, %v7758
        %v8119 = vpack.c.b16 %v7763, %v7759
        %v8120 = vpack.c.b16 %v7764, %v7760
        %v8121 = vpack.c.b16 %v7765, %v7761
        %v8122 = vpack.c.b16 %v7770, %v7766
        %v8123 = vpack.c.b16 %v7771, %v7767
        %v8124 = vpack.c.b16 %v7772, %v7768
        %v8125 = vpack.c.b16 %v7773, %v7769
        %v8126 = vpack.c.b16 %v7778, %v7774
        %v8127 = vpack.c.b16 %v7779, %v7775
        %v8128 = vpack.c.b16 %v7780, %v7776
        %v8129 = vpack.c.b16 %v7781, %v7777
        %v8130 = vpack.c.b16 %v7786, %v7782
        %v8131 = vpack.c.b16 %v7787, %v7783
        %v8132 = vpack.c.b16 %v7788, %v7784
        %v8133 = vpack.c.b16 %v7789, %v7785
        %v8134 = vpack.c.b16 %v7794, %v7790
        %v8135 = vpack.c.b16 %v7795, %v7791
        %v8136 = vpack.c.b16 %v7796, %v7792
        %v8137 = vpack.c.b16 %v7797, %v7793
        %v8138 = vpack.c.b16 %v7802, %v7798
        %v8139 = vpack.c.b16 %v7803, %v7799
        %v8140 = vpack.c.b16 %v7804, %v7800
        %v8141 = vpack.c.b16 %v7805, %v7801
        %v8142 = vpack.c.b16 %v7810, %v7806
        %v8143 = vpack.c.b16 %v7811, %v7807
        %v8144 = vpack.c.b16 %v7812, %v7808
        %v8145 = vpack.c.b16 %v7813, %v7809
        %v8146 = vpack.c.b16 %v7818, %v7814
        %v8147 = vpack.c.b16 %v7819, %v7815
        %v8148 = vpack.c.b16 %v7820, %v7816
        %v8149 = vpack.c.b16 %v7821, %v7817
        %v8150 = vpack.c.b16 %v7826, %v7822
        %v8151 = vpack.c.b16 %v7827, %v7823
        %v8152 = vpack.c.b16 %v7828, %v7824
        %v8153 = vpack.c.b16 %v7829, %v7825
        %v8154 = vpack.c.b16 %v7834, %v7830
        %v8155 = vpack.c.b16 %v7835, %v7831
        %v8156 = vpack.c.b16 %v7836, %v7832
        %v8157 = vpack.c.b16 %v7837, %v7833
        %v8158 = vpack.c.b16 %v7842, %v7838
        %v8159 = vpack.c.b16 %v7843, %v7839
        %v8160 = vpack.c.b16 %v7844, %v7840
        %v8161 = vpack.c.b16 %v7845, %v7841
        %v8162 = vpack.c.b16 %v7850, %v7846
        %v8163 = vpack.c.b16 %v7851, %v7847
        %v8164 = vpack.c.b16 %v7852, %v7848
        %v8165 = vpack.c.b16 %v7853, %v7849
        %v8166 = vpack.c.b16 %v7858, %v7854
        %v8167 = vpack.c.b16 %v7859, %v7855
        %v8168 = vpack.c.b16 %v7860, %v7856
        %v8169 = vpack.c.b16 %v7861, %v7857
        %v8170 = vpack.c.b16 %v7866, %v7862
        %v8171 = vpack.c.b16 %v7867, %v7863
        %v8172 = vpack.c.b16 %v7868, %v7864
        %v8173 = vpack.c.b16 %v7869, %v7865
        %v8174 = vpack.c.b16 %v7874, %v7870
        %v8175 = vpack.c.b16 %v7875, %v7871
        %v8176 = vpack.c.b16 %v7876, %v7872
        %v8177 = vpack.c.b16 %v7877, %v7873
        %v8178 = vpack.c.b16 %v7882, %v7878
        %v8179 = vpack.c.b16 %v7883, %v7879
        %v8180 = vpack.c.b16 %v7884, %v7880
        %v8181 = vpack.c.b16 %v7885, %v7881
        %v8182 = vpack.c.b16 %v7890, %v7886
        %v8183 = vpack.c.b16 %v7891, %v7887
        %v8184 = vpack.c.b16 %v7892, %v7888
        %v8185 = vpack.c.b16 %v7893, %v7889
        %v8186 = vpack.c.b16 %v7898, %v7894
        %v8187 = vpack.c.b16 %v7899, %v7895
        %v8188 = vpack.c.b16 %v7900, %v7896
        %v8189 = vpack.c.b16 %v7901, %v7897
        %v8190 = vpack.c.b16 %v7906, %v7902
        %v8191 = vpack.c.b16 %v7907, %v7903
        %v8192 = vpack.c.b16 %v7908, %v7904
        %v8193 = vpack.c.b16 %v7909, %v7905
        %v8194 = vpack.c.b16 %v7914, %v7910
        %v8195 = vpack.c.b16 %v7915, %v7911
        %v8196 = vpack.c.b16 %v7916, %v7912
        %v8197 = vpack.c.b16 %v7917, %v7913
        %v8198 = vpack.c.b16 %v7922, %v7918
        %v8199 = vpack.c.b16 %v7923, %v7919
        %v8200 = vpack.c.b16 %v7924, %v7920
        %v8201 = vpack.c.b16 %v7925, %v7921
        %v8202 = vpack.c.b16 %v7930, %v7926
        %v8203 = vpack.c.b16 %v7931, %v7927
        %v8204 = vpack.c.b16 %v7932, %v7928
        %v8205 = vpack.c.b16 %v7933, %v7929
        %v8206 = vpack.c.b16 %v7938, %v7934
        %v8207 = vpack.c.b16 %v7939, %v7935
        %v8208 = vpack.c.b16 %v7940, %v7936
        %v8209 = vpack.c.b16 %v7941, %v7937
        %v8210 = vpack.c.b16 %v7946, %v7942
        %v8211 = vpack.c.b16 %v7947, %v7943
        %v8212 = vpack.c.b16 %v7948, %v7944
        %v8213 = vpack.c.b16 %v7949, %v7945
        %v8214 = vpack.c.b16 %v7954, %v7950
        %v8215 = vpack.c.b16 %v7955, %v7951
        %v8216 = vpack.c.b16 %v7956, %v7952
        %v8217 = vpack.c.b16 %v7957, %v7953
        %v8218 = vpack.c.b16 %v7962, %v7958
        %v8219 = vpack.c.b16 %v7963, %v7959
        %v8220 = vpack.c.b16 %v7964, %v7960
        %v8221 = vpack.c.b16 %v7965, %v7961
        %8478 = vmatprep.subr.bf16.mxu0 %v7995
        %8479 = vmatpush1.bf16.msra.mxu0 %v7994
        %8480 = vmatprep.subr.bf16.mxu0 %v7991
        %8481 = vmatpush1.bf16.msra.mxu0 %v7990
        %8482 = vmatprep.subr.bf16.mxu0 %v7987
        %8483 = vmatpush1.bf16.msra.mxu0 %v7986
        %8484 = vmatprep.subr.bf16.mxu0 %v7983
        %8485 = vmatpush1.bf16.msra.mxu0 %v7982
        %8486 = vmatprep.subr.bf16.mxu0 %v7979
        %8487 = vmatpush1.bf16.msra.mxu0 %v7978
        %8488 = vmatprep.subr.bf16.mxu0 %v7975
        %8489 = vmatpush1.bf16.msra.mxu0 %v7974
        %8490 = vmatprep.subr.bf16.mxu0 %v7971
        %8491 = vmatpush1.bf16.msra.mxu0 %v7970
        %8492 = vmatprep.subr.bf16.mxu0 %v7967
        %8493 = vmatpush1.bf16.msra.mxu0 %v7966
        %8494 = vmatprep.subr.bf16.mxu0 %v8027
        %8495 = vmatpush2.bf16.msra.mxu0 %v8026
        %8496 = vmatprep.subr.bf16.mxu0 %v8023
        %8497 = vmatpush2.bf16.msra.mxu0 %v8022
        %8498 = vmatprep.subr.bf16.mxu0 %v8019
        %8499 = vmatpush2.bf16.msra.mxu0 %v8018
        %8500 = vmatprep.subr.bf16.mxu0 %v8015
        %8501 = vmatpush2.bf16.msra.mxu0 %v8014
        %8502 = vmatprep.subr.bf16.mxu0 %v8011
        %8503 = vmatpush2.bf16.msra.mxu0 %v8010
        %8504 = vmatprep.subr.bf16.mxu0 %v8007
        %8505 = vmatpush2.bf16.msra.mxu0 %v8006
        %8506 = vmatprep.subr.bf16.mxu0 %v8003
        %8507 = vmatpush2.bf16.msra.mxu0 %v8002
        %8508 = vmatprep.subr.bf16.mxu0 %v7999
        %8509 = vmatpush2.bf16.msra.mxu0 %v7998
        %8510 = vmatprep.mubr.bf16.mxu0 %v6913
        %8511 = vmatmul.mubr.bf16.gmra.mxu0 %v6912
        %v8512 = vpop.f32.mrf.mxu0
        %v8513 = vadd.f32 %v7181, %v8512
        %v8514 = vpop.f32.mrf.mxu0
        %v8515 = vadd.f32 %v7185, %v8514
        %v8516 = vpop.f32.mrf.mxu0
        %v8517 = vpop.f32.mrf.mxu0
        %8518 = vdwg.mxu0
        %8519 = vmatprep.subr.bf16.mxu0 %v8059
        %8520 = vmatpush1.bf16.msra.mxu0 %v8058
        %8521 = vmatprep.subr.bf16.mxu0 %v8055
        %8522 = vmatpush1.bf16.msra.mxu0 %v8054
        %8523 = vmatprep.subr.bf16.mxu0 %v8051
        %8524 = vmatpush1.bf16.msra.mxu0 %v8050
        %8525 = vmatprep.subr.bf16.mxu0 %v8047
        %8526 = vmatpush1.bf16.msra.mxu0 %v8046
        %8527 = vmatprep.subr.bf16.mxu0 %v8043
        %8528 = vmatpush1.bf16.msra.mxu0 %v8042
        %8529 = vmatprep.subr.bf16.mxu0 %v8039
        %8530 = vmatpush1.bf16.msra.mxu0 %v8038
        %8531 = vmatprep.subr.bf16.mxu0 %v8035
        %8532 = vmatpush1.bf16.msra.mxu0 %v8034
        %8533 = vmatprep.subr.bf16.mxu0 %v8031
        %8534 = vmatpush1.bf16.msra.mxu0 %v8030
        %8535 = vmatprep.subr.bf16.mxu0 %v8091
        %8536 = vmatpush2.bf16.msra.mxu0 %v8090
        %8537 = vmatprep.subr.bf16.mxu0 %v8087
        %8538 = vmatpush2.bf16.msra.mxu0 %v8086
        %8539 = vmatprep.subr.bf16.mxu0 %v8083
        %8540 = vmatpush2.bf16.msra.mxu0 %v8082
        %8541 = vmatprep.subr.bf16.mxu0 %v8079
        %8542 = vmatpush2.bf16.msra.mxu0 %v8078
        %8543 = vmatprep.subr.bf16.mxu0 %v8075
        %8544 = vmatpush2.bf16.msra.mxu0 %v8074
        %8545 = vmatprep.subr.bf16.mxu0 %v8071
        %8546 = vmatpush2.bf16.msra.mxu0 %v8070
        %8547 = vmatprep.subr.bf16.mxu0 %v8067
        %8548 = vmatpush2.bf16.msra.mxu0 %v8066
        %8549 = vmatprep.subr.bf16.mxu0 %v8063
        %8550 = vmatpush2.bf16.msra.mxu0 %v8062
        %8551 = vmatprep.mubr.bf16.mxu0 %v6915
        %8552 = vmatmul.mubr.bf16.gmra.mxu0 %v6914
        %v8553 = vpop.f32.mrf.mxu0
        %v8554 = vadd.f32 %v8513, %v8553
        %v8555 = vpop.f32.mrf.mxu0
        %v8556 = vadd.f32 %v8515, %v8555
        %v8557 = vpop.f32.mrf.mxu0
        %v8558 = vpop.f32.mrf.mxu0
        %8559 = vdwg.mxu0
        %8560 = vmatprep.subr.bf16.mxu0 %v8123
        %8561 = vmatpush1.bf16.msra.mxu0 %v8122
        %8562 = vmatprep.subr.bf16.mxu0 %v8119
        %8563 = vmatpush1.bf16.msra.mxu0 %v8118
        %8564 = vmatprep.subr.bf16.mxu0 %v8115
        %8565 = vmatpush1.bf16.msra.mxu0 %v8114
        %8566 = vmatprep.subr.bf16.mxu0 %v8111
        %8567 = vmatpush1.bf16.msra.mxu0 %v8110
        %8568 = vmatprep.subr.bf16.mxu0 %v8107
        %8569 = vmatpush1.bf16.msra.mxu0 %v8106
        %8570 = vmatprep.subr.bf16.mxu0 %v8103
        %8571 = vmatpush1.bf16.msra.mxu0 %v8102
        %8572 = vmatprep.subr.bf16.mxu0 %v8099
        %8573 = vmatpush1.bf16.msra.mxu0 %v8098
        %8574 = vmatprep.subr.bf16.mxu0 %v8095
        %8575 = vmatpush1.bf16.msra.mxu0 %v8094
        %8576 = vmatprep.subr.bf16.mxu0 %v8155
        %8577 = vmatpush2.bf16.msra.mxu0 %v8154
        %8578 = vmatprep.subr.bf16.mxu0 %v8151
        %8579 = vmatpush2.bf16.msra.mxu0 %v8150
        %8580 = vmatprep.subr.bf16.mxu0 %v8147
        %8581 = vmatpush2.bf16.msra.mxu0 %v8146
        %8582 = vmatprep.subr.bf16.mxu0 %v8143
        %8583 = vmatpush2.bf16.msra.mxu0 %v8142
        %8584 = vmatprep.subr.bf16.mxu0 %v8139
        %8585 = vmatpush2.bf16.msra.mxu0 %v8138
        %8586 = vmatprep.subr.bf16.mxu0 %v8135
        %8587 = vmatpush2.bf16.msra.mxu0 %v8134
        %8588 = vmatprep.subr.bf16.mxu0 %v8131
        %8589 = vmatpush2.bf16.msra.mxu0 %v8130
        %8590 = vmatprep.subr.bf16.mxu0 %v8127
        %8591 = vmatpush2.bf16.msra.mxu0 %v8126
        %8592 = vmatprep.mubr.bf16.mxu0 %v6917
        %8593 = vmatmul.mubr.bf16.gmra.mxu0 %v6916
        %v8594 = vpop.f32.mrf.mxu0
        %v8595 = vadd.f32 %v8554, %v8594
        %v8596 = vpop.f32.mrf.mxu0
        %v8597 = vadd.f32 %v8556, %v8596
        %v8598 = vpop.f32.mrf.mxu0
        %v8599 = vpop.f32.mrf.mxu0
        %8600 = vdwg.mxu0
        %8601 = vmatprep.subr.bf16.mxu0 %v8187
        %8602 = vmatpush1.bf16.msra.mxu0 %v8186
        %8603 = vmatprep.subr.bf16.mxu0 %v8183
        %8604 = vmatpush1.bf16.msra.mxu0 %v8182
        %8605 = vmatprep.subr.bf16.mxu0 %v8179
        %8606 = vmatpush1.bf16.msra.mxu0 %v8178
        %8607 = vmatprep.subr.bf16.mxu0 %v8175
        %8608 = vmatpush1.bf16.msra.mxu0 %v8174
        %8609 = vmatprep.subr.bf16.mxu0 %v8171
        %8610 = vmatpush1.bf16.msra.mxu0 %v8170
        %8611 = vmatprep.subr.bf16.mxu0 %v8167
        %8612 = vmatpush1.bf16.msra.mxu0 %v8166
        %8613 = vmatprep.subr.bf16.mxu0 %v8163
        %8614 = vmatpush1.bf16.msra.mxu0 %v8162
        %8615 = vmatprep.subr.bf16.mxu0 %v8159
        %8616 = vmatpush1.bf16.msra.mxu0 %v8158
        %8617 = vmatprep.subr.bf16.mxu0 %v8219
        %8618 = vmatpush2.bf16.msra.mxu0 %v8218
        %8619 = vmatprep.subr.bf16.mxu0 %v8215
        %8620 = vmatpush2.bf16.msra.mxu0 %v8214
        %8621 = vmatprep.subr.bf16.mxu0 %v8211
        %8622 = vmatpush2.bf16.msra.mxu0 %v8210
        %8623 = vmatprep.subr.bf16.mxu0 %v8207
        %8624 = vmatpush2.bf16.msra.mxu0 %v8206
        %8625 = vmatprep.subr.bf16.mxu0 %v8203
        %8626 = vmatpush2.bf16.msra.mxu0 %v8202
        %8627 = vmatprep.subr.bf16.mxu0 %v8199
        %8628 = vmatpush2.bf16.msra.mxu0 %v8198
        %8629 = vmatprep.subr.bf16.mxu0 %v8195
        %8630 = vmatpush2.bf16.msra.mxu0 %v8194
        %8631 = vmatprep.subr.bf16.mxu0 %v8191
        %8632 = vmatpush2.bf16.msra.mxu0 %v8190
        %8633 = vmatprep.mubr.bf16.mxu0 %v6919
        %8634 = vmatmul.mubr.bf16.gmra.mxu0 %v6918
        %v8635 = vpop.f32.mrf.mxu0
        %v8636 = vadd.f32 %v8595, %v8635
        %v8637 = vpop.f32.mrf.mxu0
        %v8638 = vadd.f32 %v8597, %v8637
        %v8639 = vpop.f32.mrf.mxu0
        %v8640 = vpop.f32.mrf.mxu0
        %8641 = vdwg.mxu0
        %8642 = vmatprep.subr.bf16.mxu0 %v7997
        %8643 = vmatpush1.bf16.msra.mxu0 %v7996
        %8644 = vmatprep.subr.bf16.mxu0 %v7993
        %8645 = vmatpush1.bf16.msra.mxu0 %v7992
        %8646 = vmatprep.subr.bf16.mxu0 %v7989
        %8647 = vmatpush1.bf16.msra.mxu0 %v7988
        %8648 = vmatprep.subr.bf16.mxu0 %v7985
        %8649 = vmatpush1.bf16.msra.mxu0 %v7984
        %8650 = vmatprep.subr.bf16.mxu0 %v7981
        %8651 = vmatpush1.bf16.msra.mxu0 %v7980
        %8652 = vmatprep.subr.bf16.mxu0 %v7977
        %8653 = vmatpush1.bf16.msra.mxu0 %v7976
        %8654 = vmatprep.subr.bf16.mxu0 %v7973
        %8655 = vmatpush1.bf16.msra.mxu0 %v7972
        %8656 = vmatprep.subr.bf16.mxu0 %v7969
        %8657 = vmatpush1.bf16.msra.mxu0 %v7968
        %8658 = vmatprep.subr.bf16.mxu0 %v8029
        %8659 = vmatpush2.bf16.msra.mxu0 %v8028
        %8660 = vmatprep.subr.bf16.mxu0 %v8025
        %8661 = vmatpush2.bf16.msra.mxu0 %v8024
        %8662 = vmatprep.subr.bf16.mxu0 %v8021
        %8663 = vmatpush2.bf16.msra.mxu0 %v8020
        %8664 = vmatprep.subr.bf16.mxu0 %v8017
        %8665 = vmatpush2.bf16.msra.mxu0 %v8016
        %8666 = vmatprep.subr.bf16.mxu0 %v8013
        %8667 = vmatpush2.bf16.msra.mxu0 %v8012
        %8668 = vmatprep.subr.bf16.mxu0 %v8009
        %8669 = vmatpush2.bf16.msra.mxu0 %v8008
        %8670 = vmatprep.subr.bf16.mxu0 %v8005
        %8671 = vmatpush2.bf16.msra.mxu0 %v8004
        %8672 = vmatprep.subr.bf16.mxu0 %v8001
        %8673 = vmatpush2.bf16.msra.mxu0 %v8000
        %8674 = vmatprep.mubr.bf16.mxu0 %v6913
        %8675 = vmatmul.mubr.bf16.gmra.mxu0 %v6912
        %v8676 = vpop.f32.mrf.mxu0
        %v8677 = vadd.f32 %v7189, %v8676
        %v8678 = vpop.f32.mrf.mxu0
        %v8679 = vadd.f32 %v7193, %v8678
        %v8680 = vpop.f32.mrf.mxu0
        %v8681 = vpop.f32.mrf.mxu0
        %8682 = vdwg.mxu0
        %8683 = vmatprep.subr.bf16.mxu0 %v8061
        %8684 = vmatpush1.bf16.msra.mxu0 %v8060
        %8685 = vmatprep.subr.bf16.mxu0 %v8057
        %8686 = vmatpush1.bf16.msra.mxu0 %v8056
        %8687 = vmatprep.subr.bf16.mxu0 %v8053
        %8688 = vmatpush1.bf16.msra.mxu0 %v8052
        %8689 = vmatprep.subr.bf16.mxu0 %v8049
        %8690 = vmatpush1.bf16.msra.mxu0 %v8048
        %8691 = vmatprep.subr.bf16.mxu0 %v8045
        %8692 = vmatpush1.bf16.msra.mxu0 %v8044
        %8693 = vmatprep.subr.bf16.mxu0 %v8041
        %8694 = vmatpush1.bf16.msra.mxu0 %v8040
        %8695 = vmatprep.subr.bf16.mxu0 %v8037
        %8696 = vmatpush1.bf16.msra.mxu0 %v8036
        %8697 = vmatprep.subr.bf16.mxu0 %v8033
        %8698 = vmatpush1.bf16.msra.mxu0 %v8032
        %8699 = vmatprep.subr.bf16.mxu0 %v8093
        %8700 = vmatpush2.bf16.msra.mxu0 %v8092
        %8701 = vmatprep.subr.bf16.mxu0 %v8089
        %8702 = vmatpush2.bf16.msra.mxu0 %v8088
        %8703 = vmatprep.subr.bf16.mxu0 %v8085
        %8704 = vmatpush2.bf16.msra.mxu0 %v8084
        %8705 = vmatprep.subr.bf16.mxu0 %v8081
        %8706 = vmatpush2.bf16.msra.mxu0 %v8080
        %8707 = vmatprep.subr.bf16.mxu0 %v8077
        %8708 = vmatpush2.bf16.msra.mxu0 %v8076
        %8709 = vmatprep.subr.bf16.mxu0 %v8073
        %8710 = vmatpush2.bf16.msra.mxu0 %v8072
        %8711 = vmatprep.subr.bf16.mxu0 %v8069
        %8712 = vmatpush2.bf16.msra.mxu0 %v8068
        %8713 = vmatprep.subr.bf16.mxu0 %v8065
        %8714 = vmatpush2.bf16.msra.mxu0 %v8064
        %8715 = vmatprep.mubr.bf16.mxu0 %v6915
        %8716 = vmatmul.mubr.bf16.gmra.mxu0 %v6914
        %v8717 = vpop.f32.mrf.mxu0
        %v8718 = vadd.f32 %v8677, %v8717
        %v8719 = vpop.f32.mrf.mxu0
        %v8720 = vadd.f32 %v8679, %v8719
        %v8721 = vpop.f32.mrf.mxu0
        %v8722 = vpop.f32.mrf.mxu0
        %8723 = vdwg.mxu0
        %8724 = vmatprep.subr.bf16.mxu0 %v8125
        %8725 = vmatpush1.bf16.msra.mxu0 %v8124
        %8726 = vmatprep.subr.bf16.mxu0 %v8121
        %8727 = vmatpush1.bf16.msra.mxu0 %v8120
        %8728 = vmatprep.subr.bf16.mxu0 %v8117
        %8729 = vmatpush1.bf16.msra.mxu0 %v8116
        %8730 = vmatprep.subr.bf16.mxu0 %v8113
        %8731 = vmatpush1.bf16.msra.mxu0 %v8112
        %8732 = vmatprep.subr.bf16.mxu0 %v8109
        %8733 = vmatpush1.bf16.msra.mxu0 %v8108
        %8734 = vmatprep.subr.bf16.mxu0 %v8105
        %8735 = vmatpush1.bf16.msra.mxu0 %v8104
        %8736 = vmatprep.subr.bf16.mxu0 %v8101
        %8737 = vmatpush1.bf16.msra.mxu0 %v8100
        %8738 = vmatprep.subr.bf16.mxu0 %v8097
        %8739 = vmatpush1.bf16.msra.mxu0 %v8096
        %8740 = vmatprep.subr.bf16.mxu0 %v8157
        %8741 = vmatpush2.bf16.msra.mxu0 %v8156
        %8742 = vmatprep.subr.bf16.mxu0 %v8153
        %8743 = vmatpush2.bf16.msra.mxu0 %v8152
        %8744 = vmatprep.subr.bf16.mxu0 %v8149
        %8745 = vmatpush2.bf16.msra.mxu0 %v8148
        %8746 = vmatprep.subr.bf16.mxu0 %v8145
        %8747 = vmatpush2.bf16.msra.mxu0 %v8144
        %8748 = vmatprep.subr.bf16.mxu0 %v8141
        %8749 = vmatpush2.bf16.msra.mxu0 %v8140
        %8750 = vmatprep.subr.bf16.mxu0 %v8137
        %8751 = vmatpush2.bf16.msra.mxu0 %v8136
        %8752 = vmatprep.subr.bf16.mxu0 %v8133
        %8753 = vmatpush2.bf16.msra.mxu0 %v8132
        %8754 = vmatprep.subr.bf16.mxu0 %v8129
        %8755 = vmatpush2.bf16.msra.mxu0 %v8128
        %8756 = vmatprep.mubr.bf16.mxu0 %v6917
        %8757 = vmatmul.mubr.bf16.gmra.mxu0 %v6916
        %v8758 = vpop.f32.mrf.mxu0
        %v8759 = vadd.f32 %v8718, %v8758
        %v8760 = vpop.f32.mrf.mxu0
        %v8761 = vadd.f32 %v8720, %v8760
        %v8762 = vpop.f32.mrf.mxu0
        %v8763 = vpop.f32.mrf.mxu0
        %8764 = vdwg.mxu0
        %8765 = vmatprep.subr.bf16.mxu0 %v8189
        %8766 = vmatpush1.bf16.msra.mxu0 %v8188
        %8767 = vmatprep.subr.bf16.mxu0 %v8185
        %8768 = vmatpush1.bf16.msra.mxu0 %v8184
        %8769 = vmatprep.subr.bf16.mxu0 %v8181
        %8770 = vmatpush1.bf16.msra.mxu0 %v8180
        %8771 = vmatprep.subr.bf16.mxu0 %v8177
        %8772 = vmatpush1.bf16.msra.mxu0 %v8176
        %8773 = vmatprep.subr.bf16.mxu0 %v8173
        %8774 = vmatpush1.bf16.msra.mxu0 %v8172
        %8775 = vmatprep.subr.bf16.mxu0 %v8169
        %8776 = vmatpush1.bf16.msra.mxu0 %v8168
        %8777 = vmatprep.subr.bf16.mxu0 %v8165
        %8778 = vmatpush1.bf16.msra.mxu0 %v8164
        %8779 = vmatprep.subr.bf16.mxu0 %v8161
        %8780 = vmatpush1.bf16.msra.mxu0 %v8160
        %8781 = vmatprep.subr.bf16.mxu0 %v8221
        %8782 = vmatpush2.bf16.msra.mxu0 %v8220
        %8783 = vmatprep.subr.bf16.mxu0 %v8217
        %8784 = vmatpush2.bf16.msra.mxu0 %v8216
        %8785 = vmatprep.subr.bf16.mxu0 %v8213
        %8786 = vmatpush2.bf16.msra.mxu0 %v8212
        %8787 = vmatprep.subr.bf16.mxu0 %v8209
        %8788 = vmatpush2.bf16.msra.mxu0 %v8208
        %8789 = vmatprep.subr.bf16.mxu0 %v8205
        %8790 = vmatpush2.bf16.msra.mxu0 %v8204
        %8791 = vmatprep.subr.bf16.mxu0 %v8201
        %8792 = vmatpush2.bf16.msra.mxu0 %v8200
        %8793 = vmatprep.subr.bf16.mxu0 %v8197
        %8794 = vmatpush2.bf16.msra.mxu0 %v8196
        %8795 = vmatprep.subr.bf16.mxu0 %v8193
        %8796 = vmatpush2.bf16.msra.mxu0 %v8192
        %8797 = vmatprep.mubr.bf16.mxu0 %v6919
        %8798 = vmatmul.mubr.bf16.gmra.mxu0 %v6918
        %v8799 = vpop.f32.mrf.mxu0
        %v8800 = vadd.f32 %v8759, %v8799
        %v8801 = vpop.f32.mrf.mxu0
        %v8802 = vadd.f32 %v8761, %v8801
        %v8803 = vpop.f32.mrf.mxu0
        %v8804 = vpop.f32.mrf.mxu0
        %8805 = vdwg.mxu0
        %v8806 = vmax.f32 %v8636, 0.0
        %v8807 = vmax.f32 %v8638, 0.0
        %v8808 = vmax.f32 %v8800, 0.0
        %v8809 = vmax.f32 %v8802, 0.0
        %v8810 = vpack.c.bf16 %v8806, %v8806
        %v8811 = vpack.c.bf16 %v8807, %v8807
        %v8812 = vpack.c.bf16 %v8808, %v8808
        %v8813 = vpack.c.bf16 %v8809, %v8809
        %v8814 = vld [vmem:[#allocation7 + $0x80] sm:$0xff]
        %v8815 = vld [vmem:[#allocation7 + $0x88] sm:$0xff]
        %v8816 = vld [vmem:[#allocation7 + $0x90] sm:$0xff]
        %v8817 = vld [vmem:[#allocation7 + $0x98] sm:$0xff]
        %v8818 = vld [vmem:[#allocation7 + $0xa0] sm:$0xff]
        %v8819 = vld [vmem:[#allocation7 + $0xa8] sm:$0xff]
        %v8820 = vld [vmem:[#allocation7 + $0xb0] sm:$0xff]
        %v8821 = vld [vmem:[#allocation7 + $0xb8] sm:$0xff]
        %v8822 = vld [vmem:[#allocation7 + $0xc0] sm:$0xff]
        %v8823 = vld [vmem:[#allocation7 + $0xc8] sm:$0xff]
        %v8824 = vld [vmem:[#allocation7 + $0xd0] sm:$0xff]
        %v8825 = vld [vmem:[#allocation7 + $0xd8] sm:$0xff]
        %v8826 = vld [vmem:[#allocation7 + $0xe0] sm:$0xff]
        %v8827 = vld [vmem:[#allocation7 + $0xe8] sm:$0xff]
        %v8828 = vld [vmem:[#allocation7 + $0xf0] sm:$0xff]
        %v8829 = vld [vmem:[#allocation7 + $0xf8] sm:$0xff]
        %v8830 = vld [vmem:[#allocation7 + $0x100] sm:$0xff]
        %v8831 = vld [vmem:[#allocation7 + $0x108] sm:$0xff]
        %v8832 = vld [vmem:[#allocation7 + $0x110] sm:$0xff]
        %v8833 = vld [vmem:[#allocation7 + $0x118] sm:$0xff]
        %v8834 = vld [vmem:[#allocation7 + $0x120] sm:$0xff]
        %v8835 = vld [vmem:[#allocation7 + $0x128] sm:$0xff]
        %v8836 = vld [vmem:[#allocation7 + $0x130] sm:$0xff]
        %v8837 = vld [vmem:[#allocation7 + $0x138] sm:$0xff]
        %v8838 = vld [vmem:[#allocation7 + $0x140] sm:$0xff]
        %v8839 = vld [vmem:[#allocation7 + $0x148] sm:$0xff]
        %v8840 = vld [vmem:[#allocation7 + $0x150] sm:$0xff]
        %v8841 = vld [vmem:[#allocation7 + $0x158] sm:$0xff]
        %v8842 = vld [vmem:[#allocation7 + $0x160] sm:$0xff]
        %v8843 = vld [vmem:[#allocation7 + $0x168] sm:$0xff]
        %v8844 = vld [vmem:[#allocation7 + $0x170] sm:$0xff]
        %v8845 = vld [vmem:[#allocation7 + $0x178] sm:$0xff]
        %v8846 = vld [vmem:[#allocation7 + $0x180] sm:$0xff]
        %v8847 = vld [vmem:[#allocation7 + $0x188] sm:$0xff]
        %v8848 = vld [vmem:[#allocation7 + $0x190] sm:$0xff]
        %v8849 = vld [vmem:[#allocation7 + $0x198] sm:$0xff]
        %v8850 = vld [vmem:[#allocation7 + $0x1a0] sm:$0xff]
        %v8851 = vld [vmem:[#allocation7 + $0x1a8] sm:$0xff]
        %v8852 = vld [vmem:[#allocation7 + $0x1b0] sm:$0xff]
        %v8853 = vld [vmem:[#allocation7 + $0x1b8] sm:$0xff]
        %v8854 = vld [vmem:[#allocation7 + $0x1c0] sm:$0xff]
        %v8855 = vld [vmem:[#allocation7 + $0x1c8] sm:$0xff]
        %v8856 = vld [vmem:[#allocation7 + $0x1d0] sm:$0xff]
        %v8857 = vld [vmem:[#allocation7 + $0x1d8] sm:$0xff]
        %v8858 = vld [vmem:[#allocation7 + $0x1e0] sm:$0xff]
        %v8859 = vld [vmem:[#allocation7 + $0x1e8] sm:$0xff]
        %v8860 = vld [vmem:[#allocation7 + $0x1f0] sm:$0xff]
        %v8861 = vld [vmem:[#allocation7 + $0x1f8] sm:$0xff]
        %v8862 = vld [vmem:[#allocation7 + $0x200] sm:$0xff]
        %v8863 = vld [vmem:[#allocation7 + $0x208] sm:$0xff]
        %v8864 = vld [vmem:[#allocation7 + $0x210] sm:$0xff]
        %v8865 = vld [vmem:[#allocation7 + $0x218] sm:$0xff]
        %v8866 = vld [vmem:[#allocation7 + $0x220] sm:$0xff]
        %v8867 = vld [vmem:[#allocation7 + $0x228] sm:$0xff]
        %v8868 = vld [vmem:[#allocation7 + $0x230] sm:$0xff]
        %v8869 = vld [vmem:[#allocation7 + $0x238] sm:$0xff]
        %v8870 = vld [vmem:[#allocation7 + $0x240] sm:$0xff]
        %v8871 = vld [vmem:[#allocation7 + $0x248] sm:$0xff]
        %v8872 = vld [vmem:[#allocation7 + $0x250] sm:$0xff]
        %v8873 = vld [vmem:[#allocation7 + $0x258] sm:$0xff]
        %v8874 = vld [vmem:[#allocation7 + $0x260] sm:$0xff]
        %v8875 = vld [vmem:[#allocation7 + $0x268] sm:$0xff]
        %v8876 = vld [vmem:[#allocation7 + $0x270] sm:$0xff]
        %v8877 = vld [vmem:[#allocation7 + $0x278] sm:$0xff]
        %v8878 = vld [vmem:[#allocation11 + $0x1d] sm:$0x3]
        %v8880 = vlaneseq
        %v8881 = vshrl.u32 %v8880, 7
        %v8882 = vsub.s32 0, %v8881
        %v8883 = vrot.slane %v8878, %v8882
        %v8884 = vlaneseq
        %v8885 = vshrl.u32 %v8884, 7
        %v8886 = vsub.s32 1, %v8885
        %v8887 = vrot.slane %v8878, %v8886
        %v8954 = vunpack.c.l.b16 %v8814
        %v8955 = vunpack.c.h.b16 %v8814
        %v8956 = vunpack.c.l.b16 %v8815
        %v8957 = vunpack.c.h.b16 %v8815
        %v8958 = vunpack.c.l.b16 %v8816
        %v8959 = vunpack.c.h.b16 %v8816
        %v8960 = vunpack.c.l.b16 %v8817
        %v8961 = vunpack.c.h.b16 %v8817
        %v8962 = vunpack.c.l.b16 %v8818
        %v8963 = vunpack.c.h.b16 %v8818
        %v8964 = vunpack.c.l.b16 %v8819
        %v8965 = vunpack.c.h.b16 %v8819
        %v8966 = vunpack.c.l.b16 %v8820
        %v8967 = vunpack.c.h.b16 %v8820
        %v8968 = vunpack.c.l.b16 %v8821
        %v8969 = vunpack.c.h.b16 %v8821
        %v8970 = vunpack.c.l.b16 %v8822
        %v8971 = vunpack.c.h.b16 %v8822
        %v8972 = vunpack.c.l.b16 %v8823
        %v8973 = vunpack.c.h.b16 %v8823
        %v8974 = vunpack.c.l.b16 %v8824
        %v8975 = vunpack.c.h.b16 %v8824
        %v8976 = vunpack.c.l.b16 %v8825
        %v8977 = vunpack.c.h.b16 %v8825
        %v8978 = vunpack.c.l.b16 %v8826
        %v8979 = vunpack.c.h.b16 %v8826
        %v8980 = vunpack.c.l.b16 %v8827
        %v8981 = vunpack.c.h.b16 %v8827
        %v8982 = vunpack.c.l.b16 %v8828
        %v8983 = vunpack.c.h.b16 %v8828
        %v8984 = vunpack.c.l.b16 %v8829
        %v8985 = vunpack.c.h.b16 %v8829
        %v8986 = vunpack.c.l.b16 %v8830
        %v8987 = vunpack.c.h.b16 %v8830
        %v8988 = vunpack.c.l.b16 %v8831
        %v8989 = vunpack.c.h.b16 %v8831
        %v8990 = vunpack.c.l.b16 %v8832
        %v8991 = vunpack.c.h.b16 %v8832
        %v8992 = vunpack.c.l.b16 %v8833
        %v8993 = vunpack.c.h.b16 %v8833
        %v8994 = vunpack.c.l.b16 %v8834
        %v8995 = vunpack.c.h.b16 %v8834
        %v8996 = vunpack.c.l.b16 %v8835
        %v8997 = vunpack.c.h.b16 %v8835
        %v8998 = vunpack.c.l.b16 %v8836
        %v8999 = vunpack.c.h.b16 %v8836
        %v9000 = vunpack.c.l.b16 %v8837
        %v9001 = vunpack.c.h.b16 %v8837
        %v9002 = vunpack.c.l.b16 %v8838
        %v9003 = vunpack.c.h.b16 %v8838
        %v9004 = vunpack.c.l.b16 %v8839
        %v9005 = vunpack.c.h.b16 %v8839
        %v9006 = vunpack.c.l.b16 %v8840
        %v9007 = vunpack.c.h.b16 %v8840
        %v9008 = vunpack.c.l.b16 %v8841
        %v9009 = vunpack.c.h.b16 %v8841
        %v9010 = vunpack.c.l.b16 %v8842
        %v9011 = vunpack.c.h.b16 %v8842
        %v9012 = vunpack.c.l.b16 %v8843
        %v9013 = vunpack.c.h.b16 %v8843
        %v9014 = vunpack.c.l.b16 %v8844
        %v9015 = vunpack.c.h.b16 %v8844
        %v9016 = vunpack.c.l.b16 %v8845
        %v9017 = vunpack.c.h.b16 %v8845
        %v9018 = vunpack.c.l.b16 %v8846
        %v9019 = vunpack.c.h.b16 %v8846
        %v9020 = vunpack.c.l.b16 %v8847
        %v9021 = vunpack.c.h.b16 %v8847
        %v9022 = vunpack.c.l.b16 %v8848
        %v9023 = vunpack.c.h.b16 %v8848
        %v9024 = vunpack.c.l.b16 %v8849
        %v9025 = vunpack.c.h.b16 %v8849
        %v9026 = vunpack.c.l.b16 %v8850
        %v9027 = vunpack.c.h.b16 %v8850
        %v9028 = vunpack.c.l.b16 %v8851
        %v9029 = vunpack.c.h.b16 %v8851
        %v9030 = vunpack.c.l.b16 %v8852
        %v9031 = vunpack.c.h.b16 %v8852
        %v9032 = vunpack.c.l.b16 %v8853
        %v9033 = vunpack.c.h.b16 %v8853
        %v9034 = vunpack.c.l.b16 %v8854
        %v9035 = vunpack.c.h.b16 %v8854
        %v9036 = vunpack.c.l.b16 %v8855
        %v9037 = vunpack.c.h.b16 %v8855
        %v9038 = vunpack.c.l.b16 %v8856
        %v9039 = vunpack.c.h.b16 %v8856
        %v9040 = vunpack.c.l.b16 %v8857
        %v9041 = vunpack.c.h.b16 %v8857
        %v9042 = vunpack.c.l.b16 %v8858
        %v9043 = vunpack.c.h.b16 %v8858
        %v9044 = vunpack.c.l.b16 %v8859
        %v9045 = vunpack.c.h.b16 %v8859
        %v9046 = vunpack.c.l.b16 %v8860
        %v9047 = vunpack.c.h.b16 %v8860
        %v9048 = vunpack.c.l.b16 %v8861
        %v9049 = vunpack.c.h.b16 %v8861
        %v9050 = vunpack.c.l.b16 %v8862
        %v9051 = vunpack.c.h.b16 %v8862
        %v9052 = vunpack.c.l.b16 %v8863
        %v9053 = vunpack.c.h.b16 %v8863
        %v9054 = vunpack.c.l.b16 %v8864
        %v9055 = vunpack.c.h.b16 %v8864
        %v9056 = vunpack.c.l.b16 %v8865
        %v9057 = vunpack.c.h.b16 %v8865
        %v9058 = vunpack.c.l.b16 %v8866
        %v9059 = vunpack.c.h.b16 %v8866
        %v9060 = vunpack.c.l.b16 %v8867
        %v9061 = vunpack.c.h.b16 %v8867
        %v9062 = vunpack.c.l.b16 %v8868
        %v9063 = vunpack.c.h.b16 %v8868
        %v9064 = vunpack.c.l.b16 %v8869
        %v9065 = vunpack.c.h.b16 %v8869
        %v9066 = vunpack.c.l.b16 %v8870
        %v9067 = vunpack.c.h.b16 %v8870
        %v9068 = vunpack.c.l.b16 %v8871
        %v9069 = vunpack.c.h.b16 %v8871
        %v9070 = vunpack.c.l.b16 %v8872
        %v9071 = vunpack.c.h.b16 %v8872
        %v9072 = vunpack.c.l.b16 %v8873
        %v9073 = vunpack.c.h.b16 %v8873
        %v9074 = vunpack.c.l.b16 %v8874
        %v9075 = vunpack.c.h.b16 %v8874
        %v9076 = vunpack.c.l.b16 %v8875
        %v9077 = vunpack.c.h.b16 %v8875
        %v9078 = vunpack.c.l.b16 %v8876
        %v9079 = vunpack.c.h.b16 %v8876
        %v9080 = vunpack.c.l.b16 %v8877
        %v9081 = vunpack.c.h.b16 %v8877
        %v9082 = vpack.c.b16 %v8956, %v8954
        %v9083 = vpack.c.b16 %v8957, %v8955
        %v9084 = vpack.c.b16 %v8960, %v8958
        %v9085 = vpack.c.b16 %v8961, %v8959
        %v9086 = vpack.c.b16 %v8964, %v8962
        %v9087 = vpack.c.b16 %v8965, %v8963
        %v9088 = vpack.c.b16 %v8968, %v8966
        %v9089 = vpack.c.b16 %v8969, %v8967
        %v9090 = vpack.c.b16 %v8972, %v8970
        %v9091 = vpack.c.b16 %v8973, %v8971
        %v9092 = vpack.c.b16 %v8976, %v8974
        %v9093 = vpack.c.b16 %v8977, %v8975
        %v9094 = vpack.c.b16 %v8980, %v8978
        %v9095 = vpack.c.b16 %v8981, %v8979
        %v9096 = vpack.c.b16 %v8984, %v8982
        %v9097 = vpack.c.b16 %v8985, %v8983
        %v9098 = vpack.c.b16 %v8988, %v8986
        %v9099 = vpack.c.b16 %v8989, %v8987
        %v9100 = vpack.c.b16 %v8992, %v8990
        %v9101 = vpack.c.b16 %v8993, %v8991
        %v9102 = vpack.c.b16 %v8996, %v8994
        %v9103 = vpack.c.b16 %v8997, %v8995
        %v9104 = vpack.c.b16 %v9000, %v8998
        %v9105 = vpack.c.b16 %v9001, %v8999
        %v9106 = vpack.c.b16 %v9004, %v9002
        %v9107 = vpack.c.b16 %v9005, %v9003
        %v9108 = vpack.c.b16 %v9008, %v9006
        %v9109 = vpack.c.b16 %v9009, %v9007
        %v9110 = vpack.c.b16 %v9012, %v9010
        %v9111 = vpack.c.b16 %v9013, %v9011
        %v9112 = vpack.c.b16 %v9016, %v9014
        %v9113 = vpack.c.b16 %v9017, %v9015
        %v9114 = vpack.c.b16 %v9020, %v9018
        %v9115 = vpack.c.b16 %v9021, %v9019
        %v9116 = vpack.c.b16 %v9024, %v9022
        %v9117 = vpack.c.b16 %v9025, %v9023
        %v9118 = vpack.c.b16 %v9028, %v9026
        %v9119 = vpack.c.b16 %v9029, %v9027
        %v9120 = vpack.c.b16 %v9032, %v9030
        %v9121 = vpack.c.b16 %v9033, %v9031
        %v9122 = vpack.c.b16 %v9036, %v9034
        %v9123 = vpack.c.b16 %v9037, %v9035
        %v9124 = vpack.c.b16 %v9040, %v9038
        %v9125 = vpack.c.b16 %v9041, %v9039
        %v9126 = vpack.c.b16 %v9044, %v9042
        %v9127 = vpack.c.b16 %v9045, %v9043
        %v9128 = vpack.c.b16 %v9048, %v9046
        %v9129 = vpack.c.b16 %v9049, %v9047
        %v9130 = vpack.c.b16 %v9052, %v9050
        %v9131 = vpack.c.b16 %v9053, %v9051
        %v9132 = vpack.c.b16 %v9056, %v9054
        %v9133 = vpack.c.b16 %v9057, %v9055
        %v9134 = vpack.c.b16 %v9060, %v9058
        %v9135 = vpack.c.b16 %v9061, %v9059
        %v9136 = vpack.c.b16 %v9064, %v9062
        %v9137 = vpack.c.b16 %v9065, %v9063
        %v9138 = vpack.c.b16 %v9068, %v9066
        %v9139 = vpack.c.b16 %v9069, %v9067
        %v9140 = vpack.c.b16 %v9072, %v9070
        %v9141 = vpack.c.b16 %v9073, %v9071
        %v9142 = vpack.c.b16 %v9076, %v9074
        %v9143 = vpack.c.b16 %v9077, %v9075
        %v9144 = vpack.c.b16 %v9080, %v9078
        %v9145 = vpack.c.b16 %v9081, %v9079
        %9210 = vmatprep.subr.bf16.mxu0 %v9097
        %9211 = vmatpush1.bf16.msra.mxu0 %v9096
        %9212 = vmatprep.subr.bf16.mxu0 %v9095
        %9213 = vmatpush1.bf16.msra.mxu0 %v9094
        %9214 = vmatprep.subr.bf16.mxu0 %v9093
        %9215 = vmatpush1.bf16.msra.mxu0 %v9092
        %9216 = vmatprep.subr.bf16.mxu0 %v9091
        %9217 = vmatpush1.bf16.msra.mxu0 %v9090
        %9218 = vmatprep.subr.bf16.mxu0 %v9089
        %9219 = vmatpush1.bf16.msra.mxu0 %v9088
        %9220 = vmatprep.subr.bf16.mxu0 %v9087
        %9221 = vmatpush1.bf16.msra.mxu0 %v9086
        %9222 = vmatprep.subr.bf16.mxu0 %v9085
        %9223 = vmatpush1.bf16.msra.mxu0 %v9084
        %9224 = vmatprep.subr.bf16.mxu0 %v9083
        %9225 = vmatpush1.bf16.msra.mxu0 %v9082
        %9226 = vmatprep.subr.bf16.mxu0 %v9113
        %9227 = vmatpush2.bf16.msra.mxu0 %v9112
        %9228 = vmatprep.subr.bf16.mxu0 %v9111
        %9229 = vmatpush2.bf16.msra.mxu0 %v9110
        %9230 = vmatprep.subr.bf16.mxu0 %v9109
        %9231 = vmatpush2.bf16.msra.mxu0 %v9108
        %9232 = vmatprep.subr.bf16.mxu0 %v9107
        %9233 = vmatpush2.bf16.msra.mxu0 %v9106
        %9234 = vmatprep.subr.bf16.mxu0 %v9105
        %9235 = vmatpush2.bf16.msra.mxu0 %v9104
        %9236 = vmatprep.subr.bf16.mxu0 %v9103
        %9237 = vmatpush2.bf16.msra.mxu0 %v9102
        %9238 = vmatprep.subr.bf16.mxu0 %v9101
        %9239 = vmatpush2.bf16.msra.mxu0 %v9100
        %9240 = vmatprep.subr.bf16.mxu0 %v9099
        %9241 = vmatpush2.bf16.msra.mxu0 %v9098
        %9242 = vmatprep.mubr.bf16.mxu0 %v8811
        %9243 = vmatmul.mubr.bf16.gmra.mxu0 %v8810
        %v9244 = vpop.f32.mrf.mxu0
        %v9245 = vadd.f32 %v8883, %v9244
        %v9246 = vpop.f32.mrf.mxu0
        %v9247 = vadd.f32 %v8887, %v9246
        %v9248 = vpop.f32.mrf.mxu0
        %v9249 = vpop.f32.mrf.mxu0
        %9250 = vdwg.mxu0
        %9251 = vmatprep.subr.bf16.mxu0 %v9129
        %9252 = vmatpush1.bf16.msra.mxu0 %v9128
        %9253 = vmatprep.subr.bf16.mxu0 %v9127
        %9254 = vmatpush1.bf16.msra.mxu0 %v9126
        %9255 = vmatprep.subr.bf16.mxu0 %v9125
        %9256 = vmatpush1.bf16.msra.mxu0 %v9124
        %9257 = vmatprep.subr.bf16.mxu0 %v9123
        %9258 = vmatpush1.bf16.msra.mxu0 %v9122
        %9259 = vmatprep.subr.bf16.mxu0 %v9121
        %9260 = vmatpush1.bf16.msra.mxu0 %v9120
        %9261 = vmatprep.subr.bf16.mxu0 %v9119
        %9262 = vmatpush1.bf16.msra.mxu0 %v9118
        %9263 = vmatprep.subr.bf16.mxu0 %v9117
        %9264 = vmatpush1.bf16.msra.mxu0 %v9116
        %9265 = vmatprep.subr.bf16.mxu0 %v9115
        %9266 = vmatpush1.bf16.msra.mxu0 %v9114
        %9267 = vmatprep.subr.bf16.mxu0 %v9145
        %9268 = vmatpush2.bf16.msra.mxu0 %v9144
        %9269 = vmatprep.subr.bf16.mxu0 %v9143
        %9270 = vmatpush2.bf16.msra.mxu0 %v9142
        %9271 = vmatprep.subr.bf16.mxu0 %v9141
        %9272 = vmatpush2.bf16.msra.mxu0 %v9140
        %9273 = vmatprep.subr.bf16.mxu0 %v9139
        %9274 = vmatpush2.bf16.msra.mxu0 %v9138
        %9275 = vmatprep.subr.bf16.mxu0 %v9137
        %9276 = vmatpush2.bf16.msra.mxu0 %v9136
        %9277 = vmatprep.subr.bf16.mxu0 %v9135
        %9278 = vmatpush2.bf16.msra.mxu0 %v9134
        %9279 = vmatprep.subr.bf16.mxu0 %v9133
        %9280 = vmatpush2.bf16.msra.mxu0 %v9132
        %9281 = vmatprep.subr.bf16.mxu0 %v9131
        %9282 = vmatpush2.bf16.msra.mxu0 %v9130
        %9283 = vmatprep.mubr.bf16.mxu0 %v8813
        %9284 = vmatmul.mubr.bf16.gmra.mxu0 %v8812
        %v9285 = vpop.f32.mrf.mxu0
        %v9286 = vadd.f32 %v9245, %v9285
        %v9287 = vpop.f32.mrf.mxu0
        %v9288 = vadd.f32 %v9247, %v9287
        %v9289 = vpop.f32.mrf.mxu0
        %v9290 = vpop.f32.mrf.mxu0
        %9291 = vdwg.mxu0
        %v9292 = vmax.f32 %v9286, 0.0
        %v9293 = vmax.f32 %v9288, 0.0
        %v9294 = vpack.c.bf16 %v9292, %v9292
        %v9295 = vpack.c.bf16 %v9293, %v9293
        %v9296 = vld [vmem:[#allocation5 + $0x40] sm:$0xf]
        %v9297 = vld [vmem:[#allocation5 + $0x44] sm:$0xf]
        %v9298 = vld [vmem:[#allocation5 + $0x48] sm:$0xf]
        %v9299 = vld [vmem:[#allocation5 + $0x4c] sm:$0xf]
        %v9300 = vld [vmem:[#allocation5 + $0x50] sm:$0xf]
        %v9301 = vld [vmem:[#allocation5 + $0x54] sm:$0xf]
        %v9302 = vld [vmem:[#allocation5 + $0x58] sm:$0xf]
        %v9303 = vld [vmem:[#allocation5 + $0x5c] sm:$0xf]
        %v9304 = vld [vmem:[#allocation5 + $0x60] sm:$0xf]
        %v9305 = vld [vmem:[#allocation5 + $0x64] sm:$0xf]
        %v9306 = vld [vmem:[#allocation5 + $0x68] sm:$0xf]
        %v9307 = vld [vmem:[#allocation5 + $0x6c] sm:$0xf]
        %v9308 = vld [vmem:[#allocation5 + $0x70] sm:$0xf]
        %v9309 = vld [vmem:[#allocation5 + $0x74] sm:$0xf]
        %v9310 = vld [vmem:[#allocation5 + $0x78] sm:$0xf]
        %v9311 = vld [vmem:[#allocation5 + $0x7c] sm:$0xf]
        %v9312 = vld [vmem:[#allocation5 + $0x80] sm:$0xf]
        %v9313 = vld [vmem:[#allocation5 + $0x84] sm:$0xf]
        %v9314 = vld [vmem:[#allocation5 + $0x88] sm:$0xf]
        %v9315 = vld [vmem:[#allocation5 + $0x8c] sm:$0xf]
        %v9316 = vld [vmem:[#allocation5 + $0x90] sm:$0xf]
        %v9317 = vld [vmem:[#allocation5 + $0x94] sm:$0xf]
        %v9318 = vld [vmem:[#allocation5 + $0x98] sm:$0xf]
        %v9319 = vld [vmem:[#allocation5 + $0x9c] sm:$0xf]
        %v9320 = vld [vmem:[#allocation5 + $0xa0] sm:$0xf]
        %v9321 = vld [vmem:[#allocation5 + $0xa4] sm:$0xf]
        %v9322 = vld [vmem:[#allocation5 + $0xa8] sm:$0xf]
        %v9323 = vld [vmem:[#allocation5 + $0xac] sm:$0xf]
        %v9324 = vld [vmem:[#allocation5 + $0xb0] sm:$0xf]
        %v9325 = vld [vmem:[#allocation5 + $0xb4] sm:$0xf]
        %v9326 = vld [vmem:[#allocation5 + $0xb8] sm:$0xf]
        %v9327 = vld [vmem:[#allocation5 + $0xbc] sm:$0xf]
        %v9328 = vld [vmem:[#allocation11 + $0x1f] sm:$0x1]
        %v9330 = vlaneseq
        %v9331 = vshrl.u32 %v9330, 7
        %v9332 = vsub.s32 0, %v9331
        %v9333 = vrot.slane %v9328, %v9332
        %v9367 = vunpack.c.l.b16 %v9296
        %v9368 = vunpack.c.l.b16 %v9297
        %v9369 = vunpack.c.l.b16 %v9298
        %v9370 = vunpack.c.l.b16 %v9299
        %v9371 = vunpack.c.l.b16 %v9300
        %v9372 = vunpack.c.l.b16 %v9301
        %v9373 = vunpack.c.l.b16 %v9302
        %v9374 = vunpack.c.l.b16 %v9303
        %v9375 = vunpack.c.l.b16 %v9304
        %v9376 = vunpack.c.l.b16 %v9305
        %v9377 = vunpack.c.l.b16 %v9306
        %v9378 = vunpack.c.l.b16 %v9307
        %v9379 = vunpack.c.l.b16 %v9308
        %v9380 = vunpack.c.l.b16 %v9309
        %v9381 = vunpack.c.l.b16 %v9310
        %v9382 = vunpack.c.l.b16 %v9311
        %v9383 = vunpack.c.l.b16 %v9312
        %v9384 = vunpack.c.l.b16 %v9313
        %v9385 = vunpack.c.l.b16 %v9314
        %v9386 = vunpack.c.l.b16 %v9315
        %v9387 = vunpack.c.l.b16 %v9316
        %v9388 = vunpack.c.l.b16 %v9317
        %v9389 = vunpack.c.l.b16 %v9318
        %v9390 = vunpack.c.l.b16 %v9319
        %v9391 = vunpack.c.l.b16 %v9320
        %v9392 = vunpack.c.l.b16 %v9321
        %v9393 = vunpack.c.l.b16 %v9322
        %v9394 = vunpack.c.l.b16 %v9323
        %v9395 = vunpack.c.l.b16 %v9324
        %v9396 = vunpack.c.l.b16 %v9325
        %v9397 = vunpack.c.l.b16 %v9326
        %v9398 = vunpack.c.l.b16 %v9327
        %v9399 = vpack.c.b16 %v9368, %v9367
        %v9400 = vpack.c.b16 %v9370, %v9369
        %v9401 = vpack.c.b16 %v9372, %v9371
        %v9402 = vpack.c.b16 %v9374, %v9373
        %v9403 = vpack.c.b16 %v9376, %v9375
        %v9404 = vpack.c.b16 %v9378, %v9377
        %v9405 = vpack.c.b16 %v9380, %v9379
        %v9406 = vpack.c.b16 %v9382, %v9381
        %v9407 = vpack.c.b16 %v9384, %v9383
        %v9408 = vpack.c.b16 %v9386, %v9385
        %v9409 = vpack.c.b16 %v9388, %v9387
        %v9410 = vpack.c.b16 %v9390, %v9389
        %v9411 = vpack.c.b16 %v9392, %v9391
        %v9412 = vpack.c.b16 %v9394, %v9393
        %v9413 = vpack.c.b16 %v9396, %v9395
        %v9414 = vpack.c.b16 %v9398, %v9397
        %9431 = vmatprep.subr.bf16.mxu0 0
        %9432 = vmatpush1.bf16.msra.mxu0 %v9406
        %9433 = vmatprep.subr.bf16.mxu0 0
        %9434 = vmatpush1.bf16.msra.mxu0 %v9405
        %9435 = vmatprep.subr.bf16.mxu0 0
        %9436 = vmatpush1.bf16.msra.mxu0 %v9404
        %9437 = vmatprep.subr.bf16.mxu0 0
        %9438 = vmatpush1.bf16.msra.mxu0 %v9403
        %9439 = vmatprep.subr.bf16.mxu0 0
        %9440 = vmatpush1.bf16.msra.mxu0 %v9402
        %9441 = vmatprep.subr.bf16.mxu0 0
        %9442 = vmatpush1.bf16.msra.mxu0 %v9401
        %9443 = vmatprep.subr.bf16.mxu0 0
        %9444 = vmatpush1.bf16.msra.mxu0 %v9400
        %9445 = vmatprep.subr.bf16.mxu0 0
        %9446 = vmatpush1.bf16.msra.mxu0 %v9399
        %9447 = vmatprep.subr.bf16.mxu0 0
        %9448 = vmatpush2.bf16.msra.mxu0 %v9414
        %9449 = vmatprep.subr.bf16.mxu0 0
        %9450 = vmatpush2.bf16.msra.mxu0 %v9413
        %9451 = vmatprep.subr.bf16.mxu0 0
        %9452 = vmatpush2.bf16.msra.mxu0 %v9412
        %9453 = vmatprep.subr.bf16.mxu0 0
        %9454 = vmatpush2.bf16.msra.mxu0 %v9411
        %9455 = vmatprep.subr.bf16.mxu0 0
        %9456 = vmatpush2.bf16.msra.mxu0 %v9410
        %9457 = vmatprep.subr.bf16.mxu0 0
        %9458 = vmatpush2.bf16.msra.mxu0 %v9409
        %9459 = vmatprep.subr.bf16.mxu0 0
        %9460 = vmatpush2.bf16.msra.mxu0 %v9408
        %9461 = vmatprep.subr.bf16.mxu0 0
        %9462 = vmatpush2.bf16.msra.mxu0 %v9407
        %9463 = vmatprep.mubr.bf16.mxu0 %v9295
        %9464 = vmatmul.mubr.bf16.gmra.mxu0 %v9294
        %v9465 = vpop.f32.mrf.mxu0
        %v9466 = vadd.f32 %v9333, %v9465
        %v9467 = vpop.f32.mrf.mxu0
        %v9468 = vpop.f32.mrf.mxu0
        %v9469 = vpop.f32.mrf.mxu0
        %9470 = vdwg.mxu0
        %v9471 = vmax.f32 %v9466, 0.0
        %v9472 = vpack.c.bf16 %v9471, %v9471
        %v9473 = vld [vmem:[#allocation5 + $0xc0] sm:$0xf]
        %v9474 = vld [vmem:[#allocation5 + $0xc4] sm:$0xf]
        %v9475 = vld [vmem:[#allocation5 + $0xc8] sm:$0xf]
        %v9476 = vld [vmem:[#allocation5 + $0xcc] sm:$0xf]
        %v9477 = vld [vmem:[#allocation5 + $0xd0] sm:$0xf]
        %v9478 = vld [vmem:[#allocation5 + $0xd4] sm:$0xf]
        %v9479 = vld [vmem:[#allocation5 + $0xd8] sm:$0xf]
        %v9480 = vld [vmem:[#allocation5 + $0xdc] sm:$0xf]
        %v9481 = vld [vmem:[#allocation5 + $0xe0] sm:$0xf]
        %v9482 = vld [vmem:[#allocation5 + $0xe4] sm:$0xf]
        %v9483 = vld [vmem:[#allocation5 + $0xe8] sm:$0xf]
        %v9484 = vld [vmem:[#allocation5 + $0xec] sm:$0xf]
        %v9485 = vld [vmem:[#allocation5 + $0xf0] sm:$0xf]
        %v9486 = vld [vmem:[#allocation5 + $0xf4] sm:$0xf]
        %v9487 = vld [vmem:[#allocation5 + $0xf8] sm:$0xf]
        %v9488 = vld [vmem:[#allocation5 + $0xfc] sm:$0xf]
        %v9489 = vld [vmem:[#allocation11 + $0x20] sm:$0x1]
        %v9491 = vlaneseq
        %v9492 = vshrl.u32 %v9491, 7
        %v9493 = vsub.s32 0, %v9492
        %v9494 = vrot.slane %v9489, %v9493
        %v9512 = vunpack.c.l.b16 %v9473
        %v9513 = vunpack.c.l.b16 %v9474
        %v9514 = vunpack.c.l.b16 %v9475
        %v9515 = vunpack.c.l.b16 %v9476
        %v9516 = vunpack.c.l.b16 %v9477
        %v9517 = vunpack.c.l.b16 %v9478
        %v9518 = vunpack.c.l.b16 %v9479
        %v9519 = vunpack.c.l.b16 %v9480
        %v9520 = vunpack.c.l.b16 %v9481
        %v9521 = vunpack.c.l.b16 %v9482
        %v9522 = vunpack.c.l.b16 %v9483
        %v9523 = vunpack.c.l.b16 %v9484
        %v9524 = vunpack.c.l.b16 %v9485
        %v9525 = vunpack.c.l.b16 %v9486
        %v9526 = vunpack.c.l.b16 %v9487
        %v9527 = vunpack.c.l.b16 %v9488
        %v9528 = vpack.c.b16 %v9513, %v9512
        %v9529 = vpack.c.b16 %v9515, %v9514
        %v9530 = vpack.c.b16 %v9517, %v9516
        %v9531 = vpack.c.b16 %v9519, %v9518
        %v9532 = vpack.c.b16 %v9521, %v9520
        %v9533 = vpack.c.b16 %v9523, %v9522
        %v9534 = vpack.c.b16 %v9525, %v9524
        %v9535 = vpack.c.b16 %v9527, %v9526
        %9544 = vmatprep.subr.bf16.mxu0 0
        %9545 = vmatpush1.bf16.msra.mxu0 %v9535
        %9546 = vmatprep.subr.bf16.mxu0 0
        %9547 = vmatpush1.bf16.msra.mxu0 %v9534
        %9548 = vmatprep.subr.bf16.mxu0 0
        %9549 = vmatpush1.bf16.msra.mxu0 %v9533
        %9550 = vmatprep.subr.bf16.mxu0 0
        %9551 = vmatpush1.bf16.msra.mxu0 %v9532
        %9552 = vmatprep.subr.bf16.mxu0 0
        %9553 = vmatpush1.bf16.msra.mxu0 %v9531
        %9554 = vmatprep.subr.bf16.mxu0 0
        %9555 = vmatpush1.bf16.msra.mxu0 %v9530
        %9556 = vmatprep.subr.bf16.mxu0 0
        %9557 = vmatpush1.bf16.msra.mxu0 %v9529
        %9558 = vmatprep.subr.bf16.mxu0 0
        %9559 = vmatpush1.bf16.msra.mxu0 %v9528
        %9560 = vmatprep.subr.bf16.mxu0 0
        %9561 = vmatpush2.bf16.msra.mxu0 0
        %9562 = vmatprep.subr.bf16.mxu0 0
        %9563 = vmatpush2.bf16.msra.mxu0 0
        %9564 = vmatprep.subr.bf16.mxu0 0
        %9565 = vmatpush2.bf16.msra.mxu0 0
        %9566 = vmatprep.subr.bf16.mxu0 0
        %9567 = vmatpush2.bf16.msra.mxu0 0
        %9568 = vmatprep.subr.bf16.mxu0 0
        %9569 = vmatpush2.bf16.msra.mxu0 0
        %9570 = vmatprep.subr.bf16.mxu0 0
        %9571 = vmatpush2.bf16.msra.mxu0 0
        %9572 = vmatprep.subr.bf16.mxu0 0
        %9573 = vmatpush2.bf16.msra.mxu0 0
        %9574 = vmatprep.subr.bf16.mxu0 0
        %9575 = vmatpush2.bf16.msra.mxu0 0
        %9576 = vmatprep.mubr.bf16.mxu0 0
        %9577 = vmatmul.mubr.bf16.gmra.mxu0 %v9472
        %v9578 = vpop.f32.mrf.mxu0
        %v9579 = vadd.f32 %v9494, %v9578
        %v9580 = vpop.f32.mrf.mxu0
        %v9581 = vpop.f32.mrf.mxu0
        %v9582 = vpop.f32.mrf.mxu0
        %9583 = vdwg.mxu0
        %v9584 = vmax.f32 %v9579, 0.0
        %v9585 = vpack.c.bf16 %v9584, %v9584
        %v9586 = vld [vmem:[#allocation5 + $0x100] sm:$0xf]
        %v9587 = vld [vmem:[#allocation5 + $0x104] sm:$0xf]
        %v9588 = vld [vmem:[#allocation5 + $0x108] sm:$0xf]
        %v9589 = vld [vmem:[#allocation5 + $0x10c] sm:$0xf]
        %v9590 = vld [vmem:[#allocation5 + $0x110] sm:$0xf]
        %v9591 = vld [vmem:[#allocation5 + $0x114] sm:$0xf]
        %v9592 = vld [vmem:[#allocation5 + $0x118] sm:$0xf]
        %v9593 = vld [vmem:[#allocation5 + $0x11c] sm:$0xf]
        %v9594 = vld [vmem:[#allocation11 + $0x21] sm:$0x1]
        %v9596 = vlaneseq
        %v9597 = vshrl.u32 %v9596, 7
        %v9598 = vsub.s32 0, %v9597
        %v9599 = vrot.slane %v9594, %v9598
        %v9609 = vunpack.c.l.b16 %v9586
        %v9610 = vunpack.c.l.b16 %v9587
        %v9611 = vunpack.c.l.b16 %v9588
        %v9612 = vunpack.c.l.b16 %v9589
        %v9613 = vunpack.c.l.b16 %v9590
        %v9614 = vunpack.c.l.b16 %v9591
        %v9615 = vunpack.c.l.b16 %v9592
        %v9616 = vunpack.c.l.b16 %v9593
        %v9617 = vpack.c.b16 %v9610, %v9609
        %v9618 = vpack.c.b16 %v9612, %v9611
        %v9619 = vpack.c.b16 %v9614, %v9613
        %v9620 = vpack.c.b16 %v9616, %v9615
        %v9626 = vsel %vm517, %v9585, 0
        %9628 = vmatprep.subr.bf16.mxu0 0
        %9629 = vmatpush1.bf16.msra.mxu0 0
        %9630 = vmatprep.subr.bf16.mxu0 0
        %9631 = vmatpush1.bf16.msra.mxu0 0
        %9632 = vmatprep.subr.bf16.mxu0 0
        %9633 = vmatpush1.bf16.msra.mxu0 0
        %9634 = vmatprep.subr.bf16.mxu0 0
        %9635 = vmatpush1.bf16.msra.mxu0 0
        %9636 = vmatprep.subr.bf16.mxu0 0
        %9637 = vmatpush1.bf16.msra.mxu0 %v9620
        %9638 = vmatprep.subr.bf16.mxu0 0
        %9639 = vmatpush1.bf16.msra.mxu0 %v9619
        %9640 = vmatprep.subr.bf16.mxu0 0
        %9641 = vmatpush1.bf16.msra.mxu0 %v9618
        %9642 = vmatprep.subr.bf16.mxu0 0
        %9643 = vmatpush1.bf16.msra.mxu0 %v9617
        %9644 = vmatprep.subr.bf16.mxu0 0
        %9645 = vmatpush2.bf16.msra.mxu0 0
        %9646 = vmatprep.subr.bf16.mxu0 0
        %9647 = vmatpush2.bf16.msra.mxu0 0
        %9648 = vmatprep.subr.bf16.mxu0 0
        %9649 = vmatpush2.bf16.msra.mxu0 0
        %9650 = vmatprep.subr.bf16.mxu0 0
        %9651 = vmatpush2.bf16.msra.mxu0 0
        %9652 = vmatprep.subr.bf16.mxu0 0
        %9653 = vmatpush2.bf16.msra.mxu0 0
        %9654 = vmatprep.subr.bf16.mxu0 0
        %9655 = vmatpush2.bf16.msra.mxu0 0
        %9656 = vmatprep.subr.bf16.mxu0 0
        %9657 = vmatpush2.bf16.msra.mxu0 0
        %9658 = vmatprep.subr.bf16.mxu0 0
        %9659 = vmatpush2.bf16.msra.mxu0 0
        %9660 = vmatprep.mubr.bf16.mxu0 0
        %9661 = vmatmul.mubr.bf16.gmra.mxu0 %v9626
        %v9662 = vpop.f32.mrf.mxu0
        %v9663 = vadd.f32 %v9599, %v9662
        %v9664 = vpop.f32.mrf.mxu0
        %v9665 = vpop.f32.mrf.mxu0
        %v9666 = vpop.f32.mrf.mxu0
        %9667 = vdwg.mxu0
        %v9668 = vmax.f32 %v9663, 0.0
        %v9669 = vpack.c.bf16 %v9668, %v9668
        %v9670 = vld [vmem:[#allocation5 + $0x120] sm:$0xf]
        %v9671 = vld [vmem:[#allocation5 + $0x124] sm:$0xf]
        %v9672 = vld [vmem:[#allocation5 + $0x128] sm:$0xf]
        %v9673 = vld [vmem:[#allocation5 + $0x12c] sm:$0xf]
        %v9674 = vld [vmem:[#allocation11 + $0x22] sm:$0x1]
        %v9676 = vlaneseq
        %v9677 = vshrl.u32 %v9676, 7
        %v9678 = vsub.s32 0, %v9677
        %v9679 = vrot.slane %v9674, %v9678
        %v9685 = vunpack.c.l.b16 %v9670
        %v9686 = vunpack.c.l.b16 %v9671
        %v9687 = vunpack.c.l.b16 %v9672
        %v9688 = vunpack.c.l.b16 %v9673
        %v9689 = vpack.c.b16 %v9686, %v9685
        %v9690 = vpack.c.b16 %v9688, %v9687
        %v9694 = vsel %vm364, %v9669, 0
        %9696 = vmatprep.subr.bf16.mxu0 0
        %9697 = vmatpush1.bf16.msra.mxu0 0
        %9698 = vmatprep.subr.bf16.mxu0 0
        %9699 = vmatpush1.bf16.msra.mxu0 0
        %9700 = vmatprep.subr.bf16.mxu0 0
        %9701 = vmatpush1.bf16.msra.mxu0 0
        %9702 = vmatprep.subr.bf16.mxu0 0
        %9703 = vmatpush1.bf16.msra.mxu0 0
        %9704 = vmatprep.subr.bf16.mxu0 0
        %9705 = vmatpush1.bf16.msra.mxu0 0
        %9706 = vmatprep.subr.bf16.mxu0 0
        %9707 = vmatpush1.bf16.msra.mxu0 0
        %9708 = vmatprep.subr.bf16.mxu0 0
        %9709 = vmatpush1.bf16.msra.mxu0 %v9690
        %9710 = vmatprep.subr.bf16.mxu0 0
        %9711 = vmatpush1.bf16.msra.mxu0 %v9689
        %9712 = vmatprep.subr.bf16.mxu0 0
        %9713 = vmatpush2.bf16.msra.mxu0 0
        %9714 = vmatprep.subr.bf16.mxu0 0
        %9715 = vmatpush2.bf16.msra.mxu0 0
        %9716 = vmatprep.subr.bf16.mxu0 0
        %9717 = vmatpush2.bf16.msra.mxu0 0
        %9718 = vmatprep.subr.bf16.mxu0 0
        %9719 = vmatpush2.bf16.msra.mxu0 0
        %9720 = vmatprep.subr.bf16.mxu0 0
        %9721 = vmatpush2.bf16.msra.mxu0 0
        %9722 = vmatprep.subr.bf16.mxu0 0
        %9723 = vmatpush2.bf16.msra.mxu0 0
        %9724 = vmatprep.subr.bf16.mxu0 0
        %9725 = vmatpush2.bf16.msra.mxu0 0
        %9726 = vmatprep.subr.bf16.mxu0 0
        %9727 = vmatpush2.bf16.msra.mxu0 0
        %9728 = vmatprep.mubr.bf16.mxu0 0
        %9729 = vmatmul.mubr.bf16.gmra.mxu0 %v9694
        %v9730 = vpop.f32.mrf.mxu0
        %v9731 = vadd.f32 %v9679, %v9730
        %v9732 = vpop.f32.mrf.mxu0
        %v9733 = vpop.f32.mrf.mxu0
        %v9734 = vpop.f32.mrf.mxu0
        %9735 = vdwg.mxu0
        %v9736 = vrot.slane %v9731, 4
        %v9737 = vadd.f32 %v9731, %v9736
        %v9738 = vrot.slane %v9737, 2
        %v9739 = vadd.f32 %v9737, %v9738
        %v9740 = vrot.slane %v9739, 1
        %v9741 = vadd.f32 %v9739, %v9740
        %9742 = vst [vmem:[%s337] sm:$0xff] %v9741
        %s9743 = sand.u32 %s165, 1
        %s9744 = scalar_lea.sflag [#allocation4], %s9743
        %s9745 = sand.u32 %s165, 1
        %s9746 = smul.addr %s9745, 8
        %s9747 = scalar_lea.vmem [#allocation13], %s9746
        // Predicated region
        $region69: #{tpu_custom_call.1} parent=43 // pred_check
          %p9748 = pneg %p175
        $region70: #{tpu_custom_call.1} parent=43 // pred_check_branch
          %9750 = sbr.rel (%p9748) target = $region72
        $region71: #{tpu_custom_call.1} parent=43 // pred_region
          %s9752 = ssub.s32 128, 128
          %9753 = vsyncadd %s9744, %s9752
          %s9754 = smul.addr %s26, 128
          %s9755 = scalar_lea.hbm %s6, %s9754
          %s9757 = sshll.u32 %s9747, 4
          %s9758 = int_to_ptr.vmem [resolvable:$true] %s9757
          %9760 = dma.vmem_to_hbm [thread:$0]  %s9758, 128, %s9755, %s9744
        $region72: #{tpu_custom_call.1} parent=43 // pred_fallthru
          _
      $region44: #{tpu_custom_call.1} parent=5 // pred_fallthru
        _
      %p9761 = scmp.le.s32.totalorder 2, %s21
      // Predicated region
      $region73: #{tpu_custom_call.1} parent=5 // pred_check
        %p9762 = pneg %p9761
      $region74: #{tpu_custom_call.1} parent=5 // pred_check_branch
        %9764 = sbr.rel (%p9762) target = $region76
      $region75: #{tpu_custom_call.1} parent=5 // pred_region
        %s9765 = ssub.s32 %s21, 2
        // Predicated region
        $region77: #{tpu_custom_call.1} parent=75 // pred_check
          %p9766 = pneg %p181
        $region78: #{tpu_custom_call.1} parent=75 // pred_check_branch
          %9768 = sbr.rel (%p9766) target = $region80
        $region79: #{tpu_custom_call.1} parent=75 // pred_region
          %s9769 = sand.u32 %s166, 1
          %s9770 = scalar_lea.sflag [#allocation4], %s9769
          %s9771 = sand.u32 %s166, 1
          %s9772 = smul.addr %s9771, 8
          %s9773 = scalar_lea.vmem [#allocation13], %s9772
          %9774 = dma.done %s9770, 128
        $region80: #{tpu_custom_call.1} parent=75 // pred_fallthru
          _
      $region76: #{tpu_custom_call.1} parent=5 // pred_fallthru
        _
    $region6: #{tpu_custom_call.1} parent=1 // loop_footer
      %s25 = sadd.s32 1, %s21
    $region7: #{tpu_custom_call.1} parent=1 // loop_footer_branch
      %20 = sbr.rel target = $region3
    $region8: #{tpu_custom_call.1} parent=1 // loop_exit
      _
    %9775 = vsyncpa [#allocation3], 1
    %s9776 = scalar_lea.sflag [#allocation3], 1
    %9777 = vsyncpa %s9776, 1
    %9778 = vsyncpa [#allocation6], 1
    %9779 = vsyncpa [#allocation9], 1
    %9780 = vsyncpa [#allocation12], 1
    %9781 = vsyncpa [#allocation4], 1
    %s9782 = scalar_lea.sflag [#allocation4], 1
    %9783 = vsyncpa %s9782, 1

</llo_original>
